<compile_context>
chip_gen: v7x
topology: tpu7x:2x2x1
jax: 0.10.0
libtpu: 0.0.40
codegen_flags: <defaults>
</compile_context>

<pallas_src>
import functools

import numpy as np
import jax
import jax.numpy as jnp
from jax.experimental import pallas as pl
from jax.experimental.pallas import tpu as pltpu


def _fused_mlp_kernel(x_ref, ss_ref, *rest, n_layers, out_dims):
    """Entire MLP in a single kernel invocation.

    Argument layout (pallas_call order: inputs, outputs, scratch):
      x_ref            f32  (B_pad, 128)   VMEM (auto-DMA)
      ss_ref           f32  (2, sum_N)     VMEM: row0 = per-column int8 scales,
                                           row1 = folded bias + BN shift
      rest[0:L]        int8 (K_i, N_i)     raw HBM refs (memory_space=pl.ANY)
      rest[L]          f32  (B_pad, 128)   output (VMEM)
      rest[L+1:2L+1]   int8 (K_i, N_i)     VMEM scratch (DMA landing buffers)
      rest[2L+1]       DMA semaphores, shape (L,)
    """
    w_hbm = rest[:n_layers]
    o_ref = rest[n_layers]
    w_vmem = rest[n_layers + 1:2 * n_layers + 1]
    sem = rest[2 * n_layers + 1]

    # Kick off every weight DMA at kernel entry; each layer waits only on its own
    # copy so dequant + matmul of layer i overlaps the DMAs of layers > i.
    copies = []
    for i in range(n_layers):
        cp = pltpu.make_async_copy(w_hbm[i], w_vmem[i], sem.at[i])
        cp.start()
        copies.append(cp)

    h = x_ref[...].astype(jnp.bfloat16)
    off = 0
    acc = None
    for i in range(n_layers):
        copies[i].wait()
        # int8 -> bf16 dequant on the VPU (exact: |q| <= 127 is representable in
        # bf16); the per-column scale is applied to the f32 accumulator below,
        # so the MXU always sees plain bf16 tiles (portable v5e/v6e/v7x).
        w = w_vmem[i][...].astype(jnp.bfloat16)
        acc = jnp.dot(h, w, preferred_element_type=jnp.float32)
        n_i = out_dims[i]
        qscale = ss_ref[0:1, off:off + n_i]
        shift = ss_ref[1:2, off:off + n_i]
        acc = acc * qscale + shift              # dequant scale + folded bias/BN shift
        if i < n_layers - 1:
            h = jnp.maximum(acc, 0.0).astype(jnp.bfloat16)   # ReLU; Dropout(eval)=id
        off += n_i
    o_ref[...] = acc                            # last layer: plain Linear


def fused_mlp(x, weights_q, ss):
    """Single gridless pallas_call: int8 weights streamed HBM->VMEM with manual
    async copies, activations resident in VMEM/vregs for all 10 layers."""
    n_layers = len(weights_q)
    B = x.shape[0]
    out_dims = tuple(int(w.shape[1]) for w in weights_q)
    n_out = out_dims[-1]

    kern = functools.partial(_fused_mlp_kernel, n_layers=n_layers, out_dims=out_dims)
    vmem_spec = pl.BlockSpec(memory_space=pltpu.MemorySpace.VMEM)
    hbm_spec = pl.BlockSpec(memory_space=pl.ANY)

    weight_bytes = sum(int(np.prod(w.shape)) for w in weights_q)          # int8
    flops = 2 * B * sum(int(w.shape[0]) * int(w.shape[1]) for w in weights_q)
    bytes_accessed = weight_bytes + int(np.prod(ss.shape)) * 4 \
        + int(np.prod(x.shape)) * 4 + B * n_out * 4

    return pl.pallas_call(
        kern,
        out_shape=jax.ShapeDtypeStruct((B, n_out), jnp.float32),
        in_specs=[vmem_spec, vmem_spec] + [hbm_spec] * n_layers,
        out_specs=vmem_spec,
        scratch_shapes=(
            [pltpu.VMEM(tuple(int(d) for d in w.shape), jnp.int8) for w in weights_q]
            + [pltpu.SemaphoreType.DMA((n_layers,))]
        ),
        compiler_params=pltpu.CompilerParams(
            # ~10 MiB actually used (single-buffered int8 weights + activations);
            # 48 MiB stays under v7x's 64 MiB physical VMEM with headroom.
            vmem_limit_bytes=48 * 1024 * 1024,
        ),
        cost_estimate=pl.CostEstimate(
            flops=flops, transcendentals=0, bytes_accessed=bytes_accessed),
    )(x, ss, *weights_q)


def init_mlp_params(key, dims, bn_eps=1e-5):
    """PyTorch-style init with bias/eval-BN folded in, then per-output-channel
    symmetric int8 quantization.

    Returns:
      weights_q : list of int8 (K_i_pad, N_i_pad) quantized weights
      ss        : f32 (2, sum_N_pad) — row0 = int8 dequant scales, row1 = shifts
      weights_f32, shifts : unquantized padded f32 tensors (for the reference)
    """
    n_layers = len(dims) - 1
    weights_q, weights_f32, qscales, shifts = [], [], [], []
    for i in range(n_layers):
        k_in, k_out = dims[i], dims[i + 1]
        key, kw, kb = jax.random.split(key, 3)
        bound = 1.0 / np.sqrt(k_in)
        w = jax.random.uniform(kw, (k_in, k_out), jnp.float32, -bound, bound)
        b = jax.random.uniform(kb, (1, k_out), jnp.float32, -bound, bound)

        if i < n_layers - 1:
            # BatchNorm1d at init (eval): gamma=1, beta=0, running_mean=0, running_var=1
            bn_scale = jnp.full((1, k_out), 1.0 / np.sqrt(1.0 + bn_eps), jnp.float32)
            bn_shift = jnp.zeros((1, k_out), jnp.float32)
        else:
            bn_scale = jnp.ones((1, k_out), jnp.float32)
            bn_shift = jnp.zeros((1, k_out), jnp.float32)

        # Fold: (x@W + b) * s + t  ==  x@(W*s) + (s*b + t)
        w_f = w * bn_scale
        shift_f = (bn_scale * b + bn_shift).astype(jnp.float32)

        # Zero-pad in/out dims to multiples of 128 (lane-dense MXU tiles & stores).
        k_pad = (-k_in) % 128
        n_pad = (-k_out) % 128
        if k_pad or n_pad:
            w_f = jnp.pad(w_f, ((0, k_pad), (0, n_pad)))
        if n_pad:
            shift_f = jnp.pad(shift_f, ((0, 0), (0, n_pad)))

        # Per-output-channel symmetric int8 quantization (scale lands in the epilogue).
        col_max = jnp.max(jnp.abs(w_f), axis=0, keepdims=True)
        qscale = jnp.where(col_max > 0, col_max / 127.0, 1.0).astype(jnp.float32)
        w_q = jnp.clip(jnp.round(w_f / qscale), -127, 127).astype(jnp.int8)

        weights_q.append(w_q)
        weights_f32.append(w_f)
        qscales.append(qscale)
        shifts.append(shift_f)

    ss = jnp.concatenate([jnp.concatenate(qscales, axis=1),
                          jnp.concatenate(shifts, axis=1)], axis=0)   # (2, sum_N)
    return weights_q, ss, weights_f32, shifts


@functools.partial(jax.jit, static_argnames=("out_dim",))
def my_model_linear_forward(data, weights_q, ss, out_dim):
    """MyModel('linear').forward: attack_model(data.view(B,-1)).reshape(B, out_dim)."""
    B = data.shape[0]
    x = data.reshape(B, -1).astype(jnp.float32)
    k_in_pad = weights_q[0].shape[0]
    if x.shape[1] < k_in_pad:
        x = jnp.pad(x, ((0, 0), (0, k_in_pad - x.shape[1])))
    # Pad batch to a multiple of 16 so the bf16 LHS fills whole (16,128) vreg tiles.
    b_pad = (-B) % 16
    if b_pad:
        x = jnp.pad(x, ((0, b_pad), (0, 0)))
    out = fused_mlp(x, weights_q, ss)
    return out[:B, :out_dim].reshape(B, out_dim)


def _reference_quantized(x_flat_padded, weights_q, ss, out_dim):
    """Pure-JAX reference with identical int8 weights + bf16 activation rounding."""
    h = x_flat_padded.astype(jnp.bfloat16).astype(jnp.float32)
    off = 0
    acc = None
    for i, w_q in enumerate(weights_q):
        n_i = w_q.shape[1]
        acc = h @ w_q.astype(jnp.float32)
        acc = acc * ss[0:1, off:off + n_i] + ss[1:2, off:off + n_i]
        if i < len(weights_q) - 1:
            h = jnp.maximum(acc, 0.0).astype(jnp.bfloat16).astype(jnp.float32)
        off += n_i
    return acc[:, :out_dim]


def _reference_f32(x_flat_padded, weights_f32, shifts, out_dim):
    """Unquantized f32 reference (documents the int8/bf16 error budget)."""
    h = x_flat_padded
    acc = None
    for i, (w, s) in enumerate(zip(weights_f32, shifts)):
        acc = h @ w + s
        if i < len(weights_f32) - 1:
            h = jnp.maximum(acc, 0.0)
    return acc[:, :out_dim]


if __name__ == "__main__":
    # MyModel('linear', n=4, m=2, p=3, batch_size=8)
    n, m, p, batch_size = 4, 2, 3, 8
    linear_input_dim = n * (n + 2 * m + p + 1)      # 48
    linear_output_dim = n ** 2 + 2 * m ** 2         # 24
    dims = [linear_input_dim, 128, 256, 512, 1024, 2048, 1024, 512, 256, 128,
            linear_output_dim]

    key = jax.random.PRNGKey(0)
    key, k_data = jax.random.split(key)
    data = jax.random.normal(k_data, (batch_size, linear_input_dim), dtype=jnp.float32)

    weights_q, ss, weights_f32, shifts = init_mlp_params(key, dims)

    out = my_model_linear_forward(data, weights_q, ss, linear_output_dim)
    out = jax.block_until_ready(out)
    assert out.shape == (batch_size, linear_output_dim), out.shape

    # 1) Tight check against a pure-JAX reference using the SAME int8 weights and
    #    bf16 activation rounding (validates the kernel itself).
    x_flat = jnp.pad(data.reshape(batch_size, -1),
                     ((0, 0), (0, weights_q[0].shape[0] - linear_input_dim)))
    ref_q = _reference_quantized(x_flat, weights_q, ss, linear_output_dim)
    np.testing.assert_allclose(np.asarray(out), np.asarray(ref_q),
                               rtol=2e-2, atol=1e-3)

    # 2) Loose check against the unquantized f32 model: explicit error budget for
    #    the int8 (per-channel) + bf16-activation quantization across 10 layers.
    ref32 = np.asarray(_reference_f32(x_flat, weights_f32, shifts, linear_output_dim))
    rel_err = np.linalg.norm(np.asarray(out) - ref32) / (np.linalg.norm(ref32) + 1e-12)
    assert rel_err < 0.15, f"quantization error budget exceeded: {rel_err}"

    print("KERNEL_OK")
</pallas_src>

<mosaic_0001>
module attributes {stable_mosaic.version = 11 : i64} {
  func.func @_fused_mlp_kernel(%arg0: memref<16x128xf32, #tpu.memory_space<vmem>>, %arg1: memref<2x6016xf32, #tpu.memory_space<vmem>>, %arg2: memref<128x128xi8, #tpu.memory_space<any>>, %arg3: memref<128x256xi8, #tpu.memory_space<any>>, %arg4: memref<256x512xi8, #tpu.memory_space<any>>, %arg5: memref<512x1024xi8, #tpu.memory_space<any>>, %arg6: memref<1024x2048xi8, #tpu.memory_space<any>>, %arg7: memref<2048x1024xi8, #tpu.memory_space<any>>, %arg8: memref<1024x512xi8, #tpu.memory_space<any>>, %arg9: memref<512x256xi8, #tpu.memory_space<any>>, %arg10: memref<256x128xi8, #tpu.memory_space<any>>, %arg11: memref<128x128xi8, #tpu.memory_space<any>>, %arg12: memref<16x128xf32, #tpu.memory_space<vmem>>, %arg13: memref<128x128xi8, #tpu.memory_space<vmem>>, %arg14: memref<128x256xi8, #tpu.memory_space<vmem>>, %arg15: memref<256x512xi8, #tpu.memory_space<vmem>>, %arg16: memref<512x1024xi8, #tpu.memory_space<vmem>>, %arg17: memref<1024x2048xi8, #tpu.memory_space<vmem>>, %arg18: memref<2048x1024xi8, #tpu.memory_space<vmem>>, %arg19: memref<1024x512xi8, #tpu.memory_space<vmem>>, %arg20: memref<512x256xi8, #tpu.memory_space<vmem>>, %arg21: memref<256x128xi8, #tpu.memory_space<vmem>>, %arg22: memref<128x128xi8, #tpu.memory_space<vmem>>, %arg23: memref<10x!tpu.dma_semaphore, #tpu.memory_space<semaphore_mem>>) attributes {dimension_semantics = [], scalar_prefetch = 0 : i64, scratch_operands = 11 : i64, tpu.core_type = #tpu.core_type<tc>} {
    %c0_i32 = arith.constant 0 : i32
    %0 = tpu.memref_slice %arg23[%c0_i32] : memref<10x!tpu.dma_semaphore, #tpu.memory_space<semaphore_mem>> -> memref<1x!tpu.dma_semaphore, #tpu.memory_space<semaphore_mem>>
    %1 = tpu.memref_squeeze %0 : memref<1x!tpu.dma_semaphore, #tpu.memory_space<semaphore_mem>> -> memref<!tpu.dma_semaphore, #tpu.memory_space<semaphore_mem>>
    tpu.enqueue_dma source(%arg2 : memref<128x128xi8, #tpu.memory_space<any>>) target(%arg13 : memref<128x128xi8, #tpu.memory_space<vmem>>) target_semaphore(%1 : memref<!tpu.dma_semaphore, #tpu.memory_space<semaphore_mem>>)
    %c1_i32 = arith.constant 1 : i32
    %2 = tpu.memref_slice %arg23[%c1_i32] : memref<10x!tpu.dma_semaphore, #tpu.memory_space<semaphore_mem>> -> memref<1x!tpu.dma_semaphore, #tpu.memory_space<semaphore_mem>>
    %3 = tpu.memref_squeeze %2 : memref<1x!tpu.dma_semaphore, #tpu.memory_space<semaphore_mem>> -> memref<!tpu.dma_semaphore, #tpu.memory_space<semaphore_mem>>
    tpu.enqueue_dma source(%arg3 : memref<128x256xi8, #tpu.memory_space<any>>) target(%arg14 : memref<128x256xi8, #tpu.memory_space<vmem>>) target_semaphore(%3 : memref<!tpu.dma_semaphore, #tpu.memory_space<semaphore_mem>>)
    %c2_i32 = arith.constant 2 : i32
    %4 = tpu.memref_slice %arg23[%c2_i32] : memref<10x!tpu.dma_semaphore, #tpu.memory_space<semaphore_mem>> -> memref<1x!tpu.dma_semaphore, #tpu.memory_space<semaphore_mem>>
    %5 = tpu.memref_squeeze %4 : memref<1x!tpu.dma_semaphore, #tpu.memory_space<semaphore_mem>> -> memref<!tpu.dma_semaphore, #tpu.memory_space<semaphore_mem>>
    tpu.enqueue_dma source(%arg4 : memref<256x512xi8, #tpu.memory_space<any>>) target(%arg15 : memref<256x512xi8, #tpu.memory_space<vmem>>) target_semaphore(%5 : memref<!tpu.dma_semaphore, #tpu.memory_space<semaphore_mem>>)
    %c3_i32 = arith.constant 3 : i32
    %6 = tpu.memref_slice %arg23[%c3_i32] : memref<10x!tpu.dma_semaphore, #tpu.memory_space<semaphore_mem>> -> memref<1x!tpu.dma_semaphore, #tpu.memory_space<semaphore_mem>>
    %7 = tpu.memref_squeeze %6 : memref<1x!tpu.dma_semaphore, #tpu.memory_space<semaphore_mem>> -> memref<!tpu.dma_semaphore, #tpu.memory_space<semaphore_mem>>
    tpu.enqueue_dma source(%arg5 : memref<512x1024xi8, #tpu.memory_space<any>>) target(%arg16 : memref<512x1024xi8, #tpu.memory_space<vmem>>) target_semaphore(%7 : memref<!tpu.dma_semaphore, #tpu.memory_space<semaphore_mem>>)
    %c4_i32 = arith.constant 4 : i32
    %8 = tpu.memref_slice %arg23[%c4_i32] : memref<10x!tpu.dma_semaphore, #tpu.memory_space<semaphore_mem>> -> memref<1x!tpu.dma_semaphore, #tpu.memory_space<semaphore_mem>>
    %9 = tpu.memref_squeeze %8 : memref<1x!tpu.dma_semaphore, #tpu.memory_space<semaphore_mem>> -> memref<!tpu.dma_semaphore, #tpu.memory_space<semaphore_mem>>
    tpu.enqueue_dma source(%arg6 : memref<1024x2048xi8, #tpu.memory_space<any>>) target(%arg17 : memref<1024x2048xi8, #tpu.memory_space<vmem>>) target_semaphore(%9 : memref<!tpu.dma_semaphore, #tpu.memory_space<semaphore_mem>>)
    %c5_i32 = arith.constant 5 : i32
    %10 = tpu.memref_slice %arg23[%c5_i32] : memref<10x!tpu.dma_semaphore, #tpu.memory_space<semaphore_mem>> -> memref<1x!tpu.dma_semaphore, #tpu.memory_space<semaphore_mem>>
    %11 = tpu.memref_squeeze %10 : memref<1x!tpu.dma_semaphore, #tpu.memory_space<semaphore_mem>> -> memref<!tpu.dma_semaphore, #tpu.memory_space<semaphore_mem>>
    tpu.enqueue_dma source(%arg7 : memref<2048x1024xi8, #tpu.memory_space<any>>) target(%arg18 : memref<2048x1024xi8, #tpu.memory_space<vmem>>) target_semaphore(%11 : memref<!tpu.dma_semaphore, #tpu.memory_space<semaphore_mem>>)
    %c6_i32 = arith.constant 6 : i32
    %12 = tpu.memref_slice %arg23[%c6_i32] : memref<10x!tpu.dma_semaphore, #tpu.memory_space<semaphore_mem>> -> memref<1x!tpu.dma_semaphore, #tpu.memory_space<semaphore_mem>>
    %13 = tpu.memref_squeeze %12 : memref<1x!tpu.dma_semaphore, #tpu.memory_space<semaphore_mem>> -> memref<!tpu.dma_semaphore, #tpu.memory_space<semaphore_mem>>
    tpu.enqueue_dma source(%arg8 : memref<1024x512xi8, #tpu.memory_space<any>>) target(%arg19 : memref<1024x512xi8, #tpu.memory_space<vmem>>) target_semaphore(%13 : memref<!tpu.dma_semaphore, #tpu.memory_space<semaphore_mem>>)
    %c7_i32 = arith.constant 7 : i32
    %14 = tpu.memref_slice %arg23[%c7_i32] : memref<10x!tpu.dma_semaphore, #tpu.memory_space<semaphore_mem>> -> memref<1x!tpu.dma_semaphore, #tpu.memory_space<semaphore_mem>>
    %15 = tpu.memref_squeeze %14 : memref<1x!tpu.dma_semaphore, #tpu.memory_space<semaphore_mem>> -> memref<!tpu.dma_semaphore, #tpu.memory_space<semaphore_mem>>
    tpu.enqueue_dma source(%arg9 : memref<512x256xi8, #tpu.memory_space<any>>) target(%arg20 : memref<512x256xi8, #tpu.memory_space<vmem>>) target_semaphore(%15 : memref<!tpu.dma_semaphore, #tpu.memory_space<semaphore_mem>>)
    %c8_i32 = arith.constant 8 : i32
    %16 = tpu.memref_slice %arg23[%c8_i32] : memref<10x!tpu.dma_semaphore, #tpu.memory_space<semaphore_mem>> -> memref<1x!tpu.dma_semaphore, #tpu.memory_space<semaphore_mem>>
    %17 = tpu.memref_squeeze %16 : memref<1x!tpu.dma_semaphore, #tpu.memory_space<semaphore_mem>> -> memref<!tpu.dma_semaphore, #tpu.memory_space<semaphore_mem>>
    tpu.enqueue_dma source(%arg10 : memref<256x128xi8, #tpu.memory_space<any>>) target(%arg21 : memref<256x128xi8, #tpu.memory_space<vmem>>) target_semaphore(%17 : memref<!tpu.dma_semaphore, #tpu.memory_space<semaphore_mem>>)
    %c9_i32 = arith.constant 9 : i32
    %18 = tpu.memref_slice %arg23[%c9_i32] : memref<10x!tpu.dma_semaphore, #tpu.memory_space<semaphore_mem>> -> memref<1x!tpu.dma_semaphore, #tpu.memory_space<semaphore_mem>>
    %19 = tpu.memref_squeeze %18 : memref<1x!tpu.dma_semaphore, #tpu.memory_space<semaphore_mem>> -> memref<!tpu.dma_semaphore, #tpu.memory_space<semaphore_mem>>
    tpu.enqueue_dma source(%arg11 : memref<128x128xi8, #tpu.memory_space<any>>) target(%arg22 : memref<128x128xi8, #tpu.memory_space<vmem>>) target_semaphore(%19 : memref<!tpu.dma_semaphore, #tpu.memory_space<semaphore_mem>>)
    %c0 = arith.constant 0 : index
    %c0_0 = arith.constant 0 : index
    %20 = vector.load %arg0[%c0, %c0_0] : memref<16x128xf32, #tpu.memory_space<vmem>>, vector<16x128xf32>
    %21 = arith.truncf %20 : vector<16x128xf32> to vector<16x128xbf16>
    %c0_i32_1 = arith.constant 0 : i32
    %22 = tpu.memref_slice %arg23[%c0_i32_1] : memref<10x!tpu.dma_semaphore, #tpu.memory_space<semaphore_mem>> -> memref<1x!tpu.dma_semaphore, #tpu.memory_space<semaphore_mem>>
    %23 = tpu.memref_squeeze %22 : memref<1x!tpu.dma_semaphore, #tpu.memory_space<semaphore_mem>> -> memref<!tpu.dma_semaphore, #tpu.memory_space<semaphore_mem>>
    tpu.wait_dma2 semaphore(%23 : memref<!tpu.dma_semaphore, #tpu.memory_space<semaphore_mem>>) src(%arg2 : memref<128x128xi8, #tpu.memory_space<any>>) dst(%arg13 : memref<128x128xi8, #tpu.memory_space<vmem>>)
    %c0_2 = arith.constant 0 : index
    %c0_3 = arith.constant 0 : index
    %24 = vector.load %arg13[%c0_2, %c0_3] : memref<128x128xi8, #tpu.memory_space<vmem>>, vector<128x128xi8>
    %25 = arith.sitofp %24 : vector<128x128xi8> to vector<128x128xbf16>
    %cst = arith.constant dense<0.000000e+00> : vector<16x128xf32>
    %26 = tpu.matmul %21, %25, %cst {dimension_numbers = #tpu.dot_dimension_numbers<[1], [0], [0], [1], [0, 0, 1, 1], [], []>} : vector<16x128xbf16>, vector<128x128xbf16>, vector<16x128xf32> -> vector<16x128xf32>
    %c0_4 = arith.constant 0 : index
    %c0_5 = arith.constant 0 : index
    %27 = vector.load %arg1[%c0_4, %c0_5] : memref<2x6016xf32, #tpu.memory_space<vmem>>, vector<1x128xf32>
    %c1 = arith.constant 1 : index
    %c0_6 = arith.constant 0 : index
    %28 = vector.load %arg1[%c1, %c0_6] : memref<2x6016xf32, #tpu.memory_space<vmem>>, vector<1x128xf32>
    %29 = vector.broadcast %27 : vector<1x128xf32> to vector<16x128xf32>
    %30 = arith.mulf %26, %29 : vector<16x128xf32>
    %31 = vector.broadcast %28 : vector<1x128xf32> to vector<16x128xf32>
    %32 = arith.addf %30, %31 : vector<16x128xf32>
    %cst_7 = arith.constant 0.000000e+00 : f32
    %33 = vector.broadcast %cst_7 : f32 to vector<16x128xf32>
    %34 = arith.maximumf %32, %33 : vector<16x128xf32>
    %35 = arith.truncf %34 : vector<16x128xf32> to vector<16x128xbf16>
    %c1_i32_8 = arith.constant 1 : i32
    %36 = tpu.memref_slice %arg23[%c1_i32_8] : memref<10x!tpu.dma_semaphore, #tpu.memory_space<semaphore_mem>> -> memref<1x!tpu.dma_semaphore, #tpu.memory_space<semaphore_mem>>
    %37 = tpu.memref_squeeze %36 : memref<1x!tpu.dma_semaphore, #tpu.memory_space<semaphore_mem>> -> memref<!tpu.dma_semaphore, #tpu.memory_space<semaphore_mem>>
    tpu.wait_dma2 semaphore(%37 : memref<!tpu.dma_semaphore, #tpu.memory_space<semaphore_mem>>) src(%arg3 : memref<128x256xi8, #tpu.memory_space<any>>) dst(%arg14 : memref<128x256xi8, #tpu.memory_space<vmem>>)
    %c0_9 = arith.constant 0 : index
    %c0_10 = arith.constant 0 : index
    %38 = vector.load %arg14[%c0_9, %c0_10] : memref<128x256xi8, #tpu.memory_space<vmem>>, vector<128x256xi8>
    %39 = arith.sitofp %38 : vector<128x256xi8> to vector<128x256xbf16>
    %cst_11 = arith.constant dense<0.000000e+00> : vector<16x256xf32>
    %40 = tpu.matmul %35, %39, %cst_11 {dimension_numbers = #tpu.dot_dimension_numbers<[1], [0], [0], [1], [0, 0, 1, 1], [], []>} : vector<16x128xbf16>, vector<128x256xbf16>, vector<16x256xf32> -> vector<16x256xf32>
    %c0_12 = arith.constant 0 : index
    %c128 = arith.constant 128 : index
    %41 = vector.load %arg1[%c0_12, %c128] : memref<2x6016xf32, #tpu.memory_space<vmem>>, vector<1x256xf32>
    %c1_13 = arith.constant 1 : index
    %c128_14 = arith.constant 128 : index
    %42 = vector.load %arg1[%c1_13, %c128_14] : memref<2x6016xf32, #tpu.memory_space<vmem>>, vector<1x256xf32>
    %43 = vector.broadcast %41 : vector<1x256xf32> to vector<16x256xf32>
    %44 = arith.mulf %40, %43 : vector<16x256xf32>
    %45 = vector.broadcast %42 : vector<1x256xf32> to vector<16x256xf32>
    %46 = arith.addf %44, %45 : vector<16x256xf32>
    %cst_15 = arith.constant 0.000000e+00 : f32
    %47 = vector.broadcast %cst_15 : f32 to vector<16x256xf32>
    %48 = arith.maximumf %46, %47 : vector<16x256xf32>
    %49 = arith.truncf %48 : vector<16x256xf32> to vector<16x256xbf16>
    %c2_i32_16 = arith.constant 2 : i32
    %50 = tpu.memref_slice %arg23[%c2_i32_16] : memref<10x!tpu.dma_semaphore, #tpu.memory_space<semaphore_mem>> -> memref<1x!tpu.dma_semaphore, #tpu.memory_space<semaphore_mem>>
    %51 = tpu.memref_squeeze %50 : memref<1x!tpu.dma_semaphore, #tpu.memory_space<semaphore_mem>> -> memref<!tpu.dma_semaphore, #tpu.memory_space<semaphore_mem>>
    tpu.wait_dma2 semaphore(%51 : memref<!tpu.dma_semaphore, #tpu.memory_space<semaphore_mem>>) src(%arg4 : memref<256x512xi8, #tpu.memory_space<any>>) dst(%arg15 : memref<256x512xi8, #tpu.memory_space<vmem>>)
    %c0_17 = arith.constant 0 : index
    %c0_18 = arith.constant 0 : index
    %52 = vector.load %arg15[%c0_17, %c0_18] : memref<256x512xi8, #tpu.memory_space<vmem>>, vector<256x512xi8>
    %53 = arith.sitofp %52 : vector<256x512xi8> to vector<256x512xbf16>
    %cst_19 = arith.constant dense<0.000000e+00> : vector<16x512xf32>
    %54 = tpu.matmul %49, %53, %cst_19 {dimension_numbers = #tpu.dot_dimension_numbers<[1], [0], [0], [1], [0, 0, 1, 1], [], []>} : vector<16x256xbf16>, vector<256x512xbf16>, vector<16x512xf32> -> vector<16x512xf32>
    %c0_20 = arith.constant 0 : index
    %c384 = arith.constant 384 : index
    %55 = vector.load %arg1[%c0_20, %c384] : memref<2x6016xf32, #tpu.memory_space<vmem>>, vector<1x512xf32>
    %c1_21 = arith.constant 1 : index
    %c384_22 = arith.constant 384 : index
    %56 = vector.load %arg1[%c1_21, %c384_22] : memref<2x6016xf32, #tpu.memory_space<vmem>>, vector<1x512xf32>
    %57 = vector.broadcast %55 : vector<1x512xf32> to vector<16x512xf32>
    %58 = arith.mulf %54, %57 : vector<16x512xf32>
    %59 = vector.broadcast %56 : vector<1x512xf32> to vector<16x512xf32>
    %60 = arith.addf %58, %59 : vector<16x512xf32>
    %cst_23 = arith.constant 0.000000e+00 : f32
    %61 = vector.broadcast %cst_23 : f32 to vector<16x512xf32>
    %62 = arith.maximumf %60, %61 : vector<16x512xf32>
    %63 = arith.truncf %62 : vector<16x512xf32> to vector<16x512xbf16>
    %c3_i32_24 = arith.constant 3 : i32
    %64 = tpu.memref_slice %arg23[%c3_i32_24] : memref<10x!tpu.dma_semaphore, #tpu.memory_space<semaphore_mem>> -> memref<1x!tpu.dma_semaphore, #tpu.memory_space<semaphore_mem>>
    %65 = tpu.memref_squeeze %64 : memref<1x!tpu.dma_semaphore, #tpu.memory_space<semaphore_mem>> -> memref<!tpu.dma_semaphore, #tpu.memory_space<semaphore_mem>>
    tpu.wait_dma2 semaphore(%65 : memref<!tpu.dma_semaphore, #tpu.memory_space<semaphore_mem>>) src(%arg5 : memref<512x1024xi8, #tpu.memory_space<any>>) dst(%arg16 : memref<512x1024xi8, #tpu.memory_space<vmem>>)
    %c0_25 = arith.constant 0 : index
    %c0_26 = arith.constant 0 : index
    %66 = vector.load %arg16[%c0_25, %c0_26] : memref<512x1024xi8, #tpu.memory_space<vmem>>, vector<512x1024xi8>
    %67 = arith.sitofp %66 : vector<512x1024xi8> to vector<512x1024xbf16>
    %cst_27 = arith.constant dense<0.000000e+00> : vector<16x1024xf32>
    %68 = tpu.matmul %63, %67, %cst_27 {dimension_numbers = #tpu.dot_dimension_numbers<[1], [0], [0], [1], [0, 0, 1, 1], [], []>} : vector<16x512xbf16>, vector<512x1024xbf16>, vector<16x1024xf32> -> vector<16x1024xf32>
    %c0_28 = arith.constant 0 : index
    %c896 = arith.constant 896 : index
    %69 = vector.load %arg1[%c0_28, %c896] : memref<2x6016xf32, #tpu.memory_space<vmem>>, vector<1x1024xf32>
    %c1_29 = arith.constant 1 : index
    %c896_30 = arith.constant 896 : index
    %70 = vector.load %arg1[%c1_29, %c896_30] : memref<2x6016xf32, #tpu.memory_space<vmem>>, vector<1x1024xf32>
    %71 = vector.broadcast %69 : vector<1x1024xf32> to vector<16x1024xf32>
    %72 = arith.mulf %68, %71 : vector<16x1024xf32>
    %73 = vector.broadcast %70 : vector<1x1024xf32> to vector<16x1024xf32>
    %74 = arith.addf %72, %73 : vector<16x1024xf32>
    %cst_31 = arith.constant 0.000000e+00 : f32
    %75 = vector.broadcast %cst_31 : f32 to vector<16x1024xf32>
    %76 = arith.maximumf %74, %75 : vector<16x1024xf32>
    %77 = arith.truncf %76 : vector<16x1024xf32> to vector<16x1024xbf16>
    %c4_i32_32 = arith.constant 4 : i32
    %78 = tpu.memref_slice %arg23[%c4_i32_32] : memref<10x!tpu.dma_semaphore, #tpu.memory_space<semaphore_mem>> -> memref<1x!tpu.dma_semaphore, #tpu.memory_space<semaphore_mem>>
    %79 = tpu.memref_squeeze %78 : memref<1x!tpu.dma_semaphore, #tpu.memory_space<semaphore_mem>> -> memref<!tpu.dma_semaphore, #tpu.memory_space<semaphore_mem>>
    tpu.wait_dma2 semaphore(%79 : memref<!tpu.dma_semaphore, #tpu.memory_space<semaphore_mem>>) src(%arg6 : memref<1024x2048xi8, #tpu.memory_space<any>>) dst(%arg17 : memref<1024x2048xi8, #tpu.memory_space<vmem>>)
    %c0_33 = arith.constant 0 : index
    %c0_34 = arith.constant 0 : index
    %80 = vector.load %arg17[%c0_33, %c0_34] : memref<1024x2048xi8, #tpu.memory_space<vmem>>, vector<1024x2048xi8>
    %81 = arith.sitofp %80 : vector<1024x2048xi8> to vector<1024x2048xbf16>
    %cst_35 = arith.constant dense<0.000000e+00> : vector<16x2048xf32>
    %82 = tpu.matmul %77, %81, %cst_35 {dimension_numbers = #tpu.dot_dimension_numbers<[1], [0], [0], [1], [0, 0, 1, 1], [], []>} : vector<16x1024xbf16>, vector<1024x2048xbf16>, vector<16x2048xf32> -> vector<16x2048xf32>
    %c0_36 = arith.constant 0 : index
    %c1920 = arith.constant 1920 : index
    %83 = vector.load %arg1[%c0_36, %c1920] : memref<2x6016xf32, #tpu.memory_space<vmem>>, vector<1x2048xf32>
    %c1_37 = arith.constant 1 : index
    %c1920_38 = arith.constant 1920 : index
    %84 = vector.load %arg1[%c1_37, %c1920_38] : memref<2x6016xf32, #tpu.memory_space<vmem>>, vector<1x2048xf32>
    %85 = vector.broadcast %83 : vector<1x2048xf32> to vector<16x2048xf32>
    %86 = arith.mulf %82, %85 : vector<16x2048xf32>
    %87 = vector.broadcast %84 : vector<1x2048xf32> to vector<16x2048xf32>
    %88 = arith.addf %86, %87 : vector<16x2048xf32>
    %cst_39 = arith.constant 0.000000e+00 : f32
    %89 = vector.broadcast %cst_39 : f32 to vector<16x2048xf32>
    %90 = arith.maximumf %88, %89 : vector<16x2048xf32>
    %91 = arith.truncf %90 : vector<16x2048xf32> to vector<16x2048xbf16>
    %c5_i32_40 = arith.constant 5 : i32
    %92 = tpu.memref_slice %arg23[%c5_i32_40] : memref<10x!tpu.dma_semaphore, #tpu.memory_space<semaphore_mem>> -> memref<1x!tpu.dma_semaphore, #tpu.memory_space<semaphore_mem>>
    %93 = tpu.memref_squeeze %92 : memref<1x!tpu.dma_semaphore, #tpu.memory_space<semaphore_mem>> -> memref<!tpu.dma_semaphore, #tpu.memory_space<semaphore_mem>>
    tpu.wait_dma2 semaphore(%93 : memref<!tpu.dma_semaphore, #tpu.memory_space<semaphore_mem>>) src(%arg7 : memref<2048x1024xi8, #tpu.memory_space<any>>) dst(%arg18 : memref<2048x1024xi8, #tpu.memory_space<vmem>>)
    %c0_41 = arith.constant 0 : index
    %c0_42 = arith.constant 0 : index
    %94 = vector.load %arg18[%c0_41, %c0_42] : memref<2048x1024xi8, #tpu.memory_space<vmem>>, vector<2048x1024xi8>
    %95 = arith.sitofp %94 : vector<2048x1024xi8> to vector<2048x1024xbf16>
    %cst_43 = arith.constant dense<0.000000e+00> : vector<16x1024xf32>
    %96 = tpu.matmul %91, %95, %cst_43 {dimension_numbers = #tpu.dot_dimension_numbers<[1], [0], [0], [1], [0, 0, 1, 1], [], []>} : vector<16x2048xbf16>, vector<2048x1024xbf16>, vector<16x1024xf32> -> vector<16x1024xf32>
    %c0_44 = arith.constant 0 : index
    %c3968 = arith.constant 3968 : index
    %97 = vector.load %arg1[%c0_44, %c3968] : memref<2x6016xf32, #tpu.memory_space<vmem>>, vector<1x1024xf32>
    %c1_45 = arith.constant 1 : index
    %c3968_46 = arith.constant 3968 : index
    %98 = vector.load %arg1[%c1_45, %c3968_46] : memref<2x6016xf32, #tpu.memory_space<vmem>>, vector<1x1024xf32>
    %99 = vector.broadcast %97 : vector<1x1024xf32> to vector<16x1024xf32>
    %100 = arith.mulf %96, %99 : vector<16x1024xf32>
    %101 = vector.broadcast %98 : vector<1x1024xf32> to vector<16x1024xf32>
    %102 = arith.addf %100, %101 : vector<16x1024xf32>
    %cst_47 = arith.constant 0.000000e+00 : f32
    %103 = vector.broadcast %cst_47 : f32 to vector<16x1024xf32>
    %104 = arith.maximumf %102, %103 : vector<16x1024xf32>
    %105 = arith.truncf %104 : vector<16x1024xf32> to vector<16x1024xbf16>
    %c6_i32_48 = arith.constant 6 : i32
    %106 = tpu.memref_slice %arg23[%c6_i32_48] : memref<10x!tpu.dma_semaphore, #tpu.memory_space<semaphore_mem>> -> memref<1x!tpu.dma_semaphore, #tpu.memory_space<semaphore_mem>>
    %107 = tpu.memref_squeeze %106 : memref<1x!tpu.dma_semaphore, #tpu.memory_space<semaphore_mem>> -> memref<!tpu.dma_semaphore, #tpu.memory_space<semaphore_mem>>
    tpu.wait_dma2 semaphore(%107 : memref<!tpu.dma_semaphore, #tpu.memory_space<semaphore_mem>>) src(%arg8 : memref<1024x512xi8, #tpu.memory_space<any>>) dst(%arg19 : memref<1024x512xi8, #tpu.memory_space<vmem>>)
    %c0_49 = arith.constant 0 : index
    %c0_50 = arith.constant 0 : index
    %108 = vector.load %arg19[%c0_49, %c0_50] : memref<1024x512xi8, #tpu.memory_space<vmem>>, vector<1024x512xi8>
    %109 = arith.sitofp %108 : vector<1024x512xi8> to vector<1024x512xbf16>
    %cst_51 = arith.constant dense<0.000000e+00> : vector<16x512xf32>
    %110 = tpu.matmul %105, %109, %cst_51 {dimension_numbers = #tpu.dot_dimension_numbers<[1], [0], [0], [1], [0, 0, 1, 1], [], []>} : vector<16x1024xbf16>, vector<1024x512xbf16>, vector<16x512xf32> -> vector<16x512xf32>
    %c0_52 = arith.constant 0 : index
    %c4992 = arith.constant 4992 : index
    %111 = vector.load %arg1[%c0_52, %c4992] : memref<2x6016xf32, #tpu.memory_space<vmem>>, vector<1x512xf32>
    %c1_53 = arith.constant 1 : index
    %c4992_54 = arith.constant 4992 : index
    %112 = vector.load %arg1[%c1_53, %c4992_54] : memref<2x6016xf32, #tpu.memory_space<vmem>>, vector<1x512xf32>
    %113 = vector.broadcast %111 : vector<1x512xf32> to vector<16x512xf32>
    %114 = arith.mulf %110, %113 : vector<16x512xf32>
    %115 = vector.broadcast %112 : vector<1x512xf32> to vector<16x512xf32>
    %116 = arith.addf %114, %115 : vector<16x512xf32>
    %cst_55 = arith.constant 0.000000e+00 : f32
    %117 = vector.broadcast %cst_55 : f32 to vector<16x512xf32>
    %118 = arith.maximumf %116, %117 : vector<16x512xf32>
    %119 = arith.truncf %118 : vector<16x512xf32> to vector<16x512xbf16>
    %c7_i32_56 = arith.constant 7 : i32
    %120 = tpu.memref_slice %arg23[%c7_i32_56] : memref<10x!tpu.dma_semaphore, #tpu.memory_space<semaphore_mem>> -> memref<1x!tpu.dma_semaphore, #tpu.memory_space<semaphore_mem>>
    %121 = tpu.memref_squeeze %120 : memref<1x!tpu.dma_semaphore, #tpu.memory_space<semaphore_mem>> -> memref<!tpu.dma_semaphore, #tpu.memory_space<semaphore_mem>>
    tpu.wait_dma2 semaphore(%121 : memref<!tpu.dma_semaphore, #tpu.memory_space<semaphore_mem>>) src(%arg9 : memref<512x256xi8, #tpu.memory_space<any>>) dst(%arg20 : memref<512x256xi8, #tpu.memory_space<vmem>>)
    %c0_57 = arith.constant 0 : index
    %c0_58 = arith.constant 0 : index
    %122 = vector.load %arg20[%c0_57, %c0_58] : memref<512x256xi8, #tpu.memory_space<vmem>>, vector<512x256xi8>
    %123 = arith.sitofp %122 : vector<512x256xi8> to vector<512x256xbf16>
    %cst_59 = arith.constant dense<0.000000e+00> : vector<16x256xf32>
    %124 = tpu.matmul %119, %123, %cst_59 {dimension_numbers = #tpu.dot_dimension_numbers<[1], [0], [0], [1], [0, 0, 1, 1], [], []>} : vector<16x512xbf16>, vector<512x256xbf16>, vector<16x256xf32> -> vector<16x256xf32>
    %c0_60 = arith.constant 0 : index
    %c5504 = arith.constant 5504 : index
    %125 = vector.load %arg1[%c0_60, %c5504] : memref<2x6016xf32, #tpu.memory_space<vmem>>, vector<1x256xf32>
    %c1_61 = arith.constant 1 : index
    %c5504_62 = arith.constant 5504 : index
    %126 = vector.load %arg1[%c1_61, %c5504_62] : memref<2x6016xf32, #tpu.memory_space<vmem>>, vector<1x256xf32>
    %127 = vector.broadcast %125 : vector<1x256xf32> to vector<16x256xf32>
    %128 = arith.mulf %124, %127 : vector<16x256xf32>
    %129 = vector.broadcast %126 : vector<1x256xf32> to vector<16x256xf32>
    %130 = arith.addf %128, %129 : vector<16x256xf32>
    %cst_63 = arith.constant 0.000000e+00 : f32
    %131 = vector.broadcast %cst_63 : f32 to vector<16x256xf32>
    %132 = arith.maximumf %130, %131 : vector<16x256xf32>
    %133 = arith.truncf %132 : vector<16x256xf32> to vector<16x256xbf16>
    %c8_i32_64 = arith.constant 8 : i32
    %134 = tpu.memref_slice %arg23[%c8_i32_64] : memref<10x!tpu.dma_semaphore, #tpu.memory_space<semaphore_mem>> -> memref<1x!tpu.dma_semaphore, #tpu.memory_space<semaphore_mem>>
    %135 = tpu.memref_squeeze %134 : memref<1x!tpu.dma_semaphore, #tpu.memory_space<semaphore_mem>> -> memref<!tpu.dma_semaphore, #tpu.memory_space<semaphore_mem>>
    tpu.wait_dma2 semaphore(%135 : memref<!tpu.dma_semaphore, #tpu.memory_space<semaphore_mem>>) src(%arg10 : memref<256x128xi8, #tpu.memory_space<any>>) dst(%arg21 : memref<256x128xi8, #tpu.memory_space<vmem>>)
    %c0_65 = arith.constant 0 : index
    %c0_66 = arith.constant 0 : index
    %136 = vector.load %arg21[%c0_65, %c0_66] : memref<256x128xi8, #tpu.memory_space<vmem>>, vector<256x128xi8>
    %137 = arith.sitofp %136 : vector<256x128xi8> to vector<256x128xbf16>
    %cst_67 = arith.constant dense<0.000000e+00> : vector<16x128xf32>
    %138 = tpu.matmul %133, %137, %cst_67 {dimension_numbers = #tpu.dot_dimension_numbers<[1], [0], [0], [1], [0, 0, 1, 1], [], []>} : vector<16x256xbf16>, vector<256x128xbf16>, vector<16x128xf32> -> vector<16x128xf32>
    %c0_68 = arith.constant 0 : index
    %c5760 = arith.constant 5760 : index
    %139 = vector.load %arg1[%c0_68, %c5760] : memref<2x6016xf32, #tpu.memory_space<vmem>>, vector<1x128xf32>
    %c1_69 = arith.constant 1 : index
    %c5760_70 = arith.constant 5760 : index
    %140 = vector.load %arg1[%c1_69, %c5760_70] : memref<2x6016xf32, #tpu.memory_space<vmem>>, vector<1x128xf32>
    %141 = vector.broadcast %139 : vector<1x128xf32> to vector<16x128xf32>
    %142 = arith.mulf %138, %141 : vector<16x128xf32>
    %143 = vector.broadcast %140 : vector<1x128xf32> to vector<16x128xf32>
    %144 = arith.addf %142, %143 : vector<16x128xf32>
    %cst_71 = arith.constant 0.000000e+00 : f32
    %145 = vector.broadcast %cst_71 : f32 to vector<16x128xf32>
    %146 = arith.maximumf %144, %145 : vector<16x128xf32>
    %147 = arith.truncf %146 : vector<16x128xf32> to vector<16x128xbf16>
    %c9_i32_72 = arith.constant 9 : i32
    %148 = tpu.memref_slice %arg23[%c9_i32_72] : memref<10x!tpu.dma_semaphore, #tpu.memory_space<semaphore_mem>> -> memref<1x!tpu.dma_semaphore, #tpu.memory_space<semaphore_mem>>
    %149 = tpu.memref_squeeze %148 : memref<1x!tpu.dma_semaphore, #tpu.memory_space<semaphore_mem>> -> memref<!tpu.dma_semaphore, #tpu.memory_space<semaphore_mem>>
    tpu.wait_dma2 semaphore(%149 : memref<!tpu.dma_semaphore, #tpu.memory_space<semaphore_mem>>) src(%arg11 : memref<128x128xi8, #tpu.memory_space<any>>) dst(%arg22 : memref<128x128xi8, #tpu.memory_space<vmem>>)
    %c0_73 = arith.constant 0 : index
    %c0_74 = arith.constant 0 : index
    %150 = vector.load %arg22[%c0_73, %c0_74] : memref<128x128xi8, #tpu.memory_space<vmem>>, vector<128x128xi8>
    %151 = arith.sitofp %150 : vector<128x128xi8> to vector<128x128xbf16>
    %cst_75 = arith.constant dense<0.000000e+00> : vector<16x128xf32>
    %152 = tpu.matmul %147, %151, %cst_75 {dimension_numbers = #tpu.dot_dimension_numbers<[1], [0], [0], [1], [0, 0, 1, 1], [], []>} : vector<16x128xbf16>, vector<128x128xbf16>, vector<16x128xf32> -> vector<16x128xf32>
    %c0_76 = arith.constant 0 : index
    %c5888 = arith.constant 5888 : index
    %153 = vector.load %arg1[%c0_76, %c5888] : memref<2x6016xf32, #tpu.memory_space<vmem>>, vector<1x128xf32>
    %c1_77 = arith.constant 1 : index
    %c5888_78 = arith.constant 5888 : index
    %154 = vector.load %arg1[%c1_77, %c5888_78] : memref<2x6016xf32, #tpu.memory_space<vmem>>, vector<1x128xf32>
    %155 = vector.broadcast %153 : vector<1x128xf32> to vector<16x128xf32>
    %156 = arith.mulf %152, %155 : vector<16x128xf32>
    %157 = vector.broadcast %154 : vector<1x128xf32> to vector<16x128xf32>
    %158 = arith.addf %156, %157 : vector<16x128xf32>
    %c0_79 = arith.constant 0 : index
    %c0_80 = arith.constant 0 : index
    %159 = vector.load %arg12[%c0_79, %c0_80] : memref<16x128xf32, #tpu.memory_space<vmem>>, vector<16x128xf32>
    tpu.vector_store %arg12[%c0_79, %c0_80], %158 {strides = array<i32>} : memref<16x128xf32, #tpu.memory_space<vmem>>, vector<16x128xf32>,
    return
  }
}

</mosaic_0001>

<llo_original>
// kernel: my_model_linear_forward.1
$region0: #{my_model_linear_forward.1}
  #allocation0 [shape = 'u32[]', space=smem, size = 0x4, offset = 0x4, fixed_abs, tag = 'smem constant byte address 0x4 - core index']
  #allocation1 [shape = 'u32[144,128]{1,0:T(1,128)}', space=vmem, size = 0x12000, scoped, tag = 'internal scratch']
  #allocation2 [shape = 's8[128,128]{1,0:T(32,128)(4,1)}', space=vmem, size = 0x4000, scoped, tag = 'scratch operand']
  #allocation3 [shape = 's8[128,256]{1,0:T(32,128)(4,1)}', space=vmem, size = 0x8000, scoped, tag = 'scratch operand']
  #allocation4 [shape = 's8[256,512]{1,0:T(32,128)(4,1)}', space=vmem, size = 0x20000, scoped, tag = 'scratch operand']
  #allocation5 [shape = 's8[512,1024]{1,0:T(32,128)(4,1)}', space=vmem, size = 0x80000, scoped, tag = 'scratch operand']
  #allocation6 [shape = 's8[1024,2048]{1,0:T(32,128)(4,1)}', space=vmem, size = 0x200000, scoped, tag = 'scratch operand']
  #allocation7 [shape = 's8[2048,1024]{1,0:T(32,128)(4,1)}', space=vmem, size = 0x200000, scoped, tag = 'scratch operand']
  #allocation8 [shape = 's8[1024,512]{1,0:T(32,128)(4,1)}', space=vmem, size = 0x80000, scoped, tag = 'scratch operand']
  #allocation9 [shape = 's8[512,256]{1,0:T(32,128)(4,1)}', space=vmem, size = 0x20000, scoped, tag = 'scratch operand']
  #allocation10 [shape = 's8[256,128]{1,0:T(32,128)(4,1)}', space=vmem, size = 0x8000, scoped, tag = 'scratch operand']
  #allocation11 [shape = 's8[128,128]{1,0:T(32,128)(4,1)}', space=vmem, size = 0x4000, scoped, tag = 'scratch operand']
  #allocation12 [shape = 's32[10]{0}', space=sflag, size = 0x28, scoped, tag = 'scratch operand']
  #allocation15 [shape = 's32[]', space=sflag, size = 0x4, offset = 0, fixed_abs, tag = 'sflag constant byte address 0x0 - dummy sync flag']
  #allocation16 [shape = 's32[]', space=sflag, size = 0x4, offset = 0, fixed_abs, tag = 'sflag constant byte address 0x0 - dummy sync flag']
  #allocation17 [shape = 'u32[]', space=smem, size = 0x4, offset = 0x44, fixed_abs, tag = 'smem constant byte address 0x44 - assertion arg 0']
  #allocation18 [shape = 'u32[]', space=smem, size = 0x4, offset = 0x48, fixed_abs, tag = 'smem constant byte address 0x48 - assertion arg 1']
  #allocation19 [shape = 's32[]', space=sflag, size = 0x4, offset = 0, fixed_abs, tag = 'sflag constant byte address 0x0 - dummy sync flag']
  #allocation20 [shape = 's32[]', space=sflag, size = 0x4, offset = 0, fixed_abs, tag = 'sflag constant byte address 0x0 - dummy sync flag']
  #allocation21 [shape = 's32[]', space=sflag, size = 0x4, offset = 0, fixed_abs, tag = 'sflag constant byte address 0x0 - dummy sync flag']
  #allocation22 [shape = 's32[]', space=sflag, size = 0x4, offset = 0, fixed_abs, tag = 'sflag constant byte address 0x0 - dummy sync flag']
  #allocation23 [shape = 's32[]', space=sflag, size = 0x4, offset = 0, fixed_abs, tag = 'sflag constant byte address 0x0 - dummy sync flag']
  #allocation24 [shape = 's32[]', space=sflag, size = 0x4, offset = 0, fixed_abs, tag = 'sflag constant byte address 0x0 - dummy sync flag']
  #allocation25 [shape = 's32[]', space=sflag, size = 0x4, offset = 0, fixed_abs, tag = 'sflag constant byte address 0x0 - dummy sync flag']
  #allocation26 [shape = 's32[]', space=sflag, size = 0x4, offset = 0, fixed_abs, tag = 'sflag constant byte address 0x0 - dummy sync flag']
  #allocation27 [shape = 's32[]', space=sflag, size = 0x4, offset = 0, fixed_abs, tag = 'sflag constant byte address 0x0 - dummy sync flag']
  #allocation28 [shape = 's32[]', space=sflag, size = 0x4, offset = 0, fixed_abs, tag = 'sflag constant byte address 0x0 - dummy sync flag']
  #allocation29 [shape = 's32[]', space=sflag, size = 0x4, offset = 0, fixed_abs, tag = 'sflag constant byte address 0x0 - dummy sync flag']
  #allocation30 [shape = 's32[]', space=sflag, size = 0x4, offset = 0, fixed_abs, tag = 'sflag constant byte address 0x0 - dummy sync flag']
  #allocation31 [shape = 's32[]', space=sflag, size = 0x4, offset = 0, fixed_abs, tag = 'sflag constant byte address 0x0 - dummy sync flag']
  #allocation32 [shape = 's32[]', space=sflag, size = 0x4, offset = 0, fixed_abs, tag = 'sflag constant byte address 0x0 - dummy sync flag']
  #allocation33 [shape = 's32[]', space=sflag, size = 0x4, offset = 0, fixed_abs, tag = 'sflag constant byte address 0x0 - dummy sync flag']
  #allocation34 [shape = 's32[]', space=sflag, size = 0x4, offset = 0, fixed_abs, tag = 'sflag constant byte address 0x0 - dummy sync flag']
  #allocation35 [shape = 's32[]', space=sflag, size = 0x4, offset = 0, fixed_abs, tag = 'sflag constant byte address 0x0 - dummy sync flag']
  #allocation36 [shape = 's32[]', space=sflag, size = 0x4, offset = 0, fixed_abs, tag = 'sflag constant byte address 0x0 - dummy sync flag']
  %s0 = inlined_call_operand.vmem [shape: f32[16,128], index: 0, kind: input, shape index: {}]
  %s1 = inlined_call_operand.hbm [shape: f32[2,6016], index: 1, kind: input, shape index: {}]
  %s2 = inlined_call_operand.hbm [shape: s8[128,128], index: 2, kind: input, shape index: {}]
  %s3 = inlined_call_operand.hbm [shape: s8[128,256], index: 3, kind: input, shape index: {}]
  %s4 = inlined_call_operand.hbm [shape: s8[256,512], index: 4, kind: input, shape index: {}]
  %s5 = inlined_call_operand.hbm [shape: s8[512,1024], index: 5, kind: input, shape index: {}]
  %s6 = inlined_call_operand.hbm [shape: s8[1024,2048], index: 6, kind: input, shape index: {}]
  %s7 = inlined_call_operand.hbm [shape: s8[2048,1024], index: 7, kind: input, shape index: {}]
  %s8 = inlined_call_operand.hbm [shape: s8[1024,512], index: 8, kind: input, shape index: {}]
  %s9 = inlined_call_operand.hbm [shape: s8[512,256], index: 9, kind: input, shape index: {}]
  %s10 = inlined_call_operand.hbm [shape: s8[256,128], index: 10, kind: input, shape index: {}]
  %s11 = inlined_call_operand.hbm [shape: s8[128,128], index: 11, kind: input, shape index: {}]
  %s12 = inlined_call_operand.vmem [shape: f32[16,128], index: 12, kind: output, shape index: {}]
  %s13 = sld [smem:[#allocation0]]
  $region62: #{my_model_linear_forward.1} parent=0
    _
  %s15 = ssub.s32 1, %s13
  %s16 = scalar_select 0, %s15, %s13
  $region1: #{my_model_linear_forward.1} parent=0
    #allocation13 [shape = 'u8[48128]{0}', space=vmem, size = 0xbc00, scoped, tag = 'input window, operand 1, single buffered']
    #allocation14 [shape = 's32[1]{0}', space=sflag, size = 0x4, scoped, tag = 'scoped memory for my_model_linear_forward.1']
    %17 = vsyncpa [#allocation14], 0
    // Predicated region
    $region2: #{my_model_linear_forward.1} parent=1 // pred_check
      _
    $region3: #{my_model_linear_forward.1} parent=1 // pred_check_branch
      %19 = sbr.rel (0) target = $region5
    $region4: #{my_model_linear_forward.1} parent=1 // pred_region
      _
    $region5: #{my_model_linear_forward.1} parent=1 // pred_fallthru
      _
    // Predicated region
    $region6: #{my_model_linear_forward.1} parent=1 // pred_check
      _
    $region7: #{my_model_linear_forward.1} parent=1 // pred_check_branch
      %21 = sbr.rel (0) target = $region9
    $region8: #{my_model_linear_forward.1} parent=1 // pred_region
      %s23 = ssub.s32 1504, 1504
      %24 = vsyncadd [#allocation14], %s23
      %s26 = sshll.u32 [#allocation13], 4
      %s27 = int_to_ptr.vmem [resolvable:$true] %s26
      %29 = dma.hbm_to_vmem [thread:$0]  %s1, 1504, %s27, [#allocation14]
    $region9: #{my_model_linear_forward.1} parent=1 // pred_fallthru
      _
    // Predicated region
    $region10: #{my_model_linear_forward.1} parent=1 // pred_check
      _
    $region11: #{my_model_linear_forward.1} parent=1 // pred_check_branch
      %31 = sbr.rel (0) target = $region13
    $region12: #{my_model_linear_forward.1} parent=1 // pred_region
      %32 = dma.done [#allocation14], 1504
    $region13: #{my_model_linear_forward.1} parent=1 // pred_fallthru
      _
    // Predicated region
    $region14: #{my_model_linear_forward.1} parent=1 // pred_check
      _
    $region15: #{my_model_linear_forward.1} parent=1 // pred_check_branch
      %35 = sbr.rel target = $region17
    $region16: #{my_model_linear_forward.1} parent=1 // pred_region
      %36 = sst [smem:[#allocation17]] [#allocation16]
      %37 = sst [smem:[#allocation18]] [#allocation15]
    $region17: #{my_model_linear_forward.1} parent=1 // pred_fallthru
      _
    %39 = shalt.err (0)
    %s41 = sshll.u32 [#allocation2], 4
    %s42 = int_to_ptr.vmem [resolvable:$true] %s41
    %44 = dma.hbm_to_vmem [thread:$0]  %s2, 512, %s42, [#allocation12]
    %s45 = scalar_lea.sflag [#allocation12], 1
    // Predicated region
    $region18: #{my_model_linear_forward.1} parent=1 // pred_check
      _
    $region19: #{my_model_linear_forward.1} parent=1 // pred_check_branch
      %47 = sbr.rel target = $region21
    $region20: #{my_model_linear_forward.1} parent=1 // pred_region
      %48 = sst [smem:[#allocation17]] [#allocation20]
      %49 = sst [smem:[#allocation18]] [#allocation19]
    $region21: #{my_model_linear_forward.1} parent=1 // pred_fallthru
      _
    %51 = shalt.err (0)
    %s53 = sshll.u32 [#allocation3], 4
    %s54 = int_to_ptr.vmem [resolvable:$true] %s53
    %56 = dma.hbm_to_vmem [thread:$0]  %s3, 1024, %s54, %s45
    %s57 = scalar_lea.sflag [#allocation12], 2
    // Predicated region
    $region22: #{my_model_linear_forward.1} parent=1 // pred_check
      _
    $region23: #{my_model_linear_forward.1} parent=1 // pred_check_branch
      %59 = sbr.rel target = $region25
    $region24: #{my_model_linear_forward.1} parent=1 // pred_region
      %60 = sst [smem:[#allocation17]] [#allocation22]
      %61 = sst [smem:[#allocation18]] [#allocation21]
    $region25: #{my_model_linear_forward.1} parent=1 // pred_fallthru
      _
    %63 = shalt.err (0)
    %s65 = sshll.u32 [#allocation4], 4
    %s66 = int_to_ptr.vmem [resolvable:$true] %s65
    %68 = dma.hbm_to_vmem [thread:$0]  %s4, 4096, %s66, %s57
    %s69 = scalar_lea.sflag [#allocation12], 3
    // Predicated region
    $region26: #{my_model_linear_forward.1} parent=1 // pred_check
      _
    $region27: #{my_model_linear_forward.1} parent=1 // pred_check_branch
      %71 = sbr.rel target = $region29
    $region28: #{my_model_linear_forward.1} parent=1 // pred_region
      %72 = sst [smem:[#allocation17]] [#allocation24]
      %73 = sst [smem:[#allocation18]] [#allocation23]
    $region29: #{my_model_linear_forward.1} parent=1 // pred_fallthru
      _
    %75 = shalt.err (0)
    %s77 = sshll.u32 [#allocation5], 4
    %s78 = int_to_ptr.vmem [resolvable:$true] %s77
    %80 = dma.hbm_to_vmem [thread:$0]  %s5, 16384, %s78, %s69
    %s81 = scalar_lea.sflag [#allocation12], 4
    // Predicated region
    $region30: #{my_model_linear_forward.1} parent=1 // pred_check
      _
    $region31: #{my_model_linear_forward.1} parent=1 // pred_check_branch
      %83 = sbr.rel target = $region33
    $region32: #{my_model_linear_forward.1} parent=1 // pred_region
      %84 = sst [smem:[#allocation17]] [#allocation26]
      %85 = sst [smem:[#allocation18]] [#allocation25]
    $region33: #{my_model_linear_forward.1} parent=1 // pred_fallthru
      _
    %87 = shalt.err (0)
    %s89 = sshll.u32 [#allocation6], 4
    %s90 = int_to_ptr.vmem [resolvable:$true] %s89
    %92 = dma.hbm_to_vmem [thread:$0]  %s6, 65536, %s90, %s81
    %s93 = scalar_lea.sflag [#allocation12], 5
    // Predicated region
    $region34: #{my_model_linear_forward.1} parent=1 // pred_check
      _
    $region35: #{my_model_linear_forward.1} parent=1 // pred_check_branch
      %95 = sbr.rel target = $region37
    $region36: #{my_model_linear_forward.1} parent=1 // pred_region
      %96 = sst [smem:[#allocation17]] [#allocation28]
      %97 = sst [smem:[#allocation18]] [#allocation27]
    $region37: #{my_model_linear_forward.1} parent=1 // pred_fallthru
      _
    %99 = shalt.err (0)
    %s101 = sshll.u32 [#allocation7], 4
    %s102 = int_to_ptr.vmem [resolvable:$true] %s101
    %104 = dma.hbm_to_vmem [thread:$0]  %s7, 65536, %s102, %s93
    %s105 = scalar_lea.sflag [#allocation12], 6
    // Predicated region
    $region38: #{my_model_linear_forward.1} parent=1 // pred_check
      _
    $region39: #{my_model_linear_forward.1} parent=1 // pred_check_branch
      %107 = sbr.rel target = $region41
    $region40: #{my_model_linear_forward.1} parent=1 // pred_region
      %108 = sst [smem:[#allocation17]] [#allocation30]
      %109 = sst [smem:[#allocation18]] [#allocation29]
    $region41: #{my_model_linear_forward.1} parent=1 // pred_fallthru
      _
    %111 = shalt.err (0)
    %s113 = sshll.u32 [#allocation8], 4
    %s114 = int_to_ptr.vmem [resolvable:$true] %s113
    %116 = dma.hbm_to_vmem [thread:$0]  %s8, 16384, %s114, %s105
    %s117 = scalar_lea.sflag [#allocation12], 7
    // Predicated region
    $region42: #{my_model_linear_forward.1} parent=1 // pred_check
      _
    $region43: #{my_model_linear_forward.1} parent=1 // pred_check_branch
      %119 = sbr.rel target = $region45
    $region44: #{my_model_linear_forward.1} parent=1 // pred_region
      %120 = sst [smem:[#allocation17]] [#allocation32]
      %121 = sst [smem:[#allocation18]] [#allocation31]
    $region45: #{my_model_linear_forward.1} parent=1 // pred_fallthru
      _
    %123 = shalt.err (0)
    %s125 = sshll.u32 [#allocation9], 4
    %s126 = int_to_ptr.vmem [resolvable:$true] %s125
    %128 = dma.hbm_to_vmem [thread:$0]  %s9, 4096, %s126, %s117
    %s129 = scalar_lea.sflag [#allocation12], 8
    // Predicated region
    $region46: #{my_model_linear_forward.1} parent=1 // pred_check
      _
    $region47: #{my_model_linear_forward.1} parent=1 // pred_check_branch
      %131 = sbr.rel target = $region49
    $region48: #{my_model_linear_forward.1} parent=1 // pred_region
      %132 = sst [smem:[#allocation17]] [#allocation34]
      %133 = sst [smem:[#allocation18]] [#allocation33]
    $region49: #{my_model_linear_forward.1} parent=1 // pred_fallthru
      _
    %135 = shalt.err (0)
    %s137 = sshll.u32 [#allocation10], 4
    %s138 = int_to_ptr.vmem [resolvable:$true] %s137
    %140 = dma.hbm_to_vmem [thread:$0]  %s10, 1024, %s138, %s129
    %s141 = scalar_lea.sflag [#allocation12], 9
    // Predicated region
    $region50: #{my_model_linear_forward.1} parent=1 // pred_check
      _
    $region51: #{my_model_linear_forward.1} parent=1 // pred_check_branch
      %143 = sbr.rel target = $region53
    $region52: #{my_model_linear_forward.1} parent=1 // pred_region
      %144 = sst [smem:[#allocation17]] [#allocation36]
      %145 = sst [smem:[#allocation18]] [#allocation35]
    $region53: #{my_model_linear_forward.1} parent=1 // pred_fallthru
      _
    %147 = shalt.err (0)
    %s149 = sshll.u32 [#allocation11], 4
    %s150 = int_to_ptr.vmem [resolvable:$true] %s149
    %152 = dma.hbm_to_vmem [thread:$0]  %s11, 512, %s150, %s141
    %v153 = vld [vmem:[%s0] sm:$0xff]
    %v154 = vld [vmem:[%s0 + $0x8] sm:$0xff]
    %v155 = vpack.c.bf16 %v154, %v153
    %s156 = smul.u32 2, 16
    %s157 = smul.u32 %s156, 1
    %s158 = sshll.u32 %s157, 4
    %159 = dma.done [#allocation12], %s158
    %v160 = vld [vmem:[#allocation2] sm:$0xff]
    %v161 = vld [vmem:[#allocation2 + $0x8] sm:$0xff]
    %v162 = vld [vmem:[#allocation2 + $0x10] sm:$0xff]
    %v163 = vld [vmem:[#allocation2 + $0x18] sm:$0xff]
    %v164 = vunpack.c.l.s8.bf16 %v160
    %v165 = vunpack.c.h.s8.bf16 %v160
    %v166 = vunpack.c.l.s8.bf16 %v161
    %v167 = vunpack.c.h.s8.bf16 %v161
    %v168 = vunpack.c.l.s8.bf16 %v162
    %v169 = vunpack.c.h.s8.bf16 %v162
    %v170 = vunpack.c.l.s8.bf16 %v163
    %v171 = vunpack.c.h.s8.bf16 %v163
    %172 = vmatprep.subr.bf16.mxu0 0
    %173 = vmatpush1.bf16.msra.mxu0 %v164
    %174 = vmatprep.subr.bf16.mxu0 0
    %175 = vmatpush1.bf16.msra.mxu0 %v165
    %176 = vmatprep.subr.bf16.mxu0 0
    %177 = vmatpush1.bf16.msra.mxu0 %v166
    %178 = vmatprep.subr.bf16.mxu0 0
    %179 = vmatpush1.bf16.msra.mxu0 %v167
    %180 = vmatprep.subr.bf16.mxu0 0
    %181 = vmatpush1.bf16.msra.mxu0 %v168
    %182 = vmatprep.subr.bf16.mxu0 0
    %183 = vmatpush1.bf16.msra.mxu0 %v169
    %184 = vmatprep.subr.bf16.mxu0 0
    %185 = vmatpush1.bf16.msra.mxu0 %v170
    %186 = vmatprep.subr.bf16.mxu0 0
    %187 = vmatpush1.bf16.msra.mxu0 %v171
    %188 = vmatprep.subr.bf16.mxu0 0
    %189 = vmatpush1.bf16.msra.mxu0 0
    %190 = vmatprep.subr.bf16.mxu0 0
    %191 = vmatpush1.bf16.msra.mxu0 0
    %192 = vmatprep.subr.bf16.mxu0 0
    %193 = vmatpush1.bf16.msra.mxu0 0
    %194 = vmatprep.subr.bf16.mxu0 0
    %195 = vmatpush1.bf16.msra.mxu0 0
    %196 = vmatprep.subr.bf16.mxu0 0
    %197 = vmatpush1.bf16.msra.mxu0 0
    %198 = vmatprep.subr.bf16.mxu0 0
    %199 = vmatpush1.bf16.msra.mxu0 0
    %200 = vmatprep.subr.bf16.mxu0 0
    %201 = vmatpush1.bf16.msra.mxu0 0
    %202 = vmatprep.subr.bf16.mxu0 0
    %203 = vmatpush1.bf16.msra.mxu0 0
    %204 = vmatprep.mubr.bf16.mxu0 0
    %205 = vmatmul.mubr.bf16.gmra.mrb[0].mxu0 %v155
    %v206 = vpop.f32.mrb[0].mxu0
    %v207 = vadd.f32 0.0, %v206
    %v208 = vpop.f32.mrb[0].mxu0
    %v209 = vpop.f32.mrb[0].mxu0
    %v210 = vadd.f32 0.0, %v209
    %v211 = vpop.f32.mrb[0].mxu0
    %212 = vdwg.mxu0
    %v213 = vld [vmem:[#allocation13] sm:$0x1]
    %v214 = vld [vmem:[#allocation13 + $0x1] sm:$0x1]
    %v215 = vlaneseq
    %v216 = vshrl.u32 %v215, 7
    %v217 = vsub.s32 0, %v216
    %v218 = vrot.slane %v213, %v217
    %v219 = vmul.f32 %v207, %v218
    %v220 = vmul.f32 %v210, %v218
    %v221 = vlaneseq
    %v222 = vshrl.u32 %v221, 7
    %v223 = vsub.s32 0, %v222
    %v224 = vrot.slane %v214, %v223
    %v225 = vadd.f32 %v219, %v224
    %v226 = vadd.f32 %v220, %v224
    %v227 = vmax.f32 %v225, 0.0
    %v228 = vmax.f32 %v226, 0.0
    %v229 = vpack.c.bf16 %v228, %v227
    %s230 = smul.u32 %s156, 2
    %s231 = sshll.u32 %s230, 4
    %232 = dma.done %s45, %s231
    %v233 = vld [vmem:[#allocation3] sm:$0xff]
    %v234 = vld [vmem:[#allocation3 + $0x8] sm:$0xff]
    %v235 = vld [vmem:[#allocation3 + $0x10] sm:$0xff]
    %v236 = vld [vmem:[#allocation3 + $0x18] sm:$0xff]
    %v237 = vld [vmem:[#allocation3 + $0x20] sm:$0xff]
    %v238 = vld [vmem:[#allocation3 + $0x28] sm:$0xff]
    %v239 = vld [vmem:[#allocation3 + $0x30] sm:$0xff]
    %v240 = vld [vmem:[#allocation3 + $0x38] sm:$0xff]
    %v241 = vunpack.c.l.s8.bf16 %v233
    %v242 = vunpack.c.l.s8.bf16 %v234
    %v243 = vunpack.c.h.s8.bf16 %v233
    %v244 = vunpack.c.h.s8.bf16 %v234
    %v245 = vunpack.c.l.s8.bf16 %v235
    %v246 = vunpack.c.l.s8.bf16 %v236
    %v247 = vunpack.c.h.s8.bf16 %v235
    %v248 = vunpack.c.h.s8.bf16 %v236
    %v249 = vunpack.c.l.s8.bf16 %v237
    %v250 = vunpack.c.l.s8.bf16 %v238
    %v251 = vunpack.c.h.s8.bf16 %v237
    %v252 = vunpack.c.h.s8.bf16 %v238
    %v253 = vunpack.c.l.s8.bf16 %v239
    %v254 = vunpack.c.l.s8.bf16 %v240
    %v255 = vunpack.c.h.s8.bf16 %v239
    %v256 = vunpack.c.h.s8.bf16 %v240
    %257 = vmatprep.subr.bf16.mxu0 %v242
    %258 = vmatpush1.bf16.msra.mxu0 %v241
    %259 = vmatprep.subr.bf16.mxu0 %v244
    %260 = vmatpush1.bf16.msra.mxu0 %v243
    %261 = vmatprep.subr.bf16.mxu0 %v246
    %262 = vmatpush1.bf16.msra.mxu0 %v245
    %263 = vmatprep.subr.bf16.mxu0 %v248
    %264 = vmatpush1.bf16.msra.mxu0 %v247
    %265 = vmatprep.subr.bf16.mxu0 %v250
    %266 = vmatpush1.bf16.msra.mxu0 %v249
    %267 = vmatprep.subr.bf16.mxu0 %v252
    %268 = vmatpush1.bf16.msra.mxu0 %v251
    %269 = vmatprep.subr.bf16.mxu0 %v254
    %270 = vmatpush1.bf16.msra.mxu0 %v253
    %271 = vmatprep.subr.bf16.mxu0 %v256
    %272 = vmatpush1.bf16.msra.mxu0 %v255
    %273 = vmatprep.subr.bf16.mxu0 0
    %274 = vmatpush1.bf16.msra.mxu0 0
    %275 = vmatprep.subr.bf16.mxu0 0
    %276 = vmatpush1.bf16.msra.mxu0 0
    %277 = vmatprep.subr.bf16.mxu0 0
    %278 = vmatpush1.bf16.msra.mxu0 0
    %279 = vmatprep.subr.bf16.mxu0 0
    %280 = vmatpush1.bf16.msra.mxu0 0
    %281 = vmatprep.subr.bf16.mxu0 0
    %282 = vmatpush1.bf16.msra.mxu0 0
    %283 = vmatprep.subr.bf16.mxu0 0
    %284 = vmatpush1.bf16.msra.mxu0 0
    %285 = vmatprep.subr.bf16.mxu0 0
    %286 = vmatpush1.bf16.msra.mxu0 0
    %287 = vmatprep.subr.bf16.mxu0 0
    %288 = vmatpush1.bf16.msra.mxu0 0
    %289 = vmatprep.mubr.bf16.mxu0 0
    %290 = vmatmul.mubr.bf16.gmra.mrb[0].mxu0 %v229
    %v291 = vpop.f32.mrb[0].mxu0
    %v292 = vadd.f32 0.0, %v291
    %v293 = vpop.f32.mrb[0].mxu0
    %v294 = vadd.f32 0.0, %v293
    %v295 = vpop.f32.mrb[0].mxu0
    %v296 = vadd.f32 0.0, %v295
    %v297 = vpop.f32.mrb[0].mxu0
    %v298 = vadd.f32 0.0, %v297
    %299 = vdwg.mxu0
    %s300 = scalar_lea.vmem [#allocation13], 2
    %v301 = vld [vmem:[%s300] ss:$2 sm:$0x3]
    %s302 = scalar_lea.vmem [#allocation13], 3
    %v303 = vld [vmem:[%s302] ss:$2 sm:$0x3]
    %v305 = vlaneseq
    %v306 = vshrl.u32 %v305, 7
    %v307 = vsub.s32 0, %v306
    %v308 = vrot.slane %v301, %v307
    %v309 = vlaneseq
    %v310 = vshrl.u32 %v309, 7
    %v311 = vsub.s32 1, %v310
    %v312 = vrot.slane %v301, %v311
    %v315 = vmul.f32 %v292, %v308
    %v316 = vmul.f32 %v294, %v312
    %v317 = vmul.f32 %v296, %v308
    %v318 = vmul.f32 %v298, %v312
    %v320 = vlaneseq
    %v321 = vshrl.u32 %v320, 7
    %v322 = vsub.s32 0, %v321
    %v323 = vrot.slane %v303, %v322
    %v324 = vlaneseq
    %v325 = vshrl.u32 %v324, 7
    %v326 = vsub.s32 1, %v325
    %v327 = vrot.slane %v303, %v326
    %v330 = vadd.f32 %v315, %v323
    %v331 = vadd.f32 %v316, %v327
    %v332 = vadd.f32 %v317, %v323
    %v333 = vadd.f32 %v318, %v327
    %v334 = vmax.f32 %v330, 0.0
    %v335 = vmax.f32 %v331, 0.0
    %v336 = vmax.f32 %v332, 0.0
    %v337 = vmax.f32 %v333, 0.0
    %v338 = vpack.c.bf16 %v336, %v334
    %v339 = vpack.c.bf16 %v337, %v335
    %s340 = smul.u32 2, 32
    %s341 = smul.u32 %s340, 4
    %s342 = sshll.u32 %s341, 4
    %343 = dma.done %s57, %s342
    %v344 = vld [vmem:[#allocation4] sm:$0xff]
    %v345 = vld [vmem:[#allocation4 + $0x8] sm:$0xff]
    %v346 = vld [vmem:[#allocation4 + $0x10] sm:$0xff]
    %v347 = vld [vmem:[#allocation4 + $0x18] sm:$0xff]
    %v348 = vld [vmem:[#allocation4 + $0x20] sm:$0xff]
    %v349 = vld [vmem:[#allocation4 + $0x28] sm:$0xff]
    %v350 = vld [vmem:[#allocation4 + $0x30] sm:$0xff]
    %v351 = vld [vmem:[#allocation4 + $0x38] sm:$0xff]
    %v352 = vld [vmem:[#allocation4 + $0x40] sm:$0xff]
    %v353 = vld [vmem:[#allocation4 + $0x48] sm:$0xff]
    %v354 = vld [vmem:[#allocation4 + $0x50] sm:$0xff]
    %v355 = vld [vmem:[#allocation4 + $0x58] sm:$0xff]
    %v356 = vld [vmem:[#allocation4 + $0x60] sm:$0xff]
    %v357 = vld [vmem:[#allocation4 + $0x68] sm:$0xff]
    %v358 = vld [vmem:[#allocation4 + $0x70] sm:$0xff]
    %v359 = vld [vmem:[#allocation4 + $0x78] sm:$0xff]
    %v360 = vld [vmem:[#allocation4 + $0x80] sm:$0xff]
    %v361 = vld [vmem:[#allocation4 + $0x88] sm:$0xff]
    %v362 = vld [vmem:[#allocation4 + $0x90] sm:$0xff]
    %v363 = vld [vmem:[#allocation4 + $0x98] sm:$0xff]
    %v364 = vld [vmem:[#allocation4 + $0xa0] sm:$0xff]
    %v365 = vld [vmem:[#allocation4 + $0xa8] sm:$0xff]
    %v366 = vld [vmem:[#allocation4 + $0xb0] sm:$0xff]
    %v367 = vld [vmem:[#allocation4 + $0xb8] sm:$0xff]
    %v368 = vld [vmem:[#allocation4 + $0xc0] sm:$0xff]
    %v369 = vld [vmem:[#allocation4 + $0xc8] sm:$0xff]
    %v370 = vld [vmem:[#allocation4 + $0xd0] sm:$0xff]
    %v371 = vld [vmem:[#allocation4 + $0xd8] sm:$0xff]
    %v372 = vld [vmem:[#allocation4 + $0xe0] sm:$0xff]
    %v373 = vld [vmem:[#allocation4 + $0xe8] sm:$0xff]
    %v374 = vld [vmem:[#allocation4 + $0xf0] sm:$0xff]
    %v375 = vld [vmem:[#allocation4 + $0xf8] sm:$0xff]
    %v376 = vunpack.c.l.s8.bf16 %v344
    %v377 = vunpack.c.l.s8.bf16 %v345
    %v378 = vunpack.c.l.s8.bf16 %v346
    %v379 = vunpack.c.l.s8.bf16 %v347
    %v380 = vunpack.c.h.s8.bf16 %v344
    %v381 = vunpack.c.h.s8.bf16 %v345
    %v382 = vunpack.c.h.s8.bf16 %v346
    %v383 = vunpack.c.h.s8.bf16 %v347
    %v384 = vunpack.c.l.s8.bf16 %v348
    %v385 = vunpack.c.l.s8.bf16 %v349
    %v386 = vunpack.c.l.s8.bf16 %v350
    %v387 = vunpack.c.l.s8.bf16 %v351
    %v388 = vunpack.c.h.s8.bf16 %v348
    %v389 = vunpack.c.h.s8.bf16 %v349
    %v390 = vunpack.c.h.s8.bf16 %v350
    %v391 = vunpack.c.h.s8.bf16 %v351
    %v392 = vunpack.c.l.s8.bf16 %v352
    %v393 = vunpack.c.l.s8.bf16 %v353
    %v394 = vunpack.c.l.s8.bf16 %v354
    %v395 = vunpack.c.l.s8.bf16 %v355
    %v396 = vunpack.c.h.s8.bf16 %v352
    %v397 = vunpack.c.h.s8.bf16 %v353
    %v398 = vunpack.c.h.s8.bf16 %v354
    %v399 = vunpack.c.h.s8.bf16 %v355
    %v400 = vunpack.c.l.s8.bf16 %v356
    %v401 = vunpack.c.l.s8.bf16 %v357
    %v402 = vunpack.c.l.s8.bf16 %v358
    %v403 = vunpack.c.l.s8.bf16 %v359
    %v404 = vunpack.c.h.s8.bf16 %v356
    %v405 = vunpack.c.h.s8.bf16 %v357
    %v406 = vunpack.c.h.s8.bf16 %v358
    %v407 = vunpack.c.h.s8.bf16 %v359
    %v408 = vunpack.c.l.s8.bf16 %v360
    %v409 = vunpack.c.l.s8.bf16 %v361
    %v410 = vunpack.c.l.s8.bf16 %v362
    %v411 = vunpack.c.l.s8.bf16 %v363
    %v412 = vunpack.c.h.s8.bf16 %v360
    %v413 = vunpack.c.h.s8.bf16 %v361
    %v414 = vunpack.c.h.s8.bf16 %v362
    %v415 = vunpack.c.h.s8.bf16 %v363
    %v416 = vunpack.c.l.s8.bf16 %v364
    %v417 = vunpack.c.l.s8.bf16 %v365
    %v418 = vunpack.c.l.s8.bf16 %v366
    %v419 = vunpack.c.l.s8.bf16 %v367
    %v420 = vunpack.c.h.s8.bf16 %v364
    %v421 = vunpack.c.h.s8.bf16 %v365
    %v422 = vunpack.c.h.s8.bf16 %v366
    %v423 = vunpack.c.h.s8.bf16 %v367
    %v424 = vunpack.c.l.s8.bf16 %v368
    %v425 = vunpack.c.l.s8.bf16 %v369
    %v426 = vunpack.c.l.s8.bf16 %v370
    %v427 = vunpack.c.l.s8.bf16 %v371
    %v428 = vunpack.c.h.s8.bf16 %v368
    %v429 = vunpack.c.h.s8.bf16 %v369
    %v430 = vunpack.c.h.s8.bf16 %v370
    %v431 = vunpack.c.h.s8.bf16 %v371
    %v432 = vunpack.c.l.s8.bf16 %v372
    %v433 = vunpack.c.l.s8.bf16 %v373
    %v434 = vunpack.c.l.s8.bf16 %v374
    %v435 = vunpack.c.l.s8.bf16 %v375
    %v436 = vunpack.c.h.s8.bf16 %v372
    %v437 = vunpack.c.h.s8.bf16 %v373
    %v438 = vunpack.c.h.s8.bf16 %v374
    %v439 = vunpack.c.h.s8.bf16 %v375
    %440 = vmatprep.subr.bf16.mxu0 %v377
    %441 = vmatpush1.bf16.msra.mxu0 %v376
    %442 = vmatprep.subr.bf16.mxu0 %v381
    %443 = vmatpush1.bf16.msra.mxu0 %v380
    %444 = vmatprep.subr.bf16.mxu0 %v385
    %445 = vmatpush1.bf16.msra.mxu0 %v384
    %446 = vmatprep.subr.bf16.mxu0 %v389
    %447 = vmatpush1.bf16.msra.mxu0 %v388
    %448 = vmatprep.subr.bf16.mxu0 %v393
    %449 = vmatpush1.bf16.msra.mxu0 %v392
    %450 = vmatprep.subr.bf16.mxu0 %v397
    %451 = vmatpush1.bf16.msra.mxu0 %v396
    %452 = vmatprep.subr.bf16.mxu0 %v401
    %453 = vmatpush1.bf16.msra.mxu0 %v400
    %454 = vmatprep.subr.bf16.mxu0 %v405
    %455 = vmatpush1.bf16.msra.mxu0 %v404
    %456 = vmatprep.subr.bf16.mxu0 %v409
    %457 = vmatpush1.bf16.msra.mxu0 %v408
    %458 = vmatprep.subr.bf16.mxu0 %v413
    %459 = vmatpush1.bf16.msra.mxu0 %v412
    %460 = vmatprep.subr.bf16.mxu0 %v417
    %461 = vmatpush1.bf16.msra.mxu0 %v416
    %462 = vmatprep.subr.bf16.mxu0 %v421
    %463 = vmatpush1.bf16.msra.mxu0 %v420
    %464 = vmatprep.subr.bf16.mxu0 %v425
    %465 = vmatpush1.bf16.msra.mxu0 %v424
    %466 = vmatprep.subr.bf16.mxu0 %v429
    %467 = vmatpush1.bf16.msra.mxu0 %v428
    %468 = vmatprep.subr.bf16.mxu0 %v433
    %469 = vmatpush1.bf16.msra.mxu0 %v432
    %470 = vmatprep.subr.bf16.mxu0 %v437
    %471 = vmatpush1.bf16.msra.mxu0 %v436
    %472 = vmatprep.mubr.bf16.mxu0 %v339
    %473 = vmatmul.mubr.bf16.gmra.mrb[0].mxu0 %v338
    %v474 = vpop.f32.mrb[0].mxu0
    %v475 = vadd.f32 0.0, %v474
    %v476 = vpop.f32.mrb[0].mxu0
    %v477 = vadd.f32 0.0, %v476
    %v478 = vpop.f32.mrb[0].mxu0
    %v479 = vadd.f32 0.0, %v478
    %v480 = vpop.f32.mrb[0].mxu0
    %v481 = vadd.f32 0.0, %v480
    %482 = vdwg.mxu0
    %483 = vmatprep.subr.bf16.mxu0 %v379
    %484 = vmatpush1.bf16.msra.mxu0 %v378
    %485 = vmatprep.subr.bf16.mxu0 %v383
    %486 = vmatpush1.bf16.msra.mxu0 %v382
    %487 = vmatprep.subr.bf16.mxu0 %v387
    %488 = vmatpush1.bf16.msra.mxu0 %v386
    %489 = vmatprep.subr.bf16.mxu0 %v391
    %490 = vmatpush1.bf16.msra.mxu0 %v390
    %491 = vmatprep.subr.bf16.mxu0 %v395
    %492 = vmatpush1.bf16.msra.mxu0 %v394
    %493 = vmatprep.subr.bf16.mxu0 %v399
    %494 = vmatpush1.bf16.msra.mxu0 %v398
    %495 = vmatprep.subr.bf16.mxu0 %v403
    %496 = vmatpush1.bf16.msra.mxu0 %v402
    %497 = vmatprep.subr.bf16.mxu0 %v407
    %498 = vmatpush1.bf16.msra.mxu0 %v406
    %499 = vmatprep.subr.bf16.mxu0 %v411
    %500 = vmatpush1.bf16.msra.mxu0 %v410
    %501 = vmatprep.subr.bf16.mxu0 %v415
    %502 = vmatpush1.bf16.msra.mxu0 %v414
    %503 = vmatprep.subr.bf16.mxu0 %v419
    %504 = vmatpush1.bf16.msra.mxu0 %v418
    %505 = vmatprep.subr.bf16.mxu0 %v423
    %506 = vmatpush1.bf16.msra.mxu0 %v422
    %507 = vmatprep.subr.bf16.mxu0 %v427
    %508 = vmatpush1.bf16.msra.mxu0 %v426
    %509 = vmatprep.subr.bf16.mxu0 %v431
    %510 = vmatpush1.bf16.msra.mxu0 %v430
    %511 = vmatprep.subr.bf16.mxu0 %v435
    %512 = vmatpush1.bf16.msra.mxu0 %v434
    %513 = vmatprep.subr.bf16.mxu0 %v439
    %514 = vmatpush1.bf16.msra.mxu0 %v438
    %515 = vmatprep.mubr.bf16.mxu0 %v339
    %516 = vmatmul.mubr.bf16.gmra.mrb[0].mxu0 %v338
    %v517 = vpop.f32.mrb[0].mxu0
    %v518 = vadd.f32 0.0, %v517
    %v519 = vpop.f32.mrb[0].mxu0
    %v520 = vadd.f32 0.0, %v519
    %v521 = vpop.f32.mrb[0].mxu0
    %v522 = vadd.f32 0.0, %v521
    %v523 = vpop.f32.mrb[0].mxu0
    %v524 = vadd.f32 0.0, %v523
    %525 = vdwg.mxu0
    %s526 = scalar_lea.vmem [#allocation13], 6
    %v527 = vld [vmem:[%s526] ss:$2 sm:$0xf]
    %s528 = scalar_lea.vmem [#allocation13], 7
    %v529 = vld [vmem:[%s528] ss:$2 sm:$0xf]
    %v531 = vlaneseq
    %v532 = vshrl.u32 %v531, 7
    %v533 = vsub.s32 0, %v532
    %v534 = vrot.slane %v527, %v533
    %v535 = vlaneseq
    %v536 = vshrl.u32 %v535, 7
    %v537 = vsub.s32 1, %v536
    %v538 = vrot.slane %v527, %v537
    %v539 = vlaneseq
    %v540 = vshrl.u32 %v539, 7
    %v541 = vsub.s32 2, %v540
    %v542 = vrot.slane %v527, %v541
    %v543 = vlaneseq
    %v544 = vshrl.u32 %v543, 7
    %v545 = vsub.s32 3, %v544
    %v546 = vrot.slane %v527, %v545
    %v551 = vmul.f32 %v475, %v534
    %v552 = vmul.f32 %v477, %v538
    %v553 = vmul.f32 %v518, %v542
    %v554 = vmul.f32 %v520, %v546
    %v555 = vmul.f32 %v479, %v534
    %v556 = vmul.f32 %v481, %v538
    %v557 = vmul.f32 %v522, %v542
    %v558 = vmul.f32 %v524, %v546
    %v560 = vlaneseq
    %v561 = vshrl.u32 %v560, 7
    %v562 = vsub.s32 0, %v561
    %v563 = vrot.slane %v529, %v562
    %v564 = vlaneseq
    %v565 = vshrl.u32 %v564, 7
    %v566 = vsub.s32 1, %v565
    %v567 = vrot.slane %v529, %v566
    %v568 = vlaneseq
    %v569 = vshrl.u32 %v568, 7
    %v570 = vsub.s32 2, %v569
    %v571 = vrot.slane %v529, %v570
    %v572 = vlaneseq
    %v573 = vshrl.u32 %v572, 7
    %v574 = vsub.s32 3, %v573
    %v575 = vrot.slane %v529, %v574
    %v580 = vadd.f32 %v551, %v563
    %v581 = vadd.f32 %v552, %v567
    %v582 = vadd.f32 %v553, %v571
    %v583 = vadd.f32 %v554, %v575
    %v584 = vadd.f32 %v555, %v563
    %v585 = vadd.f32 %v556, %v567
    %v586 = vadd.f32 %v557, %v571
    %v587 = vadd.f32 %v558, %v575
    %v588 = vmax.f32 %v580, 0.0
    %v589 = vmax.f32 %v581, 0.0
    %v590 = vmax.f32 %v582, 0.0
    %v591 = vmax.f32 %v583, 0.0
    %v592 = vmax.f32 %v584, 0.0
    %v593 = vmax.f32 %v585, 0.0
    %v594 = vmax.f32 %v586, 0.0
    %v595 = vmax.f32 %v587, 0.0
    %v596 = vpack.c.bf16 %v592, %v588
    %v597 = vpack.c.bf16 %v593, %v589
    %v598 = vpack.c.bf16 %v594, %v590
    %v599 = vpack.c.bf16 %v595, %v591
    %s600 = smul.u32 2, 64
    %s601 = smul.u32 %s600, 8
    %s602 = sshll.u32 %s601, 4
    %603 = dma.done %s69, %s602
    %v604 = vld [vmem:[#allocation5] sm:$0xff]
    %v605 = vld [vmem:[#allocation5 + $0x8] sm:$0xff]
    %v606 = vld [vmem:[#allocation5 + $0x10] sm:$0xff]
    %v607 = vld [vmem:[#allocation5 + $0x18] sm:$0xff]
    %v608 = vld [vmem:[#allocation5 + $0x20] sm:$0xff]
    %v609 = vld [vmem:[#allocation5 + $0x28] sm:$0xff]
    %v610 = vld [vmem:[#allocation5 + $0x30] sm:$0xff]
    %v611 = vld [vmem:[#allocation5 + $0x38] sm:$0xff]
    %v612 = vld [vmem:[#allocation5 + $0x40] sm:$0xff]
    %v613 = vld [vmem:[#allocation5 + $0x48] sm:$0xff]
    %v614 = vld [vmem:[#allocation5 + $0x50] sm:$0xff]
    %v615 = vld [vmem:[#allocation5 + $0x58] sm:$0xff]
    %v616 = vld [vmem:[#allocation5 + $0x60] sm:$0xff]
    %v617 = vld [vmem:[#allocation5 + $0x68] sm:$0xff]
    %v618 = vld [vmem:[#allocation5 + $0x70] sm:$0xff]
    %v619 = vld [vmem:[#allocation5 + $0x78] sm:$0xff]
    %v620 = vld [vmem:[#allocation5 + $0x80] sm:$0xff]
    %v621 = vld [vmem:[#allocation5 + $0x88] sm:$0xff]
    %v622 = vld [vmem:[#allocation5 + $0x90] sm:$0xff]
    %v623 = vld [vmem:[#allocation5 + $0x98] sm:$0xff]
    %v624 = vld [vmem:[#allocation5 + $0xa0] sm:$0xff]
    %v625 = vld [vmem:[#allocation5 + $0xa8] sm:$0xff]
    %v626 = vld [vmem:[#allocation5 + $0xb0] sm:$0xff]
    %v627 = vld [vmem:[#allocation5 + $0xb8] sm:$0xff]
    %v628 = vld [vmem:[#allocation5 + $0xc0] sm:$0xff]
    %v629 = vld [vmem:[#allocation5 + $0xc8] sm:$0xff]
    %v630 = vld [vmem:[#allocation5 + $0xd0] sm:$0xff]
    %v631 = vld [vmem:[#allocation5 + $0xd8] sm:$0xff]
    %v632 = vld [vmem:[#allocation5 + $0xe0] sm:$0xff]
    %v633 = vld [vmem:[#allocation5 + $0xe8] sm:$0xff]
    %v634 = vld [vmem:[#allocation5 + $0xf0] sm:$0xff]
    %v635 = vld [vmem:[#allocation5 + $0xf8] sm:$0xff]
    %v636 = vld [vmem:[#allocation5 + $0x100] sm:$0xff]
    %v637 = vld [vmem:[#allocation5 + $0x108] sm:$0xff]
    %v638 = vld [vmem:[#allocation5 + $0x110] sm:$0xff]
    %v639 = vld [vmem:[#allocation5 + $0x118] sm:$0xff]
    %v640 = vld [vmem:[#allocation5 + $0x120] sm:$0xff]
    %v641 = vld [vmem:[#allocation5 + $0x128] sm:$0xff]
    %v642 = vld [vmem:[#allocation5 + $0x130] sm:$0xff]
    %v643 = vld [vmem:[#allocation5 + $0x138] sm:$0xff]
    %v644 = vld [vmem:[#allocation5 + $0x140] sm:$0xff]
    %v645 = vld [vmem:[#allocation5 + $0x148] sm:$0xff]
    %v646 = vld [vmem:[#allocation5 + $0x150] sm:$0xff]
    %v647 = vld [vmem:[#allocation5 + $0x158] sm:$0xff]
    %v648 = vld [vmem:[#allocation5 + $0x160] sm:$0xff]
    %v649 = vld [vmem:[#allocation5 + $0x168] sm:$0xff]
    %v650 = vld [vmem:[#allocation5 + $0x170] sm:$0xff]
    %v651 = vld [vmem:[#allocation5 + $0x178] sm:$0xff]
    %v652 = vld [vmem:[#allocation5 + $0x180] sm:$0xff]
    %v653 = vld [vmem:[#allocation5 + $0x188] sm:$0xff]
    %v654 = vld [vmem:[#allocation5 + $0x190] sm:$0xff]
    %v655 = vld [vmem:[#allocation5 + $0x198] sm:$0xff]
    %v656 = vld [vmem:[#allocation5 + $0x1a0] sm:$0xff]
    %v657 = vld [vmem:[#allocation5 + $0x1a8] sm:$0xff]
    %v658 = vld [vmem:[#allocation5 + $0x1b0] sm:$0xff]
    %v659 = vld [vmem:[#allocation5 + $0x1b8] sm:$0xff]
    %v660 = vld [vmem:[#allocation5 + $0x1c0] sm:$0xff]
    %v661 = vld [vmem:[#allocation5 + $0x1c8] sm:$0xff]
    %v662 = vld [vmem:[#allocation5 + $0x1d0] sm:$0xff]
    %v663 = vld [vmem:[#allocation5 + $0x1d8] sm:$0xff]
    %v664 = vld [vmem:[#allocation5 + $0x1e0] sm:$0xff]
    %v665 = vld [vmem:[#allocation5 + $0x1e8] sm:$0xff]
    %v666 = vld [vmem:[#allocation5 + $0x1f0] sm:$0xff]
    %v667 = vld [vmem:[#allocation5 + $0x1f8] sm:$0xff]
    %v668 = vld [vmem:[#allocation5 + $0x200] sm:$0xff]
    %v669 = vld [vmem:[#allocation5 + $0x208] sm:$0xff]
    %v670 = vld [vmem:[#allocation5 + $0x210] sm:$0xff]
    %v671 = vld [vmem:[#allocation5 + $0x218] sm:$0xff]
    %v672 = vld [vmem:[#allocation5 + $0x220] sm:$0xff]
    %v673 = vld [vmem:[#allocation5 + $0x228] sm:$0xff]
    %v674 = vld [vmem:[#allocation5 + $0x230] sm:$0xff]
    %v675 = vld [vmem:[#allocation5 + $0x238] sm:$0xff]
    %v676 = vld [vmem:[#allocation5 + $0x240] sm:$0xff]
    %v677 = vld [vmem:[#allocation5 + $0x248] sm:$0xff]
    %v678 = vld [vmem:[#allocation5 + $0x250] sm:$0xff]
    %v679 = vld [vmem:[#allocation5 + $0x258] sm:$0xff]
    %v680 = vld [vmem:[#allocation5 + $0x260] sm:$0xff]
    %v681 = vld [vmem:[#allocation5 + $0x268] sm:$0xff]
    %v682 = vld [vmem:[#allocation5 + $0x270] sm:$0xff]
    %v683 = vld [vmem:[#allocation5 + $0x278] sm:$0xff]
    %v684 = vld [vmem:[#allocation5 + $0x280] sm:$0xff]
    %v685 = vld [vmem:[#allocation5 + $0x288] sm:$0xff]
    %v686 = vld [vmem:[#allocation5 + $0x290] sm:$0xff]
    %v687 = vld [vmem:[#allocation5 + $0x298] sm:$0xff]
    %v688 = vld [vmem:[#allocation5 + $0x2a0] sm:$0xff]
    %v689 = vld [vmem:[#allocation5 + $0x2a8] sm:$0xff]
    %v690 = vld [vmem:[#allocation5 + $0x2b0] sm:$0xff]
    %v691 = vld [vmem:[#allocation5 + $0x2b8] sm:$0xff]
    %v692 = vld [vmem:[#allocation5 + $0x2c0] sm:$0xff]
    %v693 = vld [vmem:[#allocation5 + $0x2c8] sm:$0xff]
    %v694 = vld [vmem:[#allocation5 + $0x2d0] sm:$0xff]
    %v695 = vld [vmem:[#allocation5 + $0x2d8] sm:$0xff]
    %v696 = vld [vmem:[#allocation5 + $0x2e0] sm:$0xff]
    %v697 = vld [vmem:[#allocation5 + $0x2e8] sm:$0xff]
    %v698 = vld [vmem:[#allocation5 + $0x2f0] sm:$0xff]
    %v699 = vld [vmem:[#allocation5 + $0x2f8] sm:$0xff]
    %v700 = vld [vmem:[#allocation5 + $0x300] sm:$0xff]
    %v701 = vld [vmem:[#allocation5 + $0x308] sm:$0xff]
    %v702 = vld [vmem:[#allocation5 + $0x310] sm:$0xff]
    %v703 = vld [vmem:[#allocation5 + $0x318] sm:$0xff]
    %v704 = vld [vmem:[#allocation5 + $0x320] sm:$0xff]
    %v705 = vld [vmem:[#allocation5 + $0x328] sm:$0xff]
    %v706 = vld [vmem:[#allocation5 + $0x330] sm:$0xff]
    %v707 = vld [vmem:[#allocation5 + $0x338] sm:$0xff]
    %v708 = vld [vmem:[#allocation5 + $0x340] sm:$0xff]
    %v709 = vld [vmem:[#allocation5 + $0x348] sm:$0xff]
    %v710 = vld [vmem:[#allocation5 + $0x350] sm:$0xff]
    %v711 = vld [vmem:[#allocation5 + $0x358] sm:$0xff]
    %v712 = vld [vmem:[#allocation5 + $0x360] sm:$0xff]
    %v713 = vld [vmem:[#allocation5 + $0x368] sm:$0xff]
    %v714 = vld [vmem:[#allocation5 + $0x370] sm:$0xff]
    %v715 = vld [vmem:[#allocation5 + $0x378] sm:$0xff]
    %v716 = vld [vmem:[#allocation5 + $0x380] sm:$0xff]
    %v717 = vld [vmem:[#allocation5 + $0x388] sm:$0xff]
    %v718 = vld [vmem:[#allocation5 + $0x390] sm:$0xff]
    %v719 = vld [vmem:[#allocation5 + $0x398] sm:$0xff]
    %v720 = vld [vmem:[#allocation5 + $0x3a0] sm:$0xff]
    %v721 = vld [vmem:[#allocation5 + $0x3a8] sm:$0xff]
    %v722 = vld [vmem:[#allocation5 + $0x3b0] sm:$0xff]
    %v723 = vld [vmem:[#allocation5 + $0x3b8] sm:$0xff]
    %v724 = vld [vmem:[#allocation5 + $0x3c0] sm:$0xff]
    %v725 = vld [vmem:[#allocation5 + $0x3c8] sm:$0xff]
    %v726 = vld [vmem:[#allocation5 + $0x3d0] sm:$0xff]
    %v727 = vld [vmem:[#allocation5 + $0x3d8] sm:$0xff]
    %v728 = vld [vmem:[#allocation5 + $0x3e0] sm:$0xff]
    %v729 = vld [vmem:[#allocation5 + $0x3e8] sm:$0xff]
    %v730 = vld [vmem:[#allocation5 + $0x3f0] sm:$0xff]
    %v731 = vld [vmem:[#allocation5 + $0x3f8] sm:$0xff]
    %v732 = vunpack.c.l.s8.bf16 %v604
    %v733 = vunpack.c.l.s8.bf16 %v605
    %v734 = vunpack.c.l.s8.bf16 %v606
    %v735 = vunpack.c.l.s8.bf16 %v607
    %v736 = vunpack.c.l.s8.bf16 %v608
    %v737 = vunpack.c.l.s8.bf16 %v609
    %v738 = vunpack.c.l.s8.bf16 %v610
    %v739 = vunpack.c.l.s8.bf16 %v611
    %v740 = vunpack.c.h.s8.bf16 %v604
    %v741 = vunpack.c.h.s8.bf16 %v605
    %v742 = vunpack.c.h.s8.bf16 %v606
    %v743 = vunpack.c.h.s8.bf16 %v607
    %v744 = vunpack.c.h.s8.bf16 %v608
    %v745 = vunpack.c.h.s8.bf16 %v609
    %v746 = vunpack.c.h.s8.bf16 %v610
    %v747 = vunpack.c.h.s8.bf16 %v611
    %v748 = vunpack.c.l.s8.bf16 %v612
    %v749 = vunpack.c.l.s8.bf16 %v613
    %v750 = vunpack.c.l.s8.bf16 %v614
    %v751 = vunpack.c.l.s8.bf16 %v615
    %v752 = vunpack.c.l.s8.bf16 %v616
    %v753 = vunpack.c.l.s8.bf16 %v617
    %v754 = vunpack.c.l.s8.bf16 %v618
    %v755 = vunpack.c.l.s8.bf16 %v619
    %v756 = vunpack.c.h.s8.bf16 %v612
    %v757 = vunpack.c.h.s8.bf16 %v613
    %v758 = vunpack.c.h.s8.bf16 %v614
    %v759 = vunpack.c.h.s8.bf16 %v615
    %v760 = vunpack.c.h.s8.bf16 %v616
    %v761 = vunpack.c.h.s8.bf16 %v617
    %v762 = vunpack.c.h.s8.bf16 %v618
    %v763 = vunpack.c.h.s8.bf16 %v619
    %v764 = vunpack.c.l.s8.bf16 %v620
    %v765 = vunpack.c.l.s8.bf16 %v621
    %v766 = vunpack.c.l.s8.bf16 %v622
    %v767 = vunpack.c.l.s8.bf16 %v623
    %v768 = vunpack.c.l.s8.bf16 %v624
    %v769 = vunpack.c.l.s8.bf16 %v625
    %v770 = vunpack.c.l.s8.bf16 %v626
    %v771 = vunpack.c.l.s8.bf16 %v627
    %v772 = vunpack.c.h.s8.bf16 %v620
    %v773 = vunpack.c.h.s8.bf16 %v621
    %v774 = vunpack.c.h.s8.bf16 %v622
    %v775 = vunpack.c.h.s8.bf16 %v623
    %v776 = vunpack.c.h.s8.bf16 %v624
    %v777 = vunpack.c.h.s8.bf16 %v625
    %v778 = vunpack.c.h.s8.bf16 %v626
    %v779 = vunpack.c.h.s8.bf16 %v627
    %v780 = vunpack.c.l.s8.bf16 %v628
    %v781 = vunpack.c.l.s8.bf16 %v629
    %v782 = vunpack.c.l.s8.bf16 %v630
    %v783 = vunpack.c.l.s8.bf16 %v631
    %v784 = vunpack.c.l.s8.bf16 %v632
    %v785 = vunpack.c.l.s8.bf16 %v633
    %v786 = vunpack.c.l.s8.bf16 %v634
    %v787 = vunpack.c.l.s8.bf16 %v635
    %v788 = vunpack.c.h.s8.bf16 %v628
    %v789 = vunpack.c.h.s8.bf16 %v629
    %v790 = vunpack.c.h.s8.bf16 %v630
    %v791 = vunpack.c.h.s8.bf16 %v631
    %v792 = vunpack.c.h.s8.bf16 %v632
    %v793 = vunpack.c.h.s8.bf16 %v633
    %v794 = vunpack.c.h.s8.bf16 %v634
    %v795 = vunpack.c.h.s8.bf16 %v635
    %v796 = vunpack.c.l.s8.bf16 %v636
    %v797 = vunpack.c.l.s8.bf16 %v637
    %v798 = vunpack.c.l.s8.bf16 %v638
    %v799 = vunpack.c.l.s8.bf16 %v639
    %v800 = vunpack.c.l.s8.bf16 %v640
    %v801 = vunpack.c.l.s8.bf16 %v641
    %v802 = vunpack.c.l.s8.bf16 %v642
    %v803 = vunpack.c.l.s8.bf16 %v643
    %v804 = vunpack.c.h.s8.bf16 %v636
    %v805 = vunpack.c.h.s8.bf16 %v637
    %v806 = vunpack.c.h.s8.bf16 %v638
    %v807 = vunpack.c.h.s8.bf16 %v639
    %v808 = vunpack.c.h.s8.bf16 %v640
    %v809 = vunpack.c.h.s8.bf16 %v641
    %v810 = vunpack.c.h.s8.bf16 %v642
    %v811 = vunpack.c.h.s8.bf16 %v643
    %v812 = vunpack.c.l.s8.bf16 %v644
    %v813 = vunpack.c.l.s8.bf16 %v645
    %v814 = vunpack.c.l.s8.bf16 %v646
    %v815 = vunpack.c.l.s8.bf16 %v647
    %v816 = vunpack.c.l.s8.bf16 %v648
    %v817 = vunpack.c.l.s8.bf16 %v649
    %v818 = vunpack.c.l.s8.bf16 %v650
    %v819 = vunpack.c.l.s8.bf16 %v651
    %v820 = vunpack.c.h.s8.bf16 %v644
    %v821 = vunpack.c.h.s8.bf16 %v645
    %v822 = vunpack.c.h.s8.bf16 %v646
    %v823 = vunpack.c.h.s8.bf16 %v647
    %v824 = vunpack.c.h.s8.bf16 %v648
    %v825 = vunpack.c.h.s8.bf16 %v649
    %v826 = vunpack.c.h.s8.bf16 %v650
    %v827 = vunpack.c.h.s8.bf16 %v651
    %v828 = vunpack.c.l.s8.bf16 %v652
    %v829 = vunpack.c.l.s8.bf16 %v653
    %v830 = vunpack.c.l.s8.bf16 %v654
    %v831 = vunpack.c.l.s8.bf16 %v655
    %v832 = vunpack.c.l.s8.bf16 %v656
    %v833 = vunpack.c.l.s8.bf16 %v657
    %v834 = vunpack.c.l.s8.bf16 %v658
    %v835 = vunpack.c.l.s8.bf16 %v659
    %v836 = vunpack.c.h.s8.bf16 %v652
    %v837 = vunpack.c.h.s8.bf16 %v653
    %v838 = vunpack.c.h.s8.bf16 %v654
    %v839 = vunpack.c.h.s8.bf16 %v655
    %v840 = vunpack.c.h.s8.bf16 %v656
    %v841 = vunpack.c.h.s8.bf16 %v657
    %v842 = vunpack.c.h.s8.bf16 %v658
    %v843 = vunpack.c.h.s8.bf16 %v659
    %v844 = vunpack.c.l.s8.bf16 %v660
    %v845 = vunpack.c.l.s8.bf16 %v661
    %v846 = vunpack.c.l.s8.bf16 %v662
    %v847 = vunpack.c.l.s8.bf16 %v663
    %v848 = vunpack.c.l.s8.bf16 %v664
    %v849 = vunpack.c.l.s8.bf16 %v665
    %v850 = vunpack.c.l.s8.bf16 %v666
    %v851 = vunpack.c.l.s8.bf16 %v667
    %v852 = vunpack.c.h.s8.bf16 %v660
    %v853 = vunpack.c.h.s8.bf16 %v661
    %v854 = vunpack.c.h.s8.bf16 %v662
    %v855 = vunpack.c.h.s8.bf16 %v663
    %v856 = vunpack.c.h.s8.bf16 %v664
    %v857 = vunpack.c.h.s8.bf16 %v665
    %v858 = vunpack.c.h.s8.bf16 %v666
    %v859 = vunpack.c.h.s8.bf16 %v667
    %v860 = vunpack.c.l.s8.bf16 %v668
    %v861 = vunpack.c.l.s8.bf16 %v669
    %v862 = vunpack.c.l.s8.bf16 %v670
    %v863 = vunpack.c.l.s8.bf16 %v671
    %v864 = vunpack.c.l.s8.bf16 %v672
    %v865 = vunpack.c.l.s8.bf16 %v673
    %v866 = vunpack.c.l.s8.bf16 %v674
    %v867 = vunpack.c.l.s8.bf16 %v675
    %v868 = vunpack.c.h.s8.bf16 %v668
    %v869 = vunpack.c.h.s8.bf16 %v669
    %v870 = vunpack.c.h.s8.bf16 %v670
    %v871 = vunpack.c.h.s8.bf16 %v671
    %v872 = vunpack.c.h.s8.bf16 %v672
    %v873 = vunpack.c.h.s8.bf16 %v673
    %v874 = vunpack.c.h.s8.bf16 %v674
    %v875 = vunpack.c.h.s8.bf16 %v675
    %v876 = vunpack.c.l.s8.bf16 %v676
    %v877 = vunpack.c.l.s8.bf16 %v677
    %v878 = vunpack.c.l.s8.bf16 %v678
    %v879 = vunpack.c.l.s8.bf16 %v679
    %v880 = vunpack.c.l.s8.bf16 %v680
    %v881 = vunpack.c.l.s8.bf16 %v681
    %v882 = vunpack.c.l.s8.bf16 %v682
    %v883 = vunpack.c.l.s8.bf16 %v683
    %v884 = vunpack.c.h.s8.bf16 %v676
    %v885 = vunpack.c.h.s8.bf16 %v677
    %v886 = vunpack.c.h.s8.bf16 %v678
    %v887 = vunpack.c.h.s8.bf16 %v679
    %v888 = vunpack.c.h.s8.bf16 %v680
    %v889 = vunpack.c.h.s8.bf16 %v681
    %v890 = vunpack.c.h.s8.bf16 %v682
    %v891 = vunpack.c.h.s8.bf16 %v683
    %v892 = vunpack.c.l.s8.bf16 %v684
    %v893 = vunpack.c.l.s8.bf16 %v685
    %v894 = vunpack.c.l.s8.bf16 %v686
    %v895 = vunpack.c.l.s8.bf16 %v687
    %v896 = vunpack.c.l.s8.bf16 %v688
    %v897 = vunpack.c.l.s8.bf16 %v689
    %v898 = vunpack.c.l.s8.bf16 %v690
    %v899 = vunpack.c.l.s8.bf16 %v691
    %v900 = vunpack.c.h.s8.bf16 %v684
    %v901 = vunpack.c.h.s8.bf16 %v685
    %v902 = vunpack.c.h.s8.bf16 %v686
    %v903 = vunpack.c.h.s8.bf16 %v687
    %v904 = vunpack.c.h.s8.bf16 %v688
    %v905 = vunpack.c.h.s8.bf16 %v689
    %v906 = vunpack.c.h.s8.bf16 %v690
    %v907 = vunpack.c.h.s8.bf16 %v691
    %v908 = vunpack.c.l.s8.bf16 %v692
    %v909 = vunpack.c.l.s8.bf16 %v693
    %v910 = vunpack.c.l.s8.bf16 %v694
    %v911 = vunpack.c.l.s8.bf16 %v695
    %v912 = vunpack.c.l.s8.bf16 %v696
    %v913 = vunpack.c.l.s8.bf16 %v697
    %v914 = vunpack.c.l.s8.bf16 %v698
    %v915 = vunpack.c.l.s8.bf16 %v699
    %v916 = vunpack.c.h.s8.bf16 %v692
    %v917 = vunpack.c.h.s8.bf16 %v693
    %v918 = vunpack.c.h.s8.bf16 %v694
    %v919 = vunpack.c.h.s8.bf16 %v695
    %v920 = vunpack.c.h.s8.bf16 %v696
    %v921 = vunpack.c.h.s8.bf16 %v697
    %v922 = vunpack.c.h.s8.bf16 %v698
    %v923 = vunpack.c.h.s8.bf16 %v699
    %v924 = vunpack.c.l.s8.bf16 %v700
    %v925 = vunpack.c.l.s8.bf16 %v701
    %v926 = vunpack.c.l.s8.bf16 %v702
    %v927 = vunpack.c.l.s8.bf16 %v703
    %v928 = vunpack.c.l.s8.bf16 %v704
    %v929 = vunpack.c.l.s8.bf16 %v705
    %v930 = vunpack.c.l.s8.bf16 %v706
    %v931 = vunpack.c.l.s8.bf16 %v707
    %v932 = vunpack.c.h.s8.bf16 %v700
    %v933 = vunpack.c.h.s8.bf16 %v701
    %v934 = vunpack.c.h.s8.bf16 %v702
    %v935 = vunpack.c.h.s8.bf16 %v703
    %v936 = vunpack.c.h.s8.bf16 %v704
    %v937 = vunpack.c.h.s8.bf16 %v705
    %v938 = vunpack.c.h.s8.bf16 %v706
    %v939 = vunpack.c.h.s8.bf16 %v707
    %v940 = vunpack.c.l.s8.bf16 %v708
    %v941 = vunpack.c.l.s8.bf16 %v709
    %v942 = vunpack.c.l.s8.bf16 %v710
    %v943 = vunpack.c.l.s8.bf16 %v711
    %v944 = vunpack.c.l.s8.bf16 %v712
    %v945 = vunpack.c.l.s8.bf16 %v713
    %v946 = vunpack.c.l.s8.bf16 %v714
    %v947 = vunpack.c.l.s8.bf16 %v715
    %v948 = vunpack.c.h.s8.bf16 %v708
    %v949 = vunpack.c.h.s8.bf16 %v709
    %v950 = vunpack.c.h.s8.bf16 %v710
    %v951 = vunpack.c.h.s8.bf16 %v711
    %v952 = vunpack.c.h.s8.bf16 %v712
    %v953 = vunpack.c.h.s8.bf16 %v713
    %v954 = vunpack.c.h.s8.bf16 %v714
    %v955 = vunpack.c.h.s8.bf16 %v715
    %v956 = vunpack.c.l.s8.bf16 %v716
    %v957 = vunpack.c.l.s8.bf16 %v717
    %v958 = vunpack.c.l.s8.bf16 %v718
    %v959 = vunpack.c.l.s8.bf16 %v719
    %v960 = vunpack.c.l.s8.bf16 %v720
    %v961 = vunpack.c.l.s8.bf16 %v721
    %v962 = vunpack.c.l.s8.bf16 %v722
    %v963 = vunpack.c.l.s8.bf16 %v723
    %v964 = vunpack.c.h.s8.bf16 %v716
    %v965 = vunpack.c.h.s8.bf16 %v717
    %v966 = vunpack.c.h.s8.bf16 %v718
    %v967 = vunpack.c.h.s8.bf16 %v719
    %v968 = vunpack.c.h.s8.bf16 %v720
    %v969 = vunpack.c.h.s8.bf16 %v721
    %v970 = vunpack.c.h.s8.bf16 %v722
    %v971 = vunpack.c.h.s8.bf16 %v723
    %v972 = vunpack.c.l.s8.bf16 %v724
    %v973 = vunpack.c.l.s8.bf16 %v725
    %v974 = vunpack.c.l.s8.bf16 %v726
    %v975 = vunpack.c.l.s8.bf16 %v727
    %v976 = vunpack.c.l.s8.bf16 %v728
    %v977 = vunpack.c.l.s8.bf16 %v729
    %v978 = vunpack.c.l.s8.bf16 %v730
    %v979 = vunpack.c.l.s8.bf16 %v731
    %v980 = vunpack.c.h.s8.bf16 %v724
    %v981 = vunpack.c.h.s8.bf16 %v725
    %v982 = vunpack.c.h.s8.bf16 %v726
    %v983 = vunpack.c.h.s8.bf16 %v727
    %v984 = vunpack.c.h.s8.bf16 %v728
    %v985 = vunpack.c.h.s8.bf16 %v729
    %v986 = vunpack.c.h.s8.bf16 %v730
    %v987 = vunpack.c.h.s8.bf16 %v731
    %988 = vmatprep.subr.bf16.mxu0 %v733
    %989 = vmatpush1.bf16.msra.mxu0 %v732
    %990 = vmatprep.subr.bf16.mxu0 %v741
    %991 = vmatpush1.bf16.msra.mxu0 %v740
    %992 = vmatprep.subr.bf16.mxu0 %v749
    %993 = vmatpush1.bf16.msra.mxu0 %v748
    %994 = vmatprep.subr.bf16.mxu0 %v757
    %995 = vmatpush1.bf16.msra.mxu0 %v756
    %996 = vmatprep.subr.bf16.mxu0 %v765
    %997 = vmatpush1.bf16.msra.mxu0 %v764
    %998 = vmatprep.subr.bf16.mxu0 %v773
    %999 = vmatpush1.bf16.msra.mxu0 %v772
    %1000 = vmatprep.subr.bf16.mxu0 %v781
    %1001 = vmatpush1.bf16.msra.mxu0 %v780
    %1002 = vmatprep.subr.bf16.mxu0 %v789
    %1003 = vmatpush1.bf16.msra.mxu0 %v788
    %1004 = vmatprep.subr.bf16.mxu0 %v797
    %1005 = vmatpush1.bf16.msra.mxu0 %v796
    %1006 = vmatprep.subr.bf16.mxu0 %v805
    %1007 = vmatpush1.bf16.msra.mxu0 %v804
    %1008 = vmatprep.subr.bf16.mxu0 %v813
    %1009 = vmatpush1.bf16.msra.mxu0 %v812
    %1010 = vmatprep.subr.bf16.mxu0 %v821
    %1011 = vmatpush1.bf16.msra.mxu0 %v820
    %1012 = vmatprep.subr.bf16.mxu0 %v829
    %1013 = vmatpush1.bf16.msra.mxu0 %v828
    %1014 = vmatprep.subr.bf16.mxu0 %v837
    %1015 = vmatpush1.bf16.msra.mxu0 %v836
    %1016 = vmatprep.subr.bf16.mxu0 %v845
    %1017 = vmatpush1.bf16.msra.mxu0 %v844
    %1018 = vmatprep.subr.bf16.mxu0 %v853
    %1019 = vmatpush1.bf16.msra.mxu0 %v852
    %1020 = vmatprep.mubr.bf16.mxu0 %v597
    %1021 = vmatmul.mubr.bf16.gmra.mrb[0].mxu0 %v596
    %v1022 = vpop.f32.mrb[0].mxu0
    %v1023 = vadd.f32 0.0, %v1022
    %v1024 = vpop.f32.mrb[0].mxu0
    %v1025 = vadd.f32 0.0, %v1024
    %v1026 = vpop.f32.mrb[0].mxu0
    %v1027 = vadd.f32 0.0, %v1026
    %v1028 = vpop.f32.mrb[0].mxu0
    %v1029 = vadd.f32 0.0, %v1028
    %1030 = vdwg.mxu0
    %1031 = vmatprep.subr.bf16.mxu0 %v861
    %1032 = vmatpush1.bf16.msra.mxu0 %v860
    %1033 = vmatprep.subr.bf16.mxu0 %v869
    %1034 = vmatpush1.bf16.msra.mxu0 %v868
    %1035 = vmatprep.subr.bf16.mxu0 %v877
    %1036 = vmatpush1.bf16.msra.mxu0 %v876
    %1037 = vmatprep.subr.bf16.mxu0 %v885
    %1038 = vmatpush1.bf16.msra.mxu0 %v884
    %1039 = vmatprep.subr.bf16.mxu0 %v893
    %1040 = vmatpush1.bf16.msra.mxu0 %v892
    %1041 = vmatprep.subr.bf16.mxu0 %v901
    %1042 = vmatpush1.bf16.msra.mxu0 %v900
    %1043 = vmatprep.subr.bf16.mxu0 %v909
    %1044 = vmatpush1.bf16.msra.mxu0 %v908
    %1045 = vmatprep.subr.bf16.mxu0 %v917
    %1046 = vmatpush1.bf16.msra.mxu0 %v916
    %1047 = vmatprep.subr.bf16.mxu0 %v925
    %1048 = vmatpush1.bf16.msra.mxu0 %v924
    %1049 = vmatprep.subr.bf16.mxu0 %v933
    %1050 = vmatpush1.bf16.msra.mxu0 %v932
    %1051 = vmatprep.subr.bf16.mxu0 %v941
    %1052 = vmatpush1.bf16.msra.mxu0 %v940
    %1053 = vmatprep.subr.bf16.mxu0 %v949
    %1054 = vmatpush1.bf16.msra.mxu0 %v948
    %1055 = vmatprep.subr.bf16.mxu0 %v957
    %1056 = vmatpush1.bf16.msra.mxu0 %v956
    %1057 = vmatprep.subr.bf16.mxu0 %v965
    %1058 = vmatpush1.bf16.msra.mxu0 %v964
    %1059 = vmatprep.subr.bf16.mxu0 %v973
    %1060 = vmatpush1.bf16.msra.mxu0 %v972
    %1061 = vmatprep.subr.bf16.mxu0 %v981
    %1062 = vmatpush1.bf16.msra.mxu0 %v980
    %1063 = vmatprep.mubr.bf16.mxu0 %v599
    %1064 = vmatmul.mubr.bf16.gmra.mrb[0].mxu0 %v598
    %v1065 = vpop.f32.mrb[0].mxu0
    %v1066 = vadd.f32 %v1023, %v1065
    %v1067 = vpop.f32.mrb[0].mxu0
    %v1068 = vadd.f32 %v1025, %v1067
    %v1069 = vpop.f32.mrb[0].mxu0
    %v1070 = vadd.f32 %v1027, %v1069
    %v1071 = vpop.f32.mrb[0].mxu0
    %v1072 = vadd.f32 %v1029, %v1071
    %1073 = vdwg.mxu0
    %1074 = vmatprep.subr.bf16.mxu0 %v735
    %1075 = vmatpush1.bf16.msra.mxu0 %v734
    %1076 = vmatprep.subr.bf16.mxu0 %v743
    %1077 = vmatpush1.bf16.msra.mxu0 %v742
    %1078 = vmatprep.subr.bf16.mxu0 %v751
    %1079 = vmatpush1.bf16.msra.mxu0 %v750
    %1080 = vmatprep.subr.bf16.mxu0 %v759
    %1081 = vmatpush1.bf16.msra.mxu0 %v758
    %1082 = vmatprep.subr.bf16.mxu0 %v767
    %1083 = vmatpush1.bf16.msra.mxu0 %v766
    %1084 = vmatprep.subr.bf16.mxu0 %v775
    %1085 = vmatpush1.bf16.msra.mxu0 %v774
    %1086 = vmatprep.subr.bf16.mxu0 %v783
    %1087 = vmatpush1.bf16.msra.mxu0 %v782
    %1088 = vmatprep.subr.bf16.mxu0 %v791
    %1089 = vmatpush1.bf16.msra.mxu0 %v790
    %1090 = vmatprep.subr.bf16.mxu0 %v799
    %1091 = vmatpush1.bf16.msra.mxu0 %v798
    %1092 = vmatprep.subr.bf16.mxu0 %v807
    %1093 = vmatpush1.bf16.msra.mxu0 %v806
    %1094 = vmatprep.subr.bf16.mxu0 %v815
    %1095 = vmatpush1.bf16.msra.mxu0 %v814
    %1096 = vmatprep.subr.bf16.mxu0 %v823
    %1097 = vmatpush1.bf16.msra.mxu0 %v822
    %1098 = vmatprep.subr.bf16.mxu0 %v831
    %1099 = vmatpush1.bf16.msra.mxu0 %v830
    %1100 = vmatprep.subr.bf16.mxu0 %v839
    %1101 = vmatpush1.bf16.msra.mxu0 %v838
    %1102 = vmatprep.subr.bf16.mxu0 %v847
    %1103 = vmatpush1.bf16.msra.mxu0 %v846
    %1104 = vmatprep.subr.bf16.mxu0 %v855
    %1105 = vmatpush1.bf16.msra.mxu0 %v854
    %1106 = vmatprep.mubr.bf16.mxu0 %v597
    %1107 = vmatmul.mubr.bf16.gmra.mrb[0].mxu0 %v596
    %v1108 = vpop.f32.mrb[0].mxu0
    %v1109 = vadd.f32 0.0, %v1108
    %v1110 = vpop.f32.mrb[0].mxu0
    %v1111 = vadd.f32 0.0, %v1110
    %v1112 = vpop.f32.mrb[0].mxu0
    %v1113 = vadd.f32 0.0, %v1112
    %v1114 = vpop.f32.mrb[0].mxu0
    %v1115 = vadd.f32 0.0, %v1114
    %1116 = vdwg.mxu0
    %1117 = vmatprep.subr.bf16.mxu0 %v863
    %1118 = vmatpush1.bf16.msra.mxu0 %v862
    %1119 = vmatprep.subr.bf16.mxu0 %v871
    %1120 = vmatpush1.bf16.msra.mxu0 %v870
    %1121 = vmatprep.subr.bf16.mxu0 %v879
    %1122 = vmatpush1.bf16.msra.mxu0 %v878
    %1123 = vmatprep.subr.bf16.mxu0 %v887
    %1124 = vmatpush1.bf16.msra.mxu0 %v886
    %1125 = vmatprep.subr.bf16.mxu0 %v895
    %1126 = vmatpush1.bf16.msra.mxu0 %v894
    %1127 = vmatprep.subr.bf16.mxu0 %v903
    %1128 = vmatpush1.bf16.msra.mxu0 %v902
    %1129 = vmatprep.subr.bf16.mxu0 %v911
    %1130 = vmatpush1.bf16.msra.mxu0 %v910
    %1131 = vmatprep.subr.bf16.mxu0 %v919
    %1132 = vmatpush1.bf16.msra.mxu0 %v918
    %1133 = vmatprep.subr.bf16.mxu0 %v927
    %1134 = vmatpush1.bf16.msra.mxu0 %v926
    %1135 = vmatprep.subr.bf16.mxu0 %v935
    %1136 = vmatpush1.bf16.msra.mxu0 %v934
    %1137 = vmatprep.subr.bf16.mxu0 %v943
    %1138 = vmatpush1.bf16.msra.mxu0 %v942
    %1139 = vmatprep.subr.bf16.mxu0 %v951
    %1140 = vmatpush1.bf16.msra.mxu0 %v950
    %1141 = vmatprep.subr.bf16.mxu0 %v959
    %1142 = vmatpush1.bf16.msra.mxu0 %v958
    %1143 = vmatprep.subr.bf16.mxu0 %v967
    %1144 = vmatpush1.bf16.msra.mxu0 %v966
    %1145 = vmatprep.subr.bf16.mxu0 %v975
    %1146 = vmatpush1.bf16.msra.mxu0 %v974
    %1147 = vmatprep.subr.bf16.mxu0 %v983
    %1148 = vmatpush1.bf16.msra.mxu0 %v982
    %1149 = vmatprep.mubr.bf16.mxu0 %v599
    %1150 = vmatmul.mubr.bf16.gmra.mrb[0].mxu0 %v598
    %v1151 = vpop.f32.mrb[0].mxu0
    %v1152 = vadd.f32 %v1109, %v1151
    %v1153 = vpop.f32.mrb[0].mxu0
    %v1154 = vadd.f32 %v1111, %v1153
    %v1155 = vpop.f32.mrb[0].mxu0
    %v1156 = vadd.f32 %v1113, %v1155
    %v1157 = vpop.f32.mrb[0].mxu0
    %v1158 = vadd.f32 %v1115, %v1157
    %1159 = vdwg.mxu0
    %1160 = vmatprep.subr.bf16.mxu0 %v737
    %1161 = vmatpush1.bf16.msra.mxu0 %v736
    %1162 = vmatprep.subr.bf16.mxu0 %v745
    %1163 = vmatpush1.bf16.msra.mxu0 %v744
    %1164 = vmatprep.subr.bf16.mxu0 %v753
    %1165 = vmatpush1.bf16.msra.mxu0 %v752
    %1166 = vmatprep.subr.bf16.mxu0 %v761
    %1167 = vmatpush1.bf16.msra.mxu0 %v760
    %1168 = vmatprep.subr.bf16.mxu0 %v769
    %1169 = vmatpush1.bf16.msra.mxu0 %v768
    %1170 = vmatprep.subr.bf16.mxu0 %v777
    %1171 = vmatpush1.bf16.msra.mxu0 %v776
    %1172 = vmatprep.subr.bf16.mxu0 %v785
    %1173 = vmatpush1.bf16.msra.mxu0 %v784
    %1174 = vmatprep.subr.bf16.mxu0 %v793
    %1175 = vmatpush1.bf16.msra.mxu0 %v792
    %1176 = vmatprep.subr.bf16.mxu0 %v801
    %1177 = vmatpush1.bf16.msra.mxu0 %v800
    %1178 = vmatprep.subr.bf16.mxu0 %v809
    %1179 = vmatpush1.bf16.msra.mxu0 %v808
    %1180 = vmatprep.subr.bf16.mxu0 %v817
    %1181 = vmatpush1.bf16.msra.mxu0 %v816
    %1182 = vmatprep.subr.bf16.mxu0 %v825
    %1183 = vmatpush1.bf16.msra.mxu0 %v824
    %1184 = vmatprep.subr.bf16.mxu0 %v833
    %1185 = vmatpush1.bf16.msra.mxu0 %v832
    %1186 = vmatprep.subr.bf16.mxu0 %v841
    %1187 = vmatpush1.bf16.msra.mxu0 %v840
    %1188 = vmatprep.subr.bf16.mxu0 %v849
    %1189 = vmatpush1.bf16.msra.mxu0 %v848
    %1190 = vmatprep.subr.bf16.mxu0 %v857
    %1191 = vmatpush1.bf16.msra.mxu0 %v856
    %1192 = vmatprep.mubr.bf16.mxu0 %v597
    %1193 = vmatmul.mubr.bf16.gmra.mrb[0].mxu0 %v596
    %v1194 = vpop.f32.mrb[0].mxu0
    %v1195 = vadd.f32 0.0, %v1194
    %v1196 = vpop.f32.mrb[0].mxu0
    %v1197 = vadd.f32 0.0, %v1196
    %v1198 = vpop.f32.mrb[0].mxu0
    %v1199 = vadd.f32 0.0, %v1198
    %v1200 = vpop.f32.mrb[0].mxu0
    %v1201 = vadd.f32 0.0, %v1200
    %1202 = vdwg.mxu0
    %1203 = vmatprep.subr.bf16.mxu0 %v865
    %1204 = vmatpush1.bf16.msra.mxu0 %v864
    %1205 = vmatprep.subr.bf16.mxu0 %v873
    %1206 = vmatpush1.bf16.msra.mxu0 %v872
    %1207 = vmatprep.subr.bf16.mxu0 %v881
    %1208 = vmatpush1.bf16.msra.mxu0 %v880
    %1209 = vmatprep.subr.bf16.mxu0 %v889
    %1210 = vmatpush1.bf16.msra.mxu0 %v888
    %1211 = vmatprep.subr.bf16.mxu0 %v897
    %1212 = vmatpush1.bf16.msra.mxu0 %v896
    %1213 = vmatprep.subr.bf16.mxu0 %v905
    %1214 = vmatpush1.bf16.msra.mxu0 %v904
    %1215 = vmatprep.subr.bf16.mxu0 %v913
    %1216 = vmatpush1.bf16.msra.mxu0 %v912
    %1217 = vmatprep.subr.bf16.mxu0 %v921
    %1218 = vmatpush1.bf16.msra.mxu0 %v920
    %1219 = vmatprep.subr.bf16.mxu0 %v929
    %1220 = vmatpush1.bf16.msra.mxu0 %v928
    %1221 = vmatprep.subr.bf16.mxu0 %v937
    %1222 = vmatpush1.bf16.msra.mxu0 %v936
    %1223 = vmatprep.subr.bf16.mxu0 %v945
    %1224 = vmatpush1.bf16.msra.mxu0 %v944
    %1225 = vmatprep.subr.bf16.mxu0 %v953
    %1226 = vmatpush1.bf16.msra.mxu0 %v952
    %1227 = vmatprep.subr.bf16.mxu0 %v961
    %1228 = vmatpush1.bf16.msra.mxu0 %v960
    %1229 = vmatprep.subr.bf16.mxu0 %v969
    %1230 = vmatpush1.bf16.msra.mxu0 %v968
    %1231 = vmatprep.subr.bf16.mxu0 %v977
    %1232 = vmatpush1.bf16.msra.mxu0 %v976
    %1233 = vmatprep.subr.bf16.mxu0 %v985
    %1234 = vmatpush1.bf16.msra.mxu0 %v984
    %1235 = vmatprep.mubr.bf16.mxu0 %v599
    %1236 = vmatmul.mubr.bf16.gmra.mrb[0].mxu0 %v598
    %v1237 = vpop.f32.mrb[0].mxu0
    %v1238 = vadd.f32 %v1195, %v1237
    %v1239 = vpop.f32.mrb[0].mxu0
    %v1240 = vadd.f32 %v1197, %v1239
    %v1241 = vpop.f32.mrb[0].mxu0
    %v1242 = vadd.f32 %v1199, %v1241
    %v1243 = vpop.f32.mrb[0].mxu0
    %v1244 = vadd.f32 %v1201, %v1243
    %1245 = vdwg.mxu0
    %1246 = vmatprep.subr.bf16.mxu0 %v739
    %1247 = vmatpush1.bf16.msra.mxu0 %v738
    %1248 = vmatprep.subr.bf16.mxu0 %v747
    %1249 = vmatpush1.bf16.msra.mxu0 %v746
    %1250 = vmatprep.subr.bf16.mxu0 %v755
    %1251 = vmatpush1.bf16.msra.mxu0 %v754
    %1252 = vmatprep.subr.bf16.mxu0 %v763
    %1253 = vmatpush1.bf16.msra.mxu0 %v762
    %1254 = vmatprep.subr.bf16.mxu0 %v771
    %1255 = vmatpush1.bf16.msra.mxu0 %v770
    %1256 = vmatprep.subr.bf16.mxu0 %v779
    %1257 = vmatpush1.bf16.msra.mxu0 %v778
    %1258 = vmatprep.subr.bf16.mxu0 %v787
    %1259 = vmatpush1.bf16.msra.mxu0 %v786
    %1260 = vmatprep.subr.bf16.mxu0 %v795
    %1261 = vmatpush1.bf16.msra.mxu0 %v794
    %1262 = vmatprep.subr.bf16.mxu0 %v803
    %1263 = vmatpush1.bf16.msra.mxu0 %v802
    %1264 = vmatprep.subr.bf16.mxu0 %v811
    %1265 = vmatpush1.bf16.msra.mxu0 %v810
    %1266 = vmatprep.subr.bf16.mxu0 %v819
    %1267 = vmatpush1.bf16.msra.mxu0 %v818
    %1268 = vmatprep.subr.bf16.mxu0 %v827
    %1269 = vmatpush1.bf16.msra.mxu0 %v826
    %1270 = vmatprep.subr.bf16.mxu0 %v835
    %1271 = vmatpush1.bf16.msra.mxu0 %v834
    %1272 = vmatprep.subr.bf16.mxu0 %v843
    %1273 = vmatpush1.bf16.msra.mxu0 %v842
    %1274 = vmatprep.subr.bf16.mxu0 %v851
    %1275 = vmatpush1.bf16.msra.mxu0 %v850
    %1276 = vmatprep.subr.bf16.mxu0 %v859
    %1277 = vmatpush1.bf16.msra.mxu0 %v858
    %1278 = vmatprep.mubr.bf16.mxu0 %v597
    %1279 = vmatmul.mubr.bf16.gmra.mrb[0].mxu0 %v596
    %v1280 = vpop.f32.mrb[0].mxu0
    %v1281 = vadd.f32 0.0, %v1280
    %v1282 = vpop.f32.mrb[0].mxu0
    %v1283 = vadd.f32 0.0, %v1282
    %v1284 = vpop.f32.mrb[0].mxu0
    %v1285 = vadd.f32 0.0, %v1284
    %v1286 = vpop.f32.mrb[0].mxu0
    %v1287 = vadd.f32 0.0, %v1286
    %1288 = vdwg.mxu0
    %1289 = vmatprep.subr.bf16.mxu0 %v867
    %1290 = vmatpush1.bf16.msra.mxu0 %v866
    %1291 = vmatprep.subr.bf16.mxu0 %v875
    %1292 = vmatpush1.bf16.msra.mxu0 %v874
    %1293 = vmatprep.subr.bf16.mxu0 %v883
    %1294 = vmatpush1.bf16.msra.mxu0 %v882
    %1295 = vmatprep.subr.bf16.mxu0 %v891
    %1296 = vmatpush1.bf16.msra.mxu0 %v890
    %1297 = vmatprep.subr.bf16.mxu0 %v899
    %1298 = vmatpush1.bf16.msra.mxu0 %v898
    %1299 = vmatprep.subr.bf16.mxu0 %v907
    %1300 = vmatpush1.bf16.msra.mxu0 %v906
    %1301 = vmatprep.subr.bf16.mxu0 %v915
    %1302 = vmatpush1.bf16.msra.mxu0 %v914
    %1303 = vmatprep.subr.bf16.mxu0 %v923
    %1304 = vmatpush1.bf16.msra.mxu0 %v922
    %1305 = vmatprep.subr.bf16.mxu0 %v931
    %1306 = vmatpush1.bf16.msra.mxu0 %v930
    %1307 = vmatprep.subr.bf16.mxu0 %v939
    %1308 = vmatpush1.bf16.msra.mxu0 %v938
    %1309 = vmatprep.subr.bf16.mxu0 %v947
    %1310 = vmatpush1.bf16.msra.mxu0 %v946
    %1311 = vmatprep.subr.bf16.mxu0 %v955
    %1312 = vmatpush1.bf16.msra.mxu0 %v954
    %1313 = vmatprep.subr.bf16.mxu0 %v963
    %1314 = vmatpush1.bf16.msra.mxu0 %v962
    %1315 = vmatprep.subr.bf16.mxu0 %v971
    %1316 = vmatpush1.bf16.msra.mxu0 %v970
    %1317 = vmatprep.subr.bf16.mxu0 %v979
    %1318 = vmatpush1.bf16.msra.mxu0 %v978
    %1319 = vmatprep.subr.bf16.mxu0 %v987
    %1320 = vmatpush1.bf16.msra.mxu0 %v986
    %1321 = vmatprep.mubr.bf16.mxu0 %v599
    %1322 = vmatmul.mubr.bf16.gmra.mrb[0].mxu0 %v598
    %v1323 = vpop.f32.mrb[0].mxu0
    %v1324 = vadd.f32 %v1281, %v1323
    %v1325 = vpop.f32.mrb[0].mxu0
    %v1326 = vadd.f32 %v1283, %v1325
    %v1327 = vpop.f32.mrb[0].mxu0
    %v1328 = vadd.f32 %v1285, %v1327
    %v1329 = vpop.f32.mrb[0].mxu0
    %v1330 = vadd.f32 %v1287, %v1329
    %1331 = vdwg.mxu0
    %s1332 = scalar_lea.vmem [#allocation13], 14
    %v1333 = vld [vmem:[%s1332] ss:$2 sm:$0xff]
    %s1334 = scalar_lea.vmem [#allocation13], 15
    %v1335 = vld [vmem:[%s1334] ss:$2 sm:$0xff]
    %v1337 = vlaneseq
    %v1338 = vshrl.u32 %v1337, 7
    %v1339 = vsub.s32 0, %v1338
    %v1340 = vrot.slane %v1333, %v1339
    %v1341 = vlaneseq
    %v1342 = vshrl.u32 %v1341, 7
    %v1343 = vsub.s32 1, %v1342
    %v1344 = vrot.slane %v1333, %v1343
    %v1345 = vlaneseq
    %v1346 = vshrl.u32 %v1345, 7
    %v1347 = vsub.s32 2, %v1346
    %v1348 = vrot.slane %v1333, %v1347
    %v1349 = vlaneseq
    %v1350 = vshrl.u32 %v1349, 7
    %v1351 = vsub.s32 3, %v1350
    %v1352 = vrot.slane %v1333, %v1351
    %v1353 = vlaneseq
    %v1354 = vshrl.u32 %v1353, 7
    %v1355 = vsub.s32 4, %v1354
    %v1356 = vrot.slane %v1333, %v1355
    %v1357 = vlaneseq
    %v1358 = vshrl.u32 %v1357, 7
    %v1359 = vsub.s32 5, %v1358
    %v1360 = vrot.slane %v1333, %v1359
    %v1361 = vlaneseq
    %v1362 = vshrl.u32 %v1361, 7
    %v1363 = vsub.s32 6, %v1362
    %v1364 = vrot.slane %v1333, %v1363
    %v1365 = vlaneseq
    %v1366 = vshrl.u32 %v1365, 7
    %v1367 = vsub.s32 7, %v1366
    %v1368 = vrot.slane %v1333, %v1367
    %v1377 = vmul.f32 %v1066, %v1340
    %v1378 = vmul.f32 %v1068, %v1344
    %v1379 = vmul.f32 %v1152, %v1348
    %v1380 = vmul.f32 %v1154, %v1352
    %v1381 = vmul.f32 %v1238, %v1356
    %v1382 = vmul.f32 %v1240, %v1360
    %v1383 = vmul.f32 %v1324, %v1364
    %v1384 = vmul.f32 %v1326, %v1368
    %v1385 = vmul.f32 %v1070, %v1340
    %v1386 = vmul.f32 %v1072, %v1344
    %v1387 = vmul.f32 %v1156, %v1348
    %v1388 = vmul.f32 %v1158, %v1352
    %v1389 = vmul.f32 %v1242, %v1356
    %v1390 = vmul.f32 %v1244, %v1360
    %v1391 = vmul.f32 %v1328, %v1364
    %v1392 = vmul.f32 %v1330, %v1368
    %v1394 = vlaneseq
    %v1395 = vshrl.u32 %v1394, 7
    %v1396 = vsub.s32 0, %v1395
    %v1397 = vrot.slane %v1335, %v1396
    %v1398 = vlaneseq
    %v1399 = vshrl.u32 %v1398, 7
    %v1400 = vsub.s32 1, %v1399
    %v1401 = vrot.slane %v1335, %v1400
    %v1402 = vlaneseq
    %v1403 = vshrl.u32 %v1402, 7
    %v1404 = vsub.s32 2, %v1403
    %v1405 = vrot.slane %v1335, %v1404
    %v1406 = vlaneseq
    %v1407 = vshrl.u32 %v1406, 7
    %v1408 = vsub.s32 3, %v1407
    %v1409 = vrot.slane %v1335, %v1408
    %v1410 = vlaneseq
    %v1411 = vshrl.u32 %v1410, 7
    %v1412 = vsub.s32 4, %v1411
    %v1413 = vrot.slane %v1335, %v1412
    %v1414 = vlaneseq
    %v1415 = vshrl.u32 %v1414, 7
    %v1416 = vsub.s32 5, %v1415
    %v1417 = vrot.slane %v1335, %v1416
    %v1418 = vlaneseq
    %v1419 = vshrl.u32 %v1418, 7
    %v1420 = vsub.s32 6, %v1419
    %v1421 = vrot.slane %v1335, %v1420
    %v1422 = vlaneseq
    %v1423 = vshrl.u32 %v1422, 7
    %v1424 = vsub.s32 7, %v1423
    %v1425 = vrot.slane %v1335, %v1424
    %v1434 = vadd.f32 %v1377, %v1397
    %v1435 = vadd.f32 %v1378, %v1401
    %v1436 = vadd.f32 %v1379, %v1405
    %v1437 = vadd.f32 %v1380, %v1409
    %v1438 = vadd.f32 %v1381, %v1413
    %v1439 = vadd.f32 %v1382, %v1417
    %v1440 = vadd.f32 %v1383, %v1421
    %v1441 = vadd.f32 %v1384, %v1425
    %v1442 = vadd.f32 %v1385, %v1397
    %v1443 = vadd.f32 %v1386, %v1401
    %v1444 = vadd.f32 %v1387, %v1405
    %v1445 = vadd.f32 %v1388, %v1409
    %v1446 = vadd.f32 %v1389, %v1413
    %v1447 = vadd.f32 %v1390, %v1417
    %v1448 = vadd.f32 %v1391, %v1421
    %v1449 = vadd.f32 %v1392, %v1425
    %v1450 = vmax.f32 %v1434, 0.0
    %v1451 = vmax.f32 %v1435, 0.0
    %v1452 = vmax.f32 %v1436, 0.0
    %v1453 = vmax.f32 %v1437, 0.0
    %v1454 = vmax.f32 %v1438, 0.0
    %v1455 = vmax.f32 %v1439, 0.0
    %v1456 = vmax.f32 %v1440, 0.0
    %v1457 = vmax.f32 %v1441, 0.0
    %v1458 = vmax.f32 %v1442, 0.0
    %v1459 = vmax.f32 %v1443, 0.0
    %v1460 = vmax.f32 %v1444, 0.0
    %v1461 = vmax.f32 %v1445, 0.0
    %v1462 = vmax.f32 %v1446, 0.0
    %v1463 = vmax.f32 %v1447, 0.0
    %v1464 = vmax.f32 %v1448, 0.0
    %v1465 = vmax.f32 %v1449, 0.0
    %v1466 = vpack.c.bf16 %v1458, %v1450
    %v1467 = vpack.c.bf16 %v1459, %v1451
    %v1468 = vpack.c.bf16 %v1460, %v1452
    %v1469 = vpack.c.bf16 %v1461, %v1453
    %v1470 = vpack.c.bf16 %v1462, %v1454
    %v1471 = vpack.c.bf16 %v1463, %v1455
    %v1472 = vpack.c.bf16 %v1464, %v1456
    %v1473 = vpack.c.bf16 %v1465, %v1457
    %s1474 = smul.u32 2, 128
    %s1475 = smul.u32 %s1474, 16
    %s1476 = sshll.u32 %s1475, 4
    %1477 = dma.done %s81, %s1476
    %v1478 = vld [vmem:[#allocation6] sm:$0xff]
    %v1479 = vld [vmem:[#allocation6 + $0x8] sm:$0xff]
    %v1480 = vld [vmem:[#allocation6 + $0x10] sm:$0xff]
    %v1481 = vld [vmem:[#allocation6 + $0x18] sm:$0xff]
    %v1482 = vld [vmem:[#allocation6 + $0x20] sm:$0xff]
    %v1483 = vld [vmem:[#allocation6 + $0x28] sm:$0xff]
    %v1484 = vld [vmem:[#allocation6 + $0x30] sm:$0xff]
    %v1485 = vld [vmem:[#allocation6 + $0x38] sm:$0xff]
    %v1486 = vld [vmem:[#allocation6 + $0x40] sm:$0xff]
    %v1487 = vld [vmem:[#allocation6 + $0x48] sm:$0xff]
    %v1488 = vld [vmem:[#allocation6 + $0x50] sm:$0xff]
    %v1489 = vld [vmem:[#allocation6 + $0x58] sm:$0xff]
    %v1490 = vld [vmem:[#allocation6 + $0x60] sm:$0xff]
    %v1491 = vld [vmem:[#allocation6 + $0x68] sm:$0xff]
    %v1492 = vld [vmem:[#allocation6 + $0x70] sm:$0xff]
    %v1493 = vld [vmem:[#allocation6 + $0x78] sm:$0xff]
    %v1494 = vld [vmem:[#allocation6 + $0x80] sm:$0xff]
    %v1495 = vld [vmem:[#allocation6 + $0x88] sm:$0xff]
    %v1496 = vld [vmem:[#allocation6 + $0x90] sm:$0xff]
    %v1497 = vld [vmem:[#allocation6 + $0x98] sm:$0xff]
    %v1498 = vld [vmem:[#allocation6 + $0xa0] sm:$0xff]
    %v1499 = vld [vmem:[#allocation6 + $0xa8] sm:$0xff]
    %v1500 = vld [vmem:[#allocation6 + $0xb0] sm:$0xff]
    %v1501 = vld [vmem:[#allocation6 + $0xb8] sm:$0xff]
    %v1502 = vld [vmem:[#allocation6 + $0xc0] sm:$0xff]
    %v1503 = vld [vmem:[#allocation6 + $0xc8] sm:$0xff]
    %v1504 = vld [vmem:[#allocation6 + $0xd0] sm:$0xff]
    %v1505 = vld [vmem:[#allocation6 + $0xd8] sm:$0xff]
    %v1506 = vld [vmem:[#allocation6 + $0xe0] sm:$0xff]
    %v1507 = vld [vmem:[#allocation6 + $0xe8] sm:$0xff]
    %v1508 = vld [vmem:[#allocation6 + $0xf0] sm:$0xff]
    %v1509 = vld [vmem:[#allocation6 + $0xf8] sm:$0xff]
    %v1510 = vld [vmem:[#allocation6 + $0x100] sm:$0xff]
    %v1511 = vld [vmem:[#allocation6 + $0x108] sm:$0xff]
    %v1512 = vld [vmem:[#allocation6 + $0x110] sm:$0xff]
    %v1513 = vld [vmem:[#allocation6 + $0x118] sm:$0xff]
    %v1514 = vld [vmem:[#allocation6 + $0x120] sm:$0xff]
    %v1515 = vld [vmem:[#allocation6 + $0x128] sm:$0xff]
    %v1516 = vld [vmem:[#allocation6 + $0x130] sm:$0xff]
    %v1517 = vld [vmem:[#allocation6 + $0x138] sm:$0xff]
    %v1518 = vld [vmem:[#allocation6 + $0x140] sm:$0xff]
    %v1519 = vld [vmem:[#allocation6 + $0x148] sm:$0xff]
    %v1520 = vld [vmem:[#allocation6 + $0x150] sm:$0xff]
    %v1521 = vld [vmem:[#allocation6 + $0x158] sm:$0xff]
    %v1522 = vld [vmem:[#allocation6 + $0x160] sm:$0xff]
    %v1523 = vld [vmem:[#allocation6 + $0x168] sm:$0xff]
    %v1524 = vld [vmem:[#allocation6 + $0x170] sm:$0xff]
    %v1525 = vld [vmem:[#allocation6 + $0x178] sm:$0xff]
    %v1526 = vld [vmem:[#allocation6 + $0x180] sm:$0xff]
    %v1527 = vld [vmem:[#allocation6 + $0x188] sm:$0xff]
    %v1528 = vld [vmem:[#allocation6 + $0x190] sm:$0xff]
    %v1529 = vld [vmem:[#allocation6 + $0x198] sm:$0xff]
    %v1530 = vld [vmem:[#allocation6 + $0x1a0] sm:$0xff]
    %v1531 = vld [vmem:[#allocation6 + $0x1a8] sm:$0xff]
    %v1532 = vld [vmem:[#allocation6 + $0x1b0] sm:$0xff]
    %v1533 = vld [vmem:[#allocation6 + $0x1b8] sm:$0xff]
    %v1534 = vld [vmem:[#allocation6 + $0x1c0] sm:$0xff]
    %v1535 = vld [vmem:[#allocation6 + $0x1c8] sm:$0xff]
    %v1536 = vld [vmem:[#allocation6 + $0x1d0] sm:$0xff]
    %v1537 = vld [vmem:[#allocation6 + $0x1d8] sm:$0xff]
    %v1538 = vld [vmem:[#allocation6 + $0x1e0] sm:$0xff]
    %v1539 = vld [vmem:[#allocation6 + $0x1e8] sm:$0xff]
    %v1540 = vld [vmem:[#allocation6 + $0x1f0] sm:$0xff]
    %v1541 = vld [vmem:[#allocation6 + $0x1f8] sm:$0xff]
    %v1542 = vld [vmem:[#allocation6 + $0x200] sm:$0xff]
    %v1543 = vld [vmem:[#allocation6 + $0x208] sm:$0xff]
    %v1544 = vld [vmem:[#allocation6 + $0x210] sm:$0xff]
    %v1545 = vld [vmem:[#allocation6 + $0x218] sm:$0xff]
    %v1546 = vld [vmem:[#allocation6 + $0x220] sm:$0xff]
    %v1547 = vld [vmem:[#allocation6 + $0x228] sm:$0xff]
    %v1548 = vld [vmem:[#allocation6 + $0x230] sm:$0xff]
    %v1549 = vld [vmem:[#allocation6 + $0x238] sm:$0xff]
    %v1550 = vld [vmem:[#allocation6 + $0x240] sm:$0xff]
    %v1551 = vld [vmem:[#allocation6 + $0x248] sm:$0xff]
    %v1552 = vld [vmem:[#allocation6 + $0x250] sm:$0xff]
    %v1553 = vld [vmem:[#allocation6 + $0x258] sm:$0xff]
    %v1554 = vld [vmem:[#allocation6 + $0x260] sm:$0xff]
    %v1555 = vld [vmem:[#allocation6 + $0x268] sm:$0xff]
    %v1556 = vld [vmem:[#allocation6 + $0x270] sm:$0xff]
    %v1557 = vld [vmem:[#allocation6 + $0x278] sm:$0xff]
    %v1558 = vld [vmem:[#allocation6 + $0x280] sm:$0xff]
    %v1559 = vld [vmem:[#allocation6 + $0x288] sm:$0xff]
    %v1560 = vld [vmem:[#allocation6 + $0x290] sm:$0xff]
    %v1561 = vld [vmem:[#allocation6 + $0x298] sm:$0xff]
    %v1562 = vld [vmem:[#allocation6 + $0x2a0] sm:$0xff]
    %v1563 = vld [vmem:[#allocation6 + $0x2a8] sm:$0xff]
    %v1564 = vld [vmem:[#allocation6 + $0x2b0] sm:$0xff]
    %v1565 = vld [vmem:[#allocation6 + $0x2b8] sm:$0xff]
    %v1566 = vld [vmem:[#allocation6 + $0x2c0] sm:$0xff]
    %v1567 = vld [vmem:[#allocation6 + $0x2c8] sm:$0xff]
    %v1568 = vld [vmem:[#allocation6 + $0x2d0] sm:$0xff]
    %v1569 = vld [vmem:[#allocation6 + $0x2d8] sm:$0xff]
    %v1570 = vld [vmem:[#allocation6 + $0x2e0] sm:$0xff]
    %v1571 = vld [vmem:[#allocation6 + $0x2e8] sm:$0xff]
    %v1572 = vld [vmem:[#allocation6 + $0x2f0] sm:$0xff]
    %v1573 = vld [vmem:[#allocation6 + $0x2f8] sm:$0xff]
    %v1574 = vld [vmem:[#allocation6 + $0x300] sm:$0xff]
    %v1575 = vld [vmem:[#allocation6 + $0x308] sm:$0xff]
    %v1576 = vld [vmem:[#allocation6 + $0x310] sm:$0xff]
    %v1577 = vld [vmem:[#allocation6 + $0x318] sm:$0xff]
    %v1578 = vld [vmem:[#allocation6 + $0x320] sm:$0xff]
    %v1579 = vld [vmem:[#allocation6 + $0x328] sm:$0xff]
    %v1580 = vld [vmem:[#allocation6 + $0x330] sm:$0xff]
    %v1581 = vld [vmem:[#allocation6 + $0x338] sm:$0xff]
    %v1582 = vld [vmem:[#allocation6 + $0x340] sm:$0xff]
    %v1583 = vld [vmem:[#allocation6 + $0x348] sm:$0xff]
    %v1584 = vld [vmem:[#allocation6 + $0x350] sm:$0xff]
    %v1585 = vld [vmem:[#allocation6 + $0x358] sm:$0xff]
    %v1586 = vld [vmem:[#allocation6 + $0x360] sm:$0xff]
    %v1587 = vld [vmem:[#allocation6 + $0x368] sm:$0xff]
    %v1588 = vld [vmem:[#allocation6 + $0x370] sm:$0xff]
    %v1589 = vld [vmem:[#allocation6 + $0x378] sm:$0xff]
    %v1590 = vld [vmem:[#allocation6 + $0x380] sm:$0xff]
    %v1591 = vld [vmem:[#allocation6 + $0x388] sm:$0xff]
    %v1592 = vld [vmem:[#allocation6 + $0x390] sm:$0xff]
    %v1593 = vld [vmem:[#allocation6 + $0x398] sm:$0xff]
    %v1594 = vld [vmem:[#allocation6 + $0x3a0] sm:$0xff]
    %v1595 = vld [vmem:[#allocation6 + $0x3a8] sm:$0xff]
    %v1596 = vld [vmem:[#allocation6 + $0x3b0] sm:$0xff]
    %v1597 = vld [vmem:[#allocation6 + $0x3b8] sm:$0xff]
    %v1598 = vld [vmem:[#allocation6 + $0x3c0] sm:$0xff]
    %v1599 = vld [vmem:[#allocation6 + $0x3c8] sm:$0xff]
    %v1600 = vld [vmem:[#allocation6 + $0x3d0] sm:$0xff]
    %v1601 = vld [vmem:[#allocation6 + $0x3d8] sm:$0xff]
    %v1602 = vld [vmem:[#allocation6 + $0x3e0] sm:$0xff]
    %v1603 = vld [vmem:[#allocation6 + $0x3e8] sm:$0xff]
    %v1604 = vld [vmem:[#allocation6 + $0x3f0] sm:$0xff]
    %v1605 = vld [vmem:[#allocation6 + $0x3f8] sm:$0xff]
    %v1606 = vld [vmem:[#allocation6 + $0x400] sm:$0xff]
    %v1607 = vld [vmem:[#allocation6 + $0x408] sm:$0xff]
    %v1608 = vld [vmem:[#allocation6 + $0x410] sm:$0xff]
    %v1609 = vld [vmem:[#allocation6 + $0x418] sm:$0xff]
    %v1610 = vld [vmem:[#allocation6 + $0x420] sm:$0xff]
    %v1611 = vld [vmem:[#allocation6 + $0x428] sm:$0xff]
    %v1612 = vld [vmem:[#allocation6 + $0x430] sm:$0xff]
    %v1613 = vld [vmem:[#allocation6 + $0x438] sm:$0xff]
    %v1614 = vld [vmem:[#allocation6 + $0x440] sm:$0xff]
    %v1615 = vld [vmem:[#allocation6 + $0x448] sm:$0xff]
    %v1616 = vld [vmem:[#allocation6 + $0x450] sm:$0xff]
    %v1617 = vld [vmem:[#allocation6 + $0x458] sm:$0xff]
    %v1618 = vld [vmem:[#allocation6 + $0x460] sm:$0xff]
    %v1619 = vld [vmem:[#allocation6 + $0x468] sm:$0xff]
    %v1620 = vld [vmem:[#allocation6 + $0x470] sm:$0xff]
    %v1621 = vld [vmem:[#allocation6 + $0x478] sm:$0xff]
    %v1622 = vld [vmem:[#allocation6 + $0x480] sm:$0xff]
    %v1623 = vld [vmem:[#allocation6 + $0x488] sm:$0xff]
    %v1624 = vld [vmem:[#allocation6 + $0x490] sm:$0xff]
    %v1625 = vld [vmem:[#allocation6 + $0x498] sm:$0xff]
    %v1626 = vld [vmem:[#allocation6 + $0x4a0] sm:$0xff]
    %v1627 = vld [vmem:[#allocation6 + $0x4a8] sm:$0xff]
    %v1628 = vld [vmem:[#allocation6 + $0x4b0] sm:$0xff]
    %v1629 = vld [vmem:[#allocation6 + $0x4b8] sm:$0xff]
    %v1630 = vld [vmem:[#allocation6 + $0x4c0] sm:$0xff]
    %v1631 = vld [vmem:[#allocation6 + $0x4c8] sm:$0xff]
    %v1632 = vld [vmem:[#allocation6 + $0x4d0] sm:$0xff]
    %v1633 = vld [vmem:[#allocation6 + $0x4d8] sm:$0xff]
    %v1634 = vld [vmem:[#allocation6 + $0x4e0] sm:$0xff]
    %v1635 = vld [vmem:[#allocation6 + $0x4e8] sm:$0xff]
    %v1636 = vld [vmem:[#allocation6 + $0x4f0] sm:$0xff]
    %v1637 = vld [vmem:[#allocation6 + $0x4f8] sm:$0xff]
    %v1638 = vld [vmem:[#allocation6 + $0x500] sm:$0xff]
    %v1639 = vld [vmem:[#allocation6 + $0x508] sm:$0xff]
    %v1640 = vld [vmem:[#allocation6 + $0x510] sm:$0xff]
    %v1641 = vld [vmem:[#allocation6 + $0x518] sm:$0xff]
    %v1642 = vld [vmem:[#allocation6 + $0x520] sm:$0xff]
    %v1643 = vld [vmem:[#allocation6 + $0x528] sm:$0xff]
    %v1644 = vld [vmem:[#allocation6 + $0x530] sm:$0xff]
    %v1645 = vld [vmem:[#allocation6 + $0x538] sm:$0xff]
    %v1646 = vld [vmem:[#allocation6 + $0x540] sm:$0xff]
    %v1647 = vld [vmem:[#allocation6 + $0x548] sm:$0xff]
    %v1648 = vld [vmem:[#allocation6 + $0x550] sm:$0xff]
    %v1649 = vld [vmem:[#allocation6 + $0x558] sm:$0xff]
    %v1650 = vld [vmem:[#allocation6 + $0x560] sm:$0xff]
    %v1651 = vld [vmem:[#allocation6 + $0x568] sm:$0xff]
    %v1652 = vld [vmem:[#allocation6 + $0x570] sm:$0xff]
    %v1653 = vld [vmem:[#allocation6 + $0x578] sm:$0xff]
    %v1654 = vld [vmem:[#allocation6 + $0x580] sm:$0xff]
    %v1655 = vld [vmem:[#allocation6 + $0x588] sm:$0xff]
    %v1656 = vld [vmem:[#allocation6 + $0x590] sm:$0xff]
    %v1657 = vld [vmem:[#allocation6 + $0x598] sm:$0xff]
    %v1658 = vld [vmem:[#allocation6 + $0x5a0] sm:$0xff]
    %v1659 = vld [vmem:[#allocation6 + $0x5a8] sm:$0xff]
    %v1660 = vld [vmem:[#allocation6 + $0x5b0] sm:$0xff]
    %v1661 = vld [vmem:[#allocation6 + $0x5b8] sm:$0xff]
    %v1662 = vld [vmem:[#allocation6 + $0x5c0] sm:$0xff]
    %v1663 = vld [vmem:[#allocation6 + $0x5c8] sm:$0xff]
    %v1664 = vld [vmem:[#allocation6 + $0x5d0] sm:$0xff]
    %v1665 = vld [vmem:[#allocation6 + $0x5d8] sm:$0xff]
    %v1666 = vld [vmem:[#allocation6 + $0x5e0] sm:$0xff]
    %v1667 = vld [vmem:[#allocation6 + $0x5e8] sm:$0xff]
    %v1668 = vld [vmem:[#allocation6 + $0x5f0] sm:$0xff]
    %v1669 = vld [vmem:[#allocation6 + $0x5f8] sm:$0xff]
    %v1670 = vld [vmem:[#allocation6 + $0x600] sm:$0xff]
    %v1671 = vld [vmem:[#allocation6 + $0x608] sm:$0xff]
    %v1672 = vld [vmem:[#allocation6 + $0x610] sm:$0xff]
    %v1673 = vld [vmem:[#allocation6 + $0x618] sm:$0xff]
    %v1674 = vld [vmem:[#allocation6 + $0x620] sm:$0xff]
    %v1675 = vld [vmem:[#allocation6 + $0x628] sm:$0xff]
    %v1676 = vld [vmem:[#allocation6 + $0x630] sm:$0xff]
    %v1677 = vld [vmem:[#allocation6 + $0x638] sm:$0xff]
    %v1678 = vld [vmem:[#allocation6 + $0x640] sm:$0xff]
    %v1679 = vld [vmem:[#allocation6 + $0x648] sm:$0xff]
    %v1680 = vld [vmem:[#allocation6 + $0x650] sm:$0xff]
    %v1681 = vld [vmem:[#allocation6 + $0x658] sm:$0xff]
    %v1682 = vld [vmem:[#allocation6 + $0x660] sm:$0xff]
    %v1683 = vld [vmem:[#allocation6 + $0x668] sm:$0xff]
    %v1684 = vld [vmem:[#allocation6 + $0x670] sm:$0xff]
    %v1685 = vld [vmem:[#allocation6 + $0x678] sm:$0xff]
    %v1686 = vld [vmem:[#allocation6 + $0x680] sm:$0xff]
    %v1687 = vld [vmem:[#allocation6 + $0x688] sm:$0xff]
    %v1688 = vld [vmem:[#allocation6 + $0x690] sm:$0xff]
    %v1689 = vld [vmem:[#allocation6 + $0x698] sm:$0xff]
    %v1690 = vld [vmem:[#allocation6 + $0x6a0] sm:$0xff]
    %v1691 = vld [vmem:[#allocation6 + $0x6a8] sm:$0xff]
    %v1692 = vld [vmem:[#allocation6 + $0x6b0] sm:$0xff]
    %v1693 = vld [vmem:[#allocation6 + $0x6b8] sm:$0xff]
    %v1694 = vld [vmem:[#allocation6 + $0x6c0] sm:$0xff]
    %v1695 = vld [vmem:[#allocation6 + $0x6c8] sm:$0xff]
    %v1696 = vld [vmem:[#allocation6 + $0x6d0] sm:$0xff]
    %v1697 = vld [vmem:[#allocation6 + $0x6d8] sm:$0xff]
    %v1698 = vld [vmem:[#allocation6 + $0x6e0] sm:$0xff]
    %v1699 = vld [vmem:[#allocation6 + $0x6e8] sm:$0xff]
    %v1700 = vld [vmem:[#allocation6 + $0x6f0] sm:$0xff]
    %v1701 = vld [vmem:[#allocation6 + $0x6f8] sm:$0xff]
    %v1702 = vld [vmem:[#allocation6 + $0x700] sm:$0xff]
    %v1703 = vld [vmem:[#allocation6 + $0x708] sm:$0xff]
    %v1704 = vld [vmem:[#allocation6 + $0x710] sm:$0xff]
    %v1705 = vld [vmem:[#allocation6 + $0x718] sm:$0xff]
    %v1706 = vld [vmem:[#allocation6 + $0x720] sm:$0xff]
    %v1707 = vld [vmem:[#allocation6 + $0x728] sm:$0xff]
    %v1708 = vld [vmem:[#allocation6 + $0x730] sm:$0xff]
    %v1709 = vld [vmem:[#allocation6 + $0x738] sm:$0xff]
    %v1710 = vld [vmem:[#allocation6 + $0x740] sm:$0xff]
    %v1711 = vld [vmem:[#allocation6 + $0x748] sm:$0xff]
    %v1712 = vld [vmem:[#allocation6 + $0x750] sm:$0xff]
    %v1713 = vld [vmem:[#allocation6 + $0x758] sm:$0xff]
    %v1714 = vld [vmem:[#allocation6 + $0x760] sm:$0xff]
    %v1715 = vld [vmem:[#allocation6 + $0x768] sm:$0xff]
    %v1716 = vld [vmem:[#allocation6 + $0x770] sm:$0xff]
    %v1717 = vld [vmem:[#allocation6 + $0x778] sm:$0xff]
    %v1718 = vld [vmem:[#allocation6 + $0x780] sm:$0xff]
    %v1719 = vld [vmem:[#allocation6 + $0x788] sm:$0xff]
    %v1720 = vld [vmem:[#allocation6 + $0x790] sm:$0xff]
    %v1721 = vld [vmem:[#allocation6 + $0x798] sm:$0xff]
    %v1722 = vld [vmem:[#allocation6 + $0x7a0] sm:$0xff]
    %v1723 = vld [vmem:[#allocation6 + $0x7a8] sm:$0xff]
    %v1724 = vld [vmem:[#allocation6 + $0x7b0] sm:$0xff]
    %v1725 = vld [vmem:[#allocation6 + $0x7b8] sm:$0xff]
    %v1726 = vld [vmem:[#allocation6 + $0x7c0] sm:$0xff]
    %v1727 = vld [vmem:[#allocation6 + $0x7c8] sm:$0xff]
    %v1728 = vld [vmem:[#allocation6 + $0x7d0] sm:$0xff]
    %v1729 = vld [vmem:[#allocation6 + $0x7d8] sm:$0xff]
    %v1730 = vld [vmem:[#allocation6 + $0x7e0] sm:$0xff]
    %v1731 = vld [vmem:[#allocation6 + $0x7e8] sm:$0xff]
    %v1732 = vld [vmem:[#allocation6 + $0x7f0] sm:$0xff]
    %v1733 = vld [vmem:[#allocation6 + $0x7f8] sm:$0xff]
    %v1734 = vld [vmem:[#allocation6 + $0x800] sm:$0xff]
    %v1735 = vld [vmem:[#allocation6 + $0x808] sm:$0xff]
    %v1736 = vld [vmem:[#allocation6 + $0x810] sm:$0xff]
    %v1737 = vld [vmem:[#allocation6 + $0x818] sm:$0xff]
    %v1738 = vld [vmem:[#allocation6 + $0x820] sm:$0xff]
    %v1739 = vld [vmem:[#allocation6 + $0x828] sm:$0xff]
    %v1740 = vld [vmem:[#allocation6 + $0x830] sm:$0xff]
    %v1741 = vld [vmem:[#allocation6 + $0x838] sm:$0xff]
    %v1742 = vld [vmem:[#allocation6 + $0x840] sm:$0xff]
    %v1743 = vld [vmem:[#allocation6 + $0x848] sm:$0xff]
    %v1744 = vld [vmem:[#allocation6 + $0x850] sm:$0xff]
    %v1745 = vld [vmem:[#allocation6 + $0x858] sm:$0xff]
    %v1746 = vld [vmem:[#allocation6 + $0x860] sm:$0xff]
    %v1747 = vld [vmem:[#allocation6 + $0x868] sm:$0xff]
    %v1748 = vld [vmem:[#allocation6 + $0x870] sm:$0xff]
    %v1749 = vld [vmem:[#allocation6 + $0x878] sm:$0xff]
    %v1750 = vld [vmem:[#allocation6 + $0x880] sm:$0xff]
    %v1751 = vld [vmem:[#allocation6 + $0x888] sm:$0xff]
    %v1752 = vld [vmem:[#allocation6 + $0x890] sm:$0xff]
    %v1753 = vld [vmem:[#allocation6 + $0x898] sm:$0xff]
    %v1754 = vld [vmem:[#allocation6 + $0x8a0] sm:$0xff]
    %v1755 = vld [vmem:[#allocation6 + $0x8a8] sm:$0xff]
    %v1756 = vld [vmem:[#allocation6 + $0x8b0] sm:$0xff]
    %v1757 = vld [vmem:[#allocation6 + $0x8b8] sm:$0xff]
    %v1758 = vld [vmem:[#allocation6 + $0x8c0] sm:$0xff]
    %v1759 = vld [vmem:[#allocation6 + $0x8c8] sm:$0xff]
    %v1760 = vld [vmem:[#allocation6 + $0x8d0] sm:$0xff]
    %v1761 = vld [vmem:[#allocation6 + $0x8d8] sm:$0xff]
    %v1762 = vld [vmem:[#allocation6 + $0x8e0] sm:$0xff]
    %v1763 = vld [vmem:[#allocation6 + $0x8e8] sm:$0xff]
    %v1764 = vld [vmem:[#allocation6 + $0x8f0] sm:$0xff]
    %v1765 = vld [vmem:[#allocation6 + $0x8f8] sm:$0xff]
    %v1766 = vld [vmem:[#allocation6 + $0x900] sm:$0xff]
    %v1767 = vld [vmem:[#allocation6 + $0x908] sm:$0xff]
    %v1768 = vld [vmem:[#allocation6 + $0x910] sm:$0xff]
    %v1769 = vld [vmem:[#allocation6 + $0x918] sm:$0xff]
    %v1770 = vld [vmem:[#allocation6 + $0x920] sm:$0xff]
    %v1771 = vld [vmem:[#allocation6 + $0x928] sm:$0xff]
    %v1772 = vld [vmem:[#allocation6 + $0x930] sm:$0xff]
    %v1773 = vld [vmem:[#allocation6 + $0x938] sm:$0xff]
    %v1774 = vld [vmem:[#allocation6 + $0x940] sm:$0xff]
    %v1775 = vld [vmem:[#allocation6 + $0x948] sm:$0xff]
    %v1776 = vld [vmem:[#allocation6 + $0x950] sm:$0xff]
    %v1777 = vld [vmem:[#allocation6 + $0x958] sm:$0xff]
    %v1778 = vld [vmem:[#allocation6 + $0x960] sm:$0xff]
    %v1779 = vld [vmem:[#allocation6 + $0x968] sm:$0xff]
    %v1780 = vld [vmem:[#allocation6 + $0x970] sm:$0xff]
    %v1781 = vld [vmem:[#allocation6 + $0x978] sm:$0xff]
    %v1782 = vld [vmem:[#allocation6 + $0x980] sm:$0xff]
    %v1783 = vld [vmem:[#allocation6 + $0x988] sm:$0xff]
    %v1784 = vld [vmem:[#allocation6 + $0x990] sm:$0xff]
    %v1785 = vld [vmem:[#allocation6 + $0x998] sm:$0xff]
    %v1786 = vld [vmem:[#allocation6 + $0x9a0] sm:$0xff]
    %v1787 = vld [vmem:[#allocation6 + $0x9a8] sm:$0xff]
    %v1788 = vld [vmem:[#allocation6 + $0x9b0] sm:$0xff]
    %v1789 = vld [vmem:[#allocation6 + $0x9b8] sm:$0xff]
    %v1790 = vld [vmem:[#allocation6 + $0x9c0] sm:$0xff]
    %v1791 = vld [vmem:[#allocation6 + $0x9c8] sm:$0xff]
    %v1792 = vld [vmem:[#allocation6 + $0x9d0] sm:$0xff]
    %v1793 = vld [vmem:[#allocation6 + $0x9d8] sm:$0xff]
    %v1794 = vld [vmem:[#allocation6 + $0x9e0] sm:$0xff]
    %v1795 = vld [vmem:[#allocation6 + $0x9e8] sm:$0xff]
    %v1796 = vld [vmem:[#allocation6 + $0x9f0] sm:$0xff]
    %v1797 = vld [vmem:[#allocation6 + $0x9f8] sm:$0xff]
    %v1798 = vld [vmem:[#allocation6 + $0xa00] sm:$0xff]
    %v1799 = vld [vmem:[#allocation6 + $0xa08] sm:$0xff]
    %v1800 = vld [vmem:[#allocation6 + $0xa10] sm:$0xff]
    %v1801 = vld [vmem:[#allocation6 + $0xa18] sm:$0xff]
    %v1802 = vld [vmem:[#allocation6 + $0xa20] sm:$0xff]
    %v1803 = vld [vmem:[#allocation6 + $0xa28] sm:$0xff]
    %v1804 = vld [vmem:[#allocation6 + $0xa30] sm:$0xff]
    %v1805 = vld [vmem:[#allocation6 + $0xa38] sm:$0xff]
    %v1806 = vld [vmem:[#allocation6 + $0xa40] sm:$0xff]
    %v1807 = vld [vmem:[#allocation6 + $0xa48] sm:$0xff]
    %v1808 = vld [vmem:[#allocation6 + $0xa50] sm:$0xff]
    %v1809 = vld [vmem:[#allocation6 + $0xa58] sm:$0xff]
    %v1810 = vld [vmem:[#allocation6 + $0xa60] sm:$0xff]
    %v1811 = vld [vmem:[#allocation6 + $0xa68] sm:$0xff]
    %v1812 = vld [vmem:[#allocation6 + $0xa70] sm:$0xff]
    %v1813 = vld [vmem:[#allocation6 + $0xa78] sm:$0xff]
    %v1814 = vld [vmem:[#allocation6 + $0xa80] sm:$0xff]
    %v1815 = vld [vmem:[#allocation6 + $0xa88] sm:$0xff]
    %v1816 = vld [vmem:[#allocation6 + $0xa90] sm:$0xff]
    %v1817 = vld [vmem:[#allocation6 + $0xa98] sm:$0xff]
    %v1818 = vld [vmem:[#allocation6 + $0xaa0] sm:$0xff]
    %v1819 = vld [vmem:[#allocation6 + $0xaa8] sm:$0xff]
    %v1820 = vld [vmem:[#allocation6 + $0xab0] sm:$0xff]
    %v1821 = vld [vmem:[#allocation6 + $0xab8] sm:$0xff]
    %v1822 = vld [vmem:[#allocation6 + $0xac0] sm:$0xff]
    %v1823 = vld [vmem:[#allocation6 + $0xac8] sm:$0xff]
    %v1824 = vld [vmem:[#allocation6 + $0xad0] sm:$0xff]
    %v1825 = vld [vmem:[#allocation6 + $0xad8] sm:$0xff]
    %v1826 = vld [vmem:[#allocation6 + $0xae0] sm:$0xff]
    %v1827 = vld [vmem:[#allocation6 + $0xae8] sm:$0xff]
    %v1828 = vld [vmem:[#allocation6 + $0xaf0] sm:$0xff]
    %v1829 = vld [vmem:[#allocation6 + $0xaf8] sm:$0xff]
    %v1830 = vld [vmem:[#allocation6 + $0xb00] sm:$0xff]
    %v1831 = vld [vmem:[#allocation6 + $0xb08] sm:$0xff]
    %v1832 = vld [vmem:[#allocation6 + $0xb10] sm:$0xff]
    %v1833 = vld [vmem:[#allocation6 + $0xb18] sm:$0xff]
    %v1834 = vld [vmem:[#allocation6 + $0xb20] sm:$0xff]
    %v1835 = vld [vmem:[#allocation6 + $0xb28] sm:$0xff]
    %v1836 = vld [vmem:[#allocation6 + $0xb30] sm:$0xff]
    %v1837 = vld [vmem:[#allocation6 + $0xb38] sm:$0xff]
    %v1838 = vld [vmem:[#allocation6 + $0xb40] sm:$0xff]
    %v1839 = vld [vmem:[#allocation6 + $0xb48] sm:$0xff]
    %v1840 = vld [vmem:[#allocation6 + $0xb50] sm:$0xff]
    %v1841 = vld [vmem:[#allocation6 + $0xb58] sm:$0xff]
    %v1842 = vld [vmem:[#allocation6 + $0xb60] sm:$0xff]
    %v1843 = vld [vmem:[#allocation6 + $0xb68] sm:$0xff]
    %v1844 = vld [vmem:[#allocation6 + $0xb70] sm:$0xff]
    %v1845 = vld [vmem:[#allocation6 + $0xb78] sm:$0xff]
    %v1846 = vld [vmem:[#allocation6 + $0xb80] sm:$0xff]
    %v1847 = vld [vmem:[#allocation6 + $0xb88] sm:$0xff]
    %v1848 = vld [vmem:[#allocation6 + $0xb90] sm:$0xff]
    %v1849 = vld [vmem:[#allocation6 + $0xb98] sm:$0xff]
    %v1850 = vld [vmem:[#allocation6 + $0xba0] sm:$0xff]
    %v1851 = vld [vmem:[#allocation6 + $0xba8] sm:$0xff]
    %v1852 = vld [vmem:[#allocation6 + $0xbb0] sm:$0xff]
    %v1853 = vld [vmem:[#allocation6 + $0xbb8] sm:$0xff]
    %v1854 = vld [vmem:[#allocation6 + $0xbc0] sm:$0xff]
    %v1855 = vld [vmem:[#allocation6 + $0xbc8] sm:$0xff]
    %v1856 = vld [vmem:[#allocation6 + $0xbd0] sm:$0xff]
    %v1857 = vld [vmem:[#allocation6 + $0xbd8] sm:$0xff]
    %v1858 = vld [vmem:[#allocation6 + $0xbe0] sm:$0xff]
    %v1859 = vld [vmem:[#allocation6 + $0xbe8] sm:$0xff]
    %v1860 = vld [vmem:[#allocation6 + $0xbf0] sm:$0xff]
    %v1861 = vld [vmem:[#allocation6 + $0xbf8] sm:$0xff]
    %v1862 = vld [vmem:[#allocation6 + $0xc00] sm:$0xff]
    %v1863 = vld [vmem:[#allocation6 + $0xc08] sm:$0xff]
    %v1864 = vld [vmem:[#allocation6 + $0xc10] sm:$0xff]
    %v1865 = vld [vmem:[#allocation6 + $0xc18] sm:$0xff]
    %v1866 = vld [vmem:[#allocation6 + $0xc20] sm:$0xff]
    %v1867 = vld [vmem:[#allocation6 + $0xc28] sm:$0xff]
    %v1868 = vld [vmem:[#allocation6 + $0xc30] sm:$0xff]
    %v1869 = vld [vmem:[#allocation6 + $0xc38] sm:$0xff]
    %v1870 = vld [vmem:[#allocation6 + $0xc40] sm:$0xff]
    %v1871 = vld [vmem:[#allocation6 + $0xc48] sm:$0xff]
    %v1872 = vld [vmem:[#allocation6 + $0xc50] sm:$0xff]
    %v1873 = vld [vmem:[#allocation6 + $0xc58] sm:$0xff]
    %v1874 = vld [vmem:[#allocation6 + $0xc60] sm:$0xff]
    %v1875 = vld [vmem:[#allocation6 + $0xc68] sm:$0xff]
    %v1876 = vld [vmem:[#allocation6 + $0xc70] sm:$0xff]
    %v1877 = vld [vmem:[#allocation6 + $0xc78] sm:$0xff]
    %v1878 = vld [vmem:[#allocation6 + $0xc80] sm:$0xff]
    %v1879 = vld [vmem:[#allocation6 + $0xc88] sm:$0xff]
    %v1880 = vld [vmem:[#allocation6 + $0xc90] sm:$0xff]
    %v1881 = vld [vmem:[#allocation6 + $0xc98] sm:$0xff]
    %v1882 = vld [vmem:[#allocation6 + $0xca0] sm:$0xff]
    %v1883 = vld [vmem:[#allocation6 + $0xca8] sm:$0xff]
    %v1884 = vld [vmem:[#allocation6 + $0xcb0] sm:$0xff]
    %v1885 = vld [vmem:[#allocation6 + $0xcb8] sm:$0xff]
    %v1886 = vld [vmem:[#allocation6 + $0xcc0] sm:$0xff]
    %v1887 = vld [vmem:[#allocation6 + $0xcc8] sm:$0xff]
    %v1888 = vld [vmem:[#allocation6 + $0xcd0] sm:$0xff]
    %v1889 = vld [vmem:[#allocation6 + $0xcd8] sm:$0xff]
    %v1890 = vld [vmem:[#allocation6 + $0xce0] sm:$0xff]
    %v1891 = vld [vmem:[#allocation6 + $0xce8] sm:$0xff]
    %v1892 = vld [vmem:[#allocation6 + $0xcf0] sm:$0xff]
    %v1893 = vld [vmem:[#allocation6 + $0xcf8] sm:$0xff]
    %v1894 = vld [vmem:[#allocation6 + $0xd00] sm:$0xff]
    %v1895 = vld [vmem:[#allocation6 + $0xd08] sm:$0xff]
    %v1896 = vld [vmem:[#allocation6 + $0xd10] sm:$0xff]
    %v1897 = vld [vmem:[#allocation6 + $0xd18] sm:$0xff]
    %v1898 = vld [vmem:[#allocation6 + $0xd20] sm:$0xff]
    %v1899 = vld [vmem:[#allocation6 + $0xd28] sm:$0xff]
    %v1900 = vld [vmem:[#allocation6 + $0xd30] sm:$0xff]
    %v1901 = vld [vmem:[#allocation6 + $0xd38] sm:$0xff]
    %v1902 = vld [vmem:[#allocation6 + $0xd40] sm:$0xff]
    %v1903 = vld [vmem:[#allocation6 + $0xd48] sm:$0xff]
    %v1904 = vld [vmem:[#allocation6 + $0xd50] sm:$0xff]
    %v1905 = vld [vmem:[#allocation6 + $0xd58] sm:$0xff]
    %v1906 = vld [vmem:[#allocation6 + $0xd60] sm:$0xff]
    %v1907 = vld [vmem:[#allocation6 + $0xd68] sm:$0xff]
    %v1908 = vld [vmem:[#allocation6 + $0xd70] sm:$0xff]
    %v1909 = vld [vmem:[#allocation6 + $0xd78] sm:$0xff]
    %v1910 = vld [vmem:[#allocation6 + $0xd80] sm:$0xff]
    %v1911 = vld [vmem:[#allocation6 + $0xd88] sm:$0xff]
    %v1912 = vld [vmem:[#allocation6 + $0xd90] sm:$0xff]
    %v1913 = vld [vmem:[#allocation6 + $0xd98] sm:$0xff]
    %v1914 = vld [vmem:[#allocation6 + $0xda0] sm:$0xff]
    %v1915 = vld [vmem:[#allocation6 + $0xda8] sm:$0xff]
    %v1916 = vld [vmem:[#allocation6 + $0xdb0] sm:$0xff]
    %v1917 = vld [vmem:[#allocation6 + $0xdb8] sm:$0xff]
    %v1918 = vld [vmem:[#allocation6 + $0xdc0] sm:$0xff]
    %v1919 = vld [vmem:[#allocation6 + $0xdc8] sm:$0xff]
    %v1920 = vld [vmem:[#allocation6 + $0xdd0] sm:$0xff]
    %v1921 = vld [vmem:[#allocation6 + $0xdd8] sm:$0xff]
    %v1922 = vld [vmem:[#allocation6 + $0xde0] sm:$0xff]
    %v1923 = vld [vmem:[#allocation6 + $0xde8] sm:$0xff]
    %v1924 = vld [vmem:[#allocation6 + $0xdf0] sm:$0xff]
    %v1925 = vld [vmem:[#allocation6 + $0xdf8] sm:$0xff]
    %v1926 = vld [vmem:[#allocation6 + $0xe00] sm:$0xff]
    %v1927 = vld [vmem:[#allocation6 + $0xe08] sm:$0xff]
    %v1928 = vld [vmem:[#allocation6 + $0xe10] sm:$0xff]
    %v1929 = vld [vmem:[#allocation6 + $0xe18] sm:$0xff]
    %v1930 = vld [vmem:[#allocation6 + $0xe20] sm:$0xff]
    %v1931 = vld [vmem:[#allocation6 + $0xe28] sm:$0xff]
    %v1932 = vld [vmem:[#allocation6 + $0xe30] sm:$0xff]
    %v1933 = vld [vmem:[#allocation6 + $0xe38] sm:$0xff]
    %v1934 = vld [vmem:[#allocation6 + $0xe40] sm:$0xff]
    %v1935 = vld [vmem:[#allocation6 + $0xe48] sm:$0xff]
    %v1936 = vld [vmem:[#allocation6 + $0xe50] sm:$0xff]
    %v1937 = vld [vmem:[#allocation6 + $0xe58] sm:$0xff]
    %v1938 = vld [vmem:[#allocation6 + $0xe60] sm:$0xff]
    %v1939 = vld [vmem:[#allocation6 + $0xe68] sm:$0xff]
    %v1940 = vld [vmem:[#allocation6 + $0xe70] sm:$0xff]
    %v1941 = vld [vmem:[#allocation6 + $0xe78] sm:$0xff]
    %v1942 = vld [vmem:[#allocation6 + $0xe80] sm:$0xff]
    %v1943 = vld [vmem:[#allocation6 + $0xe88] sm:$0xff]
    %v1944 = vld [vmem:[#allocation6 + $0xe90] sm:$0xff]
    %v1945 = vld [vmem:[#allocation6 + $0xe98] sm:$0xff]
    %v1946 = vld [vmem:[#allocation6 + $0xea0] sm:$0xff]
    %v1947 = vld [vmem:[#allocation6 + $0xea8] sm:$0xff]
    %v1948 = vld [vmem:[#allocation6 + $0xeb0] sm:$0xff]
    %v1949 = vld [vmem:[#allocation6 + $0xeb8] sm:$0xff]
    %v1950 = vld [vmem:[#allocation6 + $0xec0] sm:$0xff]
    %v1951 = vld [vmem:[#allocation6 + $0xec8] sm:$0xff]
    %v1952 = vld [vmem:[#allocation6 + $0xed0] sm:$0xff]
    %v1953 = vld [vmem:[#allocation6 + $0xed8] sm:$0xff]
    %v1954 = vld [vmem:[#allocation6 + $0xee0] sm:$0xff]
    %v1955 = vld [vmem:[#allocation6 + $0xee8] sm:$0xff]
    %v1956 = vld [vmem:[#allocation6 + $0xef0] sm:$0xff]
    %v1957 = vld [vmem:[#allocation6 + $0xef8] sm:$0xff]
    %v1958 = vld [vmem:[#allocation6 + $0xf00] sm:$0xff]
    %v1959 = vld [vmem:[#allocation6 + $0xf08] sm:$0xff]
    %v1960 = vld [vmem:[#allocation6 + $0xf10] sm:$0xff]
    %v1961 = vld [vmem:[#allocation6 + $0xf18] sm:$0xff]
    %v1962 = vld [vmem:[#allocation6 + $0xf20] sm:$0xff]
    %v1963 = vld [vmem:[#allocation6 + $0xf28] sm:$0xff]
    %v1964 = vld [vmem:[#allocation6 + $0xf30] sm:$0xff]
    %v1965 = vld [vmem:[#allocation6 + $0xf38] sm:$0xff]
    %v1966 = vld [vmem:[#allocation6 + $0xf40] sm:$0xff]
    %v1967 = vld [vmem:[#allocation6 + $0xf48] sm:$0xff]
    %v1968 = vld [vmem:[#allocation6 + $0xf50] sm:$0xff]
    %v1969 = vld [vmem:[#allocation6 + $0xf58] sm:$0xff]
    %v1970 = vld [vmem:[#allocation6 + $0xf60] sm:$0xff]
    %v1971 = vld [vmem:[#allocation6 + $0xf68] sm:$0xff]
    %v1972 = vld [vmem:[#allocation6 + $0xf70] sm:$0xff]
    %v1973 = vld [vmem:[#allocation6 + $0xf78] sm:$0xff]
    %v1974 = vld [vmem:[#allocation6 + $0xf80] sm:$0xff]
    %v1975 = vld [vmem:[#allocation6 + $0xf88] sm:$0xff]
    %v1976 = vld [vmem:[#allocation6 + $0xf90] sm:$0xff]
    %v1977 = vld [vmem:[#allocation6 + $0xf98] sm:$0xff]
    %v1978 = vld [vmem:[#allocation6 + $0xfa0] sm:$0xff]
    %v1979 = vld [vmem:[#allocation6 + $0xfa8] sm:$0xff]
    %v1980 = vld [vmem:[#allocation6 + $0xfb0] sm:$0xff]
    %v1981 = vld [vmem:[#allocation6 + $0xfb8] sm:$0xff]
    %v1982 = vld [vmem:[#allocation6 + $0xfc0] sm:$0xff]
    %v1983 = vld [vmem:[#allocation6 + $0xfc8] sm:$0xff]
    %v1984 = vld [vmem:[#allocation6 + $0xfd0] sm:$0xff]
    %v1985 = vld [vmem:[#allocation6 + $0xfd8] sm:$0xff]
    %v1986 = vld [vmem:[#allocation6 + $0xfe0] sm:$0xff]
    %v1987 = vld [vmem:[#allocation6 + $0xfe8] sm:$0xff]
    %v1988 = vld [vmem:[#allocation6 + $0xff0] sm:$0xff]
    %v1989 = vld [vmem:[#allocation6 + $0xff8] sm:$0xff]
    %v1990 = vunpack.c.l.s8.bf16 %v1478
    %v1991 = vunpack.c.l.s8.bf16 %v1479
    %v1992 = vunpack.c.l.s8.bf16 %v1480
    %v1993 = vunpack.c.l.s8.bf16 %v1481
    %v1994 = vunpack.c.l.s8.bf16 %v1482
    %v1995 = vunpack.c.l.s8.bf16 %v1483
    %v1996 = vunpack.c.l.s8.bf16 %v1484
    %v1997 = vunpack.c.l.s8.bf16 %v1485
    %v1998 = vunpack.c.l.s8.bf16 %v1486
    %v1999 = vunpack.c.l.s8.bf16 %v1487
    %v2000 = vunpack.c.l.s8.bf16 %v1488
    %v2001 = vunpack.c.l.s8.bf16 %v1489
    %v2002 = vunpack.c.l.s8.bf16 %v1490
    %v2003 = vunpack.c.l.s8.bf16 %v1491
    %v2004 = vunpack.c.l.s8.bf16 %v1492
    %v2005 = vunpack.c.l.s8.bf16 %v1493
    %v2006 = vunpack.c.h.s8.bf16 %v1478
    %v2007 = vunpack.c.h.s8.bf16 %v1479
    %v2008 = vunpack.c.h.s8.bf16 %v1480
    %v2009 = vunpack.c.h.s8.bf16 %v1481
    %v2010 = vunpack.c.h.s8.bf16 %v1482
    %v2011 = vunpack.c.h.s8.bf16 %v1483
    %v2012 = vunpack.c.h.s8.bf16 %v1484
    %v2013 = vunpack.c.h.s8.bf16 %v1485
    %v2014 = vunpack.c.h.s8.bf16 %v1486
    %v2015 = vunpack.c.h.s8.bf16 %v1487
    %v2016 = vunpack.c.h.s8.bf16 %v1488
    %v2017 = vunpack.c.h.s8.bf16 %v1489
    %v2018 = vunpack.c.h.s8.bf16 %v1490
    %v2019 = vunpack.c.h.s8.bf16 %v1491
    %v2020 = vunpack.c.h.s8.bf16 %v1492
    %v2021 = vunpack.c.h.s8.bf16 %v1493
    %v2022 = vunpack.c.l.s8.bf16 %v1494
    %v2023 = vunpack.c.l.s8.bf16 %v1495
    %v2024 = vunpack.c.l.s8.bf16 %v1496
    %v2025 = vunpack.c.l.s8.bf16 %v1497
    %v2026 = vunpack.c.l.s8.bf16 %v1498
    %v2027 = vunpack.c.l.s8.bf16 %v1499
    %v2028 = vunpack.c.l.s8.bf16 %v1500
    %v2029 = vunpack.c.l.s8.bf16 %v1501
    %v2030 = vunpack.c.l.s8.bf16 %v1502
    %v2031 = vunpack.c.l.s8.bf16 %v1503
    %v2032 = vunpack.c.l.s8.bf16 %v1504
    %v2033 = vunpack.c.l.s8.bf16 %v1505
    %v2034 = vunpack.c.l.s8.bf16 %v1506
    %v2035 = vunpack.c.l.s8.bf16 %v1507
    %v2036 = vunpack.c.l.s8.bf16 %v1508
    %v2037 = vunpack.c.l.s8.bf16 %v1509
    %v2038 = vunpack.c.h.s8.bf16 %v1494
    %v2039 = vunpack.c.h.s8.bf16 %v1495
    %v2040 = vunpack.c.h.s8.bf16 %v1496
    %v2041 = vunpack.c.h.s8.bf16 %v1497
    %v2042 = vunpack.c.h.s8.bf16 %v1498
    %v2043 = vunpack.c.h.s8.bf16 %v1499
    %v2044 = vunpack.c.h.s8.bf16 %v1500
    %v2045 = vunpack.c.h.s8.bf16 %v1501
    %v2046 = vunpack.c.h.s8.bf16 %v1502
    %v2047 = vunpack.c.h.s8.bf16 %v1503
    %v2048 = vunpack.c.h.s8.bf16 %v1504
    %v2049 = vunpack.c.h.s8.bf16 %v1505
    %v2050 = vunpack.c.h.s8.bf16 %v1506
    %v2051 = vunpack.c.h.s8.bf16 %v1507
    %v2052 = vunpack.c.h.s8.bf16 %v1508
    %v2053 = vunpack.c.h.s8.bf16 %v1509
    %v2054 = vunpack.c.l.s8.bf16 %v1510
    %v2055 = vunpack.c.l.s8.bf16 %v1511
    %v2056 = vunpack.c.l.s8.bf16 %v1512
    %v2057 = vunpack.c.l.s8.bf16 %v1513
    %v2058 = vunpack.c.l.s8.bf16 %v1514
    %v2059 = vunpack.c.l.s8.bf16 %v1515
    %v2060 = vunpack.c.l.s8.bf16 %v1516
    %v2061 = vunpack.c.l.s8.bf16 %v1517
    %v2062 = vunpack.c.l.s8.bf16 %v1518
    %v2063 = vunpack.c.l.s8.bf16 %v1519
    %v2064 = vunpack.c.l.s8.bf16 %v1520
    %v2065 = vunpack.c.l.s8.bf16 %v1521
    %v2066 = vunpack.c.l.s8.bf16 %v1522
    %v2067 = vunpack.c.l.s8.bf16 %v1523
    %v2068 = vunpack.c.l.s8.bf16 %v1524
    %v2069 = vunpack.c.l.s8.bf16 %v1525
    %v2070 = vunpack.c.h.s8.bf16 %v1510
    %v2071 = vunpack.c.h.s8.bf16 %v1511
    %v2072 = vunpack.c.h.s8.bf16 %v1512
    %v2073 = vunpack.c.h.s8.bf16 %v1513
    %v2074 = vunpack.c.h.s8.bf16 %v1514
    %v2075 = vunpack.c.h.s8.bf16 %v1515
    %v2076 = vunpack.c.h.s8.bf16 %v1516
    %v2077 = vunpack.c.h.s8.bf16 %v1517
    %v2078 = vunpack.c.h.s8.bf16 %v1518
    %v2079 = vunpack.c.h.s8.bf16 %v1519
    %v2080 = vunpack.c.h.s8.bf16 %v1520
    %v2081 = vunpack.c.h.s8.bf16 %v1521
    %v2082 = vunpack.c.h.s8.bf16 %v1522
    %v2083 = vunpack.c.h.s8.bf16 %v1523
    %v2084 = vunpack.c.h.s8.bf16 %v1524
    %v2085 = vunpack.c.h.s8.bf16 %v1525
    %v2086 = vunpack.c.l.s8.bf16 %v1526
    %v2087 = vunpack.c.l.s8.bf16 %v1527
    %v2088 = vunpack.c.l.s8.bf16 %v1528
    %v2089 = vunpack.c.l.s8.bf16 %v1529
    %v2090 = vunpack.c.l.s8.bf16 %v1530
    %v2091 = vunpack.c.l.s8.bf16 %v1531
    %v2092 = vunpack.c.l.s8.bf16 %v1532
    %v2093 = vunpack.c.l.s8.bf16 %v1533
    %v2094 = vunpack.c.l.s8.bf16 %v1534
    %v2095 = vunpack.c.l.s8.bf16 %v1535
    %v2096 = vunpack.c.l.s8.bf16 %v1536
    %v2097 = vunpack.c.l.s8.bf16 %v1537
    %v2098 = vunpack.c.l.s8.bf16 %v1538
    %v2099 = vunpack.c.l.s8.bf16 %v1539
    %v2100 = vunpack.c.l.s8.bf16 %v1540
    %v2101 = vunpack.c.l.s8.bf16 %v1541
    %v2102 = vunpack.c.h.s8.bf16 %v1526
    %v2103 = vunpack.c.h.s8.bf16 %v1527
    %v2104 = vunpack.c.h.s8.bf16 %v1528
    %v2105 = vunpack.c.h.s8.bf16 %v1529
    %v2106 = vunpack.c.h.s8.bf16 %v1530
    %v2107 = vunpack.c.h.s8.bf16 %v1531
    %v2108 = vunpack.c.h.s8.bf16 %v1532
    %v2109 = vunpack.c.h.s8.bf16 %v1533
    %v2110 = vunpack.c.h.s8.bf16 %v1534
    %v2111 = vunpack.c.h.s8.bf16 %v1535
    %v2112 = vunpack.c.h.s8.bf16 %v1536
    %v2113 = vunpack.c.h.s8.bf16 %v1537
    %v2114 = vunpack.c.h.s8.bf16 %v1538
    %v2115 = vunpack.c.h.s8.bf16 %v1539
    %v2116 = vunpack.c.h.s8.bf16 %v1540
    %v2117 = vunpack.c.h.s8.bf16 %v1541
    %v2118 = vunpack.c.l.s8.bf16 %v1542
    %v2119 = vunpack.c.l.s8.bf16 %v1543
    %v2120 = vunpack.c.l.s8.bf16 %v1544
    %v2121 = vunpack.c.l.s8.bf16 %v1545
    %v2122 = vunpack.c.l.s8.bf16 %v1546
    %v2123 = vunpack.c.l.s8.bf16 %v1547
    %v2124 = vunpack.c.l.s8.bf16 %v1548
    %v2125 = vunpack.c.l.s8.bf16 %v1549
    %v2126 = vunpack.c.l.s8.bf16 %v1550
    %v2127 = vunpack.c.l.s8.bf16 %v1551
    %v2128 = vunpack.c.l.s8.bf16 %v1552
    %v2129 = vunpack.c.l.s8.bf16 %v1553
    %v2130 = vunpack.c.l.s8.bf16 %v1554
    %v2131 = vunpack.c.l.s8.bf16 %v1555
    %v2132 = vunpack.c.l.s8.bf16 %v1556
    %v2133 = vunpack.c.l.s8.bf16 %v1557
    %v2134 = vunpack.c.h.s8.bf16 %v1542
    %v2135 = vunpack.c.h.s8.bf16 %v1543
    %v2136 = vunpack.c.h.s8.bf16 %v1544
    %v2137 = vunpack.c.h.s8.bf16 %v1545
    %v2138 = vunpack.c.h.s8.bf16 %v1546
    %v2139 = vunpack.c.h.s8.bf16 %v1547
    %v2140 = vunpack.c.h.s8.bf16 %v1548
    %v2141 = vunpack.c.h.s8.bf16 %v1549
    %v2142 = vunpack.c.h.s8.bf16 %v1550
    %v2143 = vunpack.c.h.s8.bf16 %v1551
    %v2144 = vunpack.c.h.s8.bf16 %v1552
    %v2145 = vunpack.c.h.s8.bf16 %v1553
    %v2146 = vunpack.c.h.s8.bf16 %v1554
    %v2147 = vunpack.c.h.s8.bf16 %v1555
    %v2148 = vunpack.c.h.s8.bf16 %v1556
    %v2149 = vunpack.c.h.s8.bf16 %v1557
    %v2150 = vunpack.c.l.s8.bf16 %v1558
    %v2151 = vunpack.c.l.s8.bf16 %v1559
    %v2152 = vunpack.c.l.s8.bf16 %v1560
    %v2153 = vunpack.c.l.s8.bf16 %v1561
    %v2154 = vunpack.c.l.s8.bf16 %v1562
    %v2155 = vunpack.c.l.s8.bf16 %v1563
    %v2156 = vunpack.c.l.s8.bf16 %v1564
    %v2157 = vunpack.c.l.s8.bf16 %v1565
    %v2158 = vunpack.c.l.s8.bf16 %v1566
    %v2159 = vunpack.c.l.s8.bf16 %v1567
    %v2160 = vunpack.c.l.s8.bf16 %v1568
    %v2161 = vunpack.c.l.s8.bf16 %v1569
    %v2162 = vunpack.c.l.s8.bf16 %v1570
    %v2163 = vunpack.c.l.s8.bf16 %v1571
    %v2164 = vunpack.c.l.s8.bf16 %v1572
    %v2165 = vunpack.c.l.s8.bf16 %v1573
    %v2166 = vunpack.c.h.s8.bf16 %v1558
    %v2167 = vunpack.c.h.s8.bf16 %v1559
    %v2168 = vunpack.c.h.s8.bf16 %v1560
    %v2169 = vunpack.c.h.s8.bf16 %v1561
    %v2170 = vunpack.c.h.s8.bf16 %v1562
    %v2171 = vunpack.c.h.s8.bf16 %v1563
    %v2172 = vunpack.c.h.s8.bf16 %v1564
    %v2173 = vunpack.c.h.s8.bf16 %v1565
    %v2174 = vunpack.c.h.s8.bf16 %v1566
    %v2175 = vunpack.c.h.s8.bf16 %v1567
    %v2176 = vunpack.c.h.s8.bf16 %v1568
    %v2177 = vunpack.c.h.s8.bf16 %v1569
    %v2178 = vunpack.c.h.s8.bf16 %v1570
    %v2179 = vunpack.c.h.s8.bf16 %v1571
    %v2180 = vunpack.c.h.s8.bf16 %v1572
    %v2181 = vunpack.c.h.s8.bf16 %v1573
    %v2182 = vunpack.c.l.s8.bf16 %v1574
    %v2183 = vunpack.c.l.s8.bf16 %v1575
    %v2184 = vunpack.c.l.s8.bf16 %v1576
    %v2185 = vunpack.c.l.s8.bf16 %v1577
    %v2186 = vunpack.c.l.s8.bf16 %v1578
    %v2187 = vunpack.c.l.s8.bf16 %v1579
    %v2188 = vunpack.c.l.s8.bf16 %v1580
    %v2189 = vunpack.c.l.s8.bf16 %v1581
    %v2190 = vunpack.c.l.s8.bf16 %v1582
    %v2191 = vunpack.c.l.s8.bf16 %v1583
    %v2192 = vunpack.c.l.s8.bf16 %v1584
    %v2193 = vunpack.c.l.s8.bf16 %v1585
    %v2194 = vunpack.c.l.s8.bf16 %v1586
    %v2195 = vunpack.c.l.s8.bf16 %v1587
    %v2196 = vunpack.c.l.s8.bf16 %v1588
    %v2197 = vunpack.c.l.s8.bf16 %v1589
    %v2198 = vunpack.c.h.s8.bf16 %v1574
    %v2199 = vunpack.c.h.s8.bf16 %v1575
    %v2200 = vunpack.c.h.s8.bf16 %v1576
    %v2201 = vunpack.c.h.s8.bf16 %v1577
    %v2202 = vunpack.c.h.s8.bf16 %v1578
    %v2203 = vunpack.c.h.s8.bf16 %v1579
    %v2204 = vunpack.c.h.s8.bf16 %v1580
    %v2205 = vunpack.c.h.s8.bf16 %v1581
    %v2206 = vunpack.c.h.s8.bf16 %v1582
    %v2207 = vunpack.c.h.s8.bf16 %v1583
    %v2208 = vunpack.c.h.s8.bf16 %v1584
    %v2209 = vunpack.c.h.s8.bf16 %v1585
    %v2210 = vunpack.c.h.s8.bf16 %v1586
    %v2211 = vunpack.c.h.s8.bf16 %v1587
    %v2212 = vunpack.c.h.s8.bf16 %v1588
    %v2213 = vunpack.c.h.s8.bf16 %v1589
    %v2214 = vunpack.c.l.s8.bf16 %v1590
    %v2215 = vunpack.c.l.s8.bf16 %v1591
    %v2216 = vunpack.c.l.s8.bf16 %v1592
    %v2217 = vunpack.c.l.s8.bf16 %v1593
    %v2218 = vunpack.c.l.s8.bf16 %v1594
    %v2219 = vunpack.c.l.s8.bf16 %v1595
    %v2220 = vunpack.c.l.s8.bf16 %v1596
    %v2221 = vunpack.c.l.s8.bf16 %v1597
    %v2222 = vunpack.c.l.s8.bf16 %v1598
    %v2223 = vunpack.c.l.s8.bf16 %v1599
    %v2224 = vunpack.c.l.s8.bf16 %v1600
    %v2225 = vunpack.c.l.s8.bf16 %v1601
    %v2226 = vunpack.c.l.s8.bf16 %v1602
    %v2227 = vunpack.c.l.s8.bf16 %v1603
    %v2228 = vunpack.c.l.s8.bf16 %v1604
    %v2229 = vunpack.c.l.s8.bf16 %v1605
    %v2230 = vunpack.c.h.s8.bf16 %v1590
    %v2231 = vunpack.c.h.s8.bf16 %v1591
    %v2232 = vunpack.c.h.s8.bf16 %v1592
    %v2233 = vunpack.c.h.s8.bf16 %v1593
    %v2234 = vunpack.c.h.s8.bf16 %v1594
    %v2235 = vunpack.c.h.s8.bf16 %v1595
    %v2236 = vunpack.c.h.s8.bf16 %v1596
    %v2237 = vunpack.c.h.s8.bf16 %v1597
    %v2238 = vunpack.c.h.s8.bf16 %v1598
    %v2239 = vunpack.c.h.s8.bf16 %v1599
    %v2240 = vunpack.c.h.s8.bf16 %v1600
    %v2241 = vunpack.c.h.s8.bf16 %v1601
    %v2242 = vunpack.c.h.s8.bf16 %v1602
    %v2243 = vunpack.c.h.s8.bf16 %v1603
    %v2244 = vunpack.c.h.s8.bf16 %v1604
    %v2245 = vunpack.c.h.s8.bf16 %v1605
    %v2246 = vunpack.c.l.s8.bf16 %v1606
    %v2247 = vunpack.c.l.s8.bf16 %v1607
    %v2248 = vunpack.c.l.s8.bf16 %v1608
    %v2249 = vunpack.c.l.s8.bf16 %v1609
    %v2250 = vunpack.c.l.s8.bf16 %v1610
    %v2251 = vunpack.c.l.s8.bf16 %v1611
    %v2252 = vunpack.c.l.s8.bf16 %v1612
    %v2253 = vunpack.c.l.s8.bf16 %v1613
    %v2254 = vunpack.c.l.s8.bf16 %v1614
    %v2255 = vunpack.c.l.s8.bf16 %v1615
    %v2256 = vunpack.c.l.s8.bf16 %v1616
    %v2257 = vunpack.c.l.s8.bf16 %v1617
    %v2258 = vunpack.c.l.s8.bf16 %v1618
    %v2259 = vunpack.c.l.s8.bf16 %v1619
    %v2260 = vunpack.c.l.s8.bf16 %v1620
    %v2261 = vunpack.c.l.s8.bf16 %v1621
    %v2262 = vunpack.c.h.s8.bf16 %v1606
    %v2263 = vunpack.c.h.s8.bf16 %v1607
    %v2264 = vunpack.c.h.s8.bf16 %v1608
    %v2265 = vunpack.c.h.s8.bf16 %v1609
    %v2266 = vunpack.c.h.s8.bf16 %v1610
    %v2267 = vunpack.c.h.s8.bf16 %v1611
    %v2268 = vunpack.c.h.s8.bf16 %v1612
    %v2269 = vunpack.c.h.s8.bf16 %v1613
    %v2270 = vunpack.c.h.s8.bf16 %v1614
    %v2271 = vunpack.c.h.s8.bf16 %v1615
    %v2272 = vunpack.c.h.s8.bf16 %v1616
    %v2273 = vunpack.c.h.s8.bf16 %v1617
    %v2274 = vunpack.c.h.s8.bf16 %v1618
    %v2275 = vunpack.c.h.s8.bf16 %v1619
    %v2276 = vunpack.c.h.s8.bf16 %v1620
    %v2277 = vunpack.c.h.s8.bf16 %v1621
    %v2278 = vunpack.c.l.s8.bf16 %v1622
    %v2279 = vunpack.c.l.s8.bf16 %v1623
    %v2280 = vunpack.c.l.s8.bf16 %v1624
    %v2281 = vunpack.c.l.s8.bf16 %v1625
    %v2282 = vunpack.c.l.s8.bf16 %v1626
    %v2283 = vunpack.c.l.s8.bf16 %v1627
    %v2284 = vunpack.c.l.s8.bf16 %v1628
    %v2285 = vunpack.c.l.s8.bf16 %v1629
    %v2286 = vunpack.c.l.s8.bf16 %v1630
    %v2287 = vunpack.c.l.s8.bf16 %v1631
    %v2288 = vunpack.c.l.s8.bf16 %v1632
    %v2289 = vunpack.c.l.s8.bf16 %v1633
    %v2290 = vunpack.c.l.s8.bf16 %v1634
    %v2291 = vunpack.c.l.s8.bf16 %v1635
    %v2292 = vunpack.c.l.s8.bf16 %v1636
    %v2293 = vunpack.c.l.s8.bf16 %v1637
    %v2294 = vunpack.c.h.s8.bf16 %v1622
    %v2295 = vunpack.c.h.s8.bf16 %v1623
    %v2296 = vunpack.c.h.s8.bf16 %v1624
    %v2297 = vunpack.c.h.s8.bf16 %v1625
    %v2298 = vunpack.c.h.s8.bf16 %v1626
    %v2299 = vunpack.c.h.s8.bf16 %v1627
    %v2300 = vunpack.c.h.s8.bf16 %v1628
    %v2301 = vunpack.c.h.s8.bf16 %v1629
    %v2302 = vunpack.c.h.s8.bf16 %v1630
    %v2303 = vunpack.c.h.s8.bf16 %v1631
    %v2304 = vunpack.c.h.s8.bf16 %v1632
    %v2305 = vunpack.c.h.s8.bf16 %v1633
    %v2306 = vunpack.c.h.s8.bf16 %v1634
    %v2307 = vunpack.c.h.s8.bf16 %v1635
    %v2308 = vunpack.c.h.s8.bf16 %v1636
    %v2309 = vunpack.c.h.s8.bf16 %v1637
    %v2310 = vunpack.c.l.s8.bf16 %v1638
    %v2311 = vunpack.c.l.s8.bf16 %v1639
    %v2312 = vunpack.c.l.s8.bf16 %v1640
    %v2313 = vunpack.c.l.s8.bf16 %v1641
    %v2314 = vunpack.c.l.s8.bf16 %v1642
    %v2315 = vunpack.c.l.s8.bf16 %v1643
    %v2316 = vunpack.c.l.s8.bf16 %v1644
    %v2317 = vunpack.c.l.s8.bf16 %v1645
    %v2318 = vunpack.c.l.s8.bf16 %v1646
    %v2319 = vunpack.c.l.s8.bf16 %v1647
    %v2320 = vunpack.c.l.s8.bf16 %v1648
    %v2321 = vunpack.c.l.s8.bf16 %v1649
    %v2322 = vunpack.c.l.s8.bf16 %v1650
    %v2323 = vunpack.c.l.s8.bf16 %v1651
    %v2324 = vunpack.c.l.s8.bf16 %v1652
    %v2325 = vunpack.c.l.s8.bf16 %v1653
    %v2326 = vunpack.c.h.s8.bf16 %v1638
    %v2327 = vunpack.c.h.s8.bf16 %v1639
    %v2328 = vunpack.c.h.s8.bf16 %v1640
    %v2329 = vunpack.c.h.s8.bf16 %v1641
    %v2330 = vunpack.c.h.s8.bf16 %v1642
    %v2331 = vunpack.c.h.s8.bf16 %v1643
    %v2332 = vunpack.c.h.s8.bf16 %v1644
    %v2333 = vunpack.c.h.s8.bf16 %v1645
    %v2334 = vunpack.c.h.s8.bf16 %v1646
    %v2335 = vunpack.c.h.s8.bf16 %v1647
    %v2336 = vunpack.c.h.s8.bf16 %v1648
    %v2337 = vunpack.c.h.s8.bf16 %v1649
    %v2338 = vunpack.c.h.s8.bf16 %v1650
    %v2339 = vunpack.c.h.s8.bf16 %v1651
    %v2340 = vunpack.c.h.s8.bf16 %v1652
    %v2341 = vunpack.c.h.s8.bf16 %v1653
    %v2342 = vunpack.c.l.s8.bf16 %v1654
    %v2343 = vunpack.c.l.s8.bf16 %v1655
    %v2344 = vunpack.c.l.s8.bf16 %v1656
    %v2345 = vunpack.c.l.s8.bf16 %v1657
    %v2346 = vunpack.c.l.s8.bf16 %v1658
    %v2347 = vunpack.c.l.s8.bf16 %v1659
    %v2348 = vunpack.c.l.s8.bf16 %v1660
    %v2349 = vunpack.c.l.s8.bf16 %v1661
    %v2350 = vunpack.c.l.s8.bf16 %v1662
    %v2351 = vunpack.c.l.s8.bf16 %v1663
    %v2352 = vunpack.c.l.s8.bf16 %v1664
    %v2353 = vunpack.c.l.s8.bf16 %v1665
    %v2354 = vunpack.c.l.s8.bf16 %v1666
    %v2355 = vunpack.c.l.s8.bf16 %v1667
    %v2356 = vunpack.c.l.s8.bf16 %v1668
    %v2357 = vunpack.c.l.s8.bf16 %v1669
    %v2358 = vunpack.c.h.s8.bf16 %v1654
    %v2359 = vunpack.c.h.s8.bf16 %v1655
    %v2360 = vunpack.c.h.s8.bf16 %v1656
    %v2361 = vunpack.c.h.s8.bf16 %v1657
    %v2362 = vunpack.c.h.s8.bf16 %v1658
    %v2363 = vunpack.c.h.s8.bf16 %v1659
    %v2364 = vunpack.c.h.s8.bf16 %v1660
    %v2365 = vunpack.c.h.s8.bf16 %v1661
    %v2366 = vunpack.c.h.s8.bf16 %v1662
    %v2367 = vunpack.c.h.s8.bf16 %v1663
    %v2368 = vunpack.c.h.s8.bf16 %v1664
    %v2369 = vunpack.c.h.s8.bf16 %v1665
    %v2370 = vunpack.c.h.s8.bf16 %v1666
    %v2371 = vunpack.c.h.s8.bf16 %v1667
    %v2372 = vunpack.c.h.s8.bf16 %v1668
    %v2373 = vunpack.c.h.s8.bf16 %v1669
    %v2374 = vunpack.c.l.s8.bf16 %v1670
    %v2375 = vunpack.c.l.s8.bf16 %v1671
    %v2376 = vunpack.c.l.s8.bf16 %v1672
    %v2377 = vunpack.c.l.s8.bf16 %v1673
    %v2378 = vunpack.c.l.s8.bf16 %v1674
    %v2379 = vunpack.c.l.s8.bf16 %v1675
    %v2380 = vunpack.c.l.s8.bf16 %v1676
    %v2381 = vunpack.c.l.s8.bf16 %v1677
    %v2382 = vunpack.c.l.s8.bf16 %v1678
    %v2383 = vunpack.c.l.s8.bf16 %v1679
    %v2384 = vunpack.c.l.s8.bf16 %v1680
    %v2385 = vunpack.c.l.s8.bf16 %v1681
    %v2386 = vunpack.c.l.s8.bf16 %v1682
    %v2387 = vunpack.c.l.s8.bf16 %v1683
    %v2388 = vunpack.c.l.s8.bf16 %v1684
    %v2389 = vunpack.c.l.s8.bf16 %v1685
    %v2390 = vunpack.c.h.s8.bf16 %v1670
    %v2391 = vunpack.c.h.s8.bf16 %v1671
    %v2392 = vunpack.c.h.s8.bf16 %v1672
    %v2393 = vunpack.c.h.s8.bf16 %v1673
    %v2394 = vunpack.c.h.s8.bf16 %v1674
    %v2395 = vunpack.c.h.s8.bf16 %v1675
    %v2396 = vunpack.c.h.s8.bf16 %v1676
    %v2397 = vunpack.c.h.s8.bf16 %v1677
    %v2398 = vunpack.c.h.s8.bf16 %v1678
    %v2399 = vunpack.c.h.s8.bf16 %v1679
    %v2400 = vunpack.c.h.s8.bf16 %v1680
    %v2401 = vunpack.c.h.s8.bf16 %v1681
    %v2402 = vunpack.c.h.s8.bf16 %v1682
    %v2403 = vunpack.c.h.s8.bf16 %v1683
    %v2404 = vunpack.c.h.s8.bf16 %v1684
    %v2405 = vunpack.c.h.s8.bf16 %v1685
    %v2406 = vunpack.c.l.s8.bf16 %v1686
    %v2407 = vunpack.c.l.s8.bf16 %v1687
    %v2408 = vunpack.c.l.s8.bf16 %v1688
    %v2409 = vunpack.c.l.s8.bf16 %v1689
    %v2410 = vunpack.c.l.s8.bf16 %v1690
    %v2411 = vunpack.c.l.s8.bf16 %v1691
    %v2412 = vunpack.c.l.s8.bf16 %v1692
    %v2413 = vunpack.c.l.s8.bf16 %v1693
    %v2414 = vunpack.c.l.s8.bf16 %v1694
    %v2415 = vunpack.c.l.s8.bf16 %v1695
    %v2416 = vunpack.c.l.s8.bf16 %v1696
    %v2417 = vunpack.c.l.s8.bf16 %v1697
    %v2418 = vunpack.c.l.s8.bf16 %v1698
    %v2419 = vunpack.c.l.s8.bf16 %v1699
    %v2420 = vunpack.c.l.s8.bf16 %v1700
    %v2421 = vunpack.c.l.s8.bf16 %v1701
    %v2422 = vunpack.c.h.s8.bf16 %v1686
    %v2423 = vunpack.c.h.s8.bf16 %v1687
    %v2424 = vunpack.c.h.s8.bf16 %v1688
    %v2425 = vunpack.c.h.s8.bf16 %v1689
    %v2426 = vunpack.c.h.s8.bf16 %v1690
    %v2427 = vunpack.c.h.s8.bf16 %v1691
    %v2428 = vunpack.c.h.s8.bf16 %v1692
    %v2429 = vunpack.c.h.s8.bf16 %v1693
    %v2430 = vunpack.c.h.s8.bf16 %v1694
    %v2431 = vunpack.c.h.s8.bf16 %v1695
    %v2432 = vunpack.c.h.s8.bf16 %v1696
    %v2433 = vunpack.c.h.s8.bf16 %v1697
    %v2434 = vunpack.c.h.s8.bf16 %v1698
    %v2435 = vunpack.c.h.s8.bf16 %v1699
    %v2436 = vunpack.c.h.s8.bf16 %v1700
    %v2437 = vunpack.c.h.s8.bf16 %v1701
    %v2438 = vunpack.c.l.s8.bf16 %v1702
    %v2439 = vunpack.c.l.s8.bf16 %v1703
    %v2440 = vunpack.c.l.s8.bf16 %v1704
    %v2441 = vunpack.c.l.s8.bf16 %v1705
    %v2442 = vunpack.c.l.s8.bf16 %v1706
    %v2443 = vunpack.c.l.s8.bf16 %v1707
    %v2444 = vunpack.c.l.s8.bf16 %v1708
    %v2445 = vunpack.c.l.s8.bf16 %v1709
    %v2446 = vunpack.c.l.s8.bf16 %v1710
    %v2447 = vunpack.c.l.s8.bf16 %v1711
    %v2448 = vunpack.c.l.s8.bf16 %v1712
    %v2449 = vunpack.c.l.s8.bf16 %v1713
    %v2450 = vunpack.c.l.s8.bf16 %v1714
    %v2451 = vunpack.c.l.s8.bf16 %v1715
    %v2452 = vunpack.c.l.s8.bf16 %v1716
    %v2453 = vunpack.c.l.s8.bf16 %v1717
    %v2454 = vunpack.c.h.s8.bf16 %v1702
    %v2455 = vunpack.c.h.s8.bf16 %v1703
    %v2456 = vunpack.c.h.s8.bf16 %v1704
    %v2457 = vunpack.c.h.s8.bf16 %v1705
    %v2458 = vunpack.c.h.s8.bf16 %v1706
    %v2459 = vunpack.c.h.s8.bf16 %v1707
    %v2460 = vunpack.c.h.s8.bf16 %v1708
    %v2461 = vunpack.c.h.s8.bf16 %v1709
    %v2462 = vunpack.c.h.s8.bf16 %v1710
    %v2463 = vunpack.c.h.s8.bf16 %v1711
    %v2464 = vunpack.c.h.s8.bf16 %v1712
    %v2465 = vunpack.c.h.s8.bf16 %v1713
    %v2466 = vunpack.c.h.s8.bf16 %v1714
    %v2467 = vunpack.c.h.s8.bf16 %v1715
    %v2468 = vunpack.c.h.s8.bf16 %v1716
    %v2469 = vunpack.c.h.s8.bf16 %v1717
    %v2470 = vunpack.c.l.s8.bf16 %v1718
    %v2471 = vunpack.c.l.s8.bf16 %v1719
    %v2472 = vunpack.c.l.s8.bf16 %v1720
    %v2473 = vunpack.c.l.s8.bf16 %v1721
    %v2474 = vunpack.c.l.s8.bf16 %v1722
    %v2475 = vunpack.c.l.s8.bf16 %v1723
    %v2476 = vunpack.c.l.s8.bf16 %v1724
    %v2477 = vunpack.c.l.s8.bf16 %v1725
    %v2478 = vunpack.c.l.s8.bf16 %v1726
    %v2479 = vunpack.c.l.s8.bf16 %v1727
    %v2480 = vunpack.c.l.s8.bf16 %v1728
    %v2481 = vunpack.c.l.s8.bf16 %v1729
    %v2482 = vunpack.c.l.s8.bf16 %v1730
    %v2483 = vunpack.c.l.s8.bf16 %v1731
    %v2484 = vunpack.c.l.s8.bf16 %v1732
    %v2485 = vunpack.c.l.s8.bf16 %v1733
    %v2486 = vunpack.c.h.s8.bf16 %v1718
    %v2487 = vunpack.c.h.s8.bf16 %v1719
    %v2488 = vunpack.c.h.s8.bf16 %v1720
    %v2489 = vunpack.c.h.s8.bf16 %v1721
    %v2490 = vunpack.c.h.s8.bf16 %v1722
    %v2491 = vunpack.c.h.s8.bf16 %v1723
    %v2492 = vunpack.c.h.s8.bf16 %v1724
    %v2493 = vunpack.c.h.s8.bf16 %v1725
    %v2494 = vunpack.c.h.s8.bf16 %v1726
    %v2495 = vunpack.c.h.s8.bf16 %v1727
    %v2496 = vunpack.c.h.s8.bf16 %v1728
    %v2497 = vunpack.c.h.s8.bf16 %v1729
    %v2498 = vunpack.c.h.s8.bf16 %v1730
    %v2499 = vunpack.c.h.s8.bf16 %v1731
    %v2500 = vunpack.c.h.s8.bf16 %v1732
    %v2501 = vunpack.c.h.s8.bf16 %v1733
    %v2502 = vunpack.c.l.s8.bf16 %v1734
    %v2503 = vunpack.c.l.s8.bf16 %v1735
    %v2504 = vunpack.c.l.s8.bf16 %v1736
    %v2505 = vunpack.c.l.s8.bf16 %v1737
    %v2506 = vunpack.c.l.s8.bf16 %v1738
    %v2507 = vunpack.c.l.s8.bf16 %v1739
    %v2508 = vunpack.c.l.s8.bf16 %v1740
    %v2509 = vunpack.c.l.s8.bf16 %v1741
    %v2510 = vunpack.c.l.s8.bf16 %v1742
    %v2511 = vunpack.c.l.s8.bf16 %v1743
    %v2512 = vunpack.c.l.s8.bf16 %v1744
    %v2513 = vunpack.c.l.s8.bf16 %v1745
    %v2514 = vunpack.c.l.s8.bf16 %v1746
    %v2515 = vunpack.c.l.s8.bf16 %v1747
    %v2516 = vunpack.c.l.s8.bf16 %v1748
    %v2517 = vunpack.c.l.s8.bf16 %v1749
    %v2518 = vunpack.c.h.s8.bf16 %v1734
    %v2519 = vunpack.c.h.s8.bf16 %v1735
    %v2520 = vunpack.c.h.s8.bf16 %v1736
    %v2521 = vunpack.c.h.s8.bf16 %v1737
    %v2522 = vunpack.c.h.s8.bf16 %v1738
    %v2523 = vunpack.c.h.s8.bf16 %v1739
    %v2524 = vunpack.c.h.s8.bf16 %v1740
    %v2525 = vunpack.c.h.s8.bf16 %v1741
    %v2526 = vunpack.c.h.s8.bf16 %v1742
    %v2527 = vunpack.c.h.s8.bf16 %v1743
    %v2528 = vunpack.c.h.s8.bf16 %v1744
    %v2529 = vunpack.c.h.s8.bf16 %v1745
    %v2530 = vunpack.c.h.s8.bf16 %v1746
    %v2531 = vunpack.c.h.s8.bf16 %v1747
    %v2532 = vunpack.c.h.s8.bf16 %v1748
    %v2533 = vunpack.c.h.s8.bf16 %v1749
    %v2534 = vunpack.c.l.s8.bf16 %v1750
    %v2535 = vunpack.c.l.s8.bf16 %v1751
    %v2536 = vunpack.c.l.s8.bf16 %v1752
    %v2537 = vunpack.c.l.s8.bf16 %v1753
    %v2538 = vunpack.c.l.s8.bf16 %v1754
    %v2539 = vunpack.c.l.s8.bf16 %v1755
    %v2540 = vunpack.c.l.s8.bf16 %v1756
    %v2541 = vunpack.c.l.s8.bf16 %v1757
    %v2542 = vunpack.c.l.s8.bf16 %v1758
    %v2543 = vunpack.c.l.s8.bf16 %v1759
    %v2544 = vunpack.c.l.s8.bf16 %v1760
    %v2545 = vunpack.c.l.s8.bf16 %v1761
    %v2546 = vunpack.c.l.s8.bf16 %v1762
    %v2547 = vunpack.c.l.s8.bf16 %v1763
    %v2548 = vunpack.c.l.s8.bf16 %v1764
    %v2549 = vunpack.c.l.s8.bf16 %v1765
    %v2550 = vunpack.c.h.s8.bf16 %v1750
    %v2551 = vunpack.c.h.s8.bf16 %v1751
    %v2552 = vunpack.c.h.s8.bf16 %v1752
    %v2553 = vunpack.c.h.s8.bf16 %v1753
    %v2554 = vunpack.c.h.s8.bf16 %v1754
    %v2555 = vunpack.c.h.s8.bf16 %v1755
    %v2556 = vunpack.c.h.s8.bf16 %v1756
    %v2557 = vunpack.c.h.s8.bf16 %v1757
    %v2558 = vunpack.c.h.s8.bf16 %v1758
    %v2559 = vunpack.c.h.s8.bf16 %v1759
    %v2560 = vunpack.c.h.s8.bf16 %v1760
    %v2561 = vunpack.c.h.s8.bf16 %v1761
    %v2562 = vunpack.c.h.s8.bf16 %v1762
    %v2563 = vunpack.c.h.s8.bf16 %v1763
    %v2564 = vunpack.c.h.s8.bf16 %v1764
    %v2565 = vunpack.c.h.s8.bf16 %v1765
    %v2566 = vunpack.c.l.s8.bf16 %v1766
    %v2567 = vunpack.c.l.s8.bf16 %v1767
    %v2568 = vunpack.c.l.s8.bf16 %v1768
    %v2569 = vunpack.c.l.s8.bf16 %v1769
    %v2570 = vunpack.c.l.s8.bf16 %v1770
    %v2571 = vunpack.c.l.s8.bf16 %v1771
    %v2572 = vunpack.c.l.s8.bf16 %v1772
    %v2573 = vunpack.c.l.s8.bf16 %v1773
    %v2574 = vunpack.c.l.s8.bf16 %v1774
    %v2575 = vunpack.c.l.s8.bf16 %v1775
    %v2576 = vunpack.c.l.s8.bf16 %v1776
    %v2577 = vunpack.c.l.s8.bf16 %v1777
    %v2578 = vunpack.c.l.s8.bf16 %v1778
    %v2579 = vunpack.c.l.s8.bf16 %v1779
    %v2580 = vunpack.c.l.s8.bf16 %v1780
    %v2581 = vunpack.c.l.s8.bf16 %v1781
    %v2582 = vunpack.c.h.s8.bf16 %v1766
    %v2583 = vunpack.c.h.s8.bf16 %v1767
    %v2584 = vunpack.c.h.s8.bf16 %v1768
    %v2585 = vunpack.c.h.s8.bf16 %v1769
    %v2586 = vunpack.c.h.s8.bf16 %v1770
    %v2587 = vunpack.c.h.s8.bf16 %v1771
    %v2588 = vunpack.c.h.s8.bf16 %v1772
    %v2589 = vunpack.c.h.s8.bf16 %v1773
    %v2590 = vunpack.c.h.s8.bf16 %v1774
    %v2591 = vunpack.c.h.s8.bf16 %v1775
    %v2592 = vunpack.c.h.s8.bf16 %v1776
    %v2593 = vunpack.c.h.s8.bf16 %v1777
    %v2594 = vunpack.c.h.s8.bf16 %v1778
    %v2595 = vunpack.c.h.s8.bf16 %v1779
    %v2596 = vunpack.c.h.s8.bf16 %v1780
    %v2597 = vunpack.c.h.s8.bf16 %v1781
    %v2598 = vunpack.c.l.s8.bf16 %v1782
    %v2599 = vunpack.c.l.s8.bf16 %v1783
    %v2600 = vunpack.c.l.s8.bf16 %v1784
    %v2601 = vunpack.c.l.s8.bf16 %v1785
    %v2602 = vunpack.c.l.s8.bf16 %v1786
    %v2603 = vunpack.c.l.s8.bf16 %v1787
    %v2604 = vunpack.c.l.s8.bf16 %v1788
    %v2605 = vunpack.c.l.s8.bf16 %v1789
    %v2606 = vunpack.c.l.s8.bf16 %v1790
    %v2607 = vunpack.c.l.s8.bf16 %v1791
    %v2608 = vunpack.c.l.s8.bf16 %v1792
    %v2609 = vunpack.c.l.s8.bf16 %v1793
    %v2610 = vunpack.c.l.s8.bf16 %v1794
    %v2611 = vunpack.c.l.s8.bf16 %v1795
    %v2612 = vunpack.c.l.s8.bf16 %v1796
    %v2613 = vunpack.c.l.s8.bf16 %v1797
    %v2614 = vunpack.c.h.s8.bf16 %v1782
    %v2615 = vunpack.c.h.s8.bf16 %v1783
    %v2616 = vunpack.c.h.s8.bf16 %v1784
    %v2617 = vunpack.c.h.s8.bf16 %v1785
    %v2618 = vunpack.c.h.s8.bf16 %v1786
    %v2619 = vunpack.c.h.s8.bf16 %v1787
    %v2620 = vunpack.c.h.s8.bf16 %v1788
    %v2621 = vunpack.c.h.s8.bf16 %v1789
    %v2622 = vunpack.c.h.s8.bf16 %v1790
    %v2623 = vunpack.c.h.s8.bf16 %v1791
    %v2624 = vunpack.c.h.s8.bf16 %v1792
    %v2625 = vunpack.c.h.s8.bf16 %v1793
    %v2626 = vunpack.c.h.s8.bf16 %v1794
    %v2627 = vunpack.c.h.s8.bf16 %v1795
    %v2628 = vunpack.c.h.s8.bf16 %v1796
    %v2629 = vunpack.c.h.s8.bf16 %v1797
    %v2630 = vunpack.c.l.s8.bf16 %v1798
    %v2631 = vunpack.c.l.s8.bf16 %v1799
    %v2632 = vunpack.c.l.s8.bf16 %v1800
    %v2633 = vunpack.c.l.s8.bf16 %v1801
    %v2634 = vunpack.c.l.s8.bf16 %v1802
    %v2635 = vunpack.c.l.s8.bf16 %v1803
    %v2636 = vunpack.c.l.s8.bf16 %v1804
    %v2637 = vunpack.c.l.s8.bf16 %v1805
    %v2638 = vunpack.c.l.s8.bf16 %v1806
    %v2639 = vunpack.c.l.s8.bf16 %v1807
    %v2640 = vunpack.c.l.s8.bf16 %v1808
    %v2641 = vunpack.c.l.s8.bf16 %v1809
    %v2642 = vunpack.c.l.s8.bf16 %v1810
    %v2643 = vunpack.c.l.s8.bf16 %v1811
    %v2644 = vunpack.c.l.s8.bf16 %v1812
    %v2645 = vunpack.c.l.s8.bf16 %v1813
    %v2646 = vunpack.c.h.s8.bf16 %v1798
    %v2647 = vunpack.c.h.s8.bf16 %v1799
    %v2648 = vunpack.c.h.s8.bf16 %v1800
    %v2649 = vunpack.c.h.s8.bf16 %v1801
    %v2650 = vunpack.c.h.s8.bf16 %v1802
    %v2651 = vunpack.c.h.s8.bf16 %v1803
    %v2652 = vunpack.c.h.s8.bf16 %v1804
    %v2653 = vunpack.c.h.s8.bf16 %v1805
    %v2654 = vunpack.c.h.s8.bf16 %v1806
    %v2655 = vunpack.c.h.s8.bf16 %v1807
    %v2656 = vunpack.c.h.s8.bf16 %v1808
    %v2657 = vunpack.c.h.s8.bf16 %v1809
    %v2658 = vunpack.c.h.s8.bf16 %v1810
    %v2659 = vunpack.c.h.s8.bf16 %v1811
    %v2660 = vunpack.c.h.s8.bf16 %v1812
    %v2661 = vunpack.c.h.s8.bf16 %v1813
    %v2662 = vunpack.c.l.s8.bf16 %v1814
    %v2663 = vunpack.c.l.s8.bf16 %v1815
    %v2664 = vunpack.c.l.s8.bf16 %v1816
    %v2665 = vunpack.c.l.s8.bf16 %v1817
    %v2666 = vunpack.c.l.s8.bf16 %v1818
    %v2667 = vunpack.c.l.s8.bf16 %v1819
    %v2668 = vunpack.c.l.s8.bf16 %v1820
    %v2669 = vunpack.c.l.s8.bf16 %v1821
    %v2670 = vunpack.c.l.s8.bf16 %v1822
    %v2671 = vunpack.c.l.s8.bf16 %v1823
    %v2672 = vunpack.c.l.s8.bf16 %v1824
    %v2673 = vunpack.c.l.s8.bf16 %v1825
    %v2674 = vunpack.c.l.s8.bf16 %v1826
    %v2675 = vunpack.c.l.s8.bf16 %v1827
    %v2676 = vunpack.c.l.s8.bf16 %v1828
    %v2677 = vunpack.c.l.s8.bf16 %v1829
    %v2678 = vunpack.c.h.s8.bf16 %v1814
    %v2679 = vunpack.c.h.s8.bf16 %v1815
    %v2680 = vunpack.c.h.s8.bf16 %v1816
    %v2681 = vunpack.c.h.s8.bf16 %v1817
    %v2682 = vunpack.c.h.s8.bf16 %v1818
    %v2683 = vunpack.c.h.s8.bf16 %v1819
    %v2684 = vunpack.c.h.s8.bf16 %v1820
    %v2685 = vunpack.c.h.s8.bf16 %v1821
    %v2686 = vunpack.c.h.s8.bf16 %v1822
    %v2687 = vunpack.c.h.s8.bf16 %v1823
    %v2688 = vunpack.c.h.s8.bf16 %v1824
    %v2689 = vunpack.c.h.s8.bf16 %v1825
    %v2690 = vunpack.c.h.s8.bf16 %v1826
    %v2691 = vunpack.c.h.s8.bf16 %v1827
    %v2692 = vunpack.c.h.s8.bf16 %v1828
    %v2693 = vunpack.c.h.s8.bf16 %v1829
    %v2694 = vunpack.c.l.s8.bf16 %v1830
    %v2695 = vunpack.c.l.s8.bf16 %v1831
    %v2696 = vunpack.c.l.s8.bf16 %v1832
    %v2697 = vunpack.c.l.s8.bf16 %v1833
    %v2698 = vunpack.c.l.s8.bf16 %v1834
    %v2699 = vunpack.c.l.s8.bf16 %v1835
    %v2700 = vunpack.c.l.s8.bf16 %v1836
    %v2701 = vunpack.c.l.s8.bf16 %v1837
    %v2702 = vunpack.c.l.s8.bf16 %v1838
    %v2703 = vunpack.c.l.s8.bf16 %v1839
    %v2704 = vunpack.c.l.s8.bf16 %v1840
    %v2705 = vunpack.c.l.s8.bf16 %v1841
    %v2706 = vunpack.c.l.s8.bf16 %v1842
    %v2707 = vunpack.c.l.s8.bf16 %v1843
    %v2708 = vunpack.c.l.s8.bf16 %v1844
    %v2709 = vunpack.c.l.s8.bf16 %v1845
    %v2710 = vunpack.c.h.s8.bf16 %v1830
    %v2711 = vunpack.c.h.s8.bf16 %v1831
    %v2712 = vunpack.c.h.s8.bf16 %v1832
    %v2713 = vunpack.c.h.s8.bf16 %v1833
    %v2714 = vunpack.c.h.s8.bf16 %v1834
    %v2715 = vunpack.c.h.s8.bf16 %v1835
    %v2716 = vunpack.c.h.s8.bf16 %v1836
    %v2717 = vunpack.c.h.s8.bf16 %v1837
    %v2718 = vunpack.c.h.s8.bf16 %v1838
    %v2719 = vunpack.c.h.s8.bf16 %v1839
    %v2720 = vunpack.c.h.s8.bf16 %v1840
    %v2721 = vunpack.c.h.s8.bf16 %v1841
    %v2722 = vunpack.c.h.s8.bf16 %v1842
    %v2723 = vunpack.c.h.s8.bf16 %v1843
    %v2724 = vunpack.c.h.s8.bf16 %v1844
    %v2725 = vunpack.c.h.s8.bf16 %v1845
    %v2726 = vunpack.c.l.s8.bf16 %v1846
    %v2727 = vunpack.c.l.s8.bf16 %v1847
    %v2728 = vunpack.c.l.s8.bf16 %v1848
    %v2729 = vunpack.c.l.s8.bf16 %v1849
    %v2730 = vunpack.c.l.s8.bf16 %v1850
    %v2731 = vunpack.c.l.s8.bf16 %v1851
    %v2732 = vunpack.c.l.s8.bf16 %v1852
    %v2733 = vunpack.c.l.s8.bf16 %v1853
    %v2734 = vunpack.c.l.s8.bf16 %v1854
    %v2735 = vunpack.c.l.s8.bf16 %v1855
    %v2736 = vunpack.c.l.s8.bf16 %v1856
    %v2737 = vunpack.c.l.s8.bf16 %v1857
    %v2738 = vunpack.c.l.s8.bf16 %v1858
    %v2739 = vunpack.c.l.s8.bf16 %v1859
    %v2740 = vunpack.c.l.s8.bf16 %v1860
    %v2741 = vunpack.c.l.s8.bf16 %v1861
    %v2742 = vunpack.c.h.s8.bf16 %v1846
    %v2743 = vunpack.c.h.s8.bf16 %v1847
    %v2744 = vunpack.c.h.s8.bf16 %v1848
    %v2745 = vunpack.c.h.s8.bf16 %v1849
    %v2746 = vunpack.c.h.s8.bf16 %v1850
    %v2747 = vunpack.c.h.s8.bf16 %v1851
    %v2748 = vunpack.c.h.s8.bf16 %v1852
    %v2749 = vunpack.c.h.s8.bf16 %v1853
    %v2750 = vunpack.c.h.s8.bf16 %v1854
    %v2751 = vunpack.c.h.s8.bf16 %v1855
    %v2752 = vunpack.c.h.s8.bf16 %v1856
    %v2753 = vunpack.c.h.s8.bf16 %v1857
    %v2754 = vunpack.c.h.s8.bf16 %v1858
    %v2755 = vunpack.c.h.s8.bf16 %v1859
    %v2756 = vunpack.c.h.s8.bf16 %v1860
    %v2757 = vunpack.c.h.s8.bf16 %v1861
    %v2758 = vunpack.c.l.s8.bf16 %v1862
    %v2759 = vunpack.c.l.s8.bf16 %v1863
    %v2760 = vunpack.c.l.s8.bf16 %v1864
    %v2761 = vunpack.c.l.s8.bf16 %v1865
    %v2762 = vunpack.c.l.s8.bf16 %v1866
    %v2763 = vunpack.c.l.s8.bf16 %v1867
    %v2764 = vunpack.c.l.s8.bf16 %v1868
    %v2765 = vunpack.c.l.s8.bf16 %v1869
    %v2766 = vunpack.c.l.s8.bf16 %v1870
    %v2767 = vunpack.c.l.s8.bf16 %v1871
    %v2768 = vunpack.c.l.s8.bf16 %v1872
    %v2769 = vunpack.c.l.s8.bf16 %v1873
    %v2770 = vunpack.c.l.s8.bf16 %v1874
    %v2771 = vunpack.c.l.s8.bf16 %v1875
    %v2772 = vunpack.c.l.s8.bf16 %v1876
    %v2773 = vunpack.c.l.s8.bf16 %v1877
    %v2774 = vunpack.c.h.s8.bf16 %v1862
    %v2775 = vunpack.c.h.s8.bf16 %v1863
    %v2776 = vunpack.c.h.s8.bf16 %v1864
    %v2777 = vunpack.c.h.s8.bf16 %v1865
    %v2778 = vunpack.c.h.s8.bf16 %v1866
    %v2779 = vunpack.c.h.s8.bf16 %v1867
    %v2780 = vunpack.c.h.s8.bf16 %v1868
    %v2781 = vunpack.c.h.s8.bf16 %v1869
    %v2782 = vunpack.c.h.s8.bf16 %v1870
    %v2783 = vunpack.c.h.s8.bf16 %v1871
    %v2784 = vunpack.c.h.s8.bf16 %v1872
    %v2785 = vunpack.c.h.s8.bf16 %v1873
    %v2786 = vunpack.c.h.s8.bf16 %v1874
    %v2787 = vunpack.c.h.s8.bf16 %v1875
    %v2788 = vunpack.c.h.s8.bf16 %v1876
    %v2789 = vunpack.c.h.s8.bf16 %v1877
    %v2790 = vunpack.c.l.s8.bf16 %v1878
    %v2791 = vunpack.c.l.s8.bf16 %v1879
    %v2792 = vunpack.c.l.s8.bf16 %v1880
    %v2793 = vunpack.c.l.s8.bf16 %v1881
    %v2794 = vunpack.c.l.s8.bf16 %v1882
    %v2795 = vunpack.c.l.s8.bf16 %v1883
    %v2796 = vunpack.c.l.s8.bf16 %v1884
    %v2797 = vunpack.c.l.s8.bf16 %v1885
    %v2798 = vunpack.c.l.s8.bf16 %v1886
    %v2799 = vunpack.c.l.s8.bf16 %v1887
    %v2800 = vunpack.c.l.s8.bf16 %v1888
    %v2801 = vunpack.c.l.s8.bf16 %v1889
    %v2802 = vunpack.c.l.s8.bf16 %v1890
    %v2803 = vunpack.c.l.s8.bf16 %v1891
    %v2804 = vunpack.c.l.s8.bf16 %v1892
    %v2805 = vunpack.c.l.s8.bf16 %v1893
    %v2806 = vunpack.c.h.s8.bf16 %v1878
    %v2807 = vunpack.c.h.s8.bf16 %v1879
    %v2808 = vunpack.c.h.s8.bf16 %v1880
    %v2809 = vunpack.c.h.s8.bf16 %v1881
    %v2810 = vunpack.c.h.s8.bf16 %v1882
    %v2811 = vunpack.c.h.s8.bf16 %v1883
    %v2812 = vunpack.c.h.s8.bf16 %v1884
    %v2813 = vunpack.c.h.s8.bf16 %v1885
    %v2814 = vunpack.c.h.s8.bf16 %v1886
    %v2815 = vunpack.c.h.s8.bf16 %v1887
    %v2816 = vunpack.c.h.s8.bf16 %v1888
    %v2817 = vunpack.c.h.s8.bf16 %v1889
    %v2818 = vunpack.c.h.s8.bf16 %v1890
    %v2819 = vunpack.c.h.s8.bf16 %v1891
    %v2820 = vunpack.c.h.s8.bf16 %v1892
    %v2821 = vunpack.c.h.s8.bf16 %v1893
    %v2822 = vunpack.c.l.s8.bf16 %v1894
    %v2823 = vunpack.c.l.s8.bf16 %v1895
    %v2824 = vunpack.c.l.s8.bf16 %v1896
    %v2825 = vunpack.c.l.s8.bf16 %v1897
    %v2826 = vunpack.c.l.s8.bf16 %v1898
    %v2827 = vunpack.c.l.s8.bf16 %v1899
    %v2828 = vunpack.c.l.s8.bf16 %v1900
    %v2829 = vunpack.c.l.s8.bf16 %v1901
    %v2830 = vunpack.c.l.s8.bf16 %v1902
    %v2831 = vunpack.c.l.s8.bf16 %v1903
    %v2832 = vunpack.c.l.s8.bf16 %v1904
    %v2833 = vunpack.c.l.s8.bf16 %v1905
    %v2834 = vunpack.c.l.s8.bf16 %v1906
    %v2835 = vunpack.c.l.s8.bf16 %v1907
    %v2836 = vunpack.c.l.s8.bf16 %v1908
    %v2837 = vunpack.c.l.s8.bf16 %v1909
    %v2838 = vunpack.c.h.s8.bf16 %v1894
    %v2839 = vunpack.c.h.s8.bf16 %v1895
    %v2840 = vunpack.c.h.s8.bf16 %v1896
    %v2841 = vunpack.c.h.s8.bf16 %v1897
    %v2842 = vunpack.c.h.s8.bf16 %v1898
    %v2843 = vunpack.c.h.s8.bf16 %v1899
    %v2844 = vunpack.c.h.s8.bf16 %v1900
    %v2845 = vunpack.c.h.s8.bf16 %v1901
    %v2846 = vunpack.c.h.s8.bf16 %v1902
    %v2847 = vunpack.c.h.s8.bf16 %v1903
    %v2848 = vunpack.c.h.s8.bf16 %v1904
    %v2849 = vunpack.c.h.s8.bf16 %v1905
    %v2850 = vunpack.c.h.s8.bf16 %v1906
    %v2851 = vunpack.c.h.s8.bf16 %v1907
    %v2852 = vunpack.c.h.s8.bf16 %v1908
    %v2853 = vunpack.c.h.s8.bf16 %v1909
    %v2854 = vunpack.c.l.s8.bf16 %v1910
    %v2855 = vunpack.c.l.s8.bf16 %v1911
    %v2856 = vunpack.c.l.s8.bf16 %v1912
    %v2857 = vunpack.c.l.s8.bf16 %v1913
    %v2858 = vunpack.c.l.s8.bf16 %v1914
    %v2859 = vunpack.c.l.s8.bf16 %v1915
    %v2860 = vunpack.c.l.s8.bf16 %v1916
    %v2861 = vunpack.c.l.s8.bf16 %v1917
    %v2862 = vunpack.c.l.s8.bf16 %v1918
    %v2863 = vunpack.c.l.s8.bf16 %v1919
    %v2864 = vunpack.c.l.s8.bf16 %v1920
    %v2865 = vunpack.c.l.s8.bf16 %v1921
    %v2866 = vunpack.c.l.s8.bf16 %v1922
    %v2867 = vunpack.c.l.s8.bf16 %v1923
    %v2868 = vunpack.c.l.s8.bf16 %v1924
    %v2869 = vunpack.c.l.s8.bf16 %v1925
    %v2870 = vunpack.c.h.s8.bf16 %v1910
    %v2871 = vunpack.c.h.s8.bf16 %v1911
    %v2872 = vunpack.c.h.s8.bf16 %v1912
    %v2873 = vunpack.c.h.s8.bf16 %v1913
    %v2874 = vunpack.c.h.s8.bf16 %v1914
    %v2875 = vunpack.c.h.s8.bf16 %v1915
    %v2876 = vunpack.c.h.s8.bf16 %v1916
    %v2877 = vunpack.c.h.s8.bf16 %v1917
    %v2878 = vunpack.c.h.s8.bf16 %v1918
    %v2879 = vunpack.c.h.s8.bf16 %v1919
    %v2880 = vunpack.c.h.s8.bf16 %v1920
    %v2881 = vunpack.c.h.s8.bf16 %v1921
    %v2882 = vunpack.c.h.s8.bf16 %v1922
    %v2883 = vunpack.c.h.s8.bf16 %v1923
    %v2884 = vunpack.c.h.s8.bf16 %v1924
    %v2885 = vunpack.c.h.s8.bf16 %v1925
    %v2886 = vunpack.c.l.s8.bf16 %v1926
    %v2887 = vunpack.c.l.s8.bf16 %v1927
    %v2888 = vunpack.c.l.s8.bf16 %v1928
    %v2889 = vunpack.c.l.s8.bf16 %v1929
    %v2890 = vunpack.c.l.s8.bf16 %v1930
    %v2891 = vunpack.c.l.s8.bf16 %v1931
    %v2892 = vunpack.c.l.s8.bf16 %v1932
    %v2893 = vunpack.c.l.s8.bf16 %v1933
    %v2894 = vunpack.c.l.s8.bf16 %v1934
    %v2895 = vunpack.c.l.s8.bf16 %v1935
    %v2896 = vunpack.c.l.s8.bf16 %v1936
    %v2897 = vunpack.c.l.s8.bf16 %v1937
    %v2898 = vunpack.c.l.s8.bf16 %v1938
    %v2899 = vunpack.c.l.s8.bf16 %v1939
    %v2900 = vunpack.c.l.s8.bf16 %v1940
    %v2901 = vunpack.c.l.s8.bf16 %v1941
    %v2902 = vunpack.c.h.s8.bf16 %v1926
    %v2903 = vunpack.c.h.s8.bf16 %v1927
    %v2904 = vunpack.c.h.s8.bf16 %v1928
    %v2905 = vunpack.c.h.s8.bf16 %v1929
    %v2906 = vunpack.c.h.s8.bf16 %v1930
    %v2907 = vunpack.c.h.s8.bf16 %v1931
    %v2908 = vunpack.c.h.s8.bf16 %v1932
    %v2909 = vunpack.c.h.s8.bf16 %v1933
    %v2910 = vunpack.c.h.s8.bf16 %v1934
    %v2911 = vunpack.c.h.s8.bf16 %v1935
    %v2912 = vunpack.c.h.s8.bf16 %v1936
    %v2913 = vunpack.c.h.s8.bf16 %v1937
    %v2914 = vunpack.c.h.s8.bf16 %v1938
    %v2915 = vunpack.c.h.s8.bf16 %v1939
    %v2916 = vunpack.c.h.s8.bf16 %v1940
    %v2917 = vunpack.c.h.s8.bf16 %v1941
    %v2918 = vunpack.c.l.s8.bf16 %v1942
    %v2919 = vunpack.c.l.s8.bf16 %v1943
    %v2920 = vunpack.c.l.s8.bf16 %v1944
    %v2921 = vunpack.c.l.s8.bf16 %v1945
    %v2922 = vunpack.c.l.s8.bf16 %v1946
    %v2923 = vunpack.c.l.s8.bf16 %v1947
    %v2924 = vunpack.c.l.s8.bf16 %v1948
    %v2925 = vunpack.c.l.s8.bf16 %v1949
    %v2926 = vunpack.c.l.s8.bf16 %v1950
    %v2927 = vunpack.c.l.s8.bf16 %v1951
    %v2928 = vunpack.c.l.s8.bf16 %v1952
    %v2929 = vunpack.c.l.s8.bf16 %v1953
    %v2930 = vunpack.c.l.s8.bf16 %v1954
    %v2931 = vunpack.c.l.s8.bf16 %v1955
    %v2932 = vunpack.c.l.s8.bf16 %v1956
    %v2933 = vunpack.c.l.s8.bf16 %v1957
    %v2934 = vunpack.c.h.s8.bf16 %v1942
    %v2935 = vunpack.c.h.s8.bf16 %v1943
    %v2936 = vunpack.c.h.s8.bf16 %v1944
    %v2937 = vunpack.c.h.s8.bf16 %v1945
    %v2938 = vunpack.c.h.s8.bf16 %v1946
    %v2939 = vunpack.c.h.s8.bf16 %v1947
    %v2940 = vunpack.c.h.s8.bf16 %v1948
    %v2941 = vunpack.c.h.s8.bf16 %v1949
    %v2942 = vunpack.c.h.s8.bf16 %v1950
    %v2943 = vunpack.c.h.s8.bf16 %v1951
    %v2944 = vunpack.c.h.s8.bf16 %v1952
    %v2945 = vunpack.c.h.s8.bf16 %v1953
    %v2946 = vunpack.c.h.s8.bf16 %v1954
    %v2947 = vunpack.c.h.s8.bf16 %v1955
    %v2948 = vunpack.c.h.s8.bf16 %v1956
    %v2949 = vunpack.c.h.s8.bf16 %v1957
    %v2950 = vunpack.c.l.s8.bf16 %v1958
    %v2951 = vunpack.c.l.s8.bf16 %v1959
    %v2952 = vunpack.c.l.s8.bf16 %v1960
    %v2953 = vunpack.c.l.s8.bf16 %v1961
    %v2954 = vunpack.c.l.s8.bf16 %v1962
    %v2955 = vunpack.c.l.s8.bf16 %v1963
    %v2956 = vunpack.c.l.s8.bf16 %v1964
    %v2957 = vunpack.c.l.s8.bf16 %v1965
    %v2958 = vunpack.c.l.s8.bf16 %v1966
    %v2959 = vunpack.c.l.s8.bf16 %v1967
    %v2960 = vunpack.c.l.s8.bf16 %v1968
    %v2961 = vunpack.c.l.s8.bf16 %v1969
    %v2962 = vunpack.c.l.s8.bf16 %v1970
    %v2963 = vunpack.c.l.s8.bf16 %v1971
    %v2964 = vunpack.c.l.s8.bf16 %v1972
    %v2965 = vunpack.c.l.s8.bf16 %v1973
    %v2966 = vunpack.c.h.s8.bf16 %v1958
    %v2967 = vunpack.c.h.s8.bf16 %v1959
    %v2968 = vunpack.c.h.s8.bf16 %v1960
    %v2969 = vunpack.c.h.s8.bf16 %v1961
    %v2970 = vunpack.c.h.s8.bf16 %v1962
    %v2971 = vunpack.c.h.s8.bf16 %v1963
    %v2972 = vunpack.c.h.s8.bf16 %v1964
    %v2973 = vunpack.c.h.s8.bf16 %v1965
    %v2974 = vunpack.c.h.s8.bf16 %v1966
    %v2975 = vunpack.c.h.s8.bf16 %v1967
    %v2976 = vunpack.c.h.s8.bf16 %v1968
    %v2977 = vunpack.c.h.s8.bf16 %v1969
    %v2978 = vunpack.c.h.s8.bf16 %v1970
    %v2979 = vunpack.c.h.s8.bf16 %v1971
    %v2980 = vunpack.c.h.s8.bf16 %v1972
    %v2981 = vunpack.c.h.s8.bf16 %v1973
    %v2982 = vunpack.c.l.s8.bf16 %v1974
    %v2983 = vunpack.c.l.s8.bf16 %v1975
    %v2984 = vunpack.c.l.s8.bf16 %v1976
    %v2985 = vunpack.c.l.s8.bf16 %v1977
    %v2986 = vunpack.c.l.s8.bf16 %v1978
    %v2987 = vunpack.c.l.s8.bf16 %v1979
    %v2988 = vunpack.c.l.s8.bf16 %v1980
    %v2989 = vunpack.c.l.s8.bf16 %v1981
    %v2990 = vunpack.c.l.s8.bf16 %v1982
    %v2991 = vunpack.c.l.s8.bf16 %v1983
    %v2992 = vunpack.c.l.s8.bf16 %v1984
    %v2993 = vunpack.c.l.s8.bf16 %v1985
    %v2994 = vunpack.c.l.s8.bf16 %v1986
    %v2995 = vunpack.c.l.s8.bf16 %v1987
    %v2996 = vunpack.c.l.s8.bf16 %v1988
    %v2997 = vunpack.c.l.s8.bf16 %v1989
    %v2998 = vunpack.c.h.s8.bf16 %v1974
    %v2999 = vunpack.c.h.s8.bf16 %v1975
    %v3000 = vunpack.c.h.s8.bf16 %v1976
    %v3001 = vunpack.c.h.s8.bf16 %v1977
    %v3002 = vunpack.c.h.s8.bf16 %v1978
    %v3003 = vunpack.c.h.s8.bf16 %v1979
    %v3004 = vunpack.c.h.s8.bf16 %v1980
    %v3005 = vunpack.c.h.s8.bf16 %v1981
    %v3006 = vunpack.c.h.s8.bf16 %v1982
    %v3007 = vunpack.c.h.s8.bf16 %v1983
    %v3008 = vunpack.c.h.s8.bf16 %v1984
    %v3009 = vunpack.c.h.s8.bf16 %v1985
    %v3010 = vunpack.c.h.s8.bf16 %v1986
    %v3011 = vunpack.c.h.s8.bf16 %v1987
    %v3012 = vunpack.c.h.s8.bf16 %v1988
    %v3013 = vunpack.c.h.s8.bf16 %v1989
    %3014 = vmatprep.subr.bf16.mxu0 %v1991
    %3015 = vmatpush1.bf16.msra.mxu0 %v1990
    %3016 = vmatprep.subr.bf16.mxu0 %v2007
    %3017 = vmatpush1.bf16.msra.mxu0 %v2006
    %3018 = vmatprep.subr.bf16.mxu0 %v2023
    %3019 = vmatpush1.bf16.msra.mxu0 %v2022
    %3020 = vmatprep.subr.bf16.mxu0 %v2039
    %3021 = vmatpush1.bf16.msra.mxu0 %v2038
    %3022 = vmatprep.subr.bf16.mxu0 %v2055
    %3023 = vmatpush1.bf16.msra.mxu0 %v2054
    %3024 = vmatprep.subr.bf16.mxu0 %v2071
    %3025 = vmatpush1.bf16.msra.mxu0 %v2070
    %3026 = vmatprep.subr.bf16.mxu0 %v2087
    %3027 = vmatpush1.bf16.msra.mxu0 %v2086
    %3028 = vmatprep.subr.bf16.mxu0 %v2103
    %3029 = vmatpush1.bf16.msra.mxu0 %v2102
    %3030 = vmatprep.subr.bf16.mxu0 %v2119
    %3031 = vmatpush1.bf16.msra.mxu0 %v2118
    %3032 = vmatprep.subr.bf16.mxu0 %v2135
    %3033 = vmatpush1.bf16.msra.mxu0 %v2134
    %3034 = vmatprep.subr.bf16.mxu0 %v2151
    %3035 = vmatpush1.bf16.msra.mxu0 %v2150
    %3036 = vmatprep.subr.bf16.mxu0 %v2167
    %3037 = vmatpush1.bf16.msra.mxu0 %v2166
    %3038 = vmatprep.subr.bf16.mxu0 %v2183
    %3039 = vmatpush1.bf16.msra.mxu0 %v2182
    %3040 = vmatprep.subr.bf16.mxu0 %v2199
    %3041 = vmatpush1.bf16.msra.mxu0 %v2198
    %3042 = vmatprep.subr.bf16.mxu0 %v2215
    %3043 = vmatpush1.bf16.msra.mxu0 %v2214
    %3044 = vmatprep.subr.bf16.mxu0 %v2231
    %3045 = vmatpush1.bf16.msra.mxu0 %v2230
    %3046 = vmatprep.mubr.bf16.mxu0 %v1467
    %3047 = vmatmul.mubr.bf16.gmra.mrb[0].mxu0 %v1466
    %v3048 = vpop.f32.mrb[0].mxu0
    %v3049 = vadd.f32 0.0, %v3048
    %v3050 = vpop.f32.mrb[0].mxu0
    %v3051 = vadd.f32 0.0, %v3050
    %v3052 = vpop.f32.mrb[0].mxu0
    %v3053 = vadd.f32 0.0, %v3052
    %v3054 = vpop.f32.mrb[0].mxu0
    %v3055 = vadd.f32 0.0, %v3054
    %3056 = vdwg.mxu0
    %3057 = vmatprep.subr.bf16.mxu0 %v2247
    %3058 = vmatpush1.bf16.msra.mxu0 %v2246
    %3059 = vmatprep.subr.bf16.mxu0 %v2263
    %3060 = vmatpush1.bf16.msra.mxu0 %v2262
    %3061 = vmatprep.subr.bf16.mxu0 %v2279
    %3062 = vmatpush1.bf16.msra.mxu0 %v2278
    %3063 = vmatprep.subr.bf16.mxu0 %v2295
    %3064 = vmatpush1.bf16.msra.mxu0 %v2294
    %3065 = vmatprep.subr.bf16.mxu0 %v2311
    %3066 = vmatpush1.bf16.msra.mxu0 %v2310
    %3067 = vmatprep.subr.bf16.mxu0 %v2327
    %3068 = vmatpush1.bf16.msra.mxu0 %v2326
    %3069 = vmatprep.subr.bf16.mxu0 %v2343
    %3070 = vmatpush1.bf16.msra.mxu0 %v2342
    %3071 = vmatprep.subr.bf16.mxu0 %v2359
    %3072 = vmatpush1.bf16.msra.mxu0 %v2358
    %3073 = vmatprep.subr.bf16.mxu0 %v2375
    %3074 = vmatpush1.bf16.msra.mxu0 %v2374
    %3075 = vmatprep.subr.bf16.mxu0 %v2391
    %3076 = vmatpush1.bf16.msra.mxu0 %v2390
    %3077 = vmatprep.subr.bf16.mxu0 %v2407
    %3078 = vmatpush1.bf16.msra.mxu0 %v2406
    %3079 = vmatprep.subr.bf16.mxu0 %v2423
    %3080 = vmatpush1.bf16.msra.mxu0 %v2422
    %3081 = vmatprep.subr.bf16.mxu0 %v2439
    %3082 = vmatpush1.bf16.msra.mxu0 %v2438
    %3083 = vmatprep.subr.bf16.mxu0 %v2455
    %3084 = vmatpush1.bf16.msra.mxu0 %v2454
    %3085 = vmatprep.subr.bf16.mxu0 %v2471
    %3086 = vmatpush1.bf16.msra.mxu0 %v2470
    %3087 = vmatprep.subr.bf16.mxu0 %v2487
    %3088 = vmatpush1.bf16.msra.mxu0 %v2486
    %3089 = vmatprep.mubr.bf16.mxu0 %v1469
    %3090 = vmatmul.mubr.bf16.gmra.mrb[0].mxu0 %v1468
    %v3091 = vpop.f32.mrb[0].mxu0
    %v3092 = vadd.f32 %v3049, %v3091
    %v3093 = vpop.f32.mrb[0].mxu0
    %v3094 = vadd.f32 %v3051, %v3093
    %v3095 = vpop.f32.mrb[0].mxu0
    %v3096 = vadd.f32 %v3053, %v3095
    %v3097 = vpop.f32.mrb[0].mxu0
    %v3098 = vadd.f32 %v3055, %v3097
    %3099 = vdwg.mxu0
    %3100 = vmatprep.subr.bf16.mxu0 %v2503
    %3101 = vmatpush1.bf16.msra.mxu0 %v2502
    %3102 = vmatprep.subr.bf16.mxu0 %v2519
    %3103 = vmatpush1.bf16.msra.mxu0 %v2518
    %3104 = vmatprep.subr.bf16.mxu0 %v2535
    %3105 = vmatpush1.bf16.msra.mxu0 %v2534
    %3106 = vmatprep.subr.bf16.mxu0 %v2551
    %3107 = vmatpush1.bf16.msra.mxu0 %v2550
    %3108 = vmatprep.subr.bf16.mxu0 %v2567
    %3109 = vmatpush1.bf16.msra.mxu0 %v2566
    %3110 = vmatprep.subr.bf16.mxu0 %v2583
    %3111 = vmatpush1.bf16.msra.mxu0 %v2582
    %3112 = vmatprep.subr.bf16.mxu0 %v2599
    %3113 = vmatpush1.bf16.msra.mxu0 %v2598
    %3114 = vmatprep.subr.bf16.mxu0 %v2615
    %3115 = vmatpush1.bf16.msra.mxu0 %v2614
    %3116 = vmatprep.subr.bf16.mxu0 %v2631
    %3117 = vmatpush1.bf16.msra.mxu0 %v2630
    %3118 = vmatprep.subr.bf16.mxu0 %v2647
    %3119 = vmatpush1.bf16.msra.mxu0 %v2646
    %3120 = vmatprep.subr.bf16.mxu0 %v2663
    %3121 = vmatpush1.bf16.msra.mxu0 %v2662
    %3122 = vmatprep.subr.bf16.mxu0 %v2679
    %3123 = vmatpush1.bf16.msra.mxu0 %v2678
    %3124 = vmatprep.subr.bf16.mxu0 %v2695
    %3125 = vmatpush1.bf16.msra.mxu0 %v2694
    %3126 = vmatprep.subr.bf16.mxu0 %v2711
    %3127 = vmatpush1.bf16.msra.mxu0 %v2710
    %3128 = vmatprep.subr.bf16.mxu0 %v2727
    %3129 = vmatpush1.bf16.msra.mxu0 %v2726
    %3130 = vmatprep.subr.bf16.mxu0 %v2743
    %3131 = vmatpush1.bf16.msra.mxu0 %v2742
    %3132 = vmatprep.mubr.bf16.mxu0 %v1471
    %3133 = vmatmul.mubr.bf16.gmra.mrb[0].mxu0 %v1470
    %v3134 = vpop.f32.mrb[0].mxu0
    %v3135 = vadd.f32 %v3092, %v3134
    %v3136 = vpop.f32.mrb[0].mxu0
    %v3137 = vadd.f32 %v3094, %v3136
    %v3138 = vpop.f32.mrb[0].mxu0
    %v3139 = vadd.f32 %v3096, %v3138
    %v3140 = vpop.f32.mrb[0].mxu0
    %v3141 = vadd.f32 %v3098, %v3140
    %3142 = vdwg.mxu0
    %3143 = vmatprep.subr.bf16.mxu0 %v2759
    %3144 = vmatpush1.bf16.msra.mxu0 %v2758
    %3145 = vmatprep.subr.bf16.mxu0 %v2775
    %3146 = vmatpush1.bf16.msra.mxu0 %v2774
    %3147 = vmatprep.subr.bf16.mxu0 %v2791
    %3148 = vmatpush1.bf16.msra.mxu0 %v2790
    %3149 = vmatprep.subr.bf16.mxu0 %v2807
    %3150 = vmatpush1.bf16.msra.mxu0 %v2806
    %3151 = vmatprep.subr.bf16.mxu0 %v2823
    %3152 = vmatpush1.bf16.msra.mxu0 %v2822
    %3153 = vmatprep.subr.bf16.mxu0 %v2839
    %3154 = vmatpush1.bf16.msra.mxu0 %v2838
    %3155 = vmatprep.subr.bf16.mxu0 %v2855
    %3156 = vmatpush1.bf16.msra.mxu0 %v2854
    %3157 = vmatprep.subr.bf16.mxu0 %v2871
    %3158 = vmatpush1.bf16.msra.mxu0 %v2870
    %3159 = vmatprep.subr.bf16.mxu0 %v2887
    %3160 = vmatpush1.bf16.msra.mxu0 %v2886
    %3161 = vmatprep.subr.bf16.mxu0 %v2903
    %3162 = vmatpush1.bf16.msra.mxu0 %v2902
    %3163 = vmatprep.subr.bf16.mxu0 %v2919
    %3164 = vmatpush1.bf16.msra.mxu0 %v2918
    %3165 = vmatprep.subr.bf16.mxu0 %v2935
    %3166 = vmatpush1.bf16.msra.mxu0 %v2934
    %3167 = vmatprep.subr.bf16.mxu0 %v2951
    %3168 = vmatpush1.bf16.msra.mxu0 %v2950
    %3169 = vmatprep.subr.bf16.mxu0 %v2967
    %3170 = vmatpush1.bf16.msra.mxu0 %v2966
    %3171 = vmatprep.subr.bf16.mxu0 %v2983
    %3172 = vmatpush1.bf16.msra.mxu0 %v2982
    %3173 = vmatprep.subr.bf16.mxu0 %v2999
    %3174 = vmatpush1.bf16.msra.mxu0 %v2998
    %3175 = vmatprep.mubr.bf16.mxu0 %v1473
    %3176 = vmatmul.mubr.bf16.gmra.mrb[0].mxu0 %v1472
    %v3177 = vpop.f32.mrb[0].mxu0
    %v3178 = vadd.f32 %v3135, %v3177
    %v3179 = vpop.f32.mrb[0].mxu0
    %v3180 = vadd.f32 %v3137, %v3179
    %v3181 = vpop.f32.mrb[0].mxu0
    %v3182 = vadd.f32 %v3139, %v3181
    %v3183 = vpop.f32.mrb[0].mxu0
    %v3184 = vadd.f32 %v3141, %v3183
    %3185 = vdwg.mxu0
    %3186 = vmatprep.subr.bf16.mxu0 %v1993
    %3187 = vmatpush1.bf16.msra.mxu0 %v1992
    %3188 = vmatprep.subr.bf16.mxu0 %v2009
    %3189 = vmatpush1.bf16.msra.mxu0 %v2008
    %3190 = vmatprep.subr.bf16.mxu0 %v2025
    %3191 = vmatpush1.bf16.msra.mxu0 %v2024
    %3192 = vmatprep.subr.bf16.mxu0 %v2041
    %3193 = vmatpush1.bf16.msra.mxu0 %v2040
    %3194 = vmatprep.subr.bf16.mxu0 %v2057
    %3195 = vmatpush1.bf16.msra.mxu0 %v2056
    %3196 = vmatprep.subr.bf16.mxu0 %v2073
    %3197 = vmatpush1.bf16.msra.mxu0 %v2072
    %3198 = vmatprep.subr.bf16.mxu0 %v2089
    %3199 = vmatpush1.bf16.msra.mxu0 %v2088
    %3200 = vmatprep.subr.bf16.mxu0 %v2105
    %3201 = vmatpush1.bf16.msra.mxu0 %v2104
    %3202 = vmatprep.subr.bf16.mxu0 %v2121
    %3203 = vmatpush1.bf16.msra.mxu0 %v2120
    %3204 = vmatprep.subr.bf16.mxu0 %v2137
    %3205 = vmatpush1.bf16.msra.mxu0 %v2136
    %3206 = vmatprep.subr.bf16.mxu0 %v2153
    %3207 = vmatpush1.bf16.msra.mxu0 %v2152
    %3208 = vmatprep.subr.bf16.mxu0 %v2169
    %3209 = vmatpush1.bf16.msra.mxu0 %v2168
    %3210 = vmatprep.subr.bf16.mxu0 %v2185
    %3211 = vmatpush1.bf16.msra.mxu0 %v2184
    %3212 = vmatprep.subr.bf16.mxu0 %v2201
    %3213 = vmatpush1.bf16.msra.mxu0 %v2200
    %3214 = vmatprep.subr.bf16.mxu0 %v2217
    %3215 = vmatpush1.bf16.msra.mxu0 %v2216
    %3216 = vmatprep.subr.bf16.mxu0 %v2233
    %3217 = vmatpush1.bf16.msra.mxu0 %v2232
    %3218 = vmatprep.mubr.bf16.mxu0 %v1467
    %3219 = vmatmul.mubr.bf16.gmra.mrb[0].mxu0 %v1466
    %v3220 = vpop.f32.mrb[0].mxu0
    %v3221 = vadd.f32 0.0, %v3220
    %v3222 = vpop.f32.mrb[0].mxu0
    %v3223 = vadd.f32 0.0, %v3222
    %v3224 = vpop.f32.mrb[0].mxu0
    %v3225 = vadd.f32 0.0, %v3224
    %v3226 = vpop.f32.mrb[0].mxu0
    %v3227 = vadd.f32 0.0, %v3226
    %3228 = vdwg.mxu0
    %3229 = vmatprep.subr.bf16.mxu0 %v2249
    %3230 = vmatpush1.bf16.msra.mxu0 %v2248
    %3231 = vmatprep.subr.bf16.mxu0 %v2265
    %3232 = vmatpush1.bf16.msra.mxu0 %v2264
    %3233 = vmatprep.subr.bf16.mxu0 %v2281
    %3234 = vmatpush1.bf16.msra.mxu0 %v2280
    %3235 = vmatprep.subr.bf16.mxu0 %v2297
    %3236 = vmatpush1.bf16.msra.mxu0 %v2296
    %3237 = vmatprep.subr.bf16.mxu0 %v2313
    %3238 = vmatpush1.bf16.msra.mxu0 %v2312
    %3239 = vmatprep.subr.bf16.mxu0 %v2329
    %3240 = vmatpush1.bf16.msra.mxu0 %v2328
    %3241 = vmatprep.subr.bf16.mxu0 %v2345
    %3242 = vmatpush1.bf16.msra.mxu0 %v2344
    %3243 = vmatprep.subr.bf16.mxu0 %v2361
    %3244 = vmatpush1.bf16.msra.mxu0 %v2360
    %3245 = vmatprep.subr.bf16.mxu0 %v2377
    %3246 = vmatpush1.bf16.msra.mxu0 %v2376
    %3247 = vmatprep.subr.bf16.mxu0 %v2393
    %3248 = vmatpush1.bf16.msra.mxu0 %v2392
    %3249 = vmatprep.subr.bf16.mxu0 %v2409
    %3250 = vmatpush1.bf16.msra.mxu0 %v2408
    %3251 = vmatprep.subr.bf16.mxu0 %v2425
    %3252 = vmatpush1.bf16.msra.mxu0 %v2424
    %3253 = vmatprep.subr.bf16.mxu0 %v2441
    %3254 = vmatpush1.bf16.msra.mxu0 %v2440
    %3255 = vmatprep.subr.bf16.mxu0 %v2457
    %3256 = vmatpush1.bf16.msra.mxu0 %v2456
    %3257 = vmatprep.subr.bf16.mxu0 %v2473
    %3258 = vmatpush1.bf16.msra.mxu0 %v2472
    %3259 = vmatprep.subr.bf16.mxu0 %v2489
    %3260 = vmatpush1.bf16.msra.mxu0 %v2488
    %3261 = vmatprep.mubr.bf16.mxu0 %v1469
    %3262 = vmatmul.mubr.bf16.gmra.mrb[0].mxu0 %v1468
    %v3263 = vpop.f32.mrb[0].mxu0
    %v3264 = vadd.f32 %v3221, %v3263
    %v3265 = vpop.f32.mrb[0].mxu0
    %v3266 = vadd.f32 %v3223, %v3265
    %v3267 = vpop.f32.mrb[0].mxu0
    %v3268 = vadd.f32 %v3225, %v3267
    %v3269 = vpop.f32.mrb[0].mxu0
    %v3270 = vadd.f32 %v3227, %v3269
    %3271 = vdwg.mxu0
    %3272 = vmatprep.subr.bf16.mxu0 %v2505
    %3273 = vmatpush1.bf16.msra.mxu0 %v2504
    %3274 = vmatprep.subr.bf16.mxu0 %v2521
    %3275 = vmatpush1.bf16.msra.mxu0 %v2520
    %3276 = vmatprep.subr.bf16.mxu0 %v2537
    %3277 = vmatpush1.bf16.msra.mxu0 %v2536
    %3278 = vmatprep.subr.bf16.mxu0 %v2553
    %3279 = vmatpush1.bf16.msra.mxu0 %v2552
    %3280 = vmatprep.subr.bf16.mxu0 %v2569
    %3281 = vmatpush1.bf16.msra.mxu0 %v2568
    %3282 = vmatprep.subr.bf16.mxu0 %v2585
    %3283 = vmatpush1.bf16.msra.mxu0 %v2584
    %3284 = vmatprep.subr.bf16.mxu0 %v2601
    %3285 = vmatpush1.bf16.msra.mxu0 %v2600
    %3286 = vmatprep.subr.bf16.mxu0 %v2617
    %3287 = vmatpush1.bf16.msra.mxu0 %v2616
    %3288 = vmatprep.subr.bf16.mxu0 %v2633
    %3289 = vmatpush1.bf16.msra.mxu0 %v2632
    %3290 = vmatprep.subr.bf16.mxu0 %v2649
    %3291 = vmatpush1.bf16.msra.mxu0 %v2648
    %3292 = vmatprep.subr.bf16.mxu0 %v2665
    %3293 = vmatpush1.bf16.msra.mxu0 %v2664
    %3294 = vmatprep.subr.bf16.mxu0 %v2681
    %3295 = vmatpush1.bf16.msra.mxu0 %v2680
    %3296 = vmatprep.subr.bf16.mxu0 %v2697
    %3297 = vmatpush1.bf16.msra.mxu0 %v2696
    %3298 = vmatprep.subr.bf16.mxu0 %v2713
    %3299 = vmatpush1.bf16.msra.mxu0 %v2712
    %3300 = vmatprep.subr.bf16.mxu0 %v2729
    %3301 = vmatpush1.bf16.msra.mxu0 %v2728
    %3302 = vmatprep.subr.bf16.mxu0 %v2745
    %3303 = vmatpush1.bf16.msra.mxu0 %v2744
    %3304 = vmatprep.mubr.bf16.mxu0 %v1471
    %3305 = vmatmul.mubr.bf16.gmra.mrb[0].mxu0 %v1470
    %v3306 = vpop.f32.mrb[0].mxu0
    %v3307 = vadd.f32 %v3264, %v3306
    %v3308 = vpop.f32.mrb[0].mxu0
    %v3309 = vadd.f32 %v3266, %v3308
    %v3310 = vpop.f32.mrb[0].mxu0
    %v3311 = vadd.f32 %v3268, %v3310
    %v3312 = vpop.f32.mrb[0].mxu0
    %v3313 = vadd.f32 %v3270, %v3312
    %3314 = vdwg.mxu0
    %3315 = vmatprep.subr.bf16.mxu0 %v2761
    %3316 = vmatpush1.bf16.msra.mxu0 %v2760
    %3317 = vmatprep.subr.bf16.mxu0 %v2777
    %3318 = vmatpush1.bf16.msra.mxu0 %v2776
    %3319 = vmatprep.subr.bf16.mxu0 %v2793
    %3320 = vmatpush1.bf16.msra.mxu0 %v2792
    %3321 = vmatprep.subr.bf16.mxu0 %v2809
    %3322 = vmatpush1.bf16.msra.mxu0 %v2808
    %3323 = vmatprep.subr.bf16.mxu0 %v2825
    %3324 = vmatpush1.bf16.msra.mxu0 %v2824
    %3325 = vmatprep.subr.bf16.mxu0 %v2841
    %3326 = vmatpush1.bf16.msra.mxu0 %v2840
    %3327 = vmatprep.subr.bf16.mxu0 %v2857
    %3328 = vmatpush1.bf16.msra.mxu0 %v2856
    %3329 = vmatprep.subr.bf16.mxu0 %v2873
    %3330 = vmatpush1.bf16.msra.mxu0 %v2872
    %3331 = vmatprep.subr.bf16.mxu0 %v2889
    %3332 = vmatpush1.bf16.msra.mxu0 %v2888
    %3333 = vmatprep.subr.bf16.mxu0 %v2905
    %3334 = vmatpush1.bf16.msra.mxu0 %v2904
    %3335 = vmatprep.subr.bf16.mxu0 %v2921
    %3336 = vmatpush1.bf16.msra.mxu0 %v2920
    %3337 = vmatprep.subr.bf16.mxu0 %v2937
    %3338 = vmatpush1.bf16.msra.mxu0 %v2936
    %3339 = vmatprep.subr.bf16.mxu0 %v2953
    %3340 = vmatpush1.bf16.msra.mxu0 %v2952
    %3341 = vmatprep.subr.bf16.mxu0 %v2969
    %3342 = vmatpush1.bf16.msra.mxu0 %v2968
    %3343 = vmatprep.subr.bf16.mxu0 %v2985
    %3344 = vmatpush1.bf16.msra.mxu0 %v2984
    %3345 = vmatprep.subr.bf16.mxu0 %v3001
    %3346 = vmatpush1.bf16.msra.mxu0 %v3000
    %3347 = vmatprep.mubr.bf16.mxu0 %v1473
    %3348 = vmatmul.mubr.bf16.gmra.mrb[0].mxu0 %v1472
    %v3349 = vpop.f32.mrb[0].mxu0
    %v3350 = vadd.f32 %v3307, %v3349
    %v3351 = vpop.f32.mrb[0].mxu0
    %v3352 = vadd.f32 %v3309, %v3351
    %v3353 = vpop.f32.mrb[0].mxu0
    %v3354 = vadd.f32 %v3311, %v3353
    %v3355 = vpop.f32.mrb[0].mxu0
    %v3356 = vadd.f32 %v3313, %v3355
    %3357 = vdwg.mxu0
    %3358 = vmatprep.subr.bf16.mxu0 %v1995
    %3359 = vmatpush1.bf16.msra.mxu0 %v1994
    %3360 = vmatprep.subr.bf16.mxu0 %v2011
    %3361 = vmatpush1.bf16.msra.mxu0 %v2010
    %3362 = vmatprep.subr.bf16.mxu0 %v2027
    %3363 = vmatpush1.bf16.msra.mxu0 %v2026
    %3364 = vmatprep.subr.bf16.mxu0 %v2043
    %3365 = vmatpush1.bf16.msra.mxu0 %v2042
    %3366 = vmatprep.subr.bf16.mxu0 %v2059
    %3367 = vmatpush1.bf16.msra.mxu0 %v2058
    %3368 = vmatprep.subr.bf16.mxu0 %v2075
    %3369 = vmatpush1.bf16.msra.mxu0 %v2074
    %3370 = vmatprep.subr.bf16.mxu0 %v2091
    %3371 = vmatpush1.bf16.msra.mxu0 %v2090
    %3372 = vmatprep.subr.bf16.mxu0 %v2107
    %3373 = vmatpush1.bf16.msra.mxu0 %v2106
    %3374 = vmatprep.subr.bf16.mxu0 %v2123
    %3375 = vmatpush1.bf16.msra.mxu0 %v2122
    %3376 = vmatprep.subr.bf16.mxu0 %v2139
    %3377 = vmatpush1.bf16.msra.mxu0 %v2138
    %3378 = vmatprep.subr.bf16.mxu0 %v2155
    %3379 = vmatpush1.bf16.msra.mxu0 %v2154
    %3380 = vmatprep.subr.bf16.mxu0 %v2171
    %3381 = vmatpush1.bf16.msra.mxu0 %v2170
    %3382 = vmatprep.subr.bf16.mxu0 %v2187
    %3383 = vmatpush1.bf16.msra.mxu0 %v2186
    %3384 = vmatprep.subr.bf16.mxu0 %v2203
    %3385 = vmatpush1.bf16.msra.mxu0 %v2202
    %3386 = vmatprep.subr.bf16.mxu0 %v2219
    %3387 = vmatpush1.bf16.msra.mxu0 %v2218
    %3388 = vmatprep.subr.bf16.mxu0 %v2235
    %3389 = vmatpush1.bf16.msra.mxu0 %v2234
    %3390 = vmatprep.mubr.bf16.mxu0 %v1467
    %3391 = vmatmul.mubr.bf16.gmra.mrb[0].mxu0 %v1466
    %v3392 = vpop.f32.mrb[0].mxu0
    %v3393 = vadd.f32 0.0, %v3392
    %v3394 = vpop.f32.mrb[0].mxu0
    %v3395 = vadd.f32 0.0, %v3394
    %v3396 = vpop.f32.mrb[0].mxu0
    %v3397 = vadd.f32 0.0, %v3396
    %v3398 = vpop.f32.mrb[0].mxu0
    %v3399 = vadd.f32 0.0, %v3398
    %3400 = vdwg.mxu0
    %3401 = vmatprep.subr.bf16.mxu0 %v2251
    %3402 = vmatpush1.bf16.msra.mxu0 %v2250
    %3403 = vmatprep.subr.bf16.mxu0 %v2267
    %3404 = vmatpush1.bf16.msra.mxu0 %v2266
    %3405 = vmatprep.subr.bf16.mxu0 %v2283
    %3406 = vmatpush1.bf16.msra.mxu0 %v2282
    %3407 = vmatprep.subr.bf16.mxu0 %v2299
    %3408 = vmatpush1.bf16.msra.mxu0 %v2298
    %3409 = vmatprep.subr.bf16.mxu0 %v2315
    %3410 = vmatpush1.bf16.msra.mxu0 %v2314
    %3411 = vmatprep.subr.bf16.mxu0 %v2331
    %3412 = vmatpush1.bf16.msra.mxu0 %v2330
    %3413 = vmatprep.subr.bf16.mxu0 %v2347
    %3414 = vmatpush1.bf16.msra.mxu0 %v2346
    %3415 = vmatprep.subr.bf16.mxu0 %v2363
    %3416 = vmatpush1.bf16.msra.mxu0 %v2362
    %3417 = vmatprep.subr.bf16.mxu0 %v2379
    %3418 = vmatpush1.bf16.msra.mxu0 %v2378
    %3419 = vmatprep.subr.bf16.mxu0 %v2395
    %3420 = vmatpush1.bf16.msra.mxu0 %v2394
    %3421 = vmatprep.subr.bf16.mxu0 %v2411
    %3422 = vmatpush1.bf16.msra.mxu0 %v2410
    %3423 = vmatprep.subr.bf16.mxu0 %v2427
    %3424 = vmatpush1.bf16.msra.mxu0 %v2426
    %3425 = vmatprep.subr.bf16.mxu0 %v2443
    %3426 = vmatpush1.bf16.msra.mxu0 %v2442
    %3427 = vmatprep.subr.bf16.mxu0 %v2459
    %3428 = vmatpush1.bf16.msra.mxu0 %v2458
    %3429 = vmatprep.subr.bf16.mxu0 %v2475
    %3430 = vmatpush1.bf16.msra.mxu0 %v2474
    %3431 = vmatprep.subr.bf16.mxu0 %v2491
    %3432 = vmatpush1.bf16.msra.mxu0 %v2490
    %3433 = vmatprep.mubr.bf16.mxu0 %v1469
    %3434 = vmatmul.mubr.bf16.gmra.mrb[0].mxu0 %v1468
    %v3435 = vpop.f32.mrb[0].mxu0
    %v3436 = vadd.f32 %v3393, %v3435
    %v3437 = vpop.f32.mrb[0].mxu0
    %v3438 = vadd.f32 %v3395, %v3437
    %v3439 = vpop.f32.mrb[0].mxu0
    %v3440 = vadd.f32 %v3397, %v3439
    %v3441 = vpop.f32.mrb[0].mxu0
    %v3442 = vadd.f32 %v3399, %v3441
    %3443 = vdwg.mxu0
    %3444 = vmatprep.subr.bf16.mxu0 %v2507
    %3445 = vmatpush1.bf16.msra.mxu0 %v2506
    %3446 = vmatprep.subr.bf16.mxu0 %v2523
    %3447 = vmatpush1.bf16.msra.mxu0 %v2522
    %3448 = vmatprep.subr.bf16.mxu0 %v2539
    %3449 = vmatpush1.bf16.msra.mxu0 %v2538
    %3450 = vmatprep.subr.bf16.mxu0 %v2555
    %3451 = vmatpush1.bf16.msra.mxu0 %v2554
    %3452 = vmatprep.subr.bf16.mxu0 %v2571
    %3453 = vmatpush1.bf16.msra.mxu0 %v2570
    %3454 = vmatprep.subr.bf16.mxu0 %v2587
    %3455 = vmatpush1.bf16.msra.mxu0 %v2586
    %3456 = vmatprep.subr.bf16.mxu0 %v2603
    %3457 = vmatpush1.bf16.msra.mxu0 %v2602
    %3458 = vmatprep.subr.bf16.mxu0 %v2619
    %3459 = vmatpush1.bf16.msra.mxu0 %v2618
    %3460 = vmatprep.subr.bf16.mxu0 %v2635
    %3461 = vmatpush1.bf16.msra.mxu0 %v2634
    %3462 = vmatprep.subr.bf16.mxu0 %v2651
    %3463 = vmatpush1.bf16.msra.mxu0 %v2650
    %3464 = vmatprep.subr.bf16.mxu0 %v2667
    %3465 = vmatpush1.bf16.msra.mxu0 %v2666
    %3466 = vmatprep.subr.bf16.mxu0 %v2683
    %3467 = vmatpush1.bf16.msra.mxu0 %v2682
    %3468 = vmatprep.subr.bf16.mxu0 %v2699
    %3469 = vmatpush1.bf16.msra.mxu0 %v2698
    %3470 = vmatprep.subr.bf16.mxu0 %v2715
    %3471 = vmatpush1.bf16.msra.mxu0 %v2714
    %3472 = vmatprep.subr.bf16.mxu0 %v2731
    %3473 = vmatpush1.bf16.msra.mxu0 %v2730
    %3474 = vmatprep.subr.bf16.mxu0 %v2747
    %3475 = vmatpush1.bf16.msra.mxu0 %v2746
    %3476 = vmatprep.mubr.bf16.mxu0 %v1471
    %3477 = vmatmul.mubr.bf16.gmra.mrb[0].mxu0 %v1470
    %v3478 = vpop.f32.mrb[0].mxu0
    %v3479 = vadd.f32 %v3436, %v3478
    %v3480 = vpop.f32.mrb[0].mxu0
    %v3481 = vadd.f32 %v3438, %v3480
    %v3482 = vpop.f32.mrb[0].mxu0
    %v3483 = vadd.f32 %v3440, %v3482
    %v3484 = vpop.f32.mrb[0].mxu0
    %v3485 = vadd.f32 %v3442, %v3484
    %3486 = vdwg.mxu0
    %3487 = vmatprep.subr.bf16.mxu0 %v2763
    %3488 = vmatpush1.bf16.msra.mxu0 %v2762
    %3489 = vmatprep.subr.bf16.mxu0 %v2779
    %3490 = vmatpush1.bf16.msra.mxu0 %v2778
    %3491 = vmatprep.subr.bf16.mxu0 %v2795
    %3492 = vmatpush1.bf16.msra.mxu0 %v2794
    %3493 = vmatprep.subr.bf16.mxu0 %v2811
    %3494 = vmatpush1.bf16.msra.mxu0 %v2810
    %3495 = vmatprep.subr.bf16.mxu0 %v2827
    %3496 = vmatpush1.bf16.msra.mxu0 %v2826
    %3497 = vmatprep.subr.bf16.mxu0 %v2843
    %3498 = vmatpush1.bf16.msra.mxu0 %v2842
    %3499 = vmatprep.subr.bf16.mxu0 %v2859
    %3500 = vmatpush1.bf16.msra.mxu0 %v2858
    %3501 = vmatprep.subr.bf16.mxu0 %v2875
    %3502 = vmatpush1.bf16.msra.mxu0 %v2874
    %3503 = vmatprep.subr.bf16.mxu0 %v2891
    %3504 = vmatpush1.bf16.msra.mxu0 %v2890
    %3505 = vmatprep.subr.bf16.mxu0 %v2907
    %3506 = vmatpush1.bf16.msra.mxu0 %v2906
    %3507 = vmatprep.subr.bf16.mxu0 %v2923
    %3508 = vmatpush1.bf16.msra.mxu0 %v2922
    %3509 = vmatprep.subr.bf16.mxu0 %v2939
    %3510 = vmatpush1.bf16.msra.mxu0 %v2938
    %3511 = vmatprep.subr.bf16.mxu0 %v2955
    %3512 = vmatpush1.bf16.msra.mxu0 %v2954
    %3513 = vmatprep.subr.bf16.mxu0 %v2971
    %3514 = vmatpush1.bf16.msra.mxu0 %v2970
    %3515 = vmatprep.subr.bf16.mxu0 %v2987
    %3516 = vmatpush1.bf16.msra.mxu0 %v2986
    %3517 = vmatprep.subr.bf16.mxu0 %v3003
    %3518 = vmatpush1.bf16.msra.mxu0 %v3002
    %3519 = vmatprep.mubr.bf16.mxu0 %v1473
    %3520 = vmatmul.mubr.bf16.gmra.mrb[0].mxu0 %v1472
    %v3521 = vpop.f32.mrb[0].mxu0
    %v3522 = vadd.f32 %v3479, %v3521
    %v3523 = vpop.f32.mrb[0].mxu0
    %v3524 = vadd.f32 %v3481, %v3523
    %v3525 = vpop.f32.mrb[0].mxu0
    %v3526 = vadd.f32 %v3483, %v3525
    %v3527 = vpop.f32.mrb[0].mxu0
    %v3528 = vadd.f32 %v3485, %v3527
    %3529 = vdwg.mxu0
    %3530 = vmatprep.subr.bf16.mxu0 %v1997
    %3531 = vmatpush1.bf16.msra.mxu0 %v1996
    %3532 = vmatprep.subr.bf16.mxu0 %v2013
    %3533 = vmatpush1.bf16.msra.mxu0 %v2012
    %3534 = vmatprep.subr.bf16.mxu0 %v2029
    %3535 = vmatpush1.bf16.msra.mxu0 %v2028
    %3536 = vmatprep.subr.bf16.mxu0 %v2045
    %3537 = vmatpush1.bf16.msra.mxu0 %v2044
    %3538 = vmatprep.subr.bf16.mxu0 %v2061
    %3539 = vmatpush1.bf16.msra.mxu0 %v2060
    %3540 = vmatprep.subr.bf16.mxu0 %v2077
    %3541 = vmatpush1.bf16.msra.mxu0 %v2076
    %3542 = vmatprep.subr.bf16.mxu0 %v2093
    %3543 = vmatpush1.bf16.msra.mxu0 %v2092
    %3544 = vmatprep.subr.bf16.mxu0 %v2109
    %3545 = vmatpush1.bf16.msra.mxu0 %v2108
    %3546 = vmatprep.subr.bf16.mxu0 %v2125
    %3547 = vmatpush1.bf16.msra.mxu0 %v2124
    %3548 = vmatprep.subr.bf16.mxu0 %v2141
    %3549 = vmatpush1.bf16.msra.mxu0 %v2140
    %3550 = vmatprep.subr.bf16.mxu0 %v2157
    %3551 = vmatpush1.bf16.msra.mxu0 %v2156
    %3552 = vmatprep.subr.bf16.mxu0 %v2173
    %3553 = vmatpush1.bf16.msra.mxu0 %v2172
    %3554 = vmatprep.subr.bf16.mxu0 %v2189
    %3555 = vmatpush1.bf16.msra.mxu0 %v2188
    %3556 = vmatprep.subr.bf16.mxu0 %v2205
    %3557 = vmatpush1.bf16.msra.mxu0 %v2204
    %3558 = vmatprep.subr.bf16.mxu0 %v2221
    %3559 = vmatpush1.bf16.msra.mxu0 %v2220
    %3560 = vmatprep.subr.bf16.mxu0 %v2237
    %3561 = vmatpush1.bf16.msra.mxu0 %v2236
    %3562 = vmatprep.mubr.bf16.mxu0 %v1467
    %3563 = vmatmul.mubr.bf16.gmra.mrb[0].mxu0 %v1466
    %v3564 = vpop.f32.mrb[0].mxu0
    %v3565 = vadd.f32 0.0, %v3564
    %v3566 = vpop.f32.mrb[0].mxu0
    %v3567 = vadd.f32 0.0, %v3566
    %v3568 = vpop.f32.mrb[0].mxu0
    %v3569 = vadd.f32 0.0, %v3568
    %v3570 = vpop.f32.mrb[0].mxu0
    %v3571 = vadd.f32 0.0, %v3570
    %3572 = vdwg.mxu0
    %3573 = vmatprep.subr.bf16.mxu0 %v2253
    %3574 = vmatpush1.bf16.msra.mxu0 %v2252
    %3575 = vmatprep.subr.bf16.mxu0 %v2269
    %3576 = vmatpush1.bf16.msra.mxu0 %v2268
    %3577 = vmatprep.subr.bf16.mxu0 %v2285
    %3578 = vmatpush1.bf16.msra.mxu0 %v2284
    %3579 = vmatprep.subr.bf16.mxu0 %v2301
    %3580 = vmatpush1.bf16.msra.mxu0 %v2300
    %3581 = vmatprep.subr.bf16.mxu0 %v2317
    %3582 = vmatpush1.bf16.msra.mxu0 %v2316
    %3583 = vmatprep.subr.bf16.mxu0 %v2333
    %3584 = vmatpush1.bf16.msra.mxu0 %v2332
    %3585 = vmatprep.subr.bf16.mxu0 %v2349
    %3586 = vmatpush1.bf16.msra.mxu0 %v2348
    %3587 = vmatprep.subr.bf16.mxu0 %v2365
    %3588 = vmatpush1.bf16.msra.mxu0 %v2364
    %3589 = vmatprep.subr.bf16.mxu0 %v2381
    %3590 = vmatpush1.bf16.msra.mxu0 %v2380
    %3591 = vmatprep.subr.bf16.mxu0 %v2397
    %3592 = vmatpush1.bf16.msra.mxu0 %v2396
    %3593 = vmatprep.subr.bf16.mxu0 %v2413
    %3594 = vmatpush1.bf16.msra.mxu0 %v2412
    %3595 = vmatprep.subr.bf16.mxu0 %v2429
    %3596 = vmatpush1.bf16.msra.mxu0 %v2428
    %3597 = vmatprep.subr.bf16.mxu0 %v2445
    %3598 = vmatpush1.bf16.msra.mxu0 %v2444
    %3599 = vmatprep.subr.bf16.mxu0 %v2461
    %3600 = vmatpush1.bf16.msra.mxu0 %v2460
    %3601 = vmatprep.subr.bf16.mxu0 %v2477
    %3602 = vmatpush1.bf16.msra.mxu0 %v2476
    %3603 = vmatprep.subr.bf16.mxu0 %v2493
    %3604 = vmatpush1.bf16.msra.mxu0 %v2492
    %3605 = vmatprep.mubr.bf16.mxu0 %v1469
    %3606 = vmatmul.mubr.bf16.gmra.mrb[0].mxu0 %v1468
    %v3607 = vpop.f32.mrb[0].mxu0
    %v3608 = vadd.f32 %v3565, %v3607
    %v3609 = vpop.f32.mrb[0].mxu0
    %v3610 = vadd.f32 %v3567, %v3609
    %v3611 = vpop.f32.mrb[0].mxu0
    %v3612 = vadd.f32 %v3569, %v3611
    %v3613 = vpop.f32.mrb[0].mxu0
    %v3614 = vadd.f32 %v3571, %v3613
    %3615 = vdwg.mxu0
    %3616 = vmatprep.subr.bf16.mxu0 %v2509
    %3617 = vmatpush1.bf16.msra.mxu0 %v2508
    %3618 = vmatprep.subr.bf16.mxu0 %v2525
    %3619 = vmatpush1.bf16.msra.mxu0 %v2524
    %3620 = vmatprep.subr.bf16.mxu0 %v2541
    %3621 = vmatpush1.bf16.msra.mxu0 %v2540
    %3622 = vmatprep.subr.bf16.mxu0 %v2557
    %3623 = vmatpush1.bf16.msra.mxu0 %v2556
    %3624 = vmatprep.subr.bf16.mxu0 %v2573
    %3625 = vmatpush1.bf16.msra.mxu0 %v2572
    %3626 = vmatprep.subr.bf16.mxu0 %v2589
    %3627 = vmatpush1.bf16.msra.mxu0 %v2588
    %3628 = vmatprep.subr.bf16.mxu0 %v2605
    %3629 = vmatpush1.bf16.msra.mxu0 %v2604
    %3630 = vmatprep.subr.bf16.mxu0 %v2621
    %3631 = vmatpush1.bf16.msra.mxu0 %v2620
    %3632 = vmatprep.subr.bf16.mxu0 %v2637
    %3633 = vmatpush1.bf16.msra.mxu0 %v2636
    %3634 = vmatprep.subr.bf16.mxu0 %v2653
    %3635 = vmatpush1.bf16.msra.mxu0 %v2652
    %3636 = vmatprep.subr.bf16.mxu0 %v2669
    %3637 = vmatpush1.bf16.msra.mxu0 %v2668
    %3638 = vmatprep.subr.bf16.mxu0 %v2685
    %3639 = vmatpush1.bf16.msra.mxu0 %v2684
    %3640 = vmatprep.subr.bf16.mxu0 %v2701
    %3641 = vmatpush1.bf16.msra.mxu0 %v2700
    %3642 = vmatprep.subr.bf16.mxu0 %v2717
    %3643 = vmatpush1.bf16.msra.mxu0 %v2716
    %3644 = vmatprep.subr.bf16.mxu0 %v2733
    %3645 = vmatpush1.bf16.msra.mxu0 %v2732
    %3646 = vmatprep.subr.bf16.mxu0 %v2749
    %3647 = vmatpush1.bf16.msra.mxu0 %v2748
    %3648 = vmatprep.mubr.bf16.mxu0 %v1471
    %3649 = vmatmul.mubr.bf16.gmra.mrb[0].mxu0 %v1470
    %v3650 = vpop.f32.mrb[0].mxu0
    %v3651 = vadd.f32 %v3608, %v3650
    %v3652 = vpop.f32.mrb[0].mxu0
    %v3653 = vadd.f32 %v3610, %v3652
    %v3654 = vpop.f32.mrb[0].mxu0
    %v3655 = vadd.f32 %v3612, %v3654
    %v3656 = vpop.f32.mrb[0].mxu0
    %v3657 = vadd.f32 %v3614, %v3656
    %3658 = vdwg.mxu0
    %3659 = vmatprep.subr.bf16.mxu0 %v2765
    %3660 = vmatpush1.bf16.msra.mxu0 %v2764
    %3661 = vmatprep.subr.bf16.mxu0 %v2781
    %3662 = vmatpush1.bf16.msra.mxu0 %v2780
    %3663 = vmatprep.subr.bf16.mxu0 %v2797
    %3664 = vmatpush1.bf16.msra.mxu0 %v2796
    %3665 = vmatprep.subr.bf16.mxu0 %v2813
    %3666 = vmatpush1.bf16.msra.mxu0 %v2812
    %3667 = vmatprep.subr.bf16.mxu0 %v2829
    %3668 = vmatpush1.bf16.msra.mxu0 %v2828
    %3669 = vmatprep.subr.bf16.mxu0 %v2845
    %3670 = vmatpush1.bf16.msra.mxu0 %v2844
    %3671 = vmatprep.subr.bf16.mxu0 %v2861
    %3672 = vmatpush1.bf16.msra.mxu0 %v2860
    %3673 = vmatprep.subr.bf16.mxu0 %v2877
    %3674 = vmatpush1.bf16.msra.mxu0 %v2876
    %3675 = vmatprep.subr.bf16.mxu0 %v2893
    %3676 = vmatpush1.bf16.msra.mxu0 %v2892
    %3677 = vmatprep.subr.bf16.mxu0 %v2909
    %3678 = vmatpush1.bf16.msra.mxu0 %v2908
    %3679 = vmatprep.subr.bf16.mxu0 %v2925
    %3680 = vmatpush1.bf16.msra.mxu0 %v2924
    %3681 = vmatprep.subr.bf16.mxu0 %v2941
    %3682 = vmatpush1.bf16.msra.mxu0 %v2940
    %3683 = vmatprep.subr.bf16.mxu0 %v2957
    %3684 = vmatpush1.bf16.msra.mxu0 %v2956
    %3685 = vmatprep.subr.bf16.mxu0 %v2973
    %3686 = vmatpush1.bf16.msra.mxu0 %v2972
    %3687 = vmatprep.subr.bf16.mxu0 %v2989
    %3688 = vmatpush1.bf16.msra.mxu0 %v2988
    %3689 = vmatprep.subr.bf16.mxu0 %v3005
    %3690 = vmatpush1.bf16.msra.mxu0 %v3004
    %3691 = vmatprep.mubr.bf16.mxu0 %v1473
    %3692 = vmatmul.mubr.bf16.gmra.mrb[0].mxu0 %v1472
    %v3693 = vpop.f32.mrb[0].mxu0
    %v3694 = vadd.f32 %v3651, %v3693
    %v3695 = vpop.f32.mrb[0].mxu0
    %v3696 = vadd.f32 %v3653, %v3695
    %v3697 = vpop.f32.mrb[0].mxu0
    %v3698 = vadd.f32 %v3655, %v3697
    %v3699 = vpop.f32.mrb[0].mxu0
    %v3700 = vadd.f32 %v3657, %v3699
    %3701 = vdwg.mxu0
    %3702 = vmatprep.subr.bf16.mxu0 %v1999
    %3703 = vmatpush1.bf16.msra.mxu0 %v1998
    %3704 = vmatprep.subr.bf16.mxu0 %v2015
    %3705 = vmatpush1.bf16.msra.mxu0 %v2014
    %3706 = vmatprep.subr.bf16.mxu0 %v2031
    %3707 = vmatpush1.bf16.msra.mxu0 %v2030
    %3708 = vmatprep.subr.bf16.mxu0 %v2047
    %3709 = vmatpush1.bf16.msra.mxu0 %v2046
    %3710 = vmatprep.subr.bf16.mxu0 %v2063
    %3711 = vmatpush1.bf16.msra.mxu0 %v2062
    %3712 = vmatprep.subr.bf16.mxu0 %v2079
    %3713 = vmatpush1.bf16.msra.mxu0 %v2078
    %3714 = vmatprep.subr.bf16.mxu0 %v2095
    %3715 = vmatpush1.bf16.msra.mxu0 %v2094
    %3716 = vmatprep.subr.bf16.mxu0 %v2111
    %3717 = vmatpush1.bf16.msra.mxu0 %v2110
    %3718 = vmatprep.subr.bf16.mxu0 %v2127
    %3719 = vmatpush1.bf16.msra.mxu0 %v2126
    %3720 = vmatprep.subr.bf16.mxu0 %v2143
    %3721 = vmatpush1.bf16.msra.mxu0 %v2142
    %3722 = vmatprep.subr.bf16.mxu0 %v2159
    %3723 = vmatpush1.bf16.msra.mxu0 %v2158
    %3724 = vmatprep.subr.bf16.mxu0 %v2175
    %3725 = vmatpush1.bf16.msra.mxu0 %v2174
    %3726 = vmatprep.subr.bf16.mxu0 %v2191
    %3727 = vmatpush1.bf16.msra.mxu0 %v2190
    %3728 = vmatprep.subr.bf16.mxu0 %v2207
    %3729 = vmatpush1.bf16.msra.mxu0 %v2206
    %3730 = vmatprep.subr.bf16.mxu0 %v2223
    %3731 = vmatpush1.bf16.msra.mxu0 %v2222
    %3732 = vmatprep.subr.bf16.mxu0 %v2239
    %3733 = vmatpush1.bf16.msra.mxu0 %v2238
    %3734 = vmatprep.mubr.bf16.mxu0 %v1467
    %3735 = vmatmul.mubr.bf16.gmra.mrb[0].mxu0 %v1466
    %v3736 = vpop.f32.mrb[0].mxu0
    %v3737 = vadd.f32 0.0, %v3736
    %v3738 = vpop.f32.mrb[0].mxu0
    %v3739 = vadd.f32 0.0, %v3738
    %v3740 = vpop.f32.mrb[0].mxu0
    %v3741 = vadd.f32 0.0, %v3740
    %v3742 = vpop.f32.mrb[0].mxu0
    %v3743 = vadd.f32 0.0, %v3742
    %3744 = vdwg.mxu0
    %3745 = vmatprep.subr.bf16.mxu0 %v2255
    %3746 = vmatpush1.bf16.msra.mxu0 %v2254
    %3747 = vmatprep.subr.bf16.mxu0 %v2271
    %3748 = vmatpush1.bf16.msra.mxu0 %v2270
    %3749 = vmatprep.subr.bf16.mxu0 %v2287
    %3750 = vmatpush1.bf16.msra.mxu0 %v2286
    %3751 = vmatprep.subr.bf16.mxu0 %v2303
    %3752 = vmatpush1.bf16.msra.mxu0 %v2302
    %3753 = vmatprep.subr.bf16.mxu0 %v2319
    %3754 = vmatpush1.bf16.msra.mxu0 %v2318
    %3755 = vmatprep.subr.bf16.mxu0 %v2335
    %3756 = vmatpush1.bf16.msra.mxu0 %v2334
    %3757 = vmatprep.subr.bf16.mxu0 %v2351
    %3758 = vmatpush1.bf16.msra.mxu0 %v2350
    %3759 = vmatprep.subr.bf16.mxu0 %v2367
    %3760 = vmatpush1.bf16.msra.mxu0 %v2366
    %3761 = vmatprep.subr.bf16.mxu0 %v2383
    %3762 = vmatpush1.bf16.msra.mxu0 %v2382
    %3763 = vmatprep.subr.bf16.mxu0 %v2399
    %3764 = vmatpush1.bf16.msra.mxu0 %v2398
    %3765 = vmatprep.subr.bf16.mxu0 %v2415
    %3766 = vmatpush1.bf16.msra.mxu0 %v2414
    %3767 = vmatprep.subr.bf16.mxu0 %v2431
    %3768 = vmatpush1.bf16.msra.mxu0 %v2430
    %3769 = vmatprep.subr.bf16.mxu0 %v2447
    %3770 = vmatpush1.bf16.msra.mxu0 %v2446
    %3771 = vmatprep.subr.bf16.mxu0 %v2463
    %3772 = vmatpush1.bf16.msra.mxu0 %v2462
    %3773 = vmatprep.subr.bf16.mxu0 %v2479
    %3774 = vmatpush1.bf16.msra.mxu0 %v2478
    %3775 = vmatprep.subr.bf16.mxu0 %v2495
    %3776 = vmatpush1.bf16.msra.mxu0 %v2494
    %3777 = vmatprep.mubr.bf16.mxu0 %v1469
    %3778 = vmatmul.mubr.bf16.gmra.mrb[0].mxu0 %v1468
    %v3779 = vpop.f32.mrb[0].mxu0
    %v3780 = vadd.f32 %v3737, %v3779
    %v3781 = vpop.f32.mrb[0].mxu0
    %v3782 = vadd.f32 %v3739, %v3781
    %v3783 = vpop.f32.mrb[0].mxu0
    %v3784 = vadd.f32 %v3741, %v3783
    %v3785 = vpop.f32.mrb[0].mxu0
    %v3786 = vadd.f32 %v3743, %v3785
    %3787 = vdwg.mxu0
    %3788 = vmatprep.subr.bf16.mxu0 %v2511
    %3789 = vmatpush1.bf16.msra.mxu0 %v2510
    %3790 = vmatprep.subr.bf16.mxu0 %v2527
    %3791 = vmatpush1.bf16.msra.mxu0 %v2526
    %3792 = vmatprep.subr.bf16.mxu0 %v2543
    %3793 = vmatpush1.bf16.msra.mxu0 %v2542
    %3794 = vmatprep.subr.bf16.mxu0 %v2559
    %3795 = vmatpush1.bf16.msra.mxu0 %v2558
    %3796 = vmatprep.subr.bf16.mxu0 %v2575
    %3797 = vmatpush1.bf16.msra.mxu0 %v2574
    %3798 = vmatprep.subr.bf16.mxu0 %v2591
    %3799 = vmatpush1.bf16.msra.mxu0 %v2590
    %3800 = vmatprep.subr.bf16.mxu0 %v2607
    %3801 = vmatpush1.bf16.msra.mxu0 %v2606
    %3802 = vmatprep.subr.bf16.mxu0 %v2623
    %3803 = vmatpush1.bf16.msra.mxu0 %v2622
    %3804 = vmatprep.subr.bf16.mxu0 %v2639
    %3805 = vmatpush1.bf16.msra.mxu0 %v2638
    %3806 = vmatprep.subr.bf16.mxu0 %v2655
    %3807 = vmatpush1.bf16.msra.mxu0 %v2654
    %3808 = vmatprep.subr.bf16.mxu0 %v2671
    %3809 = vmatpush1.bf16.msra.mxu0 %v2670
    %3810 = vmatprep.subr.bf16.mxu0 %v2687
    %3811 = vmatpush1.bf16.msra.mxu0 %v2686
    %3812 = vmatprep.subr.bf16.mxu0 %v2703
    %3813 = vmatpush1.bf16.msra.mxu0 %v2702
    %3814 = vmatprep.subr.bf16.mxu0 %v2719
    %3815 = vmatpush1.bf16.msra.mxu0 %v2718
    %3816 = vmatprep.subr.bf16.mxu0 %v2735
    %3817 = vmatpush1.bf16.msra.mxu0 %v2734
    %3818 = vmatprep.subr.bf16.mxu0 %v2751
    %3819 = vmatpush1.bf16.msra.mxu0 %v2750
    %3820 = vmatprep.mubr.bf16.mxu0 %v1471
    %3821 = vmatmul.mubr.bf16.gmra.mrb[0].mxu0 %v1470
    %v3822 = vpop.f32.mrb[0].mxu0
    %v3823 = vadd.f32 %v3780, %v3822
    %v3824 = vpop.f32.mrb[0].mxu0
    %v3825 = vadd.f32 %v3782, %v3824
    %v3826 = vpop.f32.mrb[0].mxu0
    %v3827 = vadd.f32 %v3784, %v3826
    %v3828 = vpop.f32.mrb[0].mxu0
    %v3829 = vadd.f32 %v3786, %v3828
    %3830 = vdwg.mxu0
    %3831 = vmatprep.subr.bf16.mxu0 %v2767
    %3832 = vmatpush1.bf16.msra.mxu0 %v2766
    %3833 = vmatprep.subr.bf16.mxu0 %v2783
    %3834 = vmatpush1.bf16.msra.mxu0 %v2782
    %3835 = vmatprep.subr.bf16.mxu0 %v2799
    %3836 = vmatpush1.bf16.msra.mxu0 %v2798
    %3837 = vmatprep.subr.bf16.mxu0 %v2815
    %3838 = vmatpush1.bf16.msra.mxu0 %v2814
    %3839 = vmatprep.subr.bf16.mxu0 %v2831
    %3840 = vmatpush1.bf16.msra.mxu0 %v2830
    %3841 = vmatprep.subr.bf16.mxu0 %v2847
    %3842 = vmatpush1.bf16.msra.mxu0 %v2846
    %3843 = vmatprep.subr.bf16.mxu0 %v2863
    %3844 = vmatpush1.bf16.msra.mxu0 %v2862
    %3845 = vmatprep.subr.bf16.mxu0 %v2879
    %3846 = vmatpush1.bf16.msra.mxu0 %v2878
    %3847 = vmatprep.subr.bf16.mxu0 %v2895
    %3848 = vmatpush1.bf16.msra.mxu0 %v2894
    %3849 = vmatprep.subr.bf16.mxu0 %v2911
    %3850 = vmatpush1.bf16.msra.mxu0 %v2910
    %3851 = vmatprep.subr.bf16.mxu0 %v2927
    %3852 = vmatpush1.bf16.msra.mxu0 %v2926
    %3853 = vmatprep.subr.bf16.mxu0 %v2943
    %3854 = vmatpush1.bf16.msra.mxu0 %v2942
    %3855 = vmatprep.subr.bf16.mxu0 %v2959
    %3856 = vmatpush1.bf16.msra.mxu0 %v2958
    %3857 = vmatprep.subr.bf16.mxu0 %v2975
    %3858 = vmatpush1.bf16.msra.mxu0 %v2974
    %3859 = vmatprep.subr.bf16.mxu0 %v2991
    %3860 = vmatpush1.bf16.msra.mxu0 %v2990
    %3861 = vmatprep.subr.bf16.mxu0 %v3007
    %3862 = vmatpush1.bf16.msra.mxu0 %v3006
    %3863 = vmatprep.mubr.bf16.mxu0 %v1473
    %3864 = vmatmul.mubr.bf16.gmra.mrb[0].mxu0 %v1472
    %v3865 = vpop.f32.mrb[0].mxu0
    %v3866 = vadd.f32 %v3823, %v3865
    %v3867 = vpop.f32.mrb[0].mxu0
    %v3868 = vadd.f32 %v3825, %v3867
    %v3869 = vpop.f32.mrb[0].mxu0
    %v3870 = vadd.f32 %v3827, %v3869
    %v3871 = vpop.f32.mrb[0].mxu0
    %v3872 = vadd.f32 %v3829, %v3871
    %3873 = vdwg.mxu0
    %3874 = vmatprep.subr.bf16.mxu0 %v2001
    %3875 = vmatpush1.bf16.msra.mxu0 %v2000
    %3876 = vmatprep.subr.bf16.mxu0 %v2017
    %3877 = vmatpush1.bf16.msra.mxu0 %v2016
    %3878 = vmatprep.subr.bf16.mxu0 %v2033
    %3879 = vmatpush1.bf16.msra.mxu0 %v2032
    %3880 = vmatprep.subr.bf16.mxu0 %v2049
    %3881 = vmatpush1.bf16.msra.mxu0 %v2048
    %3882 = vmatprep.subr.bf16.mxu0 %v2065
    %3883 = vmatpush1.bf16.msra.mxu0 %v2064
    %3884 = vmatprep.subr.bf16.mxu0 %v2081
    %3885 = vmatpush1.bf16.msra.mxu0 %v2080
    %3886 = vmatprep.subr.bf16.mxu0 %v2097
    %3887 = vmatpush1.bf16.msra.mxu0 %v2096
    %3888 = vmatprep.subr.bf16.mxu0 %v2113
    %3889 = vmatpush1.bf16.msra.mxu0 %v2112
    %3890 = vmatprep.subr.bf16.mxu0 %v2129
    %3891 = vmatpush1.bf16.msra.mxu0 %v2128
    %3892 = vmatprep.subr.bf16.mxu0 %v2145
    %3893 = vmatpush1.bf16.msra.mxu0 %v2144
    %3894 = vmatprep.subr.bf16.mxu0 %v2161
    %3895 = vmatpush1.bf16.msra.mxu0 %v2160
    %3896 = vmatprep.subr.bf16.mxu0 %v2177
    %3897 = vmatpush1.bf16.msra.mxu0 %v2176
    %3898 = vmatprep.subr.bf16.mxu0 %v2193
    %3899 = vmatpush1.bf16.msra.mxu0 %v2192
    %3900 = vmatprep.subr.bf16.mxu0 %v2209
    %3901 = vmatpush1.bf16.msra.mxu0 %v2208
    %3902 = vmatprep.subr.bf16.mxu0 %v2225
    %3903 = vmatpush1.bf16.msra.mxu0 %v2224
    %3904 = vmatprep.subr.bf16.mxu0 %v2241
    %3905 = vmatpush1.bf16.msra.mxu0 %v2240
    %3906 = vmatprep.mubr.bf16.mxu0 %v1467
    %3907 = vmatmul.mubr.bf16.gmra.mrb[0].mxu0 %v1466
    %v3908 = vpop.f32.mrb[0].mxu0
    %v3909 = vadd.f32 0.0, %v3908
    %v3910 = vpop.f32.mrb[0].mxu0
    %v3911 = vadd.f32 0.0, %v3910
    %v3912 = vpop.f32.mrb[0].mxu0
    %v3913 = vadd.f32 0.0, %v3912
    %v3914 = vpop.f32.mrb[0].mxu0
    %v3915 = vadd.f32 0.0, %v3914
    %3916 = vdwg.mxu0
    %3917 = vmatprep.subr.bf16.mxu0 %v2257
    %3918 = vmatpush1.bf16.msra.mxu0 %v2256
    %3919 = vmatprep.subr.bf16.mxu0 %v2273
    %3920 = vmatpush1.bf16.msra.mxu0 %v2272
    %3921 = vmatprep.subr.bf16.mxu0 %v2289
    %3922 = vmatpush1.bf16.msra.mxu0 %v2288
    %3923 = vmatprep.subr.bf16.mxu0 %v2305
    %3924 = vmatpush1.bf16.msra.mxu0 %v2304
    %3925 = vmatprep.subr.bf16.mxu0 %v2321
    %3926 = vmatpush1.bf16.msra.mxu0 %v2320
    %3927 = vmatprep.subr.bf16.mxu0 %v2337
    %3928 = vmatpush1.bf16.msra.mxu0 %v2336
    %3929 = vmatprep.subr.bf16.mxu0 %v2353
    %3930 = vmatpush1.bf16.msra.mxu0 %v2352
    %3931 = vmatprep.subr.bf16.mxu0 %v2369
    %3932 = vmatpush1.bf16.msra.mxu0 %v2368
    %3933 = vmatprep.subr.bf16.mxu0 %v2385
    %3934 = vmatpush1.bf16.msra.mxu0 %v2384
    %3935 = vmatprep.subr.bf16.mxu0 %v2401
    %3936 = vmatpush1.bf16.msra.mxu0 %v2400
    %3937 = vmatprep.subr.bf16.mxu0 %v2417
    %3938 = vmatpush1.bf16.msra.mxu0 %v2416
    %3939 = vmatprep.subr.bf16.mxu0 %v2433
    %3940 = vmatpush1.bf16.msra.mxu0 %v2432
    %3941 = vmatprep.subr.bf16.mxu0 %v2449
    %3942 = vmatpush1.bf16.msra.mxu0 %v2448
    %3943 = vmatprep.subr.bf16.mxu0 %v2465
    %3944 = vmatpush1.bf16.msra.mxu0 %v2464
    %3945 = vmatprep.subr.bf16.mxu0 %v2481
    %3946 = vmatpush1.bf16.msra.mxu0 %v2480
    %3947 = vmatprep.subr.bf16.mxu0 %v2497
    %3948 = vmatpush1.bf16.msra.mxu0 %v2496
    %3949 = vmatprep.mubr.bf16.mxu0 %v1469
    %3950 = vmatmul.mubr.bf16.gmra.mrb[0].mxu0 %v1468
    %v3951 = vpop.f32.mrb[0].mxu0
    %v3952 = vadd.f32 %v3909, %v3951
    %v3953 = vpop.f32.mrb[0].mxu0
    %v3954 = vadd.f32 %v3911, %v3953
    %v3955 = vpop.f32.mrb[0].mxu0
    %v3956 = vadd.f32 %v3913, %v3955
    %v3957 = vpop.f32.mrb[0].mxu0
    %v3958 = vadd.f32 %v3915, %v3957
    %3959 = vdwg.mxu0
    %3960 = vmatprep.subr.bf16.mxu0 %v2513
    %3961 = vmatpush1.bf16.msra.mxu0 %v2512
    %3962 = vmatprep.subr.bf16.mxu0 %v2529
    %3963 = vmatpush1.bf16.msra.mxu0 %v2528
    %3964 = vmatprep.subr.bf16.mxu0 %v2545
    %3965 = vmatpush1.bf16.msra.mxu0 %v2544
    %3966 = vmatprep.subr.bf16.mxu0 %v2561
    %3967 = vmatpush1.bf16.msra.mxu0 %v2560
    %3968 = vmatprep.subr.bf16.mxu0 %v2577
    %3969 = vmatpush1.bf16.msra.mxu0 %v2576
    %3970 = vmatprep.subr.bf16.mxu0 %v2593
    %3971 = vmatpush1.bf16.msra.mxu0 %v2592
    %3972 = vmatprep.subr.bf16.mxu0 %v2609
    %3973 = vmatpush1.bf16.msra.mxu0 %v2608
    %3974 = vmatprep.subr.bf16.mxu0 %v2625
    %3975 = vmatpush1.bf16.msra.mxu0 %v2624
    %3976 = vmatprep.subr.bf16.mxu0 %v2641
    %3977 = vmatpush1.bf16.msra.mxu0 %v2640
    %3978 = vmatprep.subr.bf16.mxu0 %v2657
    %3979 = vmatpush1.bf16.msra.mxu0 %v2656
    %3980 = vmatprep.subr.bf16.mxu0 %v2673
    %3981 = vmatpush1.bf16.msra.mxu0 %v2672
    %3982 = vmatprep.subr.bf16.mxu0 %v2689
    %3983 = vmatpush1.bf16.msra.mxu0 %v2688
    %3984 = vmatprep.subr.bf16.mxu0 %v2705
    %3985 = vmatpush1.bf16.msra.mxu0 %v2704
    %3986 = vmatprep.subr.bf16.mxu0 %v2721
    %3987 = vmatpush1.bf16.msra.mxu0 %v2720
    %3988 = vmatprep.subr.bf16.mxu0 %v2737
    %3989 = vmatpush1.bf16.msra.mxu0 %v2736
    %3990 = vmatprep.subr.bf16.mxu0 %v2753
    %3991 = vmatpush1.bf16.msra.mxu0 %v2752
    %3992 = vmatprep.mubr.bf16.mxu0 %v1471
    %3993 = vmatmul.mubr.bf16.gmra.mrb[0].mxu0 %v1470
    %v3994 = vpop.f32.mrb[0].mxu0
    %v3995 = vadd.f32 %v3952, %v3994
    %v3996 = vpop.f32.mrb[0].mxu0
    %v3997 = vadd.f32 %v3954, %v3996
    %v3998 = vpop.f32.mrb[0].mxu0
    %v3999 = vadd.f32 %v3956, %v3998
    %v4000 = vpop.f32.mrb[0].mxu0
    %v4001 = vadd.f32 %v3958, %v4000
    %4002 = vdwg.mxu0
    %4003 = vmatprep.subr.bf16.mxu0 %v2769
    %4004 = vmatpush1.bf16.msra.mxu0 %v2768
    %4005 = vmatprep.subr.bf16.mxu0 %v2785
    %4006 = vmatpush1.bf16.msra.mxu0 %v2784
    %4007 = vmatprep.subr.bf16.mxu0 %v2801
    %4008 = vmatpush1.bf16.msra.mxu0 %v2800
    %4009 = vmatprep.subr.bf16.mxu0 %v2817
    %4010 = vmatpush1.bf16.msra.mxu0 %v2816
    %4011 = vmatprep.subr.bf16.mxu0 %v2833
    %4012 = vmatpush1.bf16.msra.mxu0 %v2832
    %4013 = vmatprep.subr.bf16.mxu0 %v2849
    %4014 = vmatpush1.bf16.msra.mxu0 %v2848
    %4015 = vmatprep.subr.bf16.mxu0 %v2865
    %4016 = vmatpush1.bf16.msra.mxu0 %v2864
    %4017 = vmatprep.subr.bf16.mxu0 %v2881
    %4018 = vmatpush1.bf16.msra.mxu0 %v2880
    %4019 = vmatprep.subr.bf16.mxu0 %v2897
    %4020 = vmatpush1.bf16.msra.mxu0 %v2896
    %4021 = vmatprep.subr.bf16.mxu0 %v2913
    %4022 = vmatpush1.bf16.msra.mxu0 %v2912
    %4023 = vmatprep.subr.bf16.mxu0 %v2929
    %4024 = vmatpush1.bf16.msra.mxu0 %v2928
    %4025 = vmatprep.subr.bf16.mxu0 %v2945
    %4026 = vmatpush1.bf16.msra.mxu0 %v2944
    %4027 = vmatprep.subr.bf16.mxu0 %v2961
    %4028 = vmatpush1.bf16.msra.mxu0 %v2960
    %4029 = vmatprep.subr.bf16.mxu0 %v2977
    %4030 = vmatpush1.bf16.msra.mxu0 %v2976
    %4031 = vmatprep.subr.bf16.mxu0 %v2993
    %4032 = vmatpush1.bf16.msra.mxu0 %v2992
    %4033 = vmatprep.subr.bf16.mxu0 %v3009
    %4034 = vmatpush1.bf16.msra.mxu0 %v3008
    %4035 = vmatprep.mubr.bf16.mxu0 %v1473
    %4036 = vmatmul.mubr.bf16.gmra.mrb[0].mxu0 %v1472
    %v4037 = vpop.f32.mrb[0].mxu0
    %v4038 = vadd.f32 %v3995, %v4037
    %v4039 = vpop.f32.mrb[0].mxu0
    %v4040 = vadd.f32 %v3997, %v4039
    %v4041 = vpop.f32.mrb[0].mxu0
    %v4042 = vadd.f32 %v3999, %v4041
    %v4043 = vpop.f32.mrb[0].mxu0
    %v4044 = vadd.f32 %v4001, %v4043
    %4045 = vdwg.mxu0
    %4046 = vmatprep.subr.bf16.mxu0 %v2003
    %4047 = vmatpush1.bf16.msra.mxu0 %v2002
    %4048 = vmatprep.subr.bf16.mxu0 %v2019
    %4049 = vmatpush1.bf16.msra.mxu0 %v2018
    %4050 = vmatprep.subr.bf16.mxu0 %v2035
    %4051 = vmatpush1.bf16.msra.mxu0 %v2034
    %4052 = vmatprep.subr.bf16.mxu0 %v2051
    %4053 = vmatpush1.bf16.msra.mxu0 %v2050
    %4054 = vmatprep.subr.bf16.mxu0 %v2067
    %4055 = vmatpush1.bf16.msra.mxu0 %v2066
    %4056 = vmatprep.subr.bf16.mxu0 %v2083
    %4057 = vmatpush1.bf16.msra.mxu0 %v2082
    %4058 = vmatprep.subr.bf16.mxu0 %v2099
    %4059 = vmatpush1.bf16.msra.mxu0 %v2098
    %4060 = vmatprep.subr.bf16.mxu0 %v2115
    %4061 = vmatpush1.bf16.msra.mxu0 %v2114
    %4062 = vmatprep.subr.bf16.mxu0 %v2131
    %4063 = vmatpush1.bf16.msra.mxu0 %v2130
    %4064 = vmatprep.subr.bf16.mxu0 %v2147
    %4065 = vmatpush1.bf16.msra.mxu0 %v2146
    %4066 = vmatprep.subr.bf16.mxu0 %v2163
    %4067 = vmatpush1.bf16.msra.mxu0 %v2162
    %4068 = vmatprep.subr.bf16.mxu0 %v2179
    %4069 = vmatpush1.bf16.msra.mxu0 %v2178
    %4070 = vmatprep.subr.bf16.mxu0 %v2195
    %4071 = vmatpush1.bf16.msra.mxu0 %v2194
    %4072 = vmatprep.subr.bf16.mxu0 %v2211
    %4073 = vmatpush1.bf16.msra.mxu0 %v2210
    %4074 = vmatprep.subr.bf16.mxu0 %v2227
    %4075 = vmatpush1.bf16.msra.mxu0 %v2226
    %4076 = vmatprep.subr.bf16.mxu0 %v2243
    %4077 = vmatpush1.bf16.msra.mxu0 %v2242
    %4078 = vmatprep.mubr.bf16.mxu0 %v1467
    %4079 = vmatmul.mubr.bf16.gmra.mrb[0].mxu0 %v1466
    %v4080 = vpop.f32.mrb[0].mxu0
    %v4081 = vadd.f32 0.0, %v4080
    %v4082 = vpop.f32.mrb[0].mxu0
    %v4083 = vadd.f32 0.0, %v4082
    %v4084 = vpop.f32.mrb[0].mxu0
    %v4085 = vadd.f32 0.0, %v4084
    %v4086 = vpop.f32.mrb[0].mxu0
    %v4087 = vadd.f32 0.0, %v4086
    %4088 = vdwg.mxu0
    %4089 = vmatprep.subr.bf16.mxu0 %v2259
    %4090 = vmatpush1.bf16.msra.mxu0 %v2258
    %4091 = vmatprep.subr.bf16.mxu0 %v2275
    %4092 = vmatpush1.bf16.msra.mxu0 %v2274
    %4093 = vmatprep.subr.bf16.mxu0 %v2291
    %4094 = vmatpush1.bf16.msra.mxu0 %v2290
    %4095 = vmatprep.subr.bf16.mxu0 %v2307
    %4096 = vmatpush1.bf16.msra.mxu0 %v2306
    %4097 = vmatprep.subr.bf16.mxu0 %v2323
    %4098 = vmatpush1.bf16.msra.mxu0 %v2322
    %4099 = vmatprep.subr.bf16.mxu0 %v2339
    %4100 = vmatpush1.bf16.msra.mxu0 %v2338
    %4101 = vmatprep.subr.bf16.mxu0 %v2355
    %4102 = vmatpush1.bf16.msra.mxu0 %v2354
    %4103 = vmatprep.subr.bf16.mxu0 %v2371
    %4104 = vmatpush1.bf16.msra.mxu0 %v2370
    %4105 = vmatprep.subr.bf16.mxu0 %v2387
    %4106 = vmatpush1.bf16.msra.mxu0 %v2386
    %4107 = vmatprep.subr.bf16.mxu0 %v2403
    %4108 = vmatpush1.bf16.msra.mxu0 %v2402
    %4109 = vmatprep.subr.bf16.mxu0 %v2419
    %4110 = vmatpush1.bf16.msra.mxu0 %v2418
    %4111 = vmatprep.subr.bf16.mxu0 %v2435
    %4112 = vmatpush1.bf16.msra.mxu0 %v2434
    %4113 = vmatprep.subr.bf16.mxu0 %v2451
    %4114 = vmatpush1.bf16.msra.mxu0 %v2450
    %4115 = vmatprep.subr.bf16.mxu0 %v2467
    %4116 = vmatpush1.bf16.msra.mxu0 %v2466
    %4117 = vmatprep.subr.bf16.mxu0 %v2483
    %4118 = vmatpush1.bf16.msra.mxu0 %v2482
    %4119 = vmatprep.subr.bf16.mxu0 %v2499
    %4120 = vmatpush1.bf16.msra.mxu0 %v2498
    %4121 = vmatprep.mubr.bf16.mxu0 %v1469
    %4122 = vmatmul.mubr.bf16.gmra.mrb[0].mxu0 %v1468
    %v4123 = vpop.f32.mrb[0].mxu0
    %v4124 = vadd.f32 %v4081, %v4123
    %v4125 = vpop.f32.mrb[0].mxu0
    %v4126 = vadd.f32 %v4083, %v4125
    %v4127 = vpop.f32.mrb[0].mxu0
    %v4128 = vadd.f32 %v4085, %v4127
    %v4129 = vpop.f32.mrb[0].mxu0
    %v4130 = vadd.f32 %v4087, %v4129
    %4131 = vdwg.mxu0
    %4132 = vmatprep.subr.bf16.mxu0 %v2515
    %4133 = vmatpush1.bf16.msra.mxu0 %v2514
    %4134 = vmatprep.subr.bf16.mxu0 %v2531
    %4135 = vmatpush1.bf16.msra.mxu0 %v2530
    %4136 = vmatprep.subr.bf16.mxu0 %v2547
    %4137 = vmatpush1.bf16.msra.mxu0 %v2546
    %4138 = vmatprep.subr.bf16.mxu0 %v2563
    %4139 = vmatpush1.bf16.msra.mxu0 %v2562
    %4140 = vmatprep.subr.bf16.mxu0 %v2579
    %4141 = vmatpush1.bf16.msra.mxu0 %v2578
    %4142 = vmatprep.subr.bf16.mxu0 %v2595
    %4143 = vmatpush1.bf16.msra.mxu0 %v2594
    %4144 = vmatprep.subr.bf16.mxu0 %v2611
    %4145 = vmatpush1.bf16.msra.mxu0 %v2610
    %4146 = vmatprep.subr.bf16.mxu0 %v2627
    %4147 = vmatpush1.bf16.msra.mxu0 %v2626
    %4148 = vmatprep.subr.bf16.mxu0 %v2643
    %4149 = vmatpush1.bf16.msra.mxu0 %v2642
    %4150 = vmatprep.subr.bf16.mxu0 %v2659
    %4151 = vmatpush1.bf16.msra.mxu0 %v2658
    %4152 = vmatprep.subr.bf16.mxu0 %v2675
    %4153 = vmatpush1.bf16.msra.mxu0 %v2674
    %4154 = vmatprep.subr.bf16.mxu0 %v2691
    %4155 = vmatpush1.bf16.msra.mxu0 %v2690
    %4156 = vmatprep.subr.bf16.mxu0 %v2707
    %4157 = vmatpush1.bf16.msra.mxu0 %v2706
    %4158 = vmatprep.subr.bf16.mxu0 %v2723
    %4159 = vmatpush1.bf16.msra.mxu0 %v2722
    %4160 = vmatprep.subr.bf16.mxu0 %v2739
    %4161 = vmatpush1.bf16.msra.mxu0 %v2738
    %4162 = vmatprep.subr.bf16.mxu0 %v2755
    %4163 = vmatpush1.bf16.msra.mxu0 %v2754
    %4164 = vmatprep.mubr.bf16.mxu0 %v1471
    %4165 = vmatmul.mubr.bf16.gmra.mrb[0].mxu0 %v1470
    %v4166 = vpop.f32.mrb[0].mxu0
    %v4167 = vadd.f32 %v4124, %v4166
    %v4168 = vpop.f32.mrb[0].mxu0
    %v4169 = vadd.f32 %v4126, %v4168
    %v4170 = vpop.f32.mrb[0].mxu0
    %v4171 = vadd.f32 %v4128, %v4170
    %v4172 = vpop.f32.mrb[0].mxu0
    %v4173 = vadd.f32 %v4130, %v4172
    %4174 = vdwg.mxu0
    %4175 = vmatprep.subr.bf16.mxu0 %v2771
    %4176 = vmatpush1.bf16.msra.mxu0 %v2770
    %4177 = vmatprep.subr.bf16.mxu0 %v2787
    %4178 = vmatpush1.bf16.msra.mxu0 %v2786
    %4179 = vmatprep.subr.bf16.mxu0 %v2803
    %4180 = vmatpush1.bf16.msra.mxu0 %v2802
    %4181 = vmatprep.subr.bf16.mxu0 %v2819
    %4182 = vmatpush1.bf16.msra.mxu0 %v2818
    %4183 = vmatprep.subr.bf16.mxu0 %v2835
    %4184 = vmatpush1.bf16.msra.mxu0 %v2834
    %4185 = vmatprep.subr.bf16.mxu0 %v2851
    %4186 = vmatpush1.bf16.msra.mxu0 %v2850
    %4187 = vmatprep.subr.bf16.mxu0 %v2867
    %4188 = vmatpush1.bf16.msra.mxu0 %v2866
    %4189 = vmatprep.subr.bf16.mxu0 %v2883
    %4190 = vmatpush1.bf16.msra.mxu0 %v2882
    %4191 = vmatprep.subr.bf16.mxu0 %v2899
    %4192 = vmatpush1.bf16.msra.mxu0 %v2898
    %4193 = vmatprep.subr.bf16.mxu0 %v2915
    %4194 = vmatpush1.bf16.msra.mxu0 %v2914
    %4195 = vmatprep.subr.bf16.mxu0 %v2931
    %4196 = vmatpush1.bf16.msra.mxu0 %v2930
    %4197 = vmatprep.subr.bf16.mxu0 %v2947
    %4198 = vmatpush1.bf16.msra.mxu0 %v2946
    %4199 = vmatprep.subr.bf16.mxu0 %v2963
    %4200 = vmatpush1.bf16.msra.mxu0 %v2962
    %4201 = vmatprep.subr.bf16.mxu0 %v2979
    %4202 = vmatpush1.bf16.msra.mxu0 %v2978
    %4203 = vmatprep.subr.bf16.mxu0 %v2995
    %4204 = vmatpush1.bf16.msra.mxu0 %v2994
    %4205 = vmatprep.subr.bf16.mxu0 %v3011
    %4206 = vmatpush1.bf16.msra.mxu0 %v3010
    %4207 = vmatprep.mubr.bf16.mxu0 %v1473
    %4208 = vmatmul.mubr.bf16.gmra.mrb[0].mxu0 %v1472
    %v4209 = vpop.f32.mrb[0].mxu0
    %v4210 = vadd.f32 %v4167, %v4209
    %v4211 = vpop.f32.mrb[0].mxu0
    %v4212 = vadd.f32 %v4169, %v4211
    %v4213 = vpop.f32.mrb[0].mxu0
    %v4214 = vadd.f32 %v4171, %v4213
    %v4215 = vpop.f32.mrb[0].mxu0
    %v4216 = vadd.f32 %v4173, %v4215
    %4217 = vdwg.mxu0
    %4218 = vmatprep.subr.bf16.mxu0 %v2005
    %4219 = vmatpush1.bf16.msra.mxu0 %v2004
    %4220 = vmatprep.subr.bf16.mxu0 %v2021
    %4221 = vmatpush1.bf16.msra.mxu0 %v2020
    %4222 = vmatprep.subr.bf16.mxu0 %v2037
    %4223 = vmatpush1.bf16.msra.mxu0 %v2036
    %4224 = vmatprep.subr.bf16.mxu0 %v2053
    %4225 = vmatpush1.bf16.msra.mxu0 %v2052
    %4226 = vmatprep.subr.bf16.mxu0 %v2069
    %4227 = vmatpush1.bf16.msra.mxu0 %v2068
    %4228 = vmatprep.subr.bf16.mxu0 %v2085
    %4229 = vmatpush1.bf16.msra.mxu0 %v2084
    %4230 = vmatprep.subr.bf16.mxu0 %v2101
    %4231 = vmatpush1.bf16.msra.mxu0 %v2100
    %4232 = vmatprep.subr.bf16.mxu0 %v2117
    %4233 = vmatpush1.bf16.msra.mxu0 %v2116
    %4234 = vmatprep.subr.bf16.mxu0 %v2133
    %4235 = vmatpush1.bf16.msra.mxu0 %v2132
    %4236 = vmatprep.subr.bf16.mxu0 %v2149
    %4237 = vmatpush1.bf16.msra.mxu0 %v2148
    %4238 = vmatprep.subr.bf16.mxu0 %v2165
    %4239 = vmatpush1.bf16.msra.mxu0 %v2164
    %4240 = vmatprep.subr.bf16.mxu0 %v2181
    %4241 = vmatpush1.bf16.msra.mxu0 %v2180
    %4242 = vmatprep.subr.bf16.mxu0 %v2197
    %4243 = vmatpush1.bf16.msra.mxu0 %v2196
    %4244 = vmatprep.subr.bf16.mxu0 %v2213
    %4245 = vmatpush1.bf16.msra.mxu0 %v2212
    %4246 = vmatprep.subr.bf16.mxu0 %v2229
    %4247 = vmatpush1.bf16.msra.mxu0 %v2228
    %4248 = vmatprep.subr.bf16.mxu0 %v2245
    %4249 = vmatpush1.bf16.msra.mxu0 %v2244
    %4250 = vmatprep.mubr.bf16.mxu0 %v1467
    %4251 = vmatmul.mubr.bf16.gmra.mrb[0].mxu0 %v1466
    %v4252 = vpop.f32.mrb[0].mxu0
    %v4253 = vadd.f32 0.0, %v4252
    %v4254 = vpop.f32.mrb[0].mxu0
    %v4255 = vadd.f32 0.0, %v4254
    %v4256 = vpop.f32.mrb[0].mxu0
    %v4257 = vadd.f32 0.0, %v4256
    %v4258 = vpop.f32.mrb[0].mxu0
    %v4259 = vadd.f32 0.0, %v4258
    %4260 = vdwg.mxu0
    %4261 = vmatprep.subr.bf16.mxu0 %v2261
    %4262 = vmatpush1.bf16.msra.mxu0 %v2260
    %4263 = vmatprep.subr.bf16.mxu0 %v2277
    %4264 = vmatpush1.bf16.msra.mxu0 %v2276
    %4265 = vmatprep.subr.bf16.mxu0 %v2293
    %4266 = vmatpush1.bf16.msra.mxu0 %v2292
    %4267 = vmatprep.subr.bf16.mxu0 %v2309
    %4268 = vmatpush1.bf16.msra.mxu0 %v2308
    %4269 = vmatprep.subr.bf16.mxu0 %v2325
    %4270 = vmatpush1.bf16.msra.mxu0 %v2324
    %4271 = vmatprep.subr.bf16.mxu0 %v2341
    %4272 = vmatpush1.bf16.msra.mxu0 %v2340
    %4273 = vmatprep.subr.bf16.mxu0 %v2357
    %4274 = vmatpush1.bf16.msra.mxu0 %v2356
    %4275 = vmatprep.subr.bf16.mxu0 %v2373
    %4276 = vmatpush1.bf16.msra.mxu0 %v2372
    %4277 = vmatprep.subr.bf16.mxu0 %v2389
    %4278 = vmatpush1.bf16.msra.mxu0 %v2388
    %4279 = vmatprep.subr.bf16.mxu0 %v2405
    %4280 = vmatpush1.bf16.msra.mxu0 %v2404
    %4281 = vmatprep.subr.bf16.mxu0 %v2421
    %4282 = vmatpush1.bf16.msra.mxu0 %v2420
    %4283 = vmatprep.subr.bf16.mxu0 %v2437
    %4284 = vmatpush1.bf16.msra.mxu0 %v2436
    %4285 = vmatprep.subr.bf16.mxu0 %v2453
    %4286 = vmatpush1.bf16.msra.mxu0 %v2452
    %4287 = vmatprep.subr.bf16.mxu0 %v2469
    %4288 = vmatpush1.bf16.msra.mxu0 %v2468
    %4289 = vmatprep.subr.bf16.mxu0 %v2485
    %4290 = vmatpush1.bf16.msra.mxu0 %v2484
    %4291 = vmatprep.subr.bf16.mxu0 %v2501
    %4292 = vmatpush1.bf16.msra.mxu0 %v2500
    %4293 = vmatprep.mubr.bf16.mxu0 %v1469
    %4294 = vmatmul.mubr.bf16.gmra.mrb[0].mxu0 %v1468
    %v4295 = vpop.f32.mrb[0].mxu0
    %v4296 = vadd.f32 %v4253, %v4295
    %v4297 = vpop.f32.mrb[0].mxu0
    %v4298 = vadd.f32 %v4255, %v4297
    %v4299 = vpop.f32.mrb[0].mxu0
    %v4300 = vadd.f32 %v4257, %v4299
    %v4301 = vpop.f32.mrb[0].mxu0
    %v4302 = vadd.f32 %v4259, %v4301
    %4303 = vdwg.mxu0
    %4304 = vmatprep.subr.bf16.mxu0 %v2517
    %4305 = vmatpush1.bf16.msra.mxu0 %v2516
    %4306 = vmatprep.subr.bf16.mxu0 %v2533
    %4307 = vmatpush1.bf16.msra.mxu0 %v2532
    %4308 = vmatprep.subr.bf16.mxu0 %v2549
    %4309 = vmatpush1.bf16.msra.mxu0 %v2548
    %4310 = vmatprep.subr.bf16.mxu0 %v2565
    %4311 = vmatpush1.bf16.msra.mxu0 %v2564
    %4312 = vmatprep.subr.bf16.mxu0 %v2581
    %4313 = vmatpush1.bf16.msra.mxu0 %v2580
    %4314 = vmatprep.subr.bf16.mxu0 %v2597
    %4315 = vmatpush1.bf16.msra.mxu0 %v2596
    %4316 = vmatprep.subr.bf16.mxu0 %v2613
    %4317 = vmatpush1.bf16.msra.mxu0 %v2612
    %4318 = vmatprep.subr.bf16.mxu0 %v2629
    %4319 = vmatpush1.bf16.msra.mxu0 %v2628
    %4320 = vmatprep.subr.bf16.mxu0 %v2645
    %4321 = vmatpush1.bf16.msra.mxu0 %v2644
    %4322 = vmatprep.subr.bf16.mxu0 %v2661
    %4323 = vmatpush1.bf16.msra.mxu0 %v2660
    %4324 = vmatprep.subr.bf16.mxu0 %v2677
    %4325 = vmatpush1.bf16.msra.mxu0 %v2676
    %4326 = vmatprep.subr.bf16.mxu0 %v2693
    %4327 = vmatpush1.bf16.msra.mxu0 %v2692
    %4328 = vmatprep.subr.bf16.mxu0 %v2709
    %4329 = vmatpush1.bf16.msra.mxu0 %v2708
    %4330 = vmatprep.subr.bf16.mxu0 %v2725
    %4331 = vmatpush1.bf16.msra.mxu0 %v2724
    %4332 = vmatprep.subr.bf16.mxu0 %v2741
    %4333 = vmatpush1.bf16.msra.mxu0 %v2740
    %4334 = vmatprep.subr.bf16.mxu0 %v2757
    %4335 = vmatpush1.bf16.msra.mxu0 %v2756
    %4336 = vmatprep.mubr.bf16.mxu0 %v1471
    %4337 = vmatmul.mubr.bf16.gmra.mrb[0].mxu0 %v1470
    %v4338 = vpop.f32.mrb[0].mxu0
    %v4339 = vadd.f32 %v4296, %v4338
    %v4340 = vpop.f32.mrb[0].mxu0
    %v4341 = vadd.f32 %v4298, %v4340
    %v4342 = vpop.f32.mrb[0].mxu0
    %v4343 = vadd.f32 %v4300, %v4342
    %v4344 = vpop.f32.mrb[0].mxu0
    %v4345 = vadd.f32 %v4302, %v4344
    %4346 = vdwg.mxu0
    %4347 = vmatprep.subr.bf16.mxu0 %v2773
    %4348 = vmatpush1.bf16.msra.mxu0 %v2772
    %4349 = vmatprep.subr.bf16.mxu0 %v2789
    %4350 = vmatpush1.bf16.msra.mxu0 %v2788
    %4351 = vmatprep.subr.bf16.mxu0 %v2805
    %4352 = vmatpush1.bf16.msra.mxu0 %v2804
    %4353 = vmatprep.subr.bf16.mxu0 %v2821
    %4354 = vmatpush1.bf16.msra.mxu0 %v2820
    %4355 = vmatprep.subr.bf16.mxu0 %v2837
    %4356 = vmatpush1.bf16.msra.mxu0 %v2836
    %4357 = vmatprep.subr.bf16.mxu0 %v2853
    %4358 = vmatpush1.bf16.msra.mxu0 %v2852
    %4359 = vmatprep.subr.bf16.mxu0 %v2869
    %4360 = vmatpush1.bf16.msra.mxu0 %v2868
    %4361 = vmatprep.subr.bf16.mxu0 %v2885
    %4362 = vmatpush1.bf16.msra.mxu0 %v2884
    %4363 = vmatprep.subr.bf16.mxu0 %v2901
    %4364 = vmatpush1.bf16.msra.mxu0 %v2900
    %4365 = vmatprep.subr.bf16.mxu0 %v2917
    %4366 = vmatpush1.bf16.msra.mxu0 %v2916
    %4367 = vmatprep.subr.bf16.mxu0 %v2933
    %4368 = vmatpush1.bf16.msra.mxu0 %v2932
    %4369 = vmatprep.subr.bf16.mxu0 %v2949
    %4370 = vmatpush1.bf16.msra.mxu0 %v2948
    %4371 = vmatprep.subr.bf16.mxu0 %v2965
    %4372 = vmatpush1.bf16.msra.mxu0 %v2964
    %4373 = vmatprep.subr.bf16.mxu0 %v2981
    %4374 = vmatpush1.bf16.msra.mxu0 %v2980
    %4375 = vmatprep.subr.bf16.mxu0 %v2997
    %4376 = vmatpush1.bf16.msra.mxu0 %v2996
    %4377 = vmatprep.subr.bf16.mxu0 %v3013
    %4378 = vmatpush1.bf16.msra.mxu0 %v3012
    %4379 = vmatprep.mubr.bf16.mxu0 %v1473
    %4380 = vmatmul.mubr.bf16.gmra.mrb[0].mxu0 %v1472
    %v4381 = vpop.f32.mrb[0].mxu0
    %v4382 = vadd.f32 %v4339, %v4381
    %v4383 = vpop.f32.mrb[0].mxu0
    %v4384 = vadd.f32 %v4341, %v4383
    %v4385 = vpop.f32.mrb[0].mxu0
    %v4386 = vadd.f32 %v4343, %v4385
    %v4387 = vpop.f32.mrb[0].mxu0
    %v4388 = vadd.f32 %v4345, %v4387
    %4389 = vdwg.mxu0
    %s4390 = scalar_lea.vmem [#allocation13], 30
    %v4391 = vld [vmem:[%s4390] ss:$2 sm:$0xff]
    %s4392 = scalar_lea.vmem [#allocation13], 46
    %v4393 = vld [vmem:[%s4392] ss:$2 sm:$0xff]
    %s4394 = scalar_lea.vmem [#allocation13], 31
    %v4395 = vld [vmem:[%s4394] ss:$2 sm:$0xff]
    %s4396 = scalar_lea.vmem [#allocation13], 47
    %v4397 = vld [vmem:[%s4396] ss:$2 sm:$0xff]
    %v4400 = vlaneseq
    %v4401 = vshrl.u32 %v4400, 7
    %v4402 = vsub.s32 0, %v4401
    %v4403 = vrot.slane %v4391, %v4402
    %v4404 = vlaneseq
    %v4405 = vshrl.u32 %v4404, 7
    %v4406 = vsub.s32 1, %v4405
    %v4407 = vrot.slane %v4391, %v4406
    %v4408 = vlaneseq
    %v4409 = vshrl.u32 %v4408, 7
    %v4410 = vsub.s32 2, %v4409
    %v4411 = vrot.slane %v4391, %v4410
    %v4412 = vlaneseq
    %v4413 = vshrl.u32 %v4412, 7
    %v4414 = vsub.s32 3, %v4413
    %v4415 = vrot.slane %v4391, %v4414
    %v4416 = vlaneseq
    %v4417 = vshrl.u32 %v4416, 7
    %v4418 = vsub.s32 4, %v4417
    %v4419 = vrot.slane %v4391, %v4418
    %v4420 = vlaneseq
    %v4421 = vshrl.u32 %v4420, 7
    %v4422 = vsub.s32 5, %v4421
    %v4423 = vrot.slane %v4391, %v4422
    %v4424 = vlaneseq
    %v4425 = vshrl.u32 %v4424, 7
    %v4426 = vsub.s32 6, %v4425
    %v4427 = vrot.slane %v4391, %v4426
    %v4428 = vlaneseq
    %v4429 = vshrl.u32 %v4428, 7
    %v4430 = vsub.s32 7, %v4429
    %v4431 = vrot.slane %v4391, %v4430
    %v4432 = vlaneseq
    %v4433 = vshrl.u32 %v4432, 7
    %v4434 = vsub.s32 0, %v4433
    %v4435 = vrot.slane %v4393, %v4434
    %v4436 = vlaneseq
    %v4437 = vshrl.u32 %v4436, 7
    %v4438 = vsub.s32 1, %v4437
    %v4439 = vrot.slane %v4393, %v4438
    %v4440 = vlaneseq
    %v4441 = vshrl.u32 %v4440, 7
    %v4442 = vsub.s32 2, %v4441
    %v4443 = vrot.slane %v4393, %v4442
    %v4444 = vlaneseq
    %v4445 = vshrl.u32 %v4444, 7
    %v4446 = vsub.s32 3, %v4445
    %v4447 = vrot.slane %v4393, %v4446
    %v4448 = vlaneseq
    %v4449 = vshrl.u32 %v4448, 7
    %v4450 = vsub.s32 4, %v4449
    %v4451 = vrot.slane %v4393, %v4450
    %v4452 = vlaneseq
    %v4453 = vshrl.u32 %v4452, 7
    %v4454 = vsub.s32 5, %v4453
    %v4455 = vrot.slane %v4393, %v4454
    %v4456 = vlaneseq
    %v4457 = vshrl.u32 %v4456, 7
    %v4458 = vsub.s32 6, %v4457
    %v4459 = vrot.slane %v4393, %v4458
    %v4460 = vlaneseq
    %v4461 = vshrl.u32 %v4460, 7
    %v4462 = vsub.s32 7, %v4461
    %v4463 = vrot.slane %v4393, %v4462
    %v4480 = vmul.f32 %v3178, %v4403
    %v4481 = vmul.f32 %v3180, %v4407
    %v4482 = vmul.f32 %v3350, %v4411
    %v4483 = vmul.f32 %v3352, %v4415
    %v4484 = vmul.f32 %v3522, %v4419
    %v4485 = vmul.f32 %v3524, %v4423
    %v4486 = vmul.f32 %v3694, %v4427
    %v4487 = vmul.f32 %v3696, %v4431
    %v4488 = vmul.f32 %v3866, %v4435
    %v4489 = vmul.f32 %v3868, %v4439
    %v4490 = vmul.f32 %v4038, %v4443
    %v4491 = vmul.f32 %v4040, %v4447
    %v4492 = vmul.f32 %v4210, %v4451
    %v4493 = vmul.f32 %v4212, %v4455
    %v4494 = vmul.f32 %v4382, %v4459
    %v4495 = vmul.f32 %v4384, %v4463
    %v4496 = vmul.f32 %v3182, %v4403
    %v4497 = vmul.f32 %v3184, %v4407
    %v4498 = vmul.f32 %v3354, %v4411
    %v4499 = vmul.f32 %v3356, %v4415
    %v4500 = vmul.f32 %v3526, %v4419
    %v4501 = vmul.f32 %v3528, %v4423
    %v4502 = vmul.f32 %v3698, %v4427
    %v4503 = vmul.f32 %v3700, %v4431
    %v4504 = vmul.f32 %v3870, %v4435
    %v4505 = vmul.f32 %v3872, %v4439
    %v4506 = vmul.f32 %v4042, %v4443
    %v4507 = vmul.f32 %v4044, %v4447
    %v4508 = vmul.f32 %v4214, %v4451
    %v4509 = vmul.f32 %v4216, %v4455
    %v4510 = vmul.f32 %v4386, %v4459
    %v4511 = vmul.f32 %v4388, %v4463
    %v4514 = vlaneseq
    %v4515 = vshrl.u32 %v4514, 7
    %v4516 = vsub.s32 0, %v4515
    %v4517 = vrot.slane %v4395, %v4516
    %v4518 = vlaneseq
    %v4519 = vshrl.u32 %v4518, 7
    %v4520 = vsub.s32 1, %v4519
    %v4521 = vrot.slane %v4395, %v4520
    %v4522 = vlaneseq
    %v4523 = vshrl.u32 %v4522, 7
    %v4524 = vsub.s32 2, %v4523
    %v4525 = vrot.slane %v4395, %v4524
    %v4526 = vlaneseq
    %v4527 = vshrl.u32 %v4526, 7
    %v4528 = vsub.s32 3, %v4527
    %v4529 = vrot.slane %v4395, %v4528
    %v4530 = vlaneseq
    %v4531 = vshrl.u32 %v4530, 7
    %v4532 = vsub.s32 4, %v4531
    %v4533 = vrot.slane %v4395, %v4532
    %v4534 = vlaneseq
    %v4535 = vshrl.u32 %v4534, 7
    %v4536 = vsub.s32 5, %v4535
    %v4537 = vrot.slane %v4395, %v4536
    %v4538 = vlaneseq
    %v4539 = vshrl.u32 %v4538, 7
    %v4540 = vsub.s32 6, %v4539
    %v4541 = vrot.slane %v4395, %v4540
    %v4542 = vlaneseq
    %v4543 = vshrl.u32 %v4542, 7
    %v4544 = vsub.s32 7, %v4543
    %v4545 = vrot.slane %v4395, %v4544
    %v4546 = vlaneseq
    %v4547 = vshrl.u32 %v4546, 7
    %v4548 = vsub.s32 0, %v4547
    %v4549 = vrot.slane %v4397, %v4548
    %v4550 = vlaneseq
    %v4551 = vshrl.u32 %v4550, 7
    %v4552 = vsub.s32 1, %v4551
    %v4553 = vrot.slane %v4397, %v4552
    %v4554 = vlaneseq
    %v4555 = vshrl.u32 %v4554, 7
    %v4556 = vsub.s32 2, %v4555
    %v4557 = vrot.slane %v4397, %v4556
    %v4558 = vlaneseq
    %v4559 = vshrl.u32 %v4558, 7
    %v4560 = vsub.s32 3, %v4559
    %v4561 = vrot.slane %v4397, %v4560
    %v4562 = vlaneseq
    %v4563 = vshrl.u32 %v4562, 7
    %v4564 = vsub.s32 4, %v4563
    %v4565 = vrot.slane %v4397, %v4564
    %v4566 = vlaneseq
    %v4567 = vshrl.u32 %v4566, 7
    %v4568 = vsub.s32 5, %v4567
    %v4569 = vrot.slane %v4397, %v4568
    %v4570 = vlaneseq
    %v4571 = vshrl.u32 %v4570, 7
    %v4572 = vsub.s32 6, %v4571
    %v4573 = vrot.slane %v4397, %v4572
    %v4574 = vlaneseq
    %v4575 = vshrl.u32 %v4574, 7
    %v4576 = vsub.s32 7, %v4575
    %v4577 = vrot.slane %v4397, %v4576
    %v4594 = vadd.f32 %v4480, %v4517
    %v4595 = vadd.f32 %v4481, %v4521
    %v4596 = vadd.f32 %v4482, %v4525
    %v4597 = vadd.f32 %v4483, %v4529
    %v4598 = vadd.f32 %v4484, %v4533
    %v4599 = vadd.f32 %v4485, %v4537
    %v4600 = vadd.f32 %v4486, %v4541
    %v4601 = vadd.f32 %v4487, %v4545
    %v4602 = vadd.f32 %v4488, %v4549
    %v4603 = vadd.f32 %v4489, %v4553
    %v4604 = vadd.f32 %v4490, %v4557
    %v4605 = vadd.f32 %v4491, %v4561
    %v4606 = vadd.f32 %v4492, %v4565
    %v4607 = vadd.f32 %v4493, %v4569
    %v4608 = vadd.f32 %v4494, %v4573
    %v4609 = vadd.f32 %v4495, %v4577
    %v4610 = vadd.f32 %v4496, %v4517
    %v4611 = vadd.f32 %v4497, %v4521
    %v4612 = vadd.f32 %v4498, %v4525
    %v4613 = vadd.f32 %v4499, %v4529
    %v4614 = vadd.f32 %v4500, %v4533
    %v4615 = vadd.f32 %v4501, %v4537
    %v4616 = vadd.f32 %v4502, %v4541
    %v4617 = vadd.f32 %v4503, %v4545
    %v4618 = vadd.f32 %v4504, %v4549
    %v4619 = vadd.f32 %v4505, %v4553
    %v4620 = vadd.f32 %v4506, %v4557
    %v4621 = vadd.f32 %v4507, %v4561
    %v4622 = vadd.f32 %v4508, %v4565
    %v4623 = vadd.f32 %v4509, %v4569
    %v4624 = vadd.f32 %v4510, %v4573
    %v4625 = vadd.f32 %v4511, %v4577
    %v4626 = vmax.f32 %v4594, 0.0
    %v4627 = vmax.f32 %v4595, 0.0
    %v4628 = vmax.f32 %v4596, 0.0
    %v4629 = vmax.f32 %v4597, 0.0
    %v4630 = vmax.f32 %v4598, 0.0
    %v4631 = vmax.f32 %v4599, 0.0
    %v4632 = vmax.f32 %v4600, 0.0
    %v4633 = vmax.f32 %v4601, 0.0
    %v4634 = vmax.f32 %v4602, 0.0
    %v4635 = vmax.f32 %v4603, 0.0
    %v4636 = vmax.f32 %v4604, 0.0
    %v4637 = vmax.f32 %v4605, 0.0
    %v4638 = vmax.f32 %v4606, 0.0
    %v4639 = vmax.f32 %v4607, 0.0
    %v4640 = vmax.f32 %v4608, 0.0
    %v4641 = vmax.f32 %v4609, 0.0
    %v4642 = vmax.f32 %v4610, 0.0
    %v4643 = vmax.f32 %v4611, 0.0
    %v4644 = vmax.f32 %v4612, 0.0
    %v4645 = vmax.f32 %v4613, 0.0
    %v4646 = vmax.f32 %v4614, 0.0
    %v4647 = vmax.f32 %v4615, 0.0
    %v4648 = vmax.f32 %v4616, 0.0
    %v4649 = vmax.f32 %v4617, 0.0
    %v4650 = vmax.f32 %v4618, 0.0
    %v4651 = vmax.f32 %v4619, 0.0
    %v4652 = vmax.f32 %v4620, 0.0
    %v4653 = vmax.f32 %v4621, 0.0
    %v4654 = vmax.f32 %v4622, 0.0
    %v4655 = vmax.f32 %v4623, 0.0
    %v4656 = vmax.f32 %v4624, 0.0
    %v4657 = vmax.f32 %v4625, 0.0
    %v4658 = vpack.c.bf16 %v4642, %v4626
    %v4659 = vpack.c.bf16 %v4643, %v4627
    %v4660 = vpack.c.bf16 %v4644, %v4628
    %v4661 = vpack.c.bf16 %v4645, %v4629
    %v4662 = vpack.c.bf16 %v4646, %v4630
    %v4663 = vpack.c.bf16 %v4647, %v4631
    %v4664 = vpack.c.bf16 %v4648, %v4632
    %v4665 = vpack.c.bf16 %v4649, %v4633
    %v4666 = vpack.c.bf16 %v4650, %v4634
    %v4667 = vpack.c.bf16 %v4651, %v4635
    %v4668 = vpack.c.bf16 %v4652, %v4636
    %v4669 = vpack.c.bf16 %v4653, %v4637
    %v4670 = vpack.c.bf16 %v4654, %v4638
    %v4671 = vpack.c.bf16 %v4655, %v4639
    %v4672 = vpack.c.bf16 %v4656, %v4640
    %v4673 = vpack.c.bf16 %v4657, %v4641
    %s4674 = smul.u32 2, 256
    %s4675 = smul.u32 %s4674, 8
    %s4676 = sshll.u32 %s4675, 4
    %4677 = dma.done %s93, %s4676
    %v4678 = vld [vmem:[#allocation7] sm:$0xff]
    %v4679 = vld [vmem:[#allocation7 + $0x8] sm:$0xff]
    %v4680 = vld [vmem:[#allocation7 + $0x10] sm:$0xff]
    %v4681 = vld [vmem:[#allocation7 + $0x18] sm:$0xff]
    %v4682 = vld [vmem:[#allocation7 + $0x20] sm:$0xff]
    %v4683 = vld [vmem:[#allocation7 + $0x28] sm:$0xff]
    %v4684 = vld [vmem:[#allocation7 + $0x30] sm:$0xff]
    %v4685 = vld [vmem:[#allocation7 + $0x38] sm:$0xff]
    %v4686 = vld [vmem:[#allocation7 + $0x40] sm:$0xff]
    %v4687 = vld [vmem:[#allocation7 + $0x48] sm:$0xff]
    %v4688 = vld [vmem:[#allocation7 + $0x50] sm:$0xff]
    %v4689 = vld [vmem:[#allocation7 + $0x58] sm:$0xff]
    %v4690 = vld [vmem:[#allocation7 + $0x60] sm:$0xff]
    %v4691 = vld [vmem:[#allocation7 + $0x68] sm:$0xff]
    %v4692 = vld [vmem:[#allocation7 + $0x70] sm:$0xff]
    %v4693 = vld [vmem:[#allocation7 + $0x78] sm:$0xff]
    %v4694 = vld [vmem:[#allocation7 + $0x80] sm:$0xff]
    %v4695 = vld [vmem:[#allocation7 + $0x88] sm:$0xff]
    %v4696 = vld [vmem:[#allocation7 + $0x90] sm:$0xff]
    %v4697 = vld [vmem:[#allocation7 + $0x98] sm:$0xff]
    %v4698 = vld [vmem:[#allocation7 + $0xa0] sm:$0xff]
    %v4699 = vld [vmem:[#allocation7 + $0xa8] sm:$0xff]
    %v4700 = vld [vmem:[#allocation7 + $0xb0] sm:$0xff]
    %v4701 = vld [vmem:[#allocation7 + $0xb8] sm:$0xff]
    %v4702 = vld [vmem:[#allocation7 + $0xc0] sm:$0xff]
    %v4703 = vld [vmem:[#allocation7 + $0xc8] sm:$0xff]
    %v4704 = vld [vmem:[#allocation7 + $0xd0] sm:$0xff]
    %v4705 = vld [vmem:[#allocation7 + $0xd8] sm:$0xff]
    %v4706 = vld [vmem:[#allocation7 + $0xe0] sm:$0xff]
    %v4707 = vld [vmem:[#allocation7 + $0xe8] sm:$0xff]
    %v4708 = vld [vmem:[#allocation7 + $0xf0] sm:$0xff]
    %v4709 = vld [vmem:[#allocation7 + $0xf8] sm:$0xff]
    %v4710 = vld [vmem:[#allocation7 + $0x100] sm:$0xff]
    %v4711 = vld [vmem:[#allocation7 + $0x108] sm:$0xff]
    %v4712 = vld [vmem:[#allocation7 + $0x110] sm:$0xff]
    %v4713 = vld [vmem:[#allocation7 + $0x118] sm:$0xff]
    %v4714 = vld [vmem:[#allocation7 + $0x120] sm:$0xff]
    %v4715 = vld [vmem:[#allocation7 + $0x128] sm:$0xff]
    %v4716 = vld [vmem:[#allocation7 + $0x130] sm:$0xff]
    %v4717 = vld [vmem:[#allocation7 + $0x138] sm:$0xff]
    %v4718 = vld [vmem:[#allocation7 + $0x140] sm:$0xff]
    %v4719 = vld [vmem:[#allocation7 + $0x148] sm:$0xff]
    %v4720 = vld [vmem:[#allocation7 + $0x150] sm:$0xff]
    %v4721 = vld [vmem:[#allocation7 + $0x158] sm:$0xff]
    %v4722 = vld [vmem:[#allocation7 + $0x160] sm:$0xff]
    %v4723 = vld [vmem:[#allocation7 + $0x168] sm:$0xff]
    %v4724 = vld [vmem:[#allocation7 + $0x170] sm:$0xff]
    %v4725 = vld [vmem:[#allocation7 + $0x178] sm:$0xff]
    %v4726 = vld [vmem:[#allocation7 + $0x180] sm:$0xff]
    %v4727 = vld [vmem:[#allocation7 + $0x188] sm:$0xff]
    %v4728 = vld [vmem:[#allocation7 + $0x190] sm:$0xff]
    %v4729 = vld [vmem:[#allocation7 + $0x198] sm:$0xff]
    %v4730 = vld [vmem:[#allocation7 + $0x1a0] sm:$0xff]
    %v4731 = vld [vmem:[#allocation7 + $0x1a8] sm:$0xff]
    %v4732 = vld [vmem:[#allocation7 + $0x1b0] sm:$0xff]
    %v4733 = vld [vmem:[#allocation7 + $0x1b8] sm:$0xff]
    %v4734 = vld [vmem:[#allocation7 + $0x1c0] sm:$0xff]
    %v4735 = vld [vmem:[#allocation7 + $0x1c8] sm:$0xff]
    %v4736 = vld [vmem:[#allocation7 + $0x1d0] sm:$0xff]
    %v4737 = vld [vmem:[#allocation7 + $0x1d8] sm:$0xff]
    %v4738 = vld [vmem:[#allocation7 + $0x1e0] sm:$0xff]
    %v4739 = vld [vmem:[#allocation7 + $0x1e8] sm:$0xff]
    %v4740 = vld [vmem:[#allocation7 + $0x1f0] sm:$0xff]
    %v4741 = vld [vmem:[#allocation7 + $0x1f8] sm:$0xff]
    %v4742 = vld [vmem:[#allocation7 + $0x200] sm:$0xff]
    %v4743 = vld [vmem:[#allocation7 + $0x208] sm:$0xff]
    %v4744 = vld [vmem:[#allocation7 + $0x210] sm:$0xff]
    %v4745 = vld [vmem:[#allocation7 + $0x218] sm:$0xff]
    %v4746 = vld [vmem:[#allocation7 + $0x220] sm:$0xff]
    %v4747 = vld [vmem:[#allocation7 + $0x228] sm:$0xff]
    %v4748 = vld [vmem:[#allocation7 + $0x230] sm:$0xff]
    %v4749 = vld [vmem:[#allocation7 + $0x238] sm:$0xff]
    %v4750 = vld [vmem:[#allocation7 + $0x240] sm:$0xff]
    %v4751 = vld [vmem:[#allocation7 + $0x248] sm:$0xff]
    %v4752 = vld [vmem:[#allocation7 + $0x250] sm:$0xff]
    %v4753 = vld [vmem:[#allocation7 + $0x258] sm:$0xff]
    %v4754 = vld [vmem:[#allocation7 + $0x260] sm:$0xff]
    %v4755 = vld [vmem:[#allocation7 + $0x268] sm:$0xff]
    %v4756 = vld [vmem:[#allocation7 + $0x270] sm:$0xff]
    %v4757 = vld [vmem:[#allocation7 + $0x278] sm:$0xff]
    %v4758 = vld [vmem:[#allocation7 + $0x280] sm:$0xff]
    %v4759 = vld [vmem:[#allocation7 + $0x288] sm:$0xff]
    %v4760 = vld [vmem:[#allocation7 + $0x290] sm:$0xff]
    %v4761 = vld [vmem:[#allocation7 + $0x298] sm:$0xff]
    %v4762 = vld [vmem:[#allocation7 + $0x2a0] sm:$0xff]
    %v4763 = vld [vmem:[#allocation7 + $0x2a8] sm:$0xff]
    %v4764 = vld [vmem:[#allocation7 + $0x2b0] sm:$0xff]
    %v4765 = vld [vmem:[#allocation7 + $0x2b8] sm:$0xff]
    %v4766 = vld [vmem:[#allocation7 + $0x2c0] sm:$0xff]
    %v4767 = vld [vmem:[#allocation7 + $0x2c8] sm:$0xff]
    %v4768 = vld [vmem:[#allocation7 + $0x2d0] sm:$0xff]
    %v4769 = vld [vmem:[#allocation7 + $0x2d8] sm:$0xff]
    %v4770 = vld [vmem:[#allocation7 + $0x2e0] sm:$0xff]
    %v4771 = vld [vmem:[#allocation7 + $0x2e8] sm:$0xff]
    %v4772 = vld [vmem:[#allocation7 + $0x2f0] sm:$0xff]
    %v4773 = vld [vmem:[#allocation7 + $0x2f8] sm:$0xff]
    %v4774 = vld [vmem:[#allocation7 + $0x300] sm:$0xff]
    %v4775 = vld [vmem:[#allocation7 + $0x308] sm:$0xff]
    %v4776 = vld [vmem:[#allocation7 + $0x310] sm:$0xff]
    %v4777 = vld [vmem:[#allocation7 + $0x318] sm:$0xff]
    %v4778 = vld [vmem:[#allocation7 + $0x320] sm:$0xff]
    %v4779 = vld [vmem:[#allocation7 + $0x328] sm:$0xff]
    %v4780 = vld [vmem:[#allocation7 + $0x330] sm:$0xff]
    %v4781 = vld [vmem:[#allocation7 + $0x338] sm:$0xff]
    %v4782 = vld [vmem:[#allocation7 + $0x340] sm:$0xff]
    %v4783 = vld [vmem:[#allocation7 + $0x348] sm:$0xff]
    %v4784 = vld [vmem:[#allocation7 + $0x350] sm:$0xff]
    %v4785 = vld [vmem:[#allocation7 + $0x358] sm:$0xff]
    %v4786 = vld [vmem:[#allocation7 + $0x360] sm:$0xff]
    %v4787 = vld [vmem:[#allocation7 + $0x368] sm:$0xff]
    %v4788 = vld [vmem:[#allocation7 + $0x370] sm:$0xff]
    %v4789 = vld [vmem:[#allocation7 + $0x378] sm:$0xff]
    %v4790 = vld [vmem:[#allocation7 + $0x380] sm:$0xff]
    %v4791 = vld [vmem:[#allocation7 + $0x388] sm:$0xff]
    %v4792 = vld [vmem:[#allocation7 + $0x390] sm:$0xff]
    %v4793 = vld [vmem:[#allocation7 + $0x398] sm:$0xff]
    %v4794 = vld [vmem:[#allocation7 + $0x3a0] sm:$0xff]
    %v4795 = vld [vmem:[#allocation7 + $0x3a8] sm:$0xff]
    %v4796 = vld [vmem:[#allocation7 + $0x3b0] sm:$0xff]
    %v4797 = vld [vmem:[#allocation7 + $0x3b8] sm:$0xff]
    %v4798 = vld [vmem:[#allocation7 + $0x3c0] sm:$0xff]
    %v4799 = vld [vmem:[#allocation7 + $0x3c8] sm:$0xff]
    %v4800 = vld [vmem:[#allocation7 + $0x3d0] sm:$0xff]
    %v4801 = vld [vmem:[#allocation7 + $0x3d8] sm:$0xff]
    %v4802 = vld [vmem:[#allocation7 + $0x3e0] sm:$0xff]
    %v4803 = vld [vmem:[#allocation7 + $0x3e8] sm:$0xff]
    %v4804 = vld [vmem:[#allocation7 + $0x3f0] sm:$0xff]
    %v4805 = vld [vmem:[#allocation7 + $0x3f8] sm:$0xff]
    %v4806 = vld [vmem:[#allocation7 + $0x400] sm:$0xff]
    %v4807 = vld [vmem:[#allocation7 + $0x408] sm:$0xff]
    %v4808 = vld [vmem:[#allocation7 + $0x410] sm:$0xff]
    %v4809 = vld [vmem:[#allocation7 + $0x418] sm:$0xff]
    %v4810 = vld [vmem:[#allocation7 + $0x420] sm:$0xff]
    %v4811 = vld [vmem:[#allocation7 + $0x428] sm:$0xff]
    %v4812 = vld [vmem:[#allocation7 + $0x430] sm:$0xff]
    %v4813 = vld [vmem:[#allocation7 + $0x438] sm:$0xff]
    %v4814 = vld [vmem:[#allocation7 + $0x440] sm:$0xff]
    %v4815 = vld [vmem:[#allocation7 + $0x448] sm:$0xff]
    %v4816 = vld [vmem:[#allocation7 + $0x450] sm:$0xff]
    %v4817 = vld [vmem:[#allocation7 + $0x458] sm:$0xff]
    %v4818 = vld [vmem:[#allocation7 + $0x460] sm:$0xff]
    %v4819 = vld [vmem:[#allocation7 + $0x468] sm:$0xff]
    %v4820 = vld [vmem:[#allocation7 + $0x470] sm:$0xff]
    %v4821 = vld [vmem:[#allocation7 + $0x478] sm:$0xff]
    %v4822 = vld [vmem:[#allocation7 + $0x480] sm:$0xff]
    %v4823 = vld [vmem:[#allocation7 + $0x488] sm:$0xff]
    %v4824 = vld [vmem:[#allocation7 + $0x490] sm:$0xff]
    %v4825 = vld [vmem:[#allocation7 + $0x498] sm:$0xff]
    %v4826 = vld [vmem:[#allocation7 + $0x4a0] sm:$0xff]
    %v4827 = vld [vmem:[#allocation7 + $0x4a8] sm:$0xff]
    %v4828 = vld [vmem:[#allocation7 + $0x4b0] sm:$0xff]
    %v4829 = vld [vmem:[#allocation7 + $0x4b8] sm:$0xff]
    %v4830 = vld [vmem:[#allocation7 + $0x4c0] sm:$0xff]
    %v4831 = vld [vmem:[#allocation7 + $0x4c8] sm:$0xff]
    %v4832 = vld [vmem:[#allocation7 + $0x4d0] sm:$0xff]
    %v4833 = vld [vmem:[#allocation7 + $0x4d8] sm:$0xff]
    %v4834 = vld [vmem:[#allocation7 + $0x4e0] sm:$0xff]
    %v4835 = vld [vmem:[#allocation7 + $0x4e8] sm:$0xff]
    %v4836 = vld [vmem:[#allocation7 + $0x4f0] sm:$0xff]
    %v4837 = vld [vmem:[#allocation7 + $0x4f8] sm:$0xff]
    %v4838 = vld [vmem:[#allocation7 + $0x500] sm:$0xff]
    %v4839 = vld [vmem:[#allocation7 + $0x508] sm:$0xff]
    %v4840 = vld [vmem:[#allocation7 + $0x510] sm:$0xff]
    %v4841 = vld [vmem:[#allocation7 + $0x518] sm:$0xff]
    %v4842 = vld [vmem:[#allocation7 + $0x520] sm:$0xff]
    %v4843 = vld [vmem:[#allocation7 + $0x528] sm:$0xff]
    %v4844 = vld [vmem:[#allocation7 + $0x530] sm:$0xff]
    %v4845 = vld [vmem:[#allocation7 + $0x538] sm:$0xff]
    %v4846 = vld [vmem:[#allocation7 + $0x540] sm:$0xff]
    %v4847 = vld [vmem:[#allocation7 + $0x548] sm:$0xff]
    %v4848 = vld [vmem:[#allocation7 + $0x550] sm:$0xff]
    %v4849 = vld [vmem:[#allocation7 + $0x558] sm:$0xff]
    %v4850 = vld [vmem:[#allocation7 + $0x560] sm:$0xff]
    %v4851 = vld [vmem:[#allocation7 + $0x568] sm:$0xff]
    %v4852 = vld [vmem:[#allocation7 + $0x570] sm:$0xff]
    %v4853 = vld [vmem:[#allocation7 + $0x578] sm:$0xff]
    %v4854 = vld [vmem:[#allocation7 + $0x580] sm:$0xff]
    %v4855 = vld [vmem:[#allocation7 + $0x588] sm:$0xff]
    %v4856 = vld [vmem:[#allocation7 + $0x590] sm:$0xff]
    %v4857 = vld [vmem:[#allocation7 + $0x598] sm:$0xff]
    %v4858 = vld [vmem:[#allocation7 + $0x5a0] sm:$0xff]
    %v4859 = vld [vmem:[#allocation7 + $0x5a8] sm:$0xff]
    %v4860 = vld [vmem:[#allocation7 + $0x5b0] sm:$0xff]
    %v4861 = vld [vmem:[#allocation7 + $0x5b8] sm:$0xff]
    %v4862 = vld [vmem:[#allocation7 + $0x5c0] sm:$0xff]
    %v4863 = vld [vmem:[#allocation7 + $0x5c8] sm:$0xff]
    %v4864 = vld [vmem:[#allocation7 + $0x5d0] sm:$0xff]
    %v4865 = vld [vmem:[#allocation7 + $0x5d8] sm:$0xff]
    %v4866 = vld [vmem:[#allocation7 + $0x5e0] sm:$0xff]
    %v4867 = vld [vmem:[#allocation7 + $0x5e8] sm:$0xff]
    %v4868 = vld [vmem:[#allocation7 + $0x5f0] sm:$0xff]
    %v4869 = vld [vmem:[#allocation7 + $0x5f8] sm:$0xff]
    %v4870 = vld [vmem:[#allocation7 + $0x600] sm:$0xff]
    %v4871 = vld [vmem:[#allocation7 + $0x608] sm:$0xff]
    %v4872 = vld [vmem:[#allocation7 + $0x610] sm:$0xff]
    %v4873 = vld [vmem:[#allocation7 + $0x618] sm:$0xff]
    %v4874 = vld [vmem:[#allocation7 + $0x620] sm:$0xff]
    %v4875 = vld [vmem:[#allocation7 + $0x628] sm:$0xff]
    %v4876 = vld [vmem:[#allocation7 + $0x630] sm:$0xff]
    %v4877 = vld [vmem:[#allocation7 + $0x638] sm:$0xff]
    %v4878 = vld [vmem:[#allocation7 + $0x640] sm:$0xff]
    %v4879 = vld [vmem:[#allocation7 + $0x648] sm:$0xff]
    %v4880 = vld [vmem:[#allocation7 + $0x650] sm:$0xff]
    %v4881 = vld [vmem:[#allocation7 + $0x658] sm:$0xff]
    %v4882 = vld [vmem:[#allocation7 + $0x660] sm:$0xff]
    %v4883 = vld [vmem:[#allocation7 + $0x668] sm:$0xff]
    %v4884 = vld [vmem:[#allocation7 + $0x670] sm:$0xff]
    %v4885 = vld [vmem:[#allocation7 + $0x678] sm:$0xff]
    %v4886 = vld [vmem:[#allocation7 + $0x680] sm:$0xff]
    %v4887 = vld [vmem:[#allocation7 + $0x688] sm:$0xff]
    %v4888 = vld [vmem:[#allocation7 + $0x690] sm:$0xff]
    %v4889 = vld [vmem:[#allocation7 + $0x698] sm:$0xff]
    %v4890 = vld [vmem:[#allocation7 + $0x6a0] sm:$0xff]
    %v4891 = vld [vmem:[#allocation7 + $0x6a8] sm:$0xff]
    %v4892 = vld [vmem:[#allocation7 + $0x6b0] sm:$0xff]
    %v4893 = vld [vmem:[#allocation7 + $0x6b8] sm:$0xff]
    %v4894 = vld [vmem:[#allocation7 + $0x6c0] sm:$0xff]
    %v4895 = vld [vmem:[#allocation7 + $0x6c8] sm:$0xff]
    %v4896 = vld [vmem:[#allocation7 + $0x6d0] sm:$0xff]
    %v4897 = vld [vmem:[#allocation7 + $0x6d8] sm:$0xff]
    %v4898 = vld [vmem:[#allocation7 + $0x6e0] sm:$0xff]
    %v4899 = vld [vmem:[#allocation7 + $0x6e8] sm:$0xff]
    %v4900 = vld [vmem:[#allocation7 + $0x6f0] sm:$0xff]
    %v4901 = vld [vmem:[#allocation7 + $0x6f8] sm:$0xff]
    %v4902 = vld [vmem:[#allocation7 + $0x700] sm:$0xff]
    %v4903 = vld [vmem:[#allocation7 + $0x708] sm:$0xff]
    %v4904 = vld [vmem:[#allocation7 + $0x710] sm:$0xff]
    %v4905 = vld [vmem:[#allocation7 + $0x718] sm:$0xff]
    %v4906 = vld [vmem:[#allocation7 + $0x720] sm:$0xff]
    %v4907 = vld [vmem:[#allocation7 + $0x728] sm:$0xff]
    %v4908 = vld [vmem:[#allocation7 + $0x730] sm:$0xff]
    %v4909 = vld [vmem:[#allocation7 + $0x738] sm:$0xff]
    %v4910 = vld [vmem:[#allocation7 + $0x740] sm:$0xff]
    %v4911 = vld [vmem:[#allocation7 + $0x748] sm:$0xff]
    %v4912 = vld [vmem:[#allocation7 + $0x750] sm:$0xff]
    %v4913 = vld [vmem:[#allocation7 + $0x758] sm:$0xff]
    %v4914 = vld [vmem:[#allocation7 + $0x760] sm:$0xff]
    %v4915 = vld [vmem:[#allocation7 + $0x768] sm:$0xff]
    %v4916 = vld [vmem:[#allocation7 + $0x770] sm:$0xff]
    %v4917 = vld [vmem:[#allocation7 + $0x778] sm:$0xff]
    %v4918 = vld [vmem:[#allocation7 + $0x780] sm:$0xff]
    %v4919 = vld [vmem:[#allocation7 + $0x788] sm:$0xff]
    %v4920 = vld [vmem:[#allocation7 + $0x790] sm:$0xff]
    %v4921 = vld [vmem:[#allocation7 + $0x798] sm:$0xff]
    %v4922 = vld [vmem:[#allocation7 + $0x7a0] sm:$0xff]
    %v4923 = vld [vmem:[#allocation7 + $0x7a8] sm:$0xff]
    %v4924 = vld [vmem:[#allocation7 + $0x7b0] sm:$0xff]
    %v4925 = vld [vmem:[#allocation7 + $0x7b8] sm:$0xff]
    %v4926 = vld [vmem:[#allocation7 + $0x7c0] sm:$0xff]
    %v4927 = vld [vmem:[#allocation7 + $0x7c8] sm:$0xff]
    %v4928 = vld [vmem:[#allocation7 + $0x7d0] sm:$0xff]
    %v4929 = vld [vmem:[#allocation7 + $0x7d8] sm:$0xff]
    %v4930 = vld [vmem:[#allocation7 + $0x7e0] sm:$0xff]
    %v4931 = vld [vmem:[#allocation7 + $0x7e8] sm:$0xff]
    %v4932 = vld [vmem:[#allocation7 + $0x7f0] sm:$0xff]
    %v4933 = vld [vmem:[#allocation7 + $0x7f8] sm:$0xff]
    %v4934 = vld [vmem:[#allocation7 + $0x800] sm:$0xff]
    %v4935 = vld [vmem:[#allocation7 + $0x808] sm:$0xff]
    %v4936 = vld [vmem:[#allocation7 + $0x810] sm:$0xff]
    %v4937 = vld [vmem:[#allocation7 + $0x818] sm:$0xff]
    %v4938 = vld [vmem:[#allocation7 + $0x820] sm:$0xff]
    %v4939 = vld [vmem:[#allocation7 + $0x828] sm:$0xff]
    %v4940 = vld [vmem:[#allocation7 + $0x830] sm:$0xff]
    %v4941 = vld [vmem:[#allocation7 + $0x838] sm:$0xff]
    %v4942 = vld [vmem:[#allocation7 + $0x840] sm:$0xff]
    %v4943 = vld [vmem:[#allocation7 + $0x848] sm:$0xff]
    %v4944 = vld [vmem:[#allocation7 + $0x850] sm:$0xff]
    %v4945 = vld [vmem:[#allocation7 + $0x858] sm:$0xff]
    %v4946 = vld [vmem:[#allocation7 + $0x860] sm:$0xff]
    %v4947 = vld [vmem:[#allocation7 + $0x868] sm:$0xff]
    %v4948 = vld [vmem:[#allocation7 + $0x870] sm:$0xff]
    %v4949 = vld [vmem:[#allocation7 + $0x878] sm:$0xff]
    %v4950 = vld [vmem:[#allocation7 + $0x880] sm:$0xff]
    %v4951 = vld [vmem:[#allocation7 + $0x888] sm:$0xff]
    %v4952 = vld [vmem:[#allocation7 + $0x890] sm:$0xff]
    %v4953 = vld [vmem:[#allocation7 + $0x898] sm:$0xff]
    %v4954 = vld [vmem:[#allocation7 + $0x8a0] sm:$0xff]
    %v4955 = vld [vmem:[#allocation7 + $0x8a8] sm:$0xff]
    %v4956 = vld [vmem:[#allocation7 + $0x8b0] sm:$0xff]
    %v4957 = vld [vmem:[#allocation7 + $0x8b8] sm:$0xff]
    %v4958 = vld [vmem:[#allocation7 + $0x8c0] sm:$0xff]
    %v4959 = vld [vmem:[#allocation7 + $0x8c8] sm:$0xff]
    %v4960 = vld [vmem:[#allocation7 + $0x8d0] sm:$0xff]
    %v4961 = vld [vmem:[#allocation7 + $0x8d8] sm:$0xff]
    %v4962 = vld [vmem:[#allocation7 + $0x8e0] sm:$0xff]
    %v4963 = vld [vmem:[#allocation7 + $0x8e8] sm:$0xff]
    %v4964 = vld [vmem:[#allocation7 + $0x8f0] sm:$0xff]
    %v4965 = vld [vmem:[#allocation7 + $0x8f8] sm:$0xff]
    %v4966 = vld [vmem:[#allocation7 + $0x900] sm:$0xff]
    %v4967 = vld [vmem:[#allocation7 + $0x908] sm:$0xff]
    %v4968 = vld [vmem:[#allocation7 + $0x910] sm:$0xff]
    %v4969 = vld [vmem:[#allocation7 + $0x918] sm:$0xff]
    %v4970 = vld [vmem:[#allocation7 + $0x920] sm:$0xff]
    %v4971 = vld [vmem:[#allocation7 + $0x928] sm:$0xff]
    %v4972 = vld [vmem:[#allocation7 + $0x930] sm:$0xff]
    %v4973 = vld [vmem:[#allocation7 + $0x938] sm:$0xff]
    %v4974 = vld [vmem:[#allocation7 + $0x940] sm:$0xff]
    %v4975 = vld [vmem:[#allocation7 + $0x948] sm:$0xff]
    %v4976 = vld [vmem:[#allocation7 + $0x950] sm:$0xff]
    %v4977 = vld [vmem:[#allocation7 + $0x958] sm:$0xff]
    %v4978 = vld [vmem:[#allocation7 + $0x960] sm:$0xff]
    %v4979 = vld [vmem:[#allocation7 + $0x968] sm:$0xff]
    %v4980 = vld [vmem:[#allocation7 + $0x970] sm:$0xff]
    %v4981 = vld [vmem:[#allocation7 + $0x978] sm:$0xff]
    %v4982 = vld [vmem:[#allocation7 + $0x980] sm:$0xff]
    %v4983 = vld [vmem:[#allocation7 + $0x988] sm:$0xff]
    %v4984 = vld [vmem:[#allocation7 + $0x990] sm:$0xff]
    %v4985 = vld [vmem:[#allocation7 + $0x998] sm:$0xff]
    %v4986 = vld [vmem:[#allocation7 + $0x9a0] sm:$0xff]
    %v4987 = vld [vmem:[#allocation7 + $0x9a8] sm:$0xff]
    %v4988 = vld [vmem:[#allocation7 + $0x9b0] sm:$0xff]
    %v4989 = vld [vmem:[#allocation7 + $0x9b8] sm:$0xff]
    %v4990 = vld [vmem:[#allocation7 + $0x9c0] sm:$0xff]
    %v4991 = vld [vmem:[#allocation7 + $0x9c8] sm:$0xff]
    %v4992 = vld [vmem:[#allocation7 + $0x9d0] sm:$0xff]
    %v4993 = vld [vmem:[#allocation7 + $0x9d8] sm:$0xff]
    %v4994 = vld [vmem:[#allocation7 + $0x9e0] sm:$0xff]
    %v4995 = vld [vmem:[#allocation7 + $0x9e8] sm:$0xff]
    %v4996 = vld [vmem:[#allocation7 + $0x9f0] sm:$0xff]
    %v4997 = vld [vmem:[#allocation7 + $0x9f8] sm:$0xff]
    %v4998 = vld [vmem:[#allocation7 + $0xa00] sm:$0xff]
    %v4999 = vld [vmem:[#allocation7 + $0xa08] sm:$0xff]
    %v5000 = vld [vmem:[#allocation7 + $0xa10] sm:$0xff]
    %v5001 = vld [vmem:[#allocation7 + $0xa18] sm:$0xff]
    %v5002 = vld [vmem:[#allocation7 + $0xa20] sm:$0xff]
    %v5003 = vld [vmem:[#allocation7 + $0xa28] sm:$0xff]
    %v5004 = vld [vmem:[#allocation7 + $0xa30] sm:$0xff]
    %v5005 = vld [vmem:[#allocation7 + $0xa38] sm:$0xff]
    %v5006 = vld [vmem:[#allocation7 + $0xa40] sm:$0xff]
    %v5007 = vld [vmem:[#allocation7 + $0xa48] sm:$0xff]
    %v5008 = vld [vmem:[#allocation7 + $0xa50] sm:$0xff]
    %v5009 = vld [vmem:[#allocation7 + $0xa58] sm:$0xff]
    %v5010 = vld [vmem:[#allocation7 + $0xa60] sm:$0xff]
    %v5011 = vld [vmem:[#allocation7 + $0xa68] sm:$0xff]
    %v5012 = vld [vmem:[#allocation7 + $0xa70] sm:$0xff]
    %v5013 = vld [vmem:[#allocation7 + $0xa78] sm:$0xff]
    %v5014 = vld [vmem:[#allocation7 + $0xa80] sm:$0xff]
    %v5015 = vld [vmem:[#allocation7 + $0xa88] sm:$0xff]
    %v5016 = vld [vmem:[#allocation7 + $0xa90] sm:$0xff]
    %v5017 = vld [vmem:[#allocation7 + $0xa98] sm:$0xff]
    %v5018 = vld [vmem:[#allocation7 + $0xaa0] sm:$0xff]
    %v5019 = vld [vmem:[#allocation7 + $0xaa8] sm:$0xff]
    %v5020 = vld [vmem:[#allocation7 + $0xab0] sm:$0xff]
    %v5021 = vld [vmem:[#allocation7 + $0xab8] sm:$0xff]
    %v5022 = vld [vmem:[#allocation7 + $0xac0] sm:$0xff]
    %v5023 = vld [vmem:[#allocation7 + $0xac8] sm:$0xff]
    %v5024 = vld [vmem:[#allocation7 + $0xad0] sm:$0xff]
    %v5025 = vld [vmem:[#allocation7 + $0xad8] sm:$0xff]
    %v5026 = vld [vmem:[#allocation7 + $0xae0] sm:$0xff]
    %v5027 = vld [vmem:[#allocation7 + $0xae8] sm:$0xff]
    %v5028 = vld [vmem:[#allocation7 + $0xaf0] sm:$0xff]
    %v5029 = vld [vmem:[#allocation7 + $0xaf8] sm:$0xff]
    %v5030 = vld [vmem:[#allocation7 + $0xb00] sm:$0xff]
    %v5031 = vld [vmem:[#allocation7 + $0xb08] sm:$0xff]
    %v5032 = vld [vmem:[#allocation7 + $0xb10] sm:$0xff]
    %v5033 = vld [vmem:[#allocation7 + $0xb18] sm:$0xff]
    %v5034 = vld [vmem:[#allocation7 + $0xb20] sm:$0xff]
    %v5035 = vld [vmem:[#allocation7 + $0xb28] sm:$0xff]
    %v5036 = vld [vmem:[#allocation7 + $0xb30] sm:$0xff]
    %v5037 = vld [vmem:[#allocation7 + $0xb38] sm:$0xff]
    %v5038 = vld [vmem:[#allocation7 + $0xb40] sm:$0xff]
    %v5039 = vld [vmem:[#allocation7 + $0xb48] sm:$0xff]
    %v5040 = vld [vmem:[#allocation7 + $0xb50] sm:$0xff]
    %v5041 = vld [vmem:[#allocation7 + $0xb58] sm:$0xff]
    %v5042 = vld [vmem:[#allocation7 + $0xb60] sm:$0xff]
    %v5043 = vld [vmem:[#allocation7 + $0xb68] sm:$0xff]
    %v5044 = vld [vmem:[#allocation7 + $0xb70] sm:$0xff]
    %v5045 = vld [vmem:[#allocation7 + $0xb78] sm:$0xff]
    %v5046 = vld [vmem:[#allocation7 + $0xb80] sm:$0xff]
    %v5047 = vld [vmem:[#allocation7 + $0xb88] sm:$0xff]
    %v5048 = vld [vmem:[#allocation7 + $0xb90] sm:$0xff]
    %v5049 = vld [vmem:[#allocation7 + $0xb98] sm:$0xff]
    %v5050 = vld [vmem:[#allocation7 + $0xba0] sm:$0xff]
    %v5051 = vld [vmem:[#allocation7 + $0xba8] sm:$0xff]
    %v5052 = vld [vmem:[#allocation7 + $0xbb0] sm:$0xff]
    %v5053 = vld [vmem:[#allocation7 + $0xbb8] sm:$0xff]
    %v5054 = vld [vmem:[#allocation7 + $0xbc0] sm:$0xff]
    %v5055 = vld [vmem:[#allocation7 + $0xbc8] sm:$0xff]
    %v5056 = vld [vmem:[#allocation7 + $0xbd0] sm:$0xff]
    %v5057 = vld [vmem:[#allocation7 + $0xbd8] sm:$0xff]
    %v5058 = vld [vmem:[#allocation7 + $0xbe0] sm:$0xff]
    %v5059 = vld [vmem:[#allocation7 + $0xbe8] sm:$0xff]
    %v5060 = vld [vmem:[#allocation7 + $0xbf0] sm:$0xff]
    %v5061 = vld [vmem:[#allocation7 + $0xbf8] sm:$0xff]
    %v5062 = vld [vmem:[#allocation7 + $0xc00] sm:$0xff]
    %v5063 = vld [vmem:[#allocation7 + $0xc08] sm:$0xff]
    %v5064 = vld [vmem:[#allocation7 + $0xc10] sm:$0xff]
    %v5065 = vld [vmem:[#allocation7 + $0xc18] sm:$0xff]
    %v5066 = vld [vmem:[#allocation7 + $0xc20] sm:$0xff]
    %v5067 = vld [vmem:[#allocation7 + $0xc28] sm:$0xff]
    %v5068 = vld [vmem:[#allocation7 + $0xc30] sm:$0xff]
    %v5069 = vld [vmem:[#allocation7 + $0xc38] sm:$0xff]
    %v5070 = vld [vmem:[#allocation7 + $0xc40] sm:$0xff]
    %v5071 = vld [vmem:[#allocation7 + $0xc48] sm:$0xff]
    %v5072 = vld [vmem:[#allocation7 + $0xc50] sm:$0xff]
    %v5073 = vld [vmem:[#allocation7 + $0xc58] sm:$0xff]
    %v5074 = vld [vmem:[#allocation7 + $0xc60] sm:$0xff]
    %v5075 = vld [vmem:[#allocation7 + $0xc68] sm:$0xff]
    %v5076 = vld [vmem:[#allocation7 + $0xc70] sm:$0xff]
    %v5077 = vld [vmem:[#allocation7 + $0xc78] sm:$0xff]
    %v5078 = vld [vmem:[#allocation7 + $0xc80] sm:$0xff]
    %v5079 = vld [vmem:[#allocation7 + $0xc88] sm:$0xff]
    %v5080 = vld [vmem:[#allocation7 + $0xc90] sm:$0xff]
    %v5081 = vld [vmem:[#allocation7 + $0xc98] sm:$0xff]
    %v5082 = vld [vmem:[#allocation7 + $0xca0] sm:$0xff]
    %v5083 = vld [vmem:[#allocation7 + $0xca8] sm:$0xff]
    %v5084 = vld [vmem:[#allocation7 + $0xcb0] sm:$0xff]
    %v5085 = vld [vmem:[#allocation7 + $0xcb8] sm:$0xff]
    %v5086 = vld [vmem:[#allocation7 + $0xcc0] sm:$0xff]
    %v5087 = vld [vmem:[#allocation7 + $0xcc8] sm:$0xff]
    %v5088 = vld [vmem:[#allocation7 + $0xcd0] sm:$0xff]
    %v5089 = vld [vmem:[#allocation7 + $0xcd8] sm:$0xff]
    %v5090 = vld [vmem:[#allocation7 + $0xce0] sm:$0xff]
    %v5091 = vld [vmem:[#allocation7 + $0xce8] sm:$0xff]
    %v5092 = vld [vmem:[#allocation7 + $0xcf0] sm:$0xff]
    %v5093 = vld [vmem:[#allocation7 + $0xcf8] sm:$0xff]
    %v5094 = vld [vmem:[#allocation7 + $0xd00] sm:$0xff]
    %v5095 = vld [vmem:[#allocation7 + $0xd08] sm:$0xff]
    %v5096 = vld [vmem:[#allocation7 + $0xd10] sm:$0xff]
    %v5097 = vld [vmem:[#allocation7 + $0xd18] sm:$0xff]
    %v5098 = vld [vmem:[#allocation7 + $0xd20] sm:$0xff]
    %v5099 = vld [vmem:[#allocation7 + $0xd28] sm:$0xff]
    %v5100 = vld [vmem:[#allocation7 + $0xd30] sm:$0xff]
    %v5101 = vld [vmem:[#allocation7 + $0xd38] sm:$0xff]
    %v5102 = vld [vmem:[#allocation7 + $0xd40] sm:$0xff]
    %v5103 = vld [vmem:[#allocation7 + $0xd48] sm:$0xff]
    %v5104 = vld [vmem:[#allocation7 + $0xd50] sm:$0xff]
    %v5105 = vld [vmem:[#allocation7 + $0xd58] sm:$0xff]
    %v5106 = vld [vmem:[#allocation7 + $0xd60] sm:$0xff]
    %v5107 = vld [vmem:[#allocation7 + $0xd68] sm:$0xff]
    %v5108 = vld [vmem:[#allocation7 + $0xd70] sm:$0xff]
    %v5109 = vld [vmem:[#allocation7 + $0xd78] sm:$0xff]
    %v5110 = vld [vmem:[#allocation7 + $0xd80] sm:$0xff]
    %v5111 = vld [vmem:[#allocation7 + $0xd88] sm:$0xff]
    %v5112 = vld [vmem:[#allocation7 + $0xd90] sm:$0xff]
    %v5113 = vld [vmem:[#allocation7 + $0xd98] sm:$0xff]
    %v5114 = vld [vmem:[#allocation7 + $0xda0] sm:$0xff]
    %v5115 = vld [vmem:[#allocation7 + $0xda8] sm:$0xff]
    %v5116 = vld [vmem:[#allocation7 + $0xdb0] sm:$0xff]
    %v5117 = vld [vmem:[#allocation7 + $0xdb8] sm:$0xff]
    %v5118 = vld [vmem:[#allocation7 + $0xdc0] sm:$0xff]
    %v5119 = vld [vmem:[#allocation7 + $0xdc8] sm:$0xff]
    %v5120 = vld [vmem:[#allocation7 + $0xdd0] sm:$0xff]
    %v5121 = vld [vmem:[#allocation7 + $0xdd8] sm:$0xff]
    %v5122 = vld [vmem:[#allocation7 + $0xde0] sm:$0xff]
    %v5123 = vld [vmem:[#allocation7 + $0xde8] sm:$0xff]
    %v5124 = vld [vmem:[#allocation7 + $0xdf0] sm:$0xff]
    %v5125 = vld [vmem:[#allocation7 + $0xdf8] sm:$0xff]
    %v5126 = vld [vmem:[#allocation7 + $0xe00] sm:$0xff]
    %v5127 = vld [vmem:[#allocation7 + $0xe08] sm:$0xff]
    %v5128 = vld [vmem:[#allocation7 + $0xe10] sm:$0xff]
    %v5129 = vld [vmem:[#allocation7 + $0xe18] sm:$0xff]
    %v5130 = vld [vmem:[#allocation7 + $0xe20] sm:$0xff]
    %v5131 = vld [vmem:[#allocation7 + $0xe28] sm:$0xff]
    %v5132 = vld [vmem:[#allocation7 + $0xe30] sm:$0xff]
    %v5133 = vld [vmem:[#allocation7 + $0xe38] sm:$0xff]
    %v5134 = vld [vmem:[#allocation7 + $0xe40] sm:$0xff]
    %v5135 = vld [vmem:[#allocation7 + $0xe48] sm:$0xff]
    %v5136 = vld [vmem:[#allocation7 + $0xe50] sm:$0xff]
    %v5137 = vld [vmem:[#allocation7 + $0xe58] sm:$0xff]
    %v5138 = vld [vmem:[#allocation7 + $0xe60] sm:$0xff]
    %v5139 = vld [vmem:[#allocation7 + $0xe68] sm:$0xff]
    %v5140 = vld [vmem:[#allocation7 + $0xe70] sm:$0xff]
    %v5141 = vld [vmem:[#allocation7 + $0xe78] sm:$0xff]
    %v5142 = vld [vmem:[#allocation7 + $0xe80] sm:$0xff]
    %v5143 = vld [vmem:[#allocation7 + $0xe88] sm:$0xff]
    %v5144 = vld [vmem:[#allocation7 + $0xe90] sm:$0xff]
    %v5145 = vld [vmem:[#allocation7 + $0xe98] sm:$0xff]
    %v5146 = vld [vmem:[#allocation7 + $0xea0] sm:$0xff]
    %v5147 = vld [vmem:[#allocation7 + $0xea8] sm:$0xff]
    %v5148 = vld [vmem:[#allocation7 + $0xeb0] sm:$0xff]
    %v5149 = vld [vmem:[#allocation7 + $0xeb8] sm:$0xff]
    %v5150 = vld [vmem:[#allocation7 + $0xec0] sm:$0xff]
    %v5151 = vld [vmem:[#allocation7 + $0xec8] sm:$0xff]
    %v5152 = vld [vmem:[#allocation7 + $0xed0] sm:$0xff]
    %v5153 = vld [vmem:[#allocation7 + $0xed8] sm:$0xff]
    %v5154 = vld [vmem:[#allocation7 + $0xee0] sm:$0xff]
    %v5155 = vld [vmem:[#allocation7 + $0xee8] sm:$0xff]
    %v5156 = vld [vmem:[#allocation7 + $0xef0] sm:$0xff]
    %v5157 = vld [vmem:[#allocation7 + $0xef8] sm:$0xff]
    %v5158 = vld [vmem:[#allocation7 + $0xf00] sm:$0xff]
    %v5159 = vld [vmem:[#allocation7 + $0xf08] sm:$0xff]
    %v5160 = vld [vmem:[#allocation7 + $0xf10] sm:$0xff]
    %v5161 = vld [vmem:[#allocation7 + $0xf18] sm:$0xff]
    %v5162 = vld [vmem:[#allocation7 + $0xf20] sm:$0xff]
    %v5163 = vld [vmem:[#allocation7 + $0xf28] sm:$0xff]
    %v5164 = vld [vmem:[#allocation7 + $0xf30] sm:$0xff]
    %v5165 = vld [vmem:[#allocation7 + $0xf38] sm:$0xff]
    %v5166 = vld [vmem:[#allocation7 + $0xf40] sm:$0xff]
    %v5167 = vld [vmem:[#allocation7 + $0xf48] sm:$0xff]
    %v5168 = vld [vmem:[#allocation7 + $0xf50] sm:$0xff]
    %v5169 = vld [vmem:[#allocation7 + $0xf58] sm:$0xff]
    %v5170 = vld [vmem:[#allocation7 + $0xf60] sm:$0xff]
    %v5171 = vld [vmem:[#allocation7 + $0xf68] sm:$0xff]
    %v5172 = vld [vmem:[#allocation7 + $0xf70] sm:$0xff]
    %v5173 = vld [vmem:[#allocation7 + $0xf78] sm:$0xff]
    %v5174 = vld [vmem:[#allocation7 + $0xf80] sm:$0xff]
    %v5175 = vld [vmem:[#allocation7 + $0xf88] sm:$0xff]
    %v5176 = vld [vmem:[#allocation7 + $0xf90] sm:$0xff]
    %v5177 = vld [vmem:[#allocation7 + $0xf98] sm:$0xff]
    %v5178 = vld [vmem:[#allocation7 + $0xfa0] sm:$0xff]
    %v5179 = vld [vmem:[#allocation7 + $0xfa8] sm:$0xff]
    %v5180 = vld [vmem:[#allocation7 + $0xfb0] sm:$0xff]
    %v5181 = vld [vmem:[#allocation7 + $0xfb8] sm:$0xff]
    %v5182 = vld [vmem:[#allocation7 + $0xfc0] sm:$0xff]
    %v5183 = vld [vmem:[#allocation7 + $0xfc8] sm:$0xff]
    %v5184 = vld [vmem:[#allocation7 + $0xfd0] sm:$0xff]
    %v5185 = vld [vmem:[#allocation7 + $0xfd8] sm:$0xff]
    %v5186 = vld [vmem:[#allocation7 + $0xfe0] sm:$0xff]
    %v5187 = vld [vmem:[#allocation7 + $0xfe8] sm:$0xff]
    %v5188 = vld [vmem:[#allocation7 + $0xff0] sm:$0xff]
    %v5189 = vld [vmem:[#allocation7 + $0xff8] sm:$0xff]
    %v5190 = vunpack.c.l.s8.bf16 %v4678
    %v5191 = vunpack.c.l.s8.bf16 %v4679
    %v5192 = vunpack.c.l.s8.bf16 %v4680
    %v5193 = vunpack.c.l.s8.bf16 %v4681
    %v5194 = vunpack.c.l.s8.bf16 %v4682
    %v5195 = vunpack.c.l.s8.bf16 %v4683
    %v5196 = vunpack.c.l.s8.bf16 %v4684
    %v5197 = vunpack.c.l.s8.bf16 %v4685
    %v5198 = vunpack.c.h.s8.bf16 %v4678
    %v5199 = vunpack.c.h.s8.bf16 %v4679
    %v5200 = vunpack.c.h.s8.bf16 %v4680
    %v5201 = vunpack.c.h.s8.bf16 %v4681
    %v5202 = vunpack.c.h.s8.bf16 %v4682
    %v5203 = vunpack.c.h.s8.bf16 %v4683
    %v5204 = vunpack.c.h.s8.bf16 %v4684
    %v5205 = vunpack.c.h.s8.bf16 %v4685
    %v5206 = vunpack.c.l.s8.bf16 %v4686
    %v5207 = vunpack.c.l.s8.bf16 %v4687
    %v5208 = vunpack.c.l.s8.bf16 %v4688
    %v5209 = vunpack.c.l.s8.bf16 %v4689
    %v5210 = vunpack.c.l.s8.bf16 %v4690
    %v5211 = vunpack.c.l.s8.bf16 %v4691
    %v5212 = vunpack.c.l.s8.bf16 %v4692
    %v5213 = vunpack.c.l.s8.bf16 %v4693
    %v5214 = vunpack.c.h.s8.bf16 %v4686
    %v5215 = vunpack.c.h.s8.bf16 %v4687
    %v5216 = vunpack.c.h.s8.bf16 %v4688
    %v5217 = vunpack.c.h.s8.bf16 %v4689
    %v5218 = vunpack.c.h.s8.bf16 %v4690
    %v5219 = vunpack.c.h.s8.bf16 %v4691
    %v5220 = vunpack.c.h.s8.bf16 %v4692
    %v5221 = vunpack.c.h.s8.bf16 %v4693
    %v5222 = vunpack.c.l.s8.bf16 %v4694
    %v5223 = vunpack.c.l.s8.bf16 %v4695
    %v5224 = vunpack.c.l.s8.bf16 %v4696
    %v5225 = vunpack.c.l.s8.bf16 %v4697
    %v5226 = vunpack.c.l.s8.bf16 %v4698
    %v5227 = vunpack.c.l.s8.bf16 %v4699
    %v5228 = vunpack.c.l.s8.bf16 %v4700
    %v5229 = vunpack.c.l.s8.bf16 %v4701
    %v5230 = vunpack.c.h.s8.bf16 %v4694
    %v5231 = vunpack.c.h.s8.bf16 %v4695
    %v5232 = vunpack.c.h.s8.bf16 %v4696
    %v5233 = vunpack.c.h.s8.bf16 %v4697
    %v5234 = vunpack.c.h.s8.bf16 %v4698
    %v5235 = vunpack.c.h.s8.bf16 %v4699
    %v5236 = vunpack.c.h.s8.bf16 %v4700
    %v5237 = vunpack.c.h.s8.bf16 %v4701
    %v5238 = vunpack.c.l.s8.bf16 %v4702
    %v5239 = vunpack.c.l.s8.bf16 %v4703
    %v5240 = vunpack.c.l.s8.bf16 %v4704
    %v5241 = vunpack.c.l.s8.bf16 %v4705
    %v5242 = vunpack.c.l.s8.bf16 %v4706
    %v5243 = vunpack.c.l.s8.bf16 %v4707
    %v5244 = vunpack.c.l.s8.bf16 %v4708
    %v5245 = vunpack.c.l.s8.bf16 %v4709
    %v5246 = vunpack.c.h.s8.bf16 %v4702
    %v5247 = vunpack.c.h.s8.bf16 %v4703
    %v5248 = vunpack.c.h.s8.bf16 %v4704
    %v5249 = vunpack.c.h.s8.bf16 %v4705
    %v5250 = vunpack.c.h.s8.bf16 %v4706
    %v5251 = vunpack.c.h.s8.bf16 %v4707
    %v5252 = vunpack.c.h.s8.bf16 %v4708
    %v5253 = vunpack.c.h.s8.bf16 %v4709
    %v5254 = vunpack.c.l.s8.bf16 %v4710
    %v5255 = vunpack.c.l.s8.bf16 %v4711
    %v5256 = vunpack.c.l.s8.bf16 %v4712
    %v5257 = vunpack.c.l.s8.bf16 %v4713
    %v5258 = vunpack.c.l.s8.bf16 %v4714
    %v5259 = vunpack.c.l.s8.bf16 %v4715
    %v5260 = vunpack.c.l.s8.bf16 %v4716
    %v5261 = vunpack.c.l.s8.bf16 %v4717
    %v5262 = vunpack.c.h.s8.bf16 %v4710
    %v5263 = vunpack.c.h.s8.bf16 %v4711
    %v5264 = vunpack.c.h.s8.bf16 %v4712
    %v5265 = vunpack.c.h.s8.bf16 %v4713
    %v5266 = vunpack.c.h.s8.bf16 %v4714
    %v5267 = vunpack.c.h.s8.bf16 %v4715
    %v5268 = vunpack.c.h.s8.bf16 %v4716
    %v5269 = vunpack.c.h.s8.bf16 %v4717
    %v5270 = vunpack.c.l.s8.bf16 %v4718
    %v5271 = vunpack.c.l.s8.bf16 %v4719
    %v5272 = vunpack.c.l.s8.bf16 %v4720
    %v5273 = vunpack.c.l.s8.bf16 %v4721
    %v5274 = vunpack.c.l.s8.bf16 %v4722
    %v5275 = vunpack.c.l.s8.bf16 %v4723
    %v5276 = vunpack.c.l.s8.bf16 %v4724
    %v5277 = vunpack.c.l.s8.bf16 %v4725
    %v5278 = vunpack.c.h.s8.bf16 %v4718
    %v5279 = vunpack.c.h.s8.bf16 %v4719
    %v5280 = vunpack.c.h.s8.bf16 %v4720
    %v5281 = vunpack.c.h.s8.bf16 %v4721
    %v5282 = vunpack.c.h.s8.bf16 %v4722
    %v5283 = vunpack.c.h.s8.bf16 %v4723
    %v5284 = vunpack.c.h.s8.bf16 %v4724
    %v5285 = vunpack.c.h.s8.bf16 %v4725
    %v5286 = vunpack.c.l.s8.bf16 %v4726
    %v5287 = vunpack.c.l.s8.bf16 %v4727
    %v5288 = vunpack.c.l.s8.bf16 %v4728
    %v5289 = vunpack.c.l.s8.bf16 %v4729
    %v5290 = vunpack.c.l.s8.bf16 %v4730
    %v5291 = vunpack.c.l.s8.bf16 %v4731
    %v5292 = vunpack.c.l.s8.bf16 %v4732
    %v5293 = vunpack.c.l.s8.bf16 %v4733
    %v5294 = vunpack.c.h.s8.bf16 %v4726
    %v5295 = vunpack.c.h.s8.bf16 %v4727
    %v5296 = vunpack.c.h.s8.bf16 %v4728
    %v5297 = vunpack.c.h.s8.bf16 %v4729
    %v5298 = vunpack.c.h.s8.bf16 %v4730
    %v5299 = vunpack.c.h.s8.bf16 %v4731
    %v5300 = vunpack.c.h.s8.bf16 %v4732
    %v5301 = vunpack.c.h.s8.bf16 %v4733
    %v5302 = vunpack.c.l.s8.bf16 %v4734
    %v5303 = vunpack.c.l.s8.bf16 %v4735
    %v5304 = vunpack.c.l.s8.bf16 %v4736
    %v5305 = vunpack.c.l.s8.bf16 %v4737
    %v5306 = vunpack.c.l.s8.bf16 %v4738
    %v5307 = vunpack.c.l.s8.bf16 %v4739
    %v5308 = vunpack.c.l.s8.bf16 %v4740
    %v5309 = vunpack.c.l.s8.bf16 %v4741
    %v5310 = vunpack.c.h.s8.bf16 %v4734
    %v5311 = vunpack.c.h.s8.bf16 %v4735
    %v5312 = vunpack.c.h.s8.bf16 %v4736
    %v5313 = vunpack.c.h.s8.bf16 %v4737
    %v5314 = vunpack.c.h.s8.bf16 %v4738
    %v5315 = vunpack.c.h.s8.bf16 %v4739
    %v5316 = vunpack.c.h.s8.bf16 %v4740
    %v5317 = vunpack.c.h.s8.bf16 %v4741
    %v5318 = vunpack.c.l.s8.bf16 %v4742
    %v5319 = vunpack.c.l.s8.bf16 %v4743
    %v5320 = vunpack.c.l.s8.bf16 %v4744
    %v5321 = vunpack.c.l.s8.bf16 %v4745
    %v5322 = vunpack.c.l.s8.bf16 %v4746
    %v5323 = vunpack.c.l.s8.bf16 %v4747
    %v5324 = vunpack.c.l.s8.bf16 %v4748
    %v5325 = vunpack.c.l.s8.bf16 %v4749
    %v5326 = vunpack.c.h.s8.bf16 %v4742
    %v5327 = vunpack.c.h.s8.bf16 %v4743
    %v5328 = vunpack.c.h.s8.bf16 %v4744
    %v5329 = vunpack.c.h.s8.bf16 %v4745
    %v5330 = vunpack.c.h.s8.bf16 %v4746
    %v5331 = vunpack.c.h.s8.bf16 %v4747
    %v5332 = vunpack.c.h.s8.bf16 %v4748
    %v5333 = vunpack.c.h.s8.bf16 %v4749
    %v5334 = vunpack.c.l.s8.bf16 %v4750
    %v5335 = vunpack.c.l.s8.bf16 %v4751
    %v5336 = vunpack.c.l.s8.bf16 %v4752
    %v5337 = vunpack.c.l.s8.bf16 %v4753
    %v5338 = vunpack.c.l.s8.bf16 %v4754
    %v5339 = vunpack.c.l.s8.bf16 %v4755
    %v5340 = vunpack.c.l.s8.bf16 %v4756
    %v5341 = vunpack.c.l.s8.bf16 %v4757
    %v5342 = vunpack.c.h.s8.bf16 %v4750
    %v5343 = vunpack.c.h.s8.bf16 %v4751
    %v5344 = vunpack.c.h.s8.bf16 %v4752
    %v5345 = vunpack.c.h.s8.bf16 %v4753
    %v5346 = vunpack.c.h.s8.bf16 %v4754
    %v5347 = vunpack.c.h.s8.bf16 %v4755
    %v5348 = vunpack.c.h.s8.bf16 %v4756
    %v5349 = vunpack.c.h.s8.bf16 %v4757
    %v5350 = vunpack.c.l.s8.bf16 %v4758
    %v5351 = vunpack.c.l.s8.bf16 %v4759
    %v5352 = vunpack.c.l.s8.bf16 %v4760
    %v5353 = vunpack.c.l.s8.bf16 %v4761
    %v5354 = vunpack.c.l.s8.bf16 %v4762
    %v5355 = vunpack.c.l.s8.bf16 %v4763
    %v5356 = vunpack.c.l.s8.bf16 %v4764
    %v5357 = vunpack.c.l.s8.bf16 %v4765
    %v5358 = vunpack.c.h.s8.bf16 %v4758
    %v5359 = vunpack.c.h.s8.bf16 %v4759
    %v5360 = vunpack.c.h.s8.bf16 %v4760
    %v5361 = vunpack.c.h.s8.bf16 %v4761
    %v5362 = vunpack.c.h.s8.bf16 %v4762
    %v5363 = vunpack.c.h.s8.bf16 %v4763
    %v5364 = vunpack.c.h.s8.bf16 %v4764
    %v5365 = vunpack.c.h.s8.bf16 %v4765
    %v5366 = vunpack.c.l.s8.bf16 %v4766
    %v5367 = vunpack.c.l.s8.bf16 %v4767
    %v5368 = vunpack.c.l.s8.bf16 %v4768
    %v5369 = vunpack.c.l.s8.bf16 %v4769
    %v5370 = vunpack.c.l.s8.bf16 %v4770
    %v5371 = vunpack.c.l.s8.bf16 %v4771
    %v5372 = vunpack.c.l.s8.bf16 %v4772
    %v5373 = vunpack.c.l.s8.bf16 %v4773
    %v5374 = vunpack.c.h.s8.bf16 %v4766
    %v5375 = vunpack.c.h.s8.bf16 %v4767
    %v5376 = vunpack.c.h.s8.bf16 %v4768
    %v5377 = vunpack.c.h.s8.bf16 %v4769
    %v5378 = vunpack.c.h.s8.bf16 %v4770
    %v5379 = vunpack.c.h.s8.bf16 %v4771
    %v5380 = vunpack.c.h.s8.bf16 %v4772
    %v5381 = vunpack.c.h.s8.bf16 %v4773
    %v5382 = vunpack.c.l.s8.bf16 %v4774
    %v5383 = vunpack.c.l.s8.bf16 %v4775
    %v5384 = vunpack.c.l.s8.bf16 %v4776
    %v5385 = vunpack.c.l.s8.bf16 %v4777
    %v5386 = vunpack.c.l.s8.bf16 %v4778
    %v5387 = vunpack.c.l.s8.bf16 %v4779
    %v5388 = vunpack.c.l.s8.bf16 %v4780
    %v5389 = vunpack.c.l.s8.bf16 %v4781
    %v5390 = vunpack.c.h.s8.bf16 %v4774
    %v5391 = vunpack.c.h.s8.bf16 %v4775
    %v5392 = vunpack.c.h.s8.bf16 %v4776
    %v5393 = vunpack.c.h.s8.bf16 %v4777
    %v5394 = vunpack.c.h.s8.bf16 %v4778
    %v5395 = vunpack.c.h.s8.bf16 %v4779
    %v5396 = vunpack.c.h.s8.bf16 %v4780
    %v5397 = vunpack.c.h.s8.bf16 %v4781
    %v5398 = vunpack.c.l.s8.bf16 %v4782
    %v5399 = vunpack.c.l.s8.bf16 %v4783
    %v5400 = vunpack.c.l.s8.bf16 %v4784
    %v5401 = vunpack.c.l.s8.bf16 %v4785
    %v5402 = vunpack.c.l.s8.bf16 %v4786
    %v5403 = vunpack.c.l.s8.bf16 %v4787
    %v5404 = vunpack.c.l.s8.bf16 %v4788
    %v5405 = vunpack.c.l.s8.bf16 %v4789
    %v5406 = vunpack.c.h.s8.bf16 %v4782
    %v5407 = vunpack.c.h.s8.bf16 %v4783
    %v5408 = vunpack.c.h.s8.bf16 %v4784
    %v5409 = vunpack.c.h.s8.bf16 %v4785
    %v5410 = vunpack.c.h.s8.bf16 %v4786
    %v5411 = vunpack.c.h.s8.bf16 %v4787
    %v5412 = vunpack.c.h.s8.bf16 %v4788
    %v5413 = vunpack.c.h.s8.bf16 %v4789
    %v5414 = vunpack.c.l.s8.bf16 %v4790
    %v5415 = vunpack.c.l.s8.bf16 %v4791
    %v5416 = vunpack.c.l.s8.bf16 %v4792
    %v5417 = vunpack.c.l.s8.bf16 %v4793
    %v5418 = vunpack.c.l.s8.bf16 %v4794
    %v5419 = vunpack.c.l.s8.bf16 %v4795
    %v5420 = vunpack.c.l.s8.bf16 %v4796
    %v5421 = vunpack.c.l.s8.bf16 %v4797
    %v5422 = vunpack.c.h.s8.bf16 %v4790
    %v5423 = vunpack.c.h.s8.bf16 %v4791
    %v5424 = vunpack.c.h.s8.bf16 %v4792
    %v5425 = vunpack.c.h.s8.bf16 %v4793
    %v5426 = vunpack.c.h.s8.bf16 %v4794
    %v5427 = vunpack.c.h.s8.bf16 %v4795
    %v5428 = vunpack.c.h.s8.bf16 %v4796
    %v5429 = vunpack.c.h.s8.bf16 %v4797
    %v5430 = vunpack.c.l.s8.bf16 %v4798
    %v5431 = vunpack.c.l.s8.bf16 %v4799
    %v5432 = vunpack.c.l.s8.bf16 %v4800
    %v5433 = vunpack.c.l.s8.bf16 %v4801
    %v5434 = vunpack.c.l.s8.bf16 %v4802
    %v5435 = vunpack.c.l.s8.bf16 %v4803
    %v5436 = vunpack.c.l.s8.bf16 %v4804
    %v5437 = vunpack.c.l.s8.bf16 %v4805
    %v5438 = vunpack.c.h.s8.bf16 %v4798
    %v5439 = vunpack.c.h.s8.bf16 %v4799
    %v5440 = vunpack.c.h.s8.bf16 %v4800
    %v5441 = vunpack.c.h.s8.bf16 %v4801
    %v5442 = vunpack.c.h.s8.bf16 %v4802
    %v5443 = vunpack.c.h.s8.bf16 %v4803
    %v5444 = vunpack.c.h.s8.bf16 %v4804
    %v5445 = vunpack.c.h.s8.bf16 %v4805
    %v5446 = vunpack.c.l.s8.bf16 %v4806
    %v5447 = vunpack.c.l.s8.bf16 %v4807
    %v5448 = vunpack.c.l.s8.bf16 %v4808
    %v5449 = vunpack.c.l.s8.bf16 %v4809
    %v5450 = vunpack.c.l.s8.bf16 %v4810
    %v5451 = vunpack.c.l.s8.bf16 %v4811
    %v5452 = vunpack.c.l.s8.bf16 %v4812
    %v5453 = vunpack.c.l.s8.bf16 %v4813
    %v5454 = vunpack.c.h.s8.bf16 %v4806
    %v5455 = vunpack.c.h.s8.bf16 %v4807
    %v5456 = vunpack.c.h.s8.bf16 %v4808
    %v5457 = vunpack.c.h.s8.bf16 %v4809
    %v5458 = vunpack.c.h.s8.bf16 %v4810
    %v5459 = vunpack.c.h.s8.bf16 %v4811
    %v5460 = vunpack.c.h.s8.bf16 %v4812
    %v5461 = vunpack.c.h.s8.bf16 %v4813
    %v5462 = vunpack.c.l.s8.bf16 %v4814
    %v5463 = vunpack.c.l.s8.bf16 %v4815
    %v5464 = vunpack.c.l.s8.bf16 %v4816
    %v5465 = vunpack.c.l.s8.bf16 %v4817
    %v5466 = vunpack.c.l.s8.bf16 %v4818
    %v5467 = vunpack.c.l.s8.bf16 %v4819
    %v5468 = vunpack.c.l.s8.bf16 %v4820
    %v5469 = vunpack.c.l.s8.bf16 %v4821
    %v5470 = vunpack.c.h.s8.bf16 %v4814
    %v5471 = vunpack.c.h.s8.bf16 %v4815
    %v5472 = vunpack.c.h.s8.bf16 %v4816
    %v5473 = vunpack.c.h.s8.bf16 %v4817
    %v5474 = vunpack.c.h.s8.bf16 %v4818
    %v5475 = vunpack.c.h.s8.bf16 %v4819
    %v5476 = vunpack.c.h.s8.bf16 %v4820
    %v5477 = vunpack.c.h.s8.bf16 %v4821
    %v5478 = vunpack.c.l.s8.bf16 %v4822
    %v5479 = vunpack.c.l.s8.bf16 %v4823
    %v5480 = vunpack.c.l.s8.bf16 %v4824
    %v5481 = vunpack.c.l.s8.bf16 %v4825
    %v5482 = vunpack.c.l.s8.bf16 %v4826
    %v5483 = vunpack.c.l.s8.bf16 %v4827
    %v5484 = vunpack.c.l.s8.bf16 %v4828
    %v5485 = vunpack.c.l.s8.bf16 %v4829
    %v5486 = vunpack.c.h.s8.bf16 %v4822
    %v5487 = vunpack.c.h.s8.bf16 %v4823
    %v5488 = vunpack.c.h.s8.bf16 %v4824
    %v5489 = vunpack.c.h.s8.bf16 %v4825
    %v5490 = vunpack.c.h.s8.bf16 %v4826
    %v5491 = vunpack.c.h.s8.bf16 %v4827
    %v5492 = vunpack.c.h.s8.bf16 %v4828
    %v5493 = vunpack.c.h.s8.bf16 %v4829
    %v5494 = vunpack.c.l.s8.bf16 %v4830
    %v5495 = vunpack.c.l.s8.bf16 %v4831
    %v5496 = vunpack.c.l.s8.bf16 %v4832
    %v5497 = vunpack.c.l.s8.bf16 %v4833
    %v5498 = vunpack.c.l.s8.bf16 %v4834
    %v5499 = vunpack.c.l.s8.bf16 %v4835
    %v5500 = vunpack.c.l.s8.bf16 %v4836
    %v5501 = vunpack.c.l.s8.bf16 %v4837
    %v5502 = vunpack.c.h.s8.bf16 %v4830
    %v5503 = vunpack.c.h.s8.bf16 %v4831
    %v5504 = vunpack.c.h.s8.bf16 %v4832
    %v5505 = vunpack.c.h.s8.bf16 %v4833
    %v5506 = vunpack.c.h.s8.bf16 %v4834
    %v5507 = vunpack.c.h.s8.bf16 %v4835
    %v5508 = vunpack.c.h.s8.bf16 %v4836
    %v5509 = vunpack.c.h.s8.bf16 %v4837
    %v5510 = vunpack.c.l.s8.bf16 %v4838
    %v5511 = vunpack.c.l.s8.bf16 %v4839
    %v5512 = vunpack.c.l.s8.bf16 %v4840
    %v5513 = vunpack.c.l.s8.bf16 %v4841
    %v5514 = vunpack.c.l.s8.bf16 %v4842
    %v5515 = vunpack.c.l.s8.bf16 %v4843
    %v5516 = vunpack.c.l.s8.bf16 %v4844
    %v5517 = vunpack.c.l.s8.bf16 %v4845
    %v5518 = vunpack.c.h.s8.bf16 %v4838
    %v5519 = vunpack.c.h.s8.bf16 %v4839
    %v5520 = vunpack.c.h.s8.bf16 %v4840
    %v5521 = vunpack.c.h.s8.bf16 %v4841
    %v5522 = vunpack.c.h.s8.bf16 %v4842
    %v5523 = vunpack.c.h.s8.bf16 %v4843
    %v5524 = vunpack.c.h.s8.bf16 %v4844
    %v5525 = vunpack.c.h.s8.bf16 %v4845
    %v5526 = vunpack.c.l.s8.bf16 %v4846
    %v5527 = vunpack.c.l.s8.bf16 %v4847
    %v5528 = vunpack.c.l.s8.bf16 %v4848
    %v5529 = vunpack.c.l.s8.bf16 %v4849
    %v5530 = vunpack.c.l.s8.bf16 %v4850
    %v5531 = vunpack.c.l.s8.bf16 %v4851
    %v5532 = vunpack.c.l.s8.bf16 %v4852
    %v5533 = vunpack.c.l.s8.bf16 %v4853
    %v5534 = vunpack.c.h.s8.bf16 %v4846
    %v5535 = vunpack.c.h.s8.bf16 %v4847
    %v5536 = vunpack.c.h.s8.bf16 %v4848
    %v5537 = vunpack.c.h.s8.bf16 %v4849
    %v5538 = vunpack.c.h.s8.bf16 %v4850
    %v5539 = vunpack.c.h.s8.bf16 %v4851
    %v5540 = vunpack.c.h.s8.bf16 %v4852
    %v5541 = vunpack.c.h.s8.bf16 %v4853
    %v5542 = vunpack.c.l.s8.bf16 %v4854
    %v5543 = vunpack.c.l.s8.bf16 %v4855
    %v5544 = vunpack.c.l.s8.bf16 %v4856
    %v5545 = vunpack.c.l.s8.bf16 %v4857
    %v5546 = vunpack.c.l.s8.bf16 %v4858
    %v5547 = vunpack.c.l.s8.bf16 %v4859
    %v5548 = vunpack.c.l.s8.bf16 %v4860
    %v5549 = vunpack.c.l.s8.bf16 %v4861
    %v5550 = vunpack.c.h.s8.bf16 %v4854
    %v5551 = vunpack.c.h.s8.bf16 %v4855
    %v5552 = vunpack.c.h.s8.bf16 %v4856
    %v5553 = vunpack.c.h.s8.bf16 %v4857
    %v5554 = vunpack.c.h.s8.bf16 %v4858
    %v5555 = vunpack.c.h.s8.bf16 %v4859
    %v5556 = vunpack.c.h.s8.bf16 %v4860
    %v5557 = vunpack.c.h.s8.bf16 %v4861
    %v5558 = vunpack.c.l.s8.bf16 %v4862
    %v5559 = vunpack.c.l.s8.bf16 %v4863
    %v5560 = vunpack.c.l.s8.bf16 %v4864
    %v5561 = vunpack.c.l.s8.bf16 %v4865
    %v5562 = vunpack.c.l.s8.bf16 %v4866
    %v5563 = vunpack.c.l.s8.bf16 %v4867
    %v5564 = vunpack.c.l.s8.bf16 %v4868
    %v5565 = vunpack.c.l.s8.bf16 %v4869
    %v5566 = vunpack.c.h.s8.bf16 %v4862
    %v5567 = vunpack.c.h.s8.bf16 %v4863
    %v5568 = vunpack.c.h.s8.bf16 %v4864
    %v5569 = vunpack.c.h.s8.bf16 %v4865
    %v5570 = vunpack.c.h.s8.bf16 %v4866
    %v5571 = vunpack.c.h.s8.bf16 %v4867
    %v5572 = vunpack.c.h.s8.bf16 %v4868
    %v5573 = vunpack.c.h.s8.bf16 %v4869
    %v5574 = vunpack.c.l.s8.bf16 %v4870
    %v5575 = vunpack.c.l.s8.bf16 %v4871
    %v5576 = vunpack.c.l.s8.bf16 %v4872
    %v5577 = vunpack.c.l.s8.bf16 %v4873
    %v5578 = vunpack.c.l.s8.bf16 %v4874
    %v5579 = vunpack.c.l.s8.bf16 %v4875
    %v5580 = vunpack.c.l.s8.bf16 %v4876
    %v5581 = vunpack.c.l.s8.bf16 %v4877
    %v5582 = vunpack.c.h.s8.bf16 %v4870
    %v5583 = vunpack.c.h.s8.bf16 %v4871
    %v5584 = vunpack.c.h.s8.bf16 %v4872
    %v5585 = vunpack.c.h.s8.bf16 %v4873
    %v5586 = vunpack.c.h.s8.bf16 %v4874
    %v5587 = vunpack.c.h.s8.bf16 %v4875
    %v5588 = vunpack.c.h.s8.bf16 %v4876
    %v5589 = vunpack.c.h.s8.bf16 %v4877
    %v5590 = vunpack.c.l.s8.bf16 %v4878
    %v5591 = vunpack.c.l.s8.bf16 %v4879
    %v5592 = vunpack.c.l.s8.bf16 %v4880
    %v5593 = vunpack.c.l.s8.bf16 %v4881
    %v5594 = vunpack.c.l.s8.bf16 %v4882
    %v5595 = vunpack.c.l.s8.bf16 %v4883
    %v5596 = vunpack.c.l.s8.bf16 %v4884
    %v5597 = vunpack.c.l.s8.bf16 %v4885
    %v5598 = vunpack.c.h.s8.bf16 %v4878
    %v5599 = vunpack.c.h.s8.bf16 %v4879
    %v5600 = vunpack.c.h.s8.bf16 %v4880
    %v5601 = vunpack.c.h.s8.bf16 %v4881
    %v5602 = vunpack.c.h.s8.bf16 %v4882
    %v5603 = vunpack.c.h.s8.bf16 %v4883
    %v5604 = vunpack.c.h.s8.bf16 %v4884
    %v5605 = vunpack.c.h.s8.bf16 %v4885
    %v5606 = vunpack.c.l.s8.bf16 %v4886
    %v5607 = vunpack.c.l.s8.bf16 %v4887
    %v5608 = vunpack.c.l.s8.bf16 %v4888
    %v5609 = vunpack.c.l.s8.bf16 %v4889
    %v5610 = vunpack.c.l.s8.bf16 %v4890
    %v5611 = vunpack.c.l.s8.bf16 %v4891
    %v5612 = vunpack.c.l.s8.bf16 %v4892
    %v5613 = vunpack.c.l.s8.bf16 %v4893
    %v5614 = vunpack.c.h.s8.bf16 %v4886
    %v5615 = vunpack.c.h.s8.bf16 %v4887
    %v5616 = vunpack.c.h.s8.bf16 %v4888
    %v5617 = vunpack.c.h.s8.bf16 %v4889
    %v5618 = vunpack.c.h.s8.bf16 %v4890
    %v5619 = vunpack.c.h.s8.bf16 %v4891
    %v5620 = vunpack.c.h.s8.bf16 %v4892
    %v5621 = vunpack.c.h.s8.bf16 %v4893
    %v5622 = vunpack.c.l.s8.bf16 %v4894
    %v5623 = vunpack.c.l.s8.bf16 %v4895
    %v5624 = vunpack.c.l.s8.bf16 %v4896
    %v5625 = vunpack.c.l.s8.bf16 %v4897
    %v5626 = vunpack.c.l.s8.bf16 %v4898
    %v5627 = vunpack.c.l.s8.bf16 %v4899
    %v5628 = vunpack.c.l.s8.bf16 %v4900
    %v5629 = vunpack.c.l.s8.bf16 %v4901
    %v5630 = vunpack.c.h.s8.bf16 %v4894
    %v5631 = vunpack.c.h.s8.bf16 %v4895
    %v5632 = vunpack.c.h.s8.bf16 %v4896
    %v5633 = vunpack.c.h.s8.bf16 %v4897
    %v5634 = vunpack.c.h.s8.bf16 %v4898
    %v5635 = vunpack.c.h.s8.bf16 %v4899
    %v5636 = vunpack.c.h.s8.bf16 %v4900
    %v5637 = vunpack.c.h.s8.bf16 %v4901
    %v5638 = vunpack.c.l.s8.bf16 %v4902
    %v5639 = vunpack.c.l.s8.bf16 %v4903
    %v5640 = vunpack.c.l.s8.bf16 %v4904
    %v5641 = vunpack.c.l.s8.bf16 %v4905
    %v5642 = vunpack.c.l.s8.bf16 %v4906
    %v5643 = vunpack.c.l.s8.bf16 %v4907
    %v5644 = vunpack.c.l.s8.bf16 %v4908
    %v5645 = vunpack.c.l.s8.bf16 %v4909
    %v5646 = vunpack.c.h.s8.bf16 %v4902
    %v5647 = vunpack.c.h.s8.bf16 %v4903
    %v5648 = vunpack.c.h.s8.bf16 %v4904
    %v5649 = vunpack.c.h.s8.bf16 %v4905
    %v5650 = vunpack.c.h.s8.bf16 %v4906
    %v5651 = vunpack.c.h.s8.bf16 %v4907
    %v5652 = vunpack.c.h.s8.bf16 %v4908
    %v5653 = vunpack.c.h.s8.bf16 %v4909
    %v5654 = vunpack.c.l.s8.bf16 %v4910
    %v5655 = vunpack.c.l.s8.bf16 %v4911
    %v5656 = vunpack.c.l.s8.bf16 %v4912
    %v5657 = vunpack.c.l.s8.bf16 %v4913
    %v5658 = vunpack.c.l.s8.bf16 %v4914
    %v5659 = vunpack.c.l.s8.bf16 %v4915
    %v5660 = vunpack.c.l.s8.bf16 %v4916
    %v5661 = vunpack.c.l.s8.bf16 %v4917
    %v5662 = vunpack.c.h.s8.bf16 %v4910
    %v5663 = vunpack.c.h.s8.bf16 %v4911
    %v5664 = vunpack.c.h.s8.bf16 %v4912
    %v5665 = vunpack.c.h.s8.bf16 %v4913
    %v5666 = vunpack.c.h.s8.bf16 %v4914
    %v5667 = vunpack.c.h.s8.bf16 %v4915
    %v5668 = vunpack.c.h.s8.bf16 %v4916
    %v5669 = vunpack.c.h.s8.bf16 %v4917
    %v5670 = vunpack.c.l.s8.bf16 %v4918
    %v5671 = vunpack.c.l.s8.bf16 %v4919
    %v5672 = vunpack.c.l.s8.bf16 %v4920
    %v5673 = vunpack.c.l.s8.bf16 %v4921
    %v5674 = vunpack.c.l.s8.bf16 %v4922
    %v5675 = vunpack.c.l.s8.bf16 %v4923
    %v5676 = vunpack.c.l.s8.bf16 %v4924
    %v5677 = vunpack.c.l.s8.bf16 %v4925
    %v5678 = vunpack.c.h.s8.bf16 %v4918
    %v5679 = vunpack.c.h.s8.bf16 %v4919
    %v5680 = vunpack.c.h.s8.bf16 %v4920
    %v5681 = vunpack.c.h.s8.bf16 %v4921
    %v5682 = vunpack.c.h.s8.bf16 %v4922
    %v5683 = vunpack.c.h.s8.bf16 %v4923
    %v5684 = vunpack.c.h.s8.bf16 %v4924
    %v5685 = vunpack.c.h.s8.bf16 %v4925
    %v5686 = vunpack.c.l.s8.bf16 %v4926
    %v5687 = vunpack.c.l.s8.bf16 %v4927
    %v5688 = vunpack.c.l.s8.bf16 %v4928
    %v5689 = vunpack.c.l.s8.bf16 %v4929
    %v5690 = vunpack.c.l.s8.bf16 %v4930
    %v5691 = vunpack.c.l.s8.bf16 %v4931
    %v5692 = vunpack.c.l.s8.bf16 %v4932
    %v5693 = vunpack.c.l.s8.bf16 %v4933
    %v5694 = vunpack.c.h.s8.bf16 %v4926
    %v5695 = vunpack.c.h.s8.bf16 %v4927
    %v5696 = vunpack.c.h.s8.bf16 %v4928
    %v5697 = vunpack.c.h.s8.bf16 %v4929
    %v5698 = vunpack.c.h.s8.bf16 %v4930
    %v5699 = vunpack.c.h.s8.bf16 %v4931
    %v5700 = vunpack.c.h.s8.bf16 %v4932
    %v5701 = vunpack.c.h.s8.bf16 %v4933
    %v5702 = vunpack.c.l.s8.bf16 %v4934
    %v5703 = vunpack.c.l.s8.bf16 %v4935
    %v5704 = vunpack.c.l.s8.bf16 %v4936
    %v5705 = vunpack.c.l.s8.bf16 %v4937
    %v5706 = vunpack.c.l.s8.bf16 %v4938
    %v5707 = vunpack.c.l.s8.bf16 %v4939
    %v5708 = vunpack.c.l.s8.bf16 %v4940
    %v5709 = vunpack.c.l.s8.bf16 %v4941
    %v5710 = vunpack.c.h.s8.bf16 %v4934
    %v5711 = vunpack.c.h.s8.bf16 %v4935
    %v5712 = vunpack.c.h.s8.bf16 %v4936
    %v5713 = vunpack.c.h.s8.bf16 %v4937
    %v5714 = vunpack.c.h.s8.bf16 %v4938
    %v5715 = vunpack.c.h.s8.bf16 %v4939
    %v5716 = vunpack.c.h.s8.bf16 %v4940
    %v5717 = vunpack.c.h.s8.bf16 %v4941
    %v5718 = vunpack.c.l.s8.bf16 %v4942
    %v5719 = vunpack.c.l.s8.bf16 %v4943
    %v5720 = vunpack.c.l.s8.bf16 %v4944
    %v5721 = vunpack.c.l.s8.bf16 %v4945
    %v5722 = vunpack.c.l.s8.bf16 %v4946
    %v5723 = vunpack.c.l.s8.bf16 %v4947
    %v5724 = vunpack.c.l.s8.bf16 %v4948
    %v5725 = vunpack.c.l.s8.bf16 %v4949
    %v5726 = vunpack.c.h.s8.bf16 %v4942
    %v5727 = vunpack.c.h.s8.bf16 %v4943
    %v5728 = vunpack.c.h.s8.bf16 %v4944
    %v5729 = vunpack.c.h.s8.bf16 %v4945
    %v5730 = vunpack.c.h.s8.bf16 %v4946
    %v5731 = vunpack.c.h.s8.bf16 %v4947
    %v5732 = vunpack.c.h.s8.bf16 %v4948
    %v5733 = vunpack.c.h.s8.bf16 %v4949
    %v5734 = vunpack.c.l.s8.bf16 %v4950
    %v5735 = vunpack.c.l.s8.bf16 %v4951
    %v5736 = vunpack.c.l.s8.bf16 %v4952
    %v5737 = vunpack.c.l.s8.bf16 %v4953
    %v5738 = vunpack.c.l.s8.bf16 %v4954
    %v5739 = vunpack.c.l.s8.bf16 %v4955
    %v5740 = vunpack.c.l.s8.bf16 %v4956
    %v5741 = vunpack.c.l.s8.bf16 %v4957
    %v5742 = vunpack.c.h.s8.bf16 %v4950
    %v5743 = vunpack.c.h.s8.bf16 %v4951
    %v5744 = vunpack.c.h.s8.bf16 %v4952
    %v5745 = vunpack.c.h.s8.bf16 %v4953
    %v5746 = vunpack.c.h.s8.bf16 %v4954
    %v5747 = vunpack.c.h.s8.bf16 %v4955
    %v5748 = vunpack.c.h.s8.bf16 %v4956
    %v5749 = vunpack.c.h.s8.bf16 %v4957
    %v5750 = vunpack.c.l.s8.bf16 %v4958
    %v5751 = vunpack.c.l.s8.bf16 %v4959
    %v5752 = vunpack.c.l.s8.bf16 %v4960
    %v5753 = vunpack.c.l.s8.bf16 %v4961
    %v5754 = vunpack.c.l.s8.bf16 %v4962
    %v5755 = vunpack.c.l.s8.bf16 %v4963
    %v5756 = vunpack.c.l.s8.bf16 %v4964
    %v5757 = vunpack.c.l.s8.bf16 %v4965
    %v5758 = vunpack.c.h.s8.bf16 %v4958
    %v5759 = vunpack.c.h.s8.bf16 %v4959
    %v5760 = vunpack.c.h.s8.bf16 %v4960
    %v5761 = vunpack.c.h.s8.bf16 %v4961
    %v5762 = vunpack.c.h.s8.bf16 %v4962
    %v5763 = vunpack.c.h.s8.bf16 %v4963
    %v5764 = vunpack.c.h.s8.bf16 %v4964
    %v5765 = vunpack.c.h.s8.bf16 %v4965
    %v5766 = vunpack.c.l.s8.bf16 %v4966
    %v5767 = vunpack.c.l.s8.bf16 %v4967
    %v5768 = vunpack.c.l.s8.bf16 %v4968
    %v5769 = vunpack.c.l.s8.bf16 %v4969
    %v5770 = vunpack.c.l.s8.bf16 %v4970
    %v5771 = vunpack.c.l.s8.bf16 %v4971
    %v5772 = vunpack.c.l.s8.bf16 %v4972
    %v5773 = vunpack.c.l.s8.bf16 %v4973
    %v5774 = vunpack.c.h.s8.bf16 %v4966
    %v5775 = vunpack.c.h.s8.bf16 %v4967
    %v5776 = vunpack.c.h.s8.bf16 %v4968
    %v5777 = vunpack.c.h.s8.bf16 %v4969
    %v5778 = vunpack.c.h.s8.bf16 %v4970
    %v5779 = vunpack.c.h.s8.bf16 %v4971
    %v5780 = vunpack.c.h.s8.bf16 %v4972
    %v5781 = vunpack.c.h.s8.bf16 %v4973
    %v5782 = vunpack.c.l.s8.bf16 %v4974
    %v5783 = vunpack.c.l.s8.bf16 %v4975
    %v5784 = vunpack.c.l.s8.bf16 %v4976
    %v5785 = vunpack.c.l.s8.bf16 %v4977
    %v5786 = vunpack.c.l.s8.bf16 %v4978
    %v5787 = vunpack.c.l.s8.bf16 %v4979
    %v5788 = vunpack.c.l.s8.bf16 %v4980
    %v5789 = vunpack.c.l.s8.bf16 %v4981
    %v5790 = vunpack.c.h.s8.bf16 %v4974
    %v5791 = vunpack.c.h.s8.bf16 %v4975
    %v5792 = vunpack.c.h.s8.bf16 %v4976
    %v5793 = vunpack.c.h.s8.bf16 %v4977
    %v5794 = vunpack.c.h.s8.bf16 %v4978
    %v5795 = vunpack.c.h.s8.bf16 %v4979
    %v5796 = vunpack.c.h.s8.bf16 %v4980
    %v5797 = vunpack.c.h.s8.bf16 %v4981
    %v5798 = vunpack.c.l.s8.bf16 %v4982
    %v5799 = vunpack.c.l.s8.bf16 %v4983
    %v5800 = vunpack.c.l.s8.bf16 %v4984
    %v5801 = vunpack.c.l.s8.bf16 %v4985
    %v5802 = vunpack.c.l.s8.bf16 %v4986
    %v5803 = vunpack.c.l.s8.bf16 %v4987
    %v5804 = vunpack.c.l.s8.bf16 %v4988
    %v5805 = vunpack.c.l.s8.bf16 %v4989
    %v5806 = vunpack.c.h.s8.bf16 %v4982
    %v5807 = vunpack.c.h.s8.bf16 %v4983
    %v5808 = vunpack.c.h.s8.bf16 %v4984
    %v5809 = vunpack.c.h.s8.bf16 %v4985
    %v5810 = vunpack.c.h.s8.bf16 %v4986
    %v5811 = vunpack.c.h.s8.bf16 %v4987
    %v5812 = vunpack.c.h.s8.bf16 %v4988
    %v5813 = vunpack.c.h.s8.bf16 %v4989
    %v5814 = vunpack.c.l.s8.bf16 %v4990
    %v5815 = vunpack.c.l.s8.bf16 %v4991
    %v5816 = vunpack.c.l.s8.bf16 %v4992
    %v5817 = vunpack.c.l.s8.bf16 %v4993
    %v5818 = vunpack.c.l.s8.bf16 %v4994
    %v5819 = vunpack.c.l.s8.bf16 %v4995
    %v5820 = vunpack.c.l.s8.bf16 %v4996
    %v5821 = vunpack.c.l.s8.bf16 %v4997
    %v5822 = vunpack.c.h.s8.bf16 %v4990
    %v5823 = vunpack.c.h.s8.bf16 %v4991
    %v5824 = vunpack.c.h.s8.bf16 %v4992
    %v5825 = vunpack.c.h.s8.bf16 %v4993
    %v5826 = vunpack.c.h.s8.bf16 %v4994
    %v5827 = vunpack.c.h.s8.bf16 %v4995
    %v5828 = vunpack.c.h.s8.bf16 %v4996
    %v5829 = vunpack.c.h.s8.bf16 %v4997
    %v5830 = vunpack.c.l.s8.bf16 %v4998
    %v5831 = vunpack.c.l.s8.bf16 %v4999
    %v5832 = vunpack.c.l.s8.bf16 %v5000
    %v5833 = vunpack.c.l.s8.bf16 %v5001
    %v5834 = vunpack.c.l.s8.bf16 %v5002
    %v5835 = vunpack.c.l.s8.bf16 %v5003
    %v5836 = vunpack.c.l.s8.bf16 %v5004
    %v5837 = vunpack.c.l.s8.bf16 %v5005
    %v5838 = vunpack.c.h.s8.bf16 %v4998
    %v5839 = vunpack.c.h.s8.bf16 %v4999
    %v5840 = vunpack.c.h.s8.bf16 %v5000
    %v5841 = vunpack.c.h.s8.bf16 %v5001
    %v5842 = vunpack.c.h.s8.bf16 %v5002
    %v5843 = vunpack.c.h.s8.bf16 %v5003
    %v5844 = vunpack.c.h.s8.bf16 %v5004
    %v5845 = vunpack.c.h.s8.bf16 %v5005
    %v5846 = vunpack.c.l.s8.bf16 %v5006
    %v5847 = vunpack.c.l.s8.bf16 %v5007
    %v5848 = vunpack.c.l.s8.bf16 %v5008
    %v5849 = vunpack.c.l.s8.bf16 %v5009
    %v5850 = vunpack.c.l.s8.bf16 %v5010
    %v5851 = vunpack.c.l.s8.bf16 %v5011
    %v5852 = vunpack.c.l.s8.bf16 %v5012
    %v5853 = vunpack.c.l.s8.bf16 %v5013
    %v5854 = vunpack.c.h.s8.bf16 %v5006
    %v5855 = vunpack.c.h.s8.bf16 %v5007
    %v5856 = vunpack.c.h.s8.bf16 %v5008
    %v5857 = vunpack.c.h.s8.bf16 %v5009
    %v5858 = vunpack.c.h.s8.bf16 %v5010
    %v5859 = vunpack.c.h.s8.bf16 %v5011
    %v5860 = vunpack.c.h.s8.bf16 %v5012
    %v5861 = vunpack.c.h.s8.bf16 %v5013
    %v5862 = vunpack.c.l.s8.bf16 %v5014
    %v5863 = vunpack.c.l.s8.bf16 %v5015
    %v5864 = vunpack.c.l.s8.bf16 %v5016
    %v5865 = vunpack.c.l.s8.bf16 %v5017
    %v5866 = vunpack.c.l.s8.bf16 %v5018
    %v5867 = vunpack.c.l.s8.bf16 %v5019
    %v5868 = vunpack.c.l.s8.bf16 %v5020
    %v5869 = vunpack.c.l.s8.bf16 %v5021
    %v5870 = vunpack.c.h.s8.bf16 %v5014
    %v5871 = vunpack.c.h.s8.bf16 %v5015
    %v5872 = vunpack.c.h.s8.bf16 %v5016
    %v5873 = vunpack.c.h.s8.bf16 %v5017
    %v5874 = vunpack.c.h.s8.bf16 %v5018
    %v5875 = vunpack.c.h.s8.bf16 %v5019
    %v5876 = vunpack.c.h.s8.bf16 %v5020
    %v5877 = vunpack.c.h.s8.bf16 %v5021
    %v5878 = vunpack.c.l.s8.bf16 %v5022
    %v5879 = vunpack.c.l.s8.bf16 %v5023
    %v5880 = vunpack.c.l.s8.bf16 %v5024
    %v5881 = vunpack.c.l.s8.bf16 %v5025
    %v5882 = vunpack.c.l.s8.bf16 %v5026
    %v5883 = vunpack.c.l.s8.bf16 %v5027
    %v5884 = vunpack.c.l.s8.bf16 %v5028
    %v5885 = vunpack.c.l.s8.bf16 %v5029
    %v5886 = vunpack.c.h.s8.bf16 %v5022
    %v5887 = vunpack.c.h.s8.bf16 %v5023
    %v5888 = vunpack.c.h.s8.bf16 %v5024
    %v5889 = vunpack.c.h.s8.bf16 %v5025
    %v5890 = vunpack.c.h.s8.bf16 %v5026
    %v5891 = vunpack.c.h.s8.bf16 %v5027
    %v5892 = vunpack.c.h.s8.bf16 %v5028
    %v5893 = vunpack.c.h.s8.bf16 %v5029
    %v5894 = vunpack.c.l.s8.bf16 %v5030
    %v5895 = vunpack.c.l.s8.bf16 %v5031
    %v5896 = vunpack.c.l.s8.bf16 %v5032
    %v5897 = vunpack.c.l.s8.bf16 %v5033
    %v5898 = vunpack.c.l.s8.bf16 %v5034
    %v5899 = vunpack.c.l.s8.bf16 %v5035
    %v5900 = vunpack.c.l.s8.bf16 %v5036
    %v5901 = vunpack.c.l.s8.bf16 %v5037
    %v5902 = vunpack.c.h.s8.bf16 %v5030
    %v5903 = vunpack.c.h.s8.bf16 %v5031
    %v5904 = vunpack.c.h.s8.bf16 %v5032
    %v5905 = vunpack.c.h.s8.bf16 %v5033
    %v5906 = vunpack.c.h.s8.bf16 %v5034
    %v5907 = vunpack.c.h.s8.bf16 %v5035
    %v5908 = vunpack.c.h.s8.bf16 %v5036
    %v5909 = vunpack.c.h.s8.bf16 %v5037
    %v5910 = vunpack.c.l.s8.bf16 %v5038
    %v5911 = vunpack.c.l.s8.bf16 %v5039
    %v5912 = vunpack.c.l.s8.bf16 %v5040
    %v5913 = vunpack.c.l.s8.bf16 %v5041
    %v5914 = vunpack.c.l.s8.bf16 %v5042
    %v5915 = vunpack.c.l.s8.bf16 %v5043
    %v5916 = vunpack.c.l.s8.bf16 %v5044
    %v5917 = vunpack.c.l.s8.bf16 %v5045
    %v5918 = vunpack.c.h.s8.bf16 %v5038
    %v5919 = vunpack.c.h.s8.bf16 %v5039
    %v5920 = vunpack.c.h.s8.bf16 %v5040
    %v5921 = vunpack.c.h.s8.bf16 %v5041
    %v5922 = vunpack.c.h.s8.bf16 %v5042
    %v5923 = vunpack.c.h.s8.bf16 %v5043
    %v5924 = vunpack.c.h.s8.bf16 %v5044
    %v5925 = vunpack.c.h.s8.bf16 %v5045
    %v5926 = vunpack.c.l.s8.bf16 %v5046
    %v5927 = vunpack.c.l.s8.bf16 %v5047
    %v5928 = vunpack.c.l.s8.bf16 %v5048
    %v5929 = vunpack.c.l.s8.bf16 %v5049
    %v5930 = vunpack.c.l.s8.bf16 %v5050
    %v5931 = vunpack.c.l.s8.bf16 %v5051
    %v5932 = vunpack.c.l.s8.bf16 %v5052
    %v5933 = vunpack.c.l.s8.bf16 %v5053
    %v5934 = vunpack.c.h.s8.bf16 %v5046
    %v5935 = vunpack.c.h.s8.bf16 %v5047
    %v5936 = vunpack.c.h.s8.bf16 %v5048
    %v5937 = vunpack.c.h.s8.bf16 %v5049
    %v5938 = vunpack.c.h.s8.bf16 %v5050
    %v5939 = vunpack.c.h.s8.bf16 %v5051
    %v5940 = vunpack.c.h.s8.bf16 %v5052
    %v5941 = vunpack.c.h.s8.bf16 %v5053
    %v5942 = vunpack.c.l.s8.bf16 %v5054
    %v5943 = vunpack.c.l.s8.bf16 %v5055
    %v5944 = vunpack.c.l.s8.bf16 %v5056
    %v5945 = vunpack.c.l.s8.bf16 %v5057
    %v5946 = vunpack.c.l.s8.bf16 %v5058
    %v5947 = vunpack.c.l.s8.bf16 %v5059
    %v5948 = vunpack.c.l.s8.bf16 %v5060
    %v5949 = vunpack.c.l.s8.bf16 %v5061
    %v5950 = vunpack.c.h.s8.bf16 %v5054
    %v5951 = vunpack.c.h.s8.bf16 %v5055
    %v5952 = vunpack.c.h.s8.bf16 %v5056
    %v5953 = vunpack.c.h.s8.bf16 %v5057
    %v5954 = vunpack.c.h.s8.bf16 %v5058
    %v5955 = vunpack.c.h.s8.bf16 %v5059
    %v5956 = vunpack.c.h.s8.bf16 %v5060
    %v5957 = vunpack.c.h.s8.bf16 %v5061
    %v5958 = vunpack.c.l.s8.bf16 %v5062
    %v5959 = vunpack.c.l.s8.bf16 %v5063
    %v5960 = vunpack.c.l.s8.bf16 %v5064
    %v5961 = vunpack.c.l.s8.bf16 %v5065
    %v5962 = vunpack.c.l.s8.bf16 %v5066
    %v5963 = vunpack.c.l.s8.bf16 %v5067
    %v5964 = vunpack.c.l.s8.bf16 %v5068
    %v5965 = vunpack.c.l.s8.bf16 %v5069
    %v5966 = vunpack.c.h.s8.bf16 %v5062
    %v5967 = vunpack.c.h.s8.bf16 %v5063
    %v5968 = vunpack.c.h.s8.bf16 %v5064
    %v5969 = vunpack.c.h.s8.bf16 %v5065
    %v5970 = vunpack.c.h.s8.bf16 %v5066
    %v5971 = vunpack.c.h.s8.bf16 %v5067
    %v5972 = vunpack.c.h.s8.bf16 %v5068
    %v5973 = vunpack.c.h.s8.bf16 %v5069
    %v5974 = vunpack.c.l.s8.bf16 %v5070
    %v5975 = vunpack.c.l.s8.bf16 %v5071
    %v5976 = vunpack.c.l.s8.bf16 %v5072
    %v5977 = vunpack.c.l.s8.bf16 %v5073
    %v5978 = vunpack.c.l.s8.bf16 %v5074
    %v5979 = vunpack.c.l.s8.bf16 %v5075
    %v5980 = vunpack.c.l.s8.bf16 %v5076
    %v5981 = vunpack.c.l.s8.bf16 %v5077
    %v5982 = vunpack.c.h.s8.bf16 %v5070
    %v5983 = vunpack.c.h.s8.bf16 %v5071
    %v5984 = vunpack.c.h.s8.bf16 %v5072
    %v5985 = vunpack.c.h.s8.bf16 %v5073
    %v5986 = vunpack.c.h.s8.bf16 %v5074
    %v5987 = vunpack.c.h.s8.bf16 %v5075
    %v5988 = vunpack.c.h.s8.bf16 %v5076
    %v5989 = vunpack.c.h.s8.bf16 %v5077
    %v5990 = vunpack.c.l.s8.bf16 %v5078
    %v5991 = vunpack.c.l.s8.bf16 %v5079
    %v5992 = vunpack.c.l.s8.bf16 %v5080
    %v5993 = vunpack.c.l.s8.bf16 %v5081
    %v5994 = vunpack.c.l.s8.bf16 %v5082
    %v5995 = vunpack.c.l.s8.bf16 %v5083
    %v5996 = vunpack.c.l.s8.bf16 %v5084
    %v5997 = vunpack.c.l.s8.bf16 %v5085
    %v5998 = vunpack.c.h.s8.bf16 %v5078
    %v5999 = vunpack.c.h.s8.bf16 %v5079
    %v6000 = vunpack.c.h.s8.bf16 %v5080
    %v6001 = vunpack.c.h.s8.bf16 %v5081
    %v6002 = vunpack.c.h.s8.bf16 %v5082
    %v6003 = vunpack.c.h.s8.bf16 %v5083
    %v6004 = vunpack.c.h.s8.bf16 %v5084
    %v6005 = vunpack.c.h.s8.bf16 %v5085
    %v6006 = vunpack.c.l.s8.bf16 %v5086
    %v6007 = vunpack.c.l.s8.bf16 %v5087
    %v6008 = vunpack.c.l.s8.bf16 %v5088
    %v6009 = vunpack.c.l.s8.bf16 %v5089
    %v6010 = vunpack.c.l.s8.bf16 %v5090
    %v6011 = vunpack.c.l.s8.bf16 %v5091
    %v6012 = vunpack.c.l.s8.bf16 %v5092
    %v6013 = vunpack.c.l.s8.bf16 %v5093
    %v6014 = vunpack.c.h.s8.bf16 %v5086
    %v6015 = vunpack.c.h.s8.bf16 %v5087
    %v6016 = vunpack.c.h.s8.bf16 %v5088
    %v6017 = vunpack.c.h.s8.bf16 %v5089
    %v6018 = vunpack.c.h.s8.bf16 %v5090
    %v6019 = vunpack.c.h.s8.bf16 %v5091
    %v6020 = vunpack.c.h.s8.bf16 %v5092
    %v6021 = vunpack.c.h.s8.bf16 %v5093
    %v6022 = vunpack.c.l.s8.bf16 %v5094
    %v6023 = vunpack.c.l.s8.bf16 %v5095
    %v6024 = vunpack.c.l.s8.bf16 %v5096
    %v6025 = vunpack.c.l.s8.bf16 %v5097
    %v6026 = vunpack.c.l.s8.bf16 %v5098
    %v6027 = vunpack.c.l.s8.bf16 %v5099
    %v6028 = vunpack.c.l.s8.bf16 %v5100
    %v6029 = vunpack.c.l.s8.bf16 %v5101
    %v6030 = vunpack.c.h.s8.bf16 %v5094
    %v6031 = vunpack.c.h.s8.bf16 %v5095
    %v6032 = vunpack.c.h.s8.bf16 %v5096
    %v6033 = vunpack.c.h.s8.bf16 %v5097
    %v6034 = vunpack.c.h.s8.bf16 %v5098
    %v6035 = vunpack.c.h.s8.bf16 %v5099
    %v6036 = vunpack.c.h.s8.bf16 %v5100
    %v6037 = vunpack.c.h.s8.bf16 %v5101
    %v6038 = vunpack.c.l.s8.bf16 %v5102
    %v6039 = vunpack.c.l.s8.bf16 %v5103
    %v6040 = vunpack.c.l.s8.bf16 %v5104
    %v6041 = vunpack.c.l.s8.bf16 %v5105
    %v6042 = vunpack.c.l.s8.bf16 %v5106
    %v6043 = vunpack.c.l.s8.bf16 %v5107
    %v6044 = vunpack.c.l.s8.bf16 %v5108
    %v6045 = vunpack.c.l.s8.bf16 %v5109
    %v6046 = vunpack.c.h.s8.bf16 %v5102
    %v6047 = vunpack.c.h.s8.bf16 %v5103
    %v6048 = vunpack.c.h.s8.bf16 %v5104
    %v6049 = vunpack.c.h.s8.bf16 %v5105
    %v6050 = vunpack.c.h.s8.bf16 %v5106
    %v6051 = vunpack.c.h.s8.bf16 %v5107
    %v6052 = vunpack.c.h.s8.bf16 %v5108
    %v6053 = vunpack.c.h.s8.bf16 %v5109
    %v6054 = vunpack.c.l.s8.bf16 %v5110
    %v6055 = vunpack.c.l.s8.bf16 %v5111
    %v6056 = vunpack.c.l.s8.bf16 %v5112
    %v6057 = vunpack.c.l.s8.bf16 %v5113
    %v6058 = vunpack.c.l.s8.bf16 %v5114
    %v6059 = vunpack.c.l.s8.bf16 %v5115
    %v6060 = vunpack.c.l.s8.bf16 %v5116
    %v6061 = vunpack.c.l.s8.bf16 %v5117
    %v6062 = vunpack.c.h.s8.bf16 %v5110
    %v6063 = vunpack.c.h.s8.bf16 %v5111
    %v6064 = vunpack.c.h.s8.bf16 %v5112
    %v6065 = vunpack.c.h.s8.bf16 %v5113
    %v6066 = vunpack.c.h.s8.bf16 %v5114
    %v6067 = vunpack.c.h.s8.bf16 %v5115
    %v6068 = vunpack.c.h.s8.bf16 %v5116
    %v6069 = vunpack.c.h.s8.bf16 %v5117
    %v6070 = vunpack.c.l.s8.bf16 %v5118
    %v6071 = vunpack.c.l.s8.bf16 %v5119
    %v6072 = vunpack.c.l.s8.bf16 %v5120
    %v6073 = vunpack.c.l.s8.bf16 %v5121
    %v6074 = vunpack.c.l.s8.bf16 %v5122
    %v6075 = vunpack.c.l.s8.bf16 %v5123
    %v6076 = vunpack.c.l.s8.bf16 %v5124
    %v6077 = vunpack.c.l.s8.bf16 %v5125
    %v6078 = vunpack.c.h.s8.bf16 %v5118
    %v6079 = vunpack.c.h.s8.bf16 %v5119
    %v6080 = vunpack.c.h.s8.bf16 %v5120
    %v6081 = vunpack.c.h.s8.bf16 %v5121
    %v6082 = vunpack.c.h.s8.bf16 %v5122
    %v6083 = vunpack.c.h.s8.bf16 %v5123
    %v6084 = vunpack.c.h.s8.bf16 %v5124
    %v6085 = vunpack.c.h.s8.bf16 %v5125
    %v6086 = vunpack.c.l.s8.bf16 %v5126
    %v6087 = vunpack.c.l.s8.bf16 %v5127
    %v6088 = vunpack.c.l.s8.bf16 %v5128
    %v6089 = vunpack.c.l.s8.bf16 %v5129
    %v6090 = vunpack.c.l.s8.bf16 %v5130
    %v6091 = vunpack.c.l.s8.bf16 %v5131
    %v6092 = vunpack.c.l.s8.bf16 %v5132
    %v6093 = vunpack.c.l.s8.bf16 %v5133
    %v6094 = vunpack.c.h.s8.bf16 %v5126
    %v6095 = vunpack.c.h.s8.bf16 %v5127
    %v6096 = vunpack.c.h.s8.bf16 %v5128
    %v6097 = vunpack.c.h.s8.bf16 %v5129
    %v6098 = vunpack.c.h.s8.bf16 %v5130
    %v6099 = vunpack.c.h.s8.bf16 %v5131
    %v6100 = vunpack.c.h.s8.bf16 %v5132
    %v6101 = vunpack.c.h.s8.bf16 %v5133
    %v6102 = vunpack.c.l.s8.bf16 %v5134
    %v6103 = vunpack.c.l.s8.bf16 %v5135
    %v6104 = vunpack.c.l.s8.bf16 %v5136
    %v6105 = vunpack.c.l.s8.bf16 %v5137
    %v6106 = vunpack.c.l.s8.bf16 %v5138
    %v6107 = vunpack.c.l.s8.bf16 %v5139
    %v6108 = vunpack.c.l.s8.bf16 %v5140
    %v6109 = vunpack.c.l.s8.bf16 %v5141
    %v6110 = vunpack.c.h.s8.bf16 %v5134
    %v6111 = vunpack.c.h.s8.bf16 %v5135
    %v6112 = vunpack.c.h.s8.bf16 %v5136
    %v6113 = vunpack.c.h.s8.bf16 %v5137
    %v6114 = vunpack.c.h.s8.bf16 %v5138
    %v6115 = vunpack.c.h.s8.bf16 %v5139
    %v6116 = vunpack.c.h.s8.bf16 %v5140
    %v6117 = vunpack.c.h.s8.bf16 %v5141
    %v6118 = vunpack.c.l.s8.bf16 %v5142
    %v6119 = vunpack.c.l.s8.bf16 %v5143
    %v6120 = vunpack.c.l.s8.bf16 %v5144
    %v6121 = vunpack.c.l.s8.bf16 %v5145
    %v6122 = vunpack.c.l.s8.bf16 %v5146
    %v6123 = vunpack.c.l.s8.bf16 %v5147
    %v6124 = vunpack.c.l.s8.bf16 %v5148
    %v6125 = vunpack.c.l.s8.bf16 %v5149
    %v6126 = vunpack.c.h.s8.bf16 %v5142
    %v6127 = vunpack.c.h.s8.bf16 %v5143
    %v6128 = vunpack.c.h.s8.bf16 %v5144
    %v6129 = vunpack.c.h.s8.bf16 %v5145
    %v6130 = vunpack.c.h.s8.bf16 %v5146
    %v6131 = vunpack.c.h.s8.bf16 %v5147
    %v6132 = vunpack.c.h.s8.bf16 %v5148
    %v6133 = vunpack.c.h.s8.bf16 %v5149
    %v6134 = vunpack.c.l.s8.bf16 %v5150
    %v6135 = vunpack.c.l.s8.bf16 %v5151
    %v6136 = vunpack.c.l.s8.bf16 %v5152
    %v6137 = vunpack.c.l.s8.bf16 %v5153
    %v6138 = vunpack.c.l.s8.bf16 %v5154
    %v6139 = vunpack.c.l.s8.bf16 %v5155
    %v6140 = vunpack.c.l.s8.bf16 %v5156
    %v6141 = vunpack.c.l.s8.bf16 %v5157
    %v6142 = vunpack.c.h.s8.bf16 %v5150
    %v6143 = vunpack.c.h.s8.bf16 %v5151
    %v6144 = vunpack.c.h.s8.bf16 %v5152
    %v6145 = vunpack.c.h.s8.bf16 %v5153
    %v6146 = vunpack.c.h.s8.bf16 %v5154
    %v6147 = vunpack.c.h.s8.bf16 %v5155
    %v6148 = vunpack.c.h.s8.bf16 %v5156
    %v6149 = vunpack.c.h.s8.bf16 %v5157
    %v6150 = vunpack.c.l.s8.bf16 %v5158
    %v6151 = vunpack.c.l.s8.bf16 %v5159
    %v6152 = vunpack.c.l.s8.bf16 %v5160
    %v6153 = vunpack.c.l.s8.bf16 %v5161
    %v6154 = vunpack.c.l.s8.bf16 %v5162
    %v6155 = vunpack.c.l.s8.bf16 %v5163
    %v6156 = vunpack.c.l.s8.bf16 %v5164
    %v6157 = vunpack.c.l.s8.bf16 %v5165
    %v6158 = vunpack.c.h.s8.bf16 %v5158
    %v6159 = vunpack.c.h.s8.bf16 %v5159
    %v6160 = vunpack.c.h.s8.bf16 %v5160
    %v6161 = vunpack.c.h.s8.bf16 %v5161
    %v6162 = vunpack.c.h.s8.bf16 %v5162
    %v6163 = vunpack.c.h.s8.bf16 %v5163
    %v6164 = vunpack.c.h.s8.bf16 %v5164
    %v6165 = vunpack.c.h.s8.bf16 %v5165
    %v6166 = vunpack.c.l.s8.bf16 %v5166
    %v6167 = vunpack.c.l.s8.bf16 %v5167
    %v6168 = vunpack.c.l.s8.bf16 %v5168
    %v6169 = vunpack.c.l.s8.bf16 %v5169
    %v6170 = vunpack.c.l.s8.bf16 %v5170
    %v6171 = vunpack.c.l.s8.bf16 %v5171
    %v6172 = vunpack.c.l.s8.bf16 %v5172
    %v6173 = vunpack.c.l.s8.bf16 %v5173
    %v6174 = vunpack.c.h.s8.bf16 %v5166
    %v6175 = vunpack.c.h.s8.bf16 %v5167
    %v6176 = vunpack.c.h.s8.bf16 %v5168
    %v6177 = vunpack.c.h.s8.bf16 %v5169
    %v6178 = vunpack.c.h.s8.bf16 %v5170
    %v6179 = vunpack.c.h.s8.bf16 %v5171
    %v6180 = vunpack.c.h.s8.bf16 %v5172
    %v6181 = vunpack.c.h.s8.bf16 %v5173
    %v6182 = vunpack.c.l.s8.bf16 %v5174
    %v6183 = vunpack.c.l.s8.bf16 %v5175
    %v6184 = vunpack.c.l.s8.bf16 %v5176
    %v6185 = vunpack.c.l.s8.bf16 %v5177
    %v6186 = vunpack.c.l.s8.bf16 %v5178
    %v6187 = vunpack.c.l.s8.bf16 %v5179
    %v6188 = vunpack.c.l.s8.bf16 %v5180
    %v6189 = vunpack.c.l.s8.bf16 %v5181
    %v6190 = vunpack.c.h.s8.bf16 %v5174
    %v6191 = vunpack.c.h.s8.bf16 %v5175
    %v6192 = vunpack.c.h.s8.bf16 %v5176
    %v6193 = vunpack.c.h.s8.bf16 %v5177
    %v6194 = vunpack.c.h.s8.bf16 %v5178
    %v6195 = vunpack.c.h.s8.bf16 %v5179
    %v6196 = vunpack.c.h.s8.bf16 %v5180
    %v6197 = vunpack.c.h.s8.bf16 %v5181
    %v6198 = vunpack.c.l.s8.bf16 %v5182
    %v6199 = vunpack.c.l.s8.bf16 %v5183
    %v6200 = vunpack.c.l.s8.bf16 %v5184
    %v6201 = vunpack.c.l.s8.bf16 %v5185
    %v6202 = vunpack.c.l.s8.bf16 %v5186
    %v6203 = vunpack.c.l.s8.bf16 %v5187
    %v6204 = vunpack.c.l.s8.bf16 %v5188
    %v6205 = vunpack.c.l.s8.bf16 %v5189
    %v6206 = vunpack.c.h.s8.bf16 %v5182
    %v6207 = vunpack.c.h.s8.bf16 %v5183
    %v6208 = vunpack.c.h.s8.bf16 %v5184
    %v6209 = vunpack.c.h.s8.bf16 %v5185
    %v6210 = vunpack.c.h.s8.bf16 %v5186
    %v6211 = vunpack.c.h.s8.bf16 %v5187
    %v6212 = vunpack.c.h.s8.bf16 %v5188
    %v6213 = vunpack.c.h.s8.bf16 %v5189
    %6214 = vmatprep.subr.bf16.mxu0 %v5191
    %6215 = vmatpush1.bf16.msra.mxu0 %v5190
    %6216 = vmatprep.subr.bf16.mxu0 %v5199
    %6217 = vmatpush1.bf16.msra.mxu0 %v5198
    %6218 = vmatprep.subr.bf16.mxu0 %v5207
    %6219 = vmatpush1.bf16.msra.mxu0 %v5206
    %6220 = vmatprep.subr.bf16.mxu0 %v5215
    %6221 = vmatpush1.bf16.msra.mxu0 %v5214
    %6222 = vmatprep.subr.bf16.mxu0 %v5223
    %6223 = vmatpush1.bf16.msra.mxu0 %v5222
    %6224 = vmatprep.subr.bf16.mxu0 %v5231
    %6225 = vmatpush1.bf16.msra.mxu0 %v5230
    %6226 = vmatprep.subr.bf16.mxu0 %v5239
    %6227 = vmatpush1.bf16.msra.mxu0 %v5238
    %6228 = vmatprep.subr.bf16.mxu0 %v5247
    %6229 = vmatpush1.bf16.msra.mxu0 %v5246
    %6230 = vmatprep.subr.bf16.mxu0 %v5255
    %6231 = vmatpush1.bf16.msra.mxu0 %v5254
    %6232 = vmatprep.subr.bf16.mxu0 %v5263
    %6233 = vmatpush1.bf16.msra.mxu0 %v5262
    %6234 = vmatprep.subr.bf16.mxu0 %v5271
    %6235 = vmatpush1.bf16.msra.mxu0 %v5270
    %6236 = vmatprep.subr.bf16.mxu0 %v5279
    %6237 = vmatpush1.bf16.msra.mxu0 %v5278
    %6238 = vmatprep.subr.bf16.mxu0 %v5287
    %6239 = vmatpush1.bf16.msra.mxu0 %v5286
    %6240 = vmatprep.subr.bf16.mxu0 %v5295
    %6241 = vmatpush1.bf16.msra.mxu0 %v5294
    %6242 = vmatprep.subr.bf16.mxu0 %v5303
    %6243 = vmatpush1.bf16.msra.mxu0 %v5302
    %6244 = vmatprep.subr.bf16.mxu0 %v5311
    %6245 = vmatpush1.bf16.msra.mxu0 %v5310
    %6246 = vmatprep.mubr.bf16.mxu0 %v4659
    %6247 = vmatmul.mubr.bf16.gmra.mrb[0].mxu0 %v4658
    %v6248 = vpop.f32.mrb[0].mxu0
    %v6249 = vadd.f32 0.0, %v6248
    %v6250 = vpop.f32.mrb[0].mxu0
    %v6251 = vadd.f32 0.0, %v6250
    %v6252 = vpop.f32.mrb[0].mxu0
    %v6253 = vadd.f32 0.0, %v6252
    %v6254 = vpop.f32.mrb[0].mxu0
    %v6255 = vadd.f32 0.0, %v6254
    %6256 = vdwg.mxu0
    %6257 = vmatprep.subr.bf16.mxu0 %v5319
    %6258 = vmatpush1.bf16.msra.mxu0 %v5318
    %6259 = vmatprep.subr.bf16.mxu0 %v5327
    %6260 = vmatpush1.bf16.msra.mxu0 %v5326
    %6261 = vmatprep.subr.bf16.mxu0 %v5335
    %6262 = vmatpush1.bf16.msra.mxu0 %v5334
    %6263 = vmatprep.subr.bf16.mxu0 %v5343
    %6264 = vmatpush1.bf16.msra.mxu0 %v5342
    %6265 = vmatprep.subr.bf16.mxu0 %v5351
    %6266 = vmatpush1.bf16.msra.mxu0 %v5350
    %6267 = vmatprep.subr.bf16.mxu0 %v5359
    %6268 = vmatpush1.bf16.msra.mxu0 %v5358
    %6269 = vmatprep.subr.bf16.mxu0 %v5367
    %6270 = vmatpush1.bf16.msra.mxu0 %v5366
    %6271 = vmatprep.subr.bf16.mxu0 %v5375
    %6272 = vmatpush1.bf16.msra.mxu0 %v5374
    %6273 = vmatprep.subr.bf16.mxu0 %v5383
    %6274 = vmatpush1.bf16.msra.mxu0 %v5382
    %6275 = vmatprep.subr.bf16.mxu0 %v5391
    %6276 = vmatpush1.bf16.msra.mxu0 %v5390
    %6277 = vmatprep.subr.bf16.mxu0 %v5399
    %6278 = vmatpush1.bf16.msra.mxu0 %v5398
    %6279 = vmatprep.subr.bf16.mxu0 %v5407
    %6280 = vmatpush1.bf16.msra.mxu0 %v5406
    %6281 = vmatprep.subr.bf16.mxu0 %v5415
    %6282 = vmatpush1.bf16.msra.mxu0 %v5414
    %6283 = vmatprep.subr.bf16.mxu0 %v5423
    %6284 = vmatpush1.bf16.msra.mxu0 %v5422
    %6285 = vmatprep.subr.bf16.mxu0 %v5431
    %6286 = vmatpush1.bf16.msra.mxu0 %v5430
    %6287 = vmatprep.subr.bf16.mxu0 %v5439
    %6288 = vmatpush1.bf16.msra.mxu0 %v5438
    %6289 = vmatprep.mubr.bf16.mxu0 %v4661
    %6290 = vmatmul.mubr.bf16.gmra.mrb[0].mxu0 %v4660
    %v6291 = vpop.f32.mrb[0].mxu0
    %v6292 = vadd.f32 %v6249, %v6291
    %v6293 = vpop.f32.mrb[0].mxu0
    %v6294 = vadd.f32 %v6251, %v6293
    %v6295 = vpop.f32.mrb[0].mxu0
    %v6296 = vadd.f32 %v6253, %v6295
    %v6297 = vpop.f32.mrb[0].mxu0
    %v6298 = vadd.f32 %v6255, %v6297
    %6299 = vdwg.mxu0
    %6300 = vmatprep.subr.bf16.mxu0 %v5447
    %6301 = vmatpush1.bf16.msra.mxu0 %v5446
    %6302 = vmatprep.subr.bf16.mxu0 %v5455
    %6303 = vmatpush1.bf16.msra.mxu0 %v5454
    %6304 = vmatprep.subr.bf16.mxu0 %v5463
    %6305 = vmatpush1.bf16.msra.mxu0 %v5462
    %6306 = vmatprep.subr.bf16.mxu0 %v5471
    %6307 = vmatpush1.bf16.msra.mxu0 %v5470
    %6308 = vmatprep.subr.bf16.mxu0 %v5479
    %6309 = vmatpush1.bf16.msra.mxu0 %v5478
    %6310 = vmatprep.subr.bf16.mxu0 %v5487
    %6311 = vmatpush1.bf16.msra.mxu0 %v5486
    %6312 = vmatprep.subr.bf16.mxu0 %v5495
    %6313 = vmatpush1.bf16.msra.mxu0 %v5494
    %6314 = vmatprep.subr.bf16.mxu0 %v5503
    %6315 = vmatpush1.bf16.msra.mxu0 %v5502
    %6316 = vmatprep.subr.bf16.mxu0 %v5511
    %6317 = vmatpush1.bf16.msra.mxu0 %v5510
    %6318 = vmatprep.subr.bf16.mxu0 %v5519
    %6319 = vmatpush1.bf16.msra.mxu0 %v5518
    %6320 = vmatprep.subr.bf16.mxu0 %v5527
    %6321 = vmatpush1.bf16.msra.mxu0 %v5526
    %6322 = vmatprep.subr.bf16.mxu0 %v5535
    %6323 = vmatpush1.bf16.msra.mxu0 %v5534
    %6324 = vmatprep.subr.bf16.mxu0 %v5543
    %6325 = vmatpush1.bf16.msra.mxu0 %v5542
    %6326 = vmatprep.subr.bf16.mxu0 %v5551
    %6327 = vmatpush1.bf16.msra.mxu0 %v5550
    %6328 = vmatprep.subr.bf16.mxu0 %v5559
    %6329 = vmatpush1.bf16.msra.mxu0 %v5558
    %6330 = vmatprep.subr.bf16.mxu0 %v5567
    %6331 = vmatpush1.bf16.msra.mxu0 %v5566
    %6332 = vmatprep.mubr.bf16.mxu0 %v4663
    %6333 = vmatmul.mubr.bf16.gmra.mrb[0].mxu0 %v4662
    %v6334 = vpop.f32.mrb[0].mxu0
    %v6335 = vadd.f32 %v6292, %v6334
    %v6336 = vpop.f32.mrb[0].mxu0
    %v6337 = vadd.f32 %v6294, %v6336
    %v6338 = vpop.f32.mrb[0].mxu0
    %v6339 = vadd.f32 %v6296, %v6338
    %v6340 = vpop.f32.mrb[0].mxu0
    %v6341 = vadd.f32 %v6298, %v6340
    %6342 = vdwg.mxu0
    %6343 = vmatprep.subr.bf16.mxu0 %v5575
    %6344 = vmatpush1.bf16.msra.mxu0 %v5574
    %6345 = vmatprep.subr.bf16.mxu0 %v5583
    %6346 = vmatpush1.bf16.msra.mxu0 %v5582
    %6347 = vmatprep.subr.bf16.mxu0 %v5591
    %6348 = vmatpush1.bf16.msra.mxu0 %v5590
    %6349 = vmatprep.subr.bf16.mxu0 %v5599
    %6350 = vmatpush1.bf16.msra.mxu0 %v5598
    %6351 = vmatprep.subr.bf16.mxu0 %v5607
    %6352 = vmatpush1.bf16.msra.mxu0 %v5606
    %6353 = vmatprep.subr.bf16.mxu0 %v5615
    %6354 = vmatpush1.bf16.msra.mxu0 %v5614
    %6355 = vmatprep.subr.bf16.mxu0 %v5623
    %6356 = vmatpush1.bf16.msra.mxu0 %v5622
    %6357 = vmatprep.subr.bf16.mxu0 %v5631
    %6358 = vmatpush1.bf16.msra.mxu0 %v5630
    %6359 = vmatprep.subr.bf16.mxu0 %v5639
    %6360 = vmatpush1.bf16.msra.mxu0 %v5638
    %6361 = vmatprep.subr.bf16.mxu0 %v5647
    %6362 = vmatpush1.bf16.msra.mxu0 %v5646
    %6363 = vmatprep.subr.bf16.mxu0 %v5655
    %6364 = vmatpush1.bf16.msra.mxu0 %v5654
    %6365 = vmatprep.subr.bf16.mxu0 %v5663
    %6366 = vmatpush1.bf16.msra.mxu0 %v5662
    %6367 = vmatprep.subr.bf16.mxu0 %v5671
    %6368 = vmatpush1.bf16.msra.mxu0 %v5670
    %6369 = vmatprep.subr.bf16.mxu0 %v5679
    %6370 = vmatpush1.bf16.msra.mxu0 %v5678
    %6371 = vmatprep.subr.bf16.mxu0 %v5687
    %6372 = vmatpush1.bf16.msra.mxu0 %v5686
    %6373 = vmatprep.subr.bf16.mxu0 %v5695
    %6374 = vmatpush1.bf16.msra.mxu0 %v5694
    %6375 = vmatprep.mubr.bf16.mxu0 %v4665
    %6376 = vmatmul.mubr.bf16.gmra.mrb[0].mxu0 %v4664
    %v6377 = vpop.f32.mrb[0].mxu0
    %v6378 = vadd.f32 %v6335, %v6377
    %v6379 = vpop.f32.mrb[0].mxu0
    %v6380 = vadd.f32 %v6337, %v6379
    %v6381 = vpop.f32.mrb[0].mxu0
    %v6382 = vadd.f32 %v6339, %v6381
    %v6383 = vpop.f32.mrb[0].mxu0
    %v6384 = vadd.f32 %v6341, %v6383
    %6385 = vdwg.mxu0
    %6386 = vmatprep.subr.bf16.mxu0 %v5703
    %6387 = vmatpush1.bf16.msra.mxu0 %v5702
    %6388 = vmatprep.subr.bf16.mxu0 %v5711
    %6389 = vmatpush1.bf16.msra.mxu0 %v5710
    %6390 = vmatprep.subr.bf16.mxu0 %v5719
    %6391 = vmatpush1.bf16.msra.mxu0 %v5718
    %6392 = vmatprep.subr.bf16.mxu0 %v5727
    %6393 = vmatpush1.bf16.msra.mxu0 %v5726
    %6394 = vmatprep.subr.bf16.mxu0 %v5735
    %6395 = vmatpush1.bf16.msra.mxu0 %v5734
    %6396 = vmatprep.subr.bf16.mxu0 %v5743
    %6397 = vmatpush1.bf16.msra.mxu0 %v5742
    %6398 = vmatprep.subr.bf16.mxu0 %v5751
    %6399 = vmatpush1.bf16.msra.mxu0 %v5750
    %6400 = vmatprep.subr.bf16.mxu0 %v5759
    %6401 = vmatpush1.bf16.msra.mxu0 %v5758
    %6402 = vmatprep.subr.bf16.mxu0 %v5767
    %6403 = vmatpush1.bf16.msra.mxu0 %v5766
    %6404 = vmatprep.subr.bf16.mxu0 %v5775
    %6405 = vmatpush1.bf16.msra.mxu0 %v5774
    %6406 = vmatprep.subr.bf16.mxu0 %v5783
    %6407 = vmatpush1.bf16.msra.mxu0 %v5782
    %6408 = vmatprep.subr.bf16.mxu0 %v5791
    %6409 = vmatpush1.bf16.msra.mxu0 %v5790
    %6410 = vmatprep.subr.bf16.mxu0 %v5799
    %6411 = vmatpush1.bf16.msra.mxu0 %v5798
    %6412 = vmatprep.subr.bf16.mxu0 %v5807
    %6413 = vmatpush1.bf16.msra.mxu0 %v5806
    %6414 = vmatprep.subr.bf16.mxu0 %v5815
    %6415 = vmatpush1.bf16.msra.mxu0 %v5814
    %6416 = vmatprep.subr.bf16.mxu0 %v5823
    %6417 = vmatpush1.bf16.msra.mxu0 %v5822
    %6418 = vmatprep.mubr.bf16.mxu0 %v4667
    %6419 = vmatmul.mubr.bf16.gmra.mrb[0].mxu0 %v4666
    %v6420 = vpop.f32.mrb[0].mxu0
    %v6421 = vadd.f32 %v6378, %v6420
    %v6422 = vpop.f32.mrb[0].mxu0
    %v6423 = vadd.f32 %v6380, %v6422
    %v6424 = vpop.f32.mrb[0].mxu0
    %v6425 = vadd.f32 %v6382, %v6424
    %v6426 = vpop.f32.mrb[0].mxu0
    %v6427 = vadd.f32 %v6384, %v6426
    %6428 = vdwg.mxu0
    %6429 = vmatprep.subr.bf16.mxu0 %v5831
    %6430 = vmatpush1.bf16.msra.mxu0 %v5830
    %6431 = vmatprep.subr.bf16.mxu0 %v5839
    %6432 = vmatpush1.bf16.msra.mxu0 %v5838
    %6433 = vmatprep.subr.bf16.mxu0 %v5847
    %6434 = vmatpush1.bf16.msra.mxu0 %v5846
    %6435 = vmatprep.subr.bf16.mxu0 %v5855
    %6436 = vmatpush1.bf16.msra.mxu0 %v5854
    %6437 = vmatprep.subr.bf16.mxu0 %v5863
    %6438 = vmatpush1.bf16.msra.mxu0 %v5862
    %6439 = vmatprep.subr.bf16.mxu0 %v5871
    %6440 = vmatpush1.bf16.msra.mxu0 %v5870
    %6441 = vmatprep.subr.bf16.mxu0 %v5879
    %6442 = vmatpush1.bf16.msra.mxu0 %v5878
    %6443 = vmatprep.subr.bf16.mxu0 %v5887
    %6444 = vmatpush1.bf16.msra.mxu0 %v5886
    %6445 = vmatprep.subr.bf16.mxu0 %v5895
    %6446 = vmatpush1.bf16.msra.mxu0 %v5894
    %6447 = vmatprep.subr.bf16.mxu0 %v5903
    %6448 = vmatpush1.bf16.msra.mxu0 %v5902
    %6449 = vmatprep.subr.bf16.mxu0 %v5911
    %6450 = vmatpush1.bf16.msra.mxu0 %v5910
    %6451 = vmatprep.subr.bf16.mxu0 %v5919
    %6452 = vmatpush1.bf16.msra.mxu0 %v5918
    %6453 = vmatprep.subr.bf16.mxu0 %v5927
    %6454 = vmatpush1.bf16.msra.mxu0 %v5926
    %6455 = vmatprep.subr.bf16.mxu0 %v5935
    %6456 = vmatpush1.bf16.msra.mxu0 %v5934
    %6457 = vmatprep.subr.bf16.mxu0 %v5943
    %6458 = vmatpush1.bf16.msra.mxu0 %v5942
    %6459 = vmatprep.subr.bf16.mxu0 %v5951
    %6460 = vmatpush1.bf16.msra.mxu0 %v5950
    %6461 = vmatprep.mubr.bf16.mxu0 %v4669
    %6462 = vmatmul.mubr.bf16.gmra.mrb[0].mxu0 %v4668
    %v6463 = vpop.f32.mrb[0].mxu0
    %v6464 = vadd.f32 %v6421, %v6463
    %v6465 = vpop.f32.mrb[0].mxu0
    %v6466 = vadd.f32 %v6423, %v6465
    %v6467 = vpop.f32.mrb[0].mxu0
    %v6468 = vadd.f32 %v6425, %v6467
    %v6469 = vpop.f32.mrb[0].mxu0
    %v6470 = vadd.f32 %v6427, %v6469
    %6471 = vdwg.mxu0
    %6472 = vmatprep.subr.bf16.mxu0 %v5959
    %6473 = vmatpush1.bf16.msra.mxu0 %v5958
    %6474 = vmatprep.subr.bf16.mxu0 %v5967
    %6475 = vmatpush1.bf16.msra.mxu0 %v5966
    %6476 = vmatprep.subr.bf16.mxu0 %v5975
    %6477 = vmatpush1.bf16.msra.mxu0 %v5974
    %6478 = vmatprep.subr.bf16.mxu0 %v5983
    %6479 = vmatpush1.bf16.msra.mxu0 %v5982
    %6480 = vmatprep.subr.bf16.mxu0 %v5991
    %6481 = vmatpush1.bf16.msra.mxu0 %v5990
    %6482 = vmatprep.subr.bf16.mxu0 %v5999
    %6483 = vmatpush1.bf16.msra.mxu0 %v5998
    %6484 = vmatprep.subr.bf16.mxu0 %v6007
    %6485 = vmatpush1.bf16.msra.mxu0 %v6006
    %6486 = vmatprep.subr.bf16.mxu0 %v6015
    %6487 = vmatpush1.bf16.msra.mxu0 %v6014
    %6488 = vmatprep.subr.bf16.mxu0 %v6023
    %6489 = vmatpush1.bf16.msra.mxu0 %v6022
    %6490 = vmatprep.subr.bf16.mxu0 %v6031
    %6491 = vmatpush1.bf16.msra.mxu0 %v6030
    %6492 = vmatprep.subr.bf16.mxu0 %v6039
    %6493 = vmatpush1.bf16.msra.mxu0 %v6038
    %6494 = vmatprep.subr.bf16.mxu0 %v6047
    %6495 = vmatpush1.bf16.msra.mxu0 %v6046
    %6496 = vmatprep.subr.bf16.mxu0 %v6055
    %6497 = vmatpush1.bf16.msra.mxu0 %v6054
    %6498 = vmatprep.subr.bf16.mxu0 %v6063
    %6499 = vmatpush1.bf16.msra.mxu0 %v6062
    %6500 = vmatprep.subr.bf16.mxu0 %v6071
    %6501 = vmatpush1.bf16.msra.mxu0 %v6070
    %6502 = vmatprep.subr.bf16.mxu0 %v6079
    %6503 = vmatpush1.bf16.msra.mxu0 %v6078
    %6504 = vmatprep.mubr.bf16.mxu0 %v4671
    %6505 = vmatmul.mubr.bf16.gmra.mrb[0].mxu0 %v4670
    %v6506 = vpop.f32.mrb[0].mxu0
    %v6507 = vadd.f32 %v6464, %v6506
    %v6508 = vpop.f32.mrb[0].mxu0
    %v6509 = vadd.f32 %v6466, %v6508
    %v6510 = vpop.f32.mrb[0].mxu0
    %v6511 = vadd.f32 %v6468, %v6510
    %v6512 = vpop.f32.mrb[0].mxu0
    %v6513 = vadd.f32 %v6470, %v6512
    %6514 = vdwg.mxu0
    %6515 = vmatprep.subr.bf16.mxu0 %v6087
    %6516 = vmatpush1.bf16.msra.mxu0 %v6086
    %6517 = vmatprep.subr.bf16.mxu0 %v6095
    %6518 = vmatpush1.bf16.msra.mxu0 %v6094
    %6519 = vmatprep.subr.bf16.mxu0 %v6103
    %6520 = vmatpush1.bf16.msra.mxu0 %v6102
    %6521 = vmatprep.subr.bf16.mxu0 %v6111
    %6522 = vmatpush1.bf16.msra.mxu0 %v6110
    %6523 = vmatprep.subr.bf16.mxu0 %v6119
    %6524 = vmatpush1.bf16.msra.mxu0 %v6118
    %6525 = vmatprep.subr.bf16.mxu0 %v6127
    %6526 = vmatpush1.bf16.msra.mxu0 %v6126
    %6527 = vmatprep.subr.bf16.mxu0 %v6135
    %6528 = vmatpush1.bf16.msra.mxu0 %v6134
    %6529 = vmatprep.subr.bf16.mxu0 %v6143
    %6530 = vmatpush1.bf16.msra.mxu0 %v6142
    %6531 = vmatprep.subr.bf16.mxu0 %v6151
    %6532 = vmatpush1.bf16.msra.mxu0 %v6150
    %6533 = vmatprep.subr.bf16.mxu0 %v6159
    %6534 = vmatpush1.bf16.msra.mxu0 %v6158
    %6535 = vmatprep.subr.bf16.mxu0 %v6167
    %6536 = vmatpush1.bf16.msra.mxu0 %v6166
    %6537 = vmatprep.subr.bf16.mxu0 %v6175
    %6538 = vmatpush1.bf16.msra.mxu0 %v6174
    %6539 = vmatprep.subr.bf16.mxu0 %v6183
    %6540 = vmatpush1.bf16.msra.mxu0 %v6182
    %6541 = vmatprep.subr.bf16.mxu0 %v6191
    %6542 = vmatpush1.bf16.msra.mxu0 %v6190
    %6543 = vmatprep.subr.bf16.mxu0 %v6199
    %6544 = vmatpush1.bf16.msra.mxu0 %v6198
    %6545 = vmatprep.subr.bf16.mxu0 %v6207
    %6546 = vmatpush1.bf16.msra.mxu0 %v6206
    %6547 = vmatprep.mubr.bf16.mxu0 %v4673
    %6548 = vmatmul.mubr.bf16.gmra.mrb[0].mxu0 %v4672
    %v6549 = vpop.f32.mrb[0].mxu0
    %v6550 = vadd.f32 %v6507, %v6549
    %v6551 = vpop.f32.mrb[0].mxu0
    %v6552 = vadd.f32 %v6509, %v6551
    %v6553 = vpop.f32.mrb[0].mxu0
    %v6554 = vadd.f32 %v6511, %v6553
    %v6555 = vpop.f32.mrb[0].mxu0
    %v6556 = vadd.f32 %v6513, %v6555
    %6557 = vdwg.mxu0
    %6558 = vmatprep.subr.bf16.mxu0 %v5193
    %6559 = vmatpush1.bf16.msra.mxu0 %v5192
    %6560 = vmatprep.subr.bf16.mxu0 %v5201
    %6561 = vmatpush1.bf16.msra.mxu0 %v5200
    %6562 = vmatprep.subr.bf16.mxu0 %v5209
    %6563 = vmatpush1.bf16.msra.mxu0 %v5208
    %6564 = vmatprep.subr.bf16.mxu0 %v5217
    %6565 = vmatpush1.bf16.msra.mxu0 %v5216
    %6566 = vmatprep.subr.bf16.mxu0 %v5225
    %6567 = vmatpush1.bf16.msra.mxu0 %v5224
    %6568 = vmatprep.subr.bf16.mxu0 %v5233
    %6569 = vmatpush1.bf16.msra.mxu0 %v5232
    %6570 = vmatprep.subr.bf16.mxu0 %v5241
    %6571 = vmatpush1.bf16.msra.mxu0 %v5240
    %6572 = vmatprep.subr.bf16.mxu0 %v5249
    %6573 = vmatpush1.bf16.msra.mxu0 %v5248
    %6574 = vmatprep.subr.bf16.mxu0 %v5257
    %6575 = vmatpush1.bf16.msra.mxu0 %v5256
    %6576 = vmatprep.subr.bf16.mxu0 %v5265
    %6577 = vmatpush1.bf16.msra.mxu0 %v5264
    %6578 = vmatprep.subr.bf16.mxu0 %v5273
    %6579 = vmatpush1.bf16.msra.mxu0 %v5272
    %6580 = vmatprep.subr.bf16.mxu0 %v5281
    %6581 = vmatpush1.bf16.msra.mxu0 %v5280
    %6582 = vmatprep.subr.bf16.mxu0 %v5289
    %6583 = vmatpush1.bf16.msra.mxu0 %v5288
    %6584 = vmatprep.subr.bf16.mxu0 %v5297
    %6585 = vmatpush1.bf16.msra.mxu0 %v5296
    %6586 = vmatprep.subr.bf16.mxu0 %v5305
    %6587 = vmatpush1.bf16.msra.mxu0 %v5304
    %6588 = vmatprep.subr.bf16.mxu0 %v5313
    %6589 = vmatpush1.bf16.msra.mxu0 %v5312
    %6590 = vmatprep.mubr.bf16.mxu0 %v4659
    %6591 = vmatmul.mubr.bf16.gmra.mrb[0].mxu0 %v4658
    %v6592 = vpop.f32.mrb[0].mxu0
    %v6593 = vadd.f32 0.0, %v6592
    %v6594 = vpop.f32.mrb[0].mxu0
    %v6595 = vadd.f32 0.0, %v6594
    %v6596 = vpop.f32.mrb[0].mxu0
    %v6597 = vadd.f32 0.0, %v6596
    %v6598 = vpop.f32.mrb[0].mxu0
    %v6599 = vadd.f32 0.0, %v6598
    %6600 = vdwg.mxu0
    %6601 = vmatprep.subr.bf16.mxu0 %v5321
    %6602 = vmatpush1.bf16.msra.mxu0 %v5320
    %6603 = vmatprep.subr.bf16.mxu0 %v5329
    %6604 = vmatpush1.bf16.msra.mxu0 %v5328
    %6605 = vmatprep.subr.bf16.mxu0 %v5337
    %6606 = vmatpush1.bf16.msra.mxu0 %v5336
    %6607 = vmatprep.subr.bf16.mxu0 %v5345
    %6608 = vmatpush1.bf16.msra.mxu0 %v5344
    %6609 = vmatprep.subr.bf16.mxu0 %v5353
    %6610 = vmatpush1.bf16.msra.mxu0 %v5352
    %6611 = vmatprep.subr.bf16.mxu0 %v5361
    %6612 = vmatpush1.bf16.msra.mxu0 %v5360
    %6613 = vmatprep.subr.bf16.mxu0 %v5369
    %6614 = vmatpush1.bf16.msra.mxu0 %v5368
    %6615 = vmatprep.subr.bf16.mxu0 %v5377
    %6616 = vmatpush1.bf16.msra.mxu0 %v5376
    %6617 = vmatprep.subr.bf16.mxu0 %v5385
    %6618 = vmatpush1.bf16.msra.mxu0 %v5384
    %6619 = vmatprep.subr.bf16.mxu0 %v5393
    %6620 = vmatpush1.bf16.msra.mxu0 %v5392
    %6621 = vmatprep.subr.bf16.mxu0 %v5401
    %6622 = vmatpush1.bf16.msra.mxu0 %v5400
    %6623 = vmatprep.subr.bf16.mxu0 %v5409
    %6624 = vmatpush1.bf16.msra.mxu0 %v5408
    %6625 = vmatprep.subr.bf16.mxu0 %v5417
    %6626 = vmatpush1.bf16.msra.mxu0 %v5416
    %6627 = vmatprep.subr.bf16.mxu0 %v5425
    %6628 = vmatpush1.bf16.msra.mxu0 %v5424
    %6629 = vmatprep.subr.bf16.mxu0 %v5433
    %6630 = vmatpush1.bf16.msra.mxu0 %v5432
    %6631 = vmatprep.subr.bf16.mxu0 %v5441
    %6632 = vmatpush1.bf16.msra.mxu0 %v5440
    %6633 = vmatprep.mubr.bf16.mxu0 %v4661
    %6634 = vmatmul.mubr.bf16.gmra.mrb[0].mxu0 %v4660
    %v6635 = vpop.f32.mrb[0].mxu0
    %v6636 = vadd.f32 %v6593, %v6635
    %v6637 = vpop.f32.mrb[0].mxu0
    %v6638 = vadd.f32 %v6595, %v6637
    %v6639 = vpop.f32.mrb[0].mxu0
    %v6640 = vadd.f32 %v6597, %v6639
    %v6641 = vpop.f32.mrb[0].mxu0
    %v6642 = vadd.f32 %v6599, %v6641
    %6643 = vdwg.mxu0
    %6644 = vmatprep.subr.bf16.mxu0 %v5449
    %6645 = vmatpush1.bf16.msra.mxu0 %v5448
    %6646 = vmatprep.subr.bf16.mxu0 %v5457
    %6647 = vmatpush1.bf16.msra.mxu0 %v5456
    %6648 = vmatprep.subr.bf16.mxu0 %v5465
    %6649 = vmatpush1.bf16.msra.mxu0 %v5464
    %6650 = vmatprep.subr.bf16.mxu0 %v5473
    %6651 = vmatpush1.bf16.msra.mxu0 %v5472
    %6652 = vmatprep.subr.bf16.mxu0 %v5481
    %6653 = vmatpush1.bf16.msra.mxu0 %v5480
    %6654 = vmatprep.subr.bf16.mxu0 %v5489
    %6655 = vmatpush1.bf16.msra.mxu0 %v5488
    %6656 = vmatprep.subr.bf16.mxu0 %v5497
    %6657 = vmatpush1.bf16.msra.mxu0 %v5496
    %6658 = vmatprep.subr.bf16.mxu0 %v5505
    %6659 = vmatpush1.bf16.msra.mxu0 %v5504
    %6660 = vmatprep.subr.bf16.mxu0 %v5513
    %6661 = vmatpush1.bf16.msra.mxu0 %v5512
    %6662 = vmatprep.subr.bf16.mxu0 %v5521
    %6663 = vmatpush1.bf16.msra.mxu0 %v5520
    %6664 = vmatprep.subr.bf16.mxu0 %v5529
    %6665 = vmatpush1.bf16.msra.mxu0 %v5528
    %6666 = vmatprep.subr.bf16.mxu0 %v5537
    %6667 = vmatpush1.bf16.msra.mxu0 %v5536
    %6668 = vmatprep.subr.bf16.mxu0 %v5545
    %6669 = vmatpush1.bf16.msra.mxu0 %v5544
    %6670 = vmatprep.subr.bf16.mxu0 %v5553
    %6671 = vmatpush1.bf16.msra.mxu0 %v5552
    %6672 = vmatprep.subr.bf16.mxu0 %v5561
    %6673 = vmatpush1.bf16.msra.mxu0 %v5560
    %6674 = vmatprep.subr.bf16.mxu0 %v5569
    %6675 = vmatpush1.bf16.msra.mxu0 %v5568
    %6676 = vmatprep.mubr.bf16.mxu0 %v4663
    %6677 = vmatmul.mubr.bf16.gmra.mrb[0].mxu0 %v4662
    %v6678 = vpop.f32.mrb[0].mxu0
    %v6679 = vadd.f32 %v6636, %v6678
    %v6680 = vpop.f32.mrb[0].mxu0
    %v6681 = vadd.f32 %v6638, %v6680
    %v6682 = vpop.f32.mrb[0].mxu0
    %v6683 = vadd.f32 %v6640, %v6682
    %v6684 = vpop.f32.mrb[0].mxu0
    %v6685 = vadd.f32 %v6642, %v6684
    %6686 = vdwg.mxu0
    %6687 = vmatprep.subr.bf16.mxu0 %v5577
    %6688 = vmatpush1.bf16.msra.mxu0 %v5576
    %6689 = vmatprep.subr.bf16.mxu0 %v5585
    %6690 = vmatpush1.bf16.msra.mxu0 %v5584
    %6691 = vmatprep.subr.bf16.mxu0 %v5593
    %6692 = vmatpush1.bf16.msra.mxu0 %v5592
    %6693 = vmatprep.subr.bf16.mxu0 %v5601
    %6694 = vmatpush1.bf16.msra.mxu0 %v5600
    %6695 = vmatprep.subr.bf16.mxu0 %v5609
    %6696 = vmatpush1.bf16.msra.mxu0 %v5608
    %6697 = vmatprep.subr.bf16.mxu0 %v5617
    %6698 = vmatpush1.bf16.msra.mxu0 %v5616
    %6699 = vmatprep.subr.bf16.mxu0 %v5625
    %6700 = vmatpush1.bf16.msra.mxu0 %v5624
    %6701 = vmatprep.subr.bf16.mxu0 %v5633
    %6702 = vmatpush1.bf16.msra.mxu0 %v5632
    %6703 = vmatprep.subr.bf16.mxu0 %v5641
    %6704 = vmatpush1.bf16.msra.mxu0 %v5640
    %6705 = vmatprep.subr.bf16.mxu0 %v5649
    %6706 = vmatpush1.bf16.msra.mxu0 %v5648
    %6707 = vmatprep.subr.bf16.mxu0 %v5657
    %6708 = vmatpush1.bf16.msra.mxu0 %v5656
    %6709 = vmatprep.subr.bf16.mxu0 %v5665
    %6710 = vmatpush1.bf16.msra.mxu0 %v5664
    %6711 = vmatprep.subr.bf16.mxu0 %v5673
    %6712 = vmatpush1.bf16.msra.mxu0 %v5672
    %6713 = vmatprep.subr.bf16.mxu0 %v5681
    %6714 = vmatpush1.bf16.msra.mxu0 %v5680
    %6715 = vmatprep.subr.bf16.mxu0 %v5689
    %6716 = vmatpush1.bf16.msra.mxu0 %v5688
    %6717 = vmatprep.subr.bf16.mxu0 %v5697
    %6718 = vmatpush1.bf16.msra.mxu0 %v5696
    %6719 = vmatprep.mubr.bf16.mxu0 %v4665
    %6720 = vmatmul.mubr.bf16.gmra.mrb[0].mxu0 %v4664
    %v6721 = vpop.f32.mrb[0].mxu0
    %v6722 = vadd.f32 %v6679, %v6721
    %v6723 = vpop.f32.mrb[0].mxu0
    %v6724 = vadd.f32 %v6681, %v6723
    %v6725 = vpop.f32.mrb[0].mxu0
    %v6726 = vadd.f32 %v6683, %v6725
    %v6727 = vpop.f32.mrb[0].mxu0
    %v6728 = vadd.f32 %v6685, %v6727
    %6729 = vdwg.mxu0
    %6730 = vmatprep.subr.bf16.mxu0 %v5705
    %6731 = vmatpush1.bf16.msra.mxu0 %v5704
    %6732 = vmatprep.subr.bf16.mxu0 %v5713
    %6733 = vmatpush1.bf16.msra.mxu0 %v5712
    %6734 = vmatprep.subr.bf16.mxu0 %v5721
    %6735 = vmatpush1.bf16.msra.mxu0 %v5720
    %6736 = vmatprep.subr.bf16.mxu0 %v5729
    %6737 = vmatpush1.bf16.msra.mxu0 %v5728
    %6738 = vmatprep.subr.bf16.mxu0 %v5737
    %6739 = vmatpush1.bf16.msra.mxu0 %v5736
    %6740 = vmatprep.subr.bf16.mxu0 %v5745
    %6741 = vmatpush1.bf16.msra.mxu0 %v5744
    %6742 = vmatprep.subr.bf16.mxu0 %v5753
    %6743 = vmatpush1.bf16.msra.mxu0 %v5752
    %6744 = vmatprep.subr.bf16.mxu0 %v5761
    %6745 = vmatpush1.bf16.msra.mxu0 %v5760
    %6746 = vmatprep.subr.bf16.mxu0 %v5769
    %6747 = vmatpush1.bf16.msra.mxu0 %v5768
    %6748 = vmatprep.subr.bf16.mxu0 %v5777
    %6749 = vmatpush1.bf16.msra.mxu0 %v5776
    %6750 = vmatprep.subr.bf16.mxu0 %v5785
    %6751 = vmatpush1.bf16.msra.mxu0 %v5784
    %6752 = vmatprep.subr.bf16.mxu0 %v5793
    %6753 = vmatpush1.bf16.msra.mxu0 %v5792
    %6754 = vmatprep.subr.bf16.mxu0 %v5801
    %6755 = vmatpush1.bf16.msra.mxu0 %v5800
    %6756 = vmatprep.subr.bf16.mxu0 %v5809
    %6757 = vmatpush1.bf16.msra.mxu0 %v5808
    %6758 = vmatprep.subr.bf16.mxu0 %v5817
    %6759 = vmatpush1.bf16.msra.mxu0 %v5816
    %6760 = vmatprep.subr.bf16.mxu0 %v5825
    %6761 = vmatpush1.bf16.msra.mxu0 %v5824
    %6762 = vmatprep.mubr.bf16.mxu0 %v4667
    %6763 = vmatmul.mubr.bf16.gmra.mrb[0].mxu0 %v4666
    %v6764 = vpop.f32.mrb[0].mxu0
    %v6765 = vadd.f32 %v6722, %v6764
    %v6766 = vpop.f32.mrb[0].mxu0
    %v6767 = vadd.f32 %v6724, %v6766
    %v6768 = vpop.f32.mrb[0].mxu0
    %v6769 = vadd.f32 %v6726, %v6768
    %v6770 = vpop.f32.mrb[0].mxu0
    %v6771 = vadd.f32 %v6728, %v6770
    %6772 = vdwg.mxu0
    %6773 = vmatprep.subr.bf16.mxu0 %v5833
    %6774 = vmatpush1.bf16.msra.mxu0 %v5832
    %6775 = vmatprep.subr.bf16.mxu0 %v5841
    %6776 = vmatpush1.bf16.msra.mxu0 %v5840
    %6777 = vmatprep.subr.bf16.mxu0 %v5849
    %6778 = vmatpush1.bf16.msra.mxu0 %v5848
    %6779 = vmatprep.subr.bf16.mxu0 %v5857
    %6780 = vmatpush1.bf16.msra.mxu0 %v5856
    %6781 = vmatprep.subr.bf16.mxu0 %v5865
    %6782 = vmatpush1.bf16.msra.mxu0 %v5864
    %6783 = vmatprep.subr.bf16.mxu0 %v5873
    %6784 = vmatpush1.bf16.msra.mxu0 %v5872
    %6785 = vmatprep.subr.bf16.mxu0 %v5881
    %6786 = vmatpush1.bf16.msra.mxu0 %v5880
    %6787 = vmatprep.subr.bf16.mxu0 %v5889
    %6788 = vmatpush1.bf16.msra.mxu0 %v5888
    %6789 = vmatprep.subr.bf16.mxu0 %v5897
    %6790 = vmatpush1.bf16.msra.mxu0 %v5896
    %6791 = vmatprep.subr.bf16.mxu0 %v5905
    %6792 = vmatpush1.bf16.msra.mxu0 %v5904
    %6793 = vmatprep.subr.bf16.mxu0 %v5913
    %6794 = vmatpush1.bf16.msra.mxu0 %v5912
    %6795 = vmatprep.subr.bf16.mxu0 %v5921
    %6796 = vmatpush1.bf16.msra.mxu0 %v5920
    %6797 = vmatprep.subr.bf16.mxu0 %v5929
    %6798 = vmatpush1.bf16.msra.mxu0 %v5928
    %6799 = vmatprep.subr.bf16.mxu0 %v5937
    %6800 = vmatpush1.bf16.msra.mxu0 %v5936
    %6801 = vmatprep.subr.bf16.mxu0 %v5945
    %6802 = vmatpush1.bf16.msra.mxu0 %v5944
    %6803 = vmatprep.subr.bf16.mxu0 %v5953
    %6804 = vmatpush1.bf16.msra.mxu0 %v5952
    %6805 = vmatprep.mubr.bf16.mxu0 %v4669
    %6806 = vmatmul.mubr.bf16.gmra.mrb[0].mxu0 %v4668
    %v6807 = vpop.f32.mrb[0].mxu0
    %v6808 = vadd.f32 %v6765, %v6807
    %v6809 = vpop.f32.mrb[0].mxu0
    %v6810 = vadd.f32 %v6767, %v6809
    %v6811 = vpop.f32.mrb[0].mxu0
    %v6812 = vadd.f32 %v6769, %v6811
    %v6813 = vpop.f32.mrb[0].mxu0
    %v6814 = vadd.f32 %v6771, %v6813
    %6815 = vdwg.mxu0
    %6816 = vmatprep.subr.bf16.mxu0 %v5961
    %6817 = vmatpush1.bf16.msra.mxu0 %v5960
    %6818 = vmatprep.subr.bf16.mxu0 %v5969
    %6819 = vmatpush1.bf16.msra.mxu0 %v5968
    %6820 = vmatprep.subr.bf16.mxu0 %v5977
    %6821 = vmatpush1.bf16.msra.mxu0 %v5976
    %6822 = vmatprep.subr.bf16.mxu0 %v5985
    %6823 = vmatpush1.bf16.msra.mxu0 %v5984
    %6824 = vmatprep.subr.bf16.mxu0 %v5993
    %6825 = vmatpush1.bf16.msra.mxu0 %v5992
    %6826 = vmatprep.subr.bf16.mxu0 %v6001
    %6827 = vmatpush1.bf16.msra.mxu0 %v6000
    %6828 = vmatprep.subr.bf16.mxu0 %v6009
    %6829 = vmatpush1.bf16.msra.mxu0 %v6008
    %6830 = vmatprep.subr.bf16.mxu0 %v6017
    %6831 = vmatpush1.bf16.msra.mxu0 %v6016
    %6832 = vmatprep.subr.bf16.mxu0 %v6025
    %6833 = vmatpush1.bf16.msra.mxu0 %v6024
    %6834 = vmatprep.subr.bf16.mxu0 %v6033
    %6835 = vmatpush1.bf16.msra.mxu0 %v6032
    %6836 = vmatprep.subr.bf16.mxu0 %v6041
    %6837 = vmatpush1.bf16.msra.mxu0 %v6040
    %6838 = vmatprep.subr.bf16.mxu0 %v6049
    %6839 = vmatpush1.bf16.msra.mxu0 %v6048
    %6840 = vmatprep.subr.bf16.mxu0 %v6057
    %6841 = vmatpush1.bf16.msra.mxu0 %v6056
    %6842 = vmatprep.subr.bf16.mxu0 %v6065
    %6843 = vmatpush1.bf16.msra.mxu0 %v6064
    %6844 = vmatprep.subr.bf16.mxu0 %v6073
    %6845 = vmatpush1.bf16.msra.mxu0 %v6072
    %6846 = vmatprep.subr.bf16.mxu0 %v6081
    %6847 = vmatpush1.bf16.msra.mxu0 %v6080
    %6848 = vmatprep.mubr.bf16.mxu0 %v4671
    %6849 = vmatmul.mubr.bf16.gmra.mrb[0].mxu0 %v4670
    %v6850 = vpop.f32.mrb[0].mxu0
    %v6851 = vadd.f32 %v6808, %v6850
    %v6852 = vpop.f32.mrb[0].mxu0
    %v6853 = vadd.f32 %v6810, %v6852
    %v6854 = vpop.f32.mrb[0].mxu0
    %v6855 = vadd.f32 %v6812, %v6854
    %v6856 = vpop.f32.mrb[0].mxu0
    %v6857 = vadd.f32 %v6814, %v6856
    %6858 = vdwg.mxu0
    %6859 = vmatprep.subr.bf16.mxu0 %v6089
    %6860 = vmatpush1.bf16.msra.mxu0 %v6088
    %6861 = vmatprep.subr.bf16.mxu0 %v6097
    %6862 = vmatpush1.bf16.msra.mxu0 %v6096
    %6863 = vmatprep.subr.bf16.mxu0 %v6105
    %6864 = vmatpush1.bf16.msra.mxu0 %v6104
    %6865 = vmatprep.subr.bf16.mxu0 %v6113
    %6866 = vmatpush1.bf16.msra.mxu0 %v6112
    %6867 = vmatprep.subr.bf16.mxu0 %v6121
    %6868 = vmatpush1.bf16.msra.mxu0 %v6120
    %6869 = vmatprep.subr.bf16.mxu0 %v6129
    %6870 = vmatpush1.bf16.msra.mxu0 %v6128
    %6871 = vmatprep.subr.bf16.mxu0 %v6137
    %6872 = vmatpush1.bf16.msra.mxu0 %v6136
    %6873 = vmatprep.subr.bf16.mxu0 %v6145
    %6874 = vmatpush1.bf16.msra.mxu0 %v6144
    %6875 = vmatprep.subr.bf16.mxu0 %v6153
    %6876 = vmatpush1.bf16.msra.mxu0 %v6152
    %6877 = vmatprep.subr.bf16.mxu0 %v6161
    %6878 = vmatpush1.bf16.msra.mxu0 %v6160
    %6879 = vmatprep.subr.bf16.mxu0 %v6169
    %6880 = vmatpush1.bf16.msra.mxu0 %v6168
    %6881 = vmatprep.subr.bf16.mxu0 %v6177
    %6882 = vmatpush1.bf16.msra.mxu0 %v6176
    %6883 = vmatprep.subr.bf16.mxu0 %v6185
    %6884 = vmatpush1.bf16.msra.mxu0 %v6184
    %6885 = vmatprep.subr.bf16.mxu0 %v6193
    %6886 = vmatpush1.bf16.msra.mxu0 %v6192
    %6887 = vmatprep.subr.bf16.mxu0 %v6201
    %6888 = vmatpush1.bf16.msra.mxu0 %v6200
    %6889 = vmatprep.subr.bf16.mxu0 %v6209
    %6890 = vmatpush1.bf16.msra.mxu0 %v6208
    %6891 = vmatprep.mubr.bf16.mxu0 %v4673
    %6892 = vmatmul.mubr.bf16.gmra.mrb[0].mxu0 %v4672
    %v6893 = vpop.f32.mrb[0].mxu0
    %v6894 = vadd.f32 %v6851, %v6893
    %v6895 = vpop.f32.mrb[0].mxu0
    %v6896 = vadd.f32 %v6853, %v6895
    %v6897 = vpop.f32.mrb[0].mxu0
    %v6898 = vadd.f32 %v6855, %v6897
    %v6899 = vpop.f32.mrb[0].mxu0
    %v6900 = vadd.f32 %v6857, %v6899
    %6901 = vdwg.mxu0
    %6902 = vmatprep.subr.bf16.mxu0 %v5195
    %6903 = vmatpush1.bf16.msra.mxu0 %v5194
    %6904 = vmatprep.subr.bf16.mxu0 %v5203
    %6905 = vmatpush1.bf16.msra.mxu0 %v5202
    %6906 = vmatprep.subr.bf16.mxu0 %v5211
    %6907 = vmatpush1.bf16.msra.mxu0 %v5210
    %6908 = vmatprep.subr.bf16.mxu0 %v5219
    %6909 = vmatpush1.bf16.msra.mxu0 %v5218
    %6910 = vmatprep.subr.bf16.mxu0 %v5227
    %6911 = vmatpush1.bf16.msra.mxu0 %v5226
    %6912 = vmatprep.subr.bf16.mxu0 %v5235
    %6913 = vmatpush1.bf16.msra.mxu0 %v5234
    %6914 = vmatprep.subr.bf16.mxu0 %v5243
    %6915 = vmatpush1.bf16.msra.mxu0 %v5242
    %6916 = vmatprep.subr.bf16.mxu0 %v5251
    %6917 = vmatpush1.bf16.msra.mxu0 %v5250
    %6918 = vmatprep.subr.bf16.mxu0 %v5259
    %6919 = vmatpush1.bf16.msra.mxu0 %v5258
    %6920 = vmatprep.subr.bf16.mxu0 %v5267
    %6921 = vmatpush1.bf16.msra.mxu0 %v5266
    %6922 = vmatprep.subr.bf16.mxu0 %v5275
    %6923 = vmatpush1.bf16.msra.mxu0 %v5274
    %6924 = vmatprep.subr.bf16.mxu0 %v5283
    %6925 = vmatpush1.bf16.msra.mxu0 %v5282
    %6926 = vmatprep.subr.bf16.mxu0 %v5291
    %6927 = vmatpush1.bf16.msra.mxu0 %v5290
    %6928 = vmatprep.subr.bf16.mxu0 %v5299
    %6929 = vmatpush1.bf16.msra.mxu0 %v5298
    %6930 = vmatprep.subr.bf16.mxu0 %v5307
    %6931 = vmatpush1.bf16.msra.mxu0 %v5306
    %6932 = vmatprep.subr.bf16.mxu0 %v5315
    %6933 = vmatpush1.bf16.msra.mxu0 %v5314
    %6934 = vmatprep.mubr.bf16.mxu0 %v4659
    %6935 = vmatmul.mubr.bf16.gmra.mrb[0].mxu0 %v4658
    %v6936 = vpop.f32.mrb[0].mxu0
    %v6937 = vadd.f32 0.0, %v6936
    %v6938 = vpop.f32.mrb[0].mxu0
    %v6939 = vadd.f32 0.0, %v6938
    %v6940 = vpop.f32.mrb[0].mxu0
    %v6941 = vadd.f32 0.0, %v6940
    %v6942 = vpop.f32.mrb[0].mxu0
    %v6943 = vadd.f32 0.0, %v6942
    %6944 = vdwg.mxu0
    %6945 = vmatprep.subr.bf16.mxu0 %v5323
    %6946 = vmatpush1.bf16.msra.mxu0 %v5322
    %6947 = vmatprep.subr.bf16.mxu0 %v5331
    %6948 = vmatpush1.bf16.msra.mxu0 %v5330
    %6949 = vmatprep.subr.bf16.mxu0 %v5339
    %6950 = vmatpush1.bf16.msra.mxu0 %v5338
    %6951 = vmatprep.subr.bf16.mxu0 %v5347
    %6952 = vmatpush1.bf16.msra.mxu0 %v5346
    %6953 = vmatprep.subr.bf16.mxu0 %v5355
    %6954 = vmatpush1.bf16.msra.mxu0 %v5354
    %6955 = vmatprep.subr.bf16.mxu0 %v5363
    %6956 = vmatpush1.bf16.msra.mxu0 %v5362
    %6957 = vmatprep.subr.bf16.mxu0 %v5371
    %6958 = vmatpush1.bf16.msra.mxu0 %v5370
    %6959 = vmatprep.subr.bf16.mxu0 %v5379
    %6960 = vmatpush1.bf16.msra.mxu0 %v5378
    %6961 = vmatprep.subr.bf16.mxu0 %v5387
    %6962 = vmatpush1.bf16.msra.mxu0 %v5386
    %6963 = vmatprep.subr.bf16.mxu0 %v5395
    %6964 = vmatpush1.bf16.msra.mxu0 %v5394
    %6965 = vmatprep.subr.bf16.mxu0 %v5403
    %6966 = vmatpush1.bf16.msra.mxu0 %v5402
    %6967 = vmatprep.subr.bf16.mxu0 %v5411
    %6968 = vmatpush1.bf16.msra.mxu0 %v5410
    %6969 = vmatprep.subr.bf16.mxu0 %v5419
    %6970 = vmatpush1.bf16.msra.mxu0 %v5418
    %6971 = vmatprep.subr.bf16.mxu0 %v5427
    %6972 = vmatpush1.bf16.msra.mxu0 %v5426
    %6973 = vmatprep.subr.bf16.mxu0 %v5435
    %6974 = vmatpush1.bf16.msra.mxu0 %v5434
    %6975 = vmatprep.subr.bf16.mxu0 %v5443
    %6976 = vmatpush1.bf16.msra.mxu0 %v5442
    %6977 = vmatprep.mubr.bf16.mxu0 %v4661
    %6978 = vmatmul.mubr.bf16.gmra.mrb[0].mxu0 %v4660
    %v6979 = vpop.f32.mrb[0].mxu0
    %v6980 = vadd.f32 %v6937, %v6979
    %v6981 = vpop.f32.mrb[0].mxu0
    %v6982 = vadd.f32 %v6939, %v6981
    %v6983 = vpop.f32.mrb[0].mxu0
    %v6984 = vadd.f32 %v6941, %v6983
    %v6985 = vpop.f32.mrb[0].mxu0
    %v6986 = vadd.f32 %v6943, %v6985
    %6987 = vdwg.mxu0
    %6988 = vmatprep.subr.bf16.mxu0 %v5451
    %6989 = vmatpush1.bf16.msra.mxu0 %v5450
    %6990 = vmatprep.subr.bf16.mxu0 %v5459
    %6991 = vmatpush1.bf16.msra.mxu0 %v5458
    %6992 = vmatprep.subr.bf16.mxu0 %v5467
    %6993 = vmatpush1.bf16.msra.mxu0 %v5466
    %6994 = vmatprep.subr.bf16.mxu0 %v5475
    %6995 = vmatpush1.bf16.msra.mxu0 %v5474
    %6996 = vmatprep.subr.bf16.mxu0 %v5483
    %6997 = vmatpush1.bf16.msra.mxu0 %v5482
    %6998 = vmatprep.subr.bf16.mxu0 %v5491
    %6999 = vmatpush1.bf16.msra.mxu0 %v5490
    %7000 = vmatprep.subr.bf16.mxu0 %v5499
    %7001 = vmatpush1.bf16.msra.mxu0 %v5498
    %7002 = vmatprep.subr.bf16.mxu0 %v5507
    %7003 = vmatpush1.bf16.msra.mxu0 %v5506
    %7004 = vmatprep.subr.bf16.mxu0 %v5515
    %7005 = vmatpush1.bf16.msra.mxu0 %v5514
    %7006 = vmatprep.subr.bf16.mxu0 %v5523
    %7007 = vmatpush1.bf16.msra.mxu0 %v5522
    %7008 = vmatprep.subr.bf16.mxu0 %v5531
    %7009 = vmatpush1.bf16.msra.mxu0 %v5530
    %7010 = vmatprep.subr.bf16.mxu0 %v5539
    %7011 = vmatpush1.bf16.msra.mxu0 %v5538
    %7012 = vmatprep.subr.bf16.mxu0 %v5547
    %7013 = vmatpush1.bf16.msra.mxu0 %v5546
    %7014 = vmatprep.subr.bf16.mxu0 %v5555
    %7015 = vmatpush1.bf16.msra.mxu0 %v5554
    %7016 = vmatprep.subr.bf16.mxu0 %v5563
    %7017 = vmatpush1.bf16.msra.mxu0 %v5562
    %7018 = vmatprep.subr.bf16.mxu0 %v5571
    %7019 = vmatpush1.bf16.msra.mxu0 %v5570
    %7020 = vmatprep.mubr.bf16.mxu0 %v4663
    %7021 = vmatmul.mubr.bf16.gmra.mrb[0].mxu0 %v4662
    %v7022 = vpop.f32.mrb[0].mxu0
    %v7023 = vadd.f32 %v6980, %v7022
    %v7024 = vpop.f32.mrb[0].mxu0
    %v7025 = vadd.f32 %v6982, %v7024
    %v7026 = vpop.f32.mrb[0].mxu0
    %v7027 = vadd.f32 %v6984, %v7026
    %v7028 = vpop.f32.mrb[0].mxu0
    %v7029 = vadd.f32 %v6986, %v7028
    %7030 = vdwg.mxu0
    %7031 = vmatprep.subr.bf16.mxu0 %v5579
    %7032 = vmatpush1.bf16.msra.mxu0 %v5578
    %7033 = vmatprep.subr.bf16.mxu0 %v5587
    %7034 = vmatpush1.bf16.msra.mxu0 %v5586
    %7035 = vmatprep.subr.bf16.mxu0 %v5595
    %7036 = vmatpush1.bf16.msra.mxu0 %v5594
    %7037 = vmatprep.subr.bf16.mxu0 %v5603
    %7038 = vmatpush1.bf16.msra.mxu0 %v5602
    %7039 = vmatprep.subr.bf16.mxu0 %v5611
    %7040 = vmatpush1.bf16.msra.mxu0 %v5610
    %7041 = vmatprep.subr.bf16.mxu0 %v5619
    %7042 = vmatpush1.bf16.msra.mxu0 %v5618
    %7043 = vmatprep.subr.bf16.mxu0 %v5627
    %7044 = vmatpush1.bf16.msra.mxu0 %v5626
    %7045 = vmatprep.subr.bf16.mxu0 %v5635
    %7046 = vmatpush1.bf16.msra.mxu0 %v5634
    %7047 = vmatprep.subr.bf16.mxu0 %v5643
    %7048 = vmatpush1.bf16.msra.mxu0 %v5642
    %7049 = vmatprep.subr.bf16.mxu0 %v5651
    %7050 = vmatpush1.bf16.msra.mxu0 %v5650
    %7051 = vmatprep.subr.bf16.mxu0 %v5659
    %7052 = vmatpush1.bf16.msra.mxu0 %v5658
    %7053 = vmatprep.subr.bf16.mxu0 %v5667
    %7054 = vmatpush1.bf16.msra.mxu0 %v5666
    %7055 = vmatprep.subr.bf16.mxu0 %v5675
    %7056 = vmatpush1.bf16.msra.mxu0 %v5674
    %7057 = vmatprep.subr.bf16.mxu0 %v5683
    %7058 = vmatpush1.bf16.msra.mxu0 %v5682
    %7059 = vmatprep.subr.bf16.mxu0 %v5691
    %7060 = vmatpush1.bf16.msra.mxu0 %v5690
    %7061 = vmatprep.subr.bf16.mxu0 %v5699
    %7062 = vmatpush1.bf16.msra.mxu0 %v5698
    %7063 = vmatprep.mubr.bf16.mxu0 %v4665
    %7064 = vmatmul.mubr.bf16.gmra.mrb[0].mxu0 %v4664
    %v7065 = vpop.f32.mrb[0].mxu0
    %v7066 = vadd.f32 %v7023, %v7065
    %v7067 = vpop.f32.mrb[0].mxu0
    %v7068 = vadd.f32 %v7025, %v7067
    %v7069 = vpop.f32.mrb[0].mxu0
    %v7070 = vadd.f32 %v7027, %v7069
    %v7071 = vpop.f32.mrb[0].mxu0
    %v7072 = vadd.f32 %v7029, %v7071
    %7073 = vdwg.mxu0
    %7074 = vmatprep.subr.bf16.mxu0 %v5707
    %7075 = vmatpush1.bf16.msra.mxu0 %v5706
    %7076 = vmatprep.subr.bf16.mxu0 %v5715
    %7077 = vmatpush1.bf16.msra.mxu0 %v5714
    %7078 = vmatprep.subr.bf16.mxu0 %v5723
    %7079 = vmatpush1.bf16.msra.mxu0 %v5722
    %7080 = vmatprep.subr.bf16.mxu0 %v5731
    %7081 = vmatpush1.bf16.msra.mxu0 %v5730
    %7082 = vmatprep.subr.bf16.mxu0 %v5739
    %7083 = vmatpush1.bf16.msra.mxu0 %v5738
    %7084 = vmatprep.subr.bf16.mxu0 %v5747
    %7085 = vmatpush1.bf16.msra.mxu0 %v5746
    %7086 = vmatprep.subr.bf16.mxu0 %v5755
    %7087 = vmatpush1.bf16.msra.mxu0 %v5754
    %7088 = vmatprep.subr.bf16.mxu0 %v5763
    %7089 = vmatpush1.bf16.msra.mxu0 %v5762
    %7090 = vmatprep.subr.bf16.mxu0 %v5771
    %7091 = vmatpush1.bf16.msra.mxu0 %v5770
    %7092 = vmatprep.subr.bf16.mxu0 %v5779
    %7093 = vmatpush1.bf16.msra.mxu0 %v5778
    %7094 = vmatprep.subr.bf16.mxu0 %v5787
    %7095 = vmatpush1.bf16.msra.mxu0 %v5786
    %7096 = vmatprep.subr.bf16.mxu0 %v5795
    %7097 = vmatpush1.bf16.msra.mxu0 %v5794
    %7098 = vmatprep.subr.bf16.mxu0 %v5803
    %7099 = vmatpush1.bf16.msra.mxu0 %v5802
    %7100 = vmatprep.subr.bf16.mxu0 %v5811
    %7101 = vmatpush1.bf16.msra.mxu0 %v5810
    %7102 = vmatprep.subr.bf16.mxu0 %v5819
    %7103 = vmatpush1.bf16.msra.mxu0 %v5818
    %7104 = vmatprep.subr.bf16.mxu0 %v5827
    %7105 = vmatpush1.bf16.msra.mxu0 %v5826
    %7106 = vmatprep.mubr.bf16.mxu0 %v4667
    %7107 = vmatmul.mubr.bf16.gmra.mrb[0].mxu0 %v4666
    %v7108 = vpop.f32.mrb[0].mxu0
    %v7109 = vadd.f32 %v7066, %v7108
    %v7110 = vpop.f32.mrb[0].mxu0
    %v7111 = vadd.f32 %v7068, %v7110
    %v7112 = vpop.f32.mrb[0].mxu0
    %v7113 = vadd.f32 %v7070, %v7112
    %v7114 = vpop.f32.mrb[0].mxu0
    %v7115 = vadd.f32 %v7072, %v7114
    %7116 = vdwg.mxu0
    %7117 = vmatprep.subr.bf16.mxu0 %v5835
    %7118 = vmatpush1.bf16.msra.mxu0 %v5834
    %7119 = vmatprep.subr.bf16.mxu0 %v5843
    %7120 = vmatpush1.bf16.msra.mxu0 %v5842
    %7121 = vmatprep.subr.bf16.mxu0 %v5851
    %7122 = vmatpush1.bf16.msra.mxu0 %v5850
    %7123 = vmatprep.subr.bf16.mxu0 %v5859
    %7124 = vmatpush1.bf16.msra.mxu0 %v5858
    %7125 = vmatprep.subr.bf16.mxu0 %v5867
    %7126 = vmatpush1.bf16.msra.mxu0 %v5866
    %7127 = vmatprep.subr.bf16.mxu0 %v5875
    %7128 = vmatpush1.bf16.msra.mxu0 %v5874
    %7129 = vmatprep.subr.bf16.mxu0 %v5883
    %7130 = vmatpush1.bf16.msra.mxu0 %v5882
    %7131 = vmatprep.subr.bf16.mxu0 %v5891
    %7132 = vmatpush1.bf16.msra.mxu0 %v5890
    %7133 = vmatprep.subr.bf16.mxu0 %v5899
    %7134 = vmatpush1.bf16.msra.mxu0 %v5898
    %7135 = vmatprep.subr.bf16.mxu0 %v5907
    %7136 = vmatpush1.bf16.msra.mxu0 %v5906
    %7137 = vmatprep.subr.bf16.mxu0 %v5915
    %7138 = vmatpush1.bf16.msra.mxu0 %v5914
    %7139 = vmatprep.subr.bf16.mxu0 %v5923
    %7140 = vmatpush1.bf16.msra.mxu0 %v5922
    %7141 = vmatprep.subr.bf16.mxu0 %v5931
    %7142 = vmatpush1.bf16.msra.mxu0 %v5930
    %7143 = vmatprep.subr.bf16.mxu0 %v5939
    %7144 = vmatpush1.bf16.msra.mxu0 %v5938
    %7145 = vmatprep.subr.bf16.mxu0 %v5947
    %7146 = vmatpush1.bf16.msra.mxu0 %v5946
    %7147 = vmatprep.subr.bf16.mxu0 %v5955
    %7148 = vmatpush1.bf16.msra.mxu0 %v5954
    %7149 = vmatprep.mubr.bf16.mxu0 %v4669
    %7150 = vmatmul.mubr.bf16.gmra.mrb[0].mxu0 %v4668
    %v7151 = vpop.f32.mrb[0].mxu0
    %v7152 = vadd.f32 %v7109, %v7151
    %v7153 = vpop.f32.mrb[0].mxu0
    %v7154 = vadd.f32 %v7111, %v7153
    %v7155 = vpop.f32.mrb[0].mxu0
    %v7156 = vadd.f32 %v7113, %v7155
    %v7157 = vpop.f32.mrb[0].mxu0
    %v7158 = vadd.f32 %v7115, %v7157
    %7159 = vdwg.mxu0
    %7160 = vmatprep.subr.bf16.mxu0 %v5963
    %7161 = vmatpush1.bf16.msra.mxu0 %v5962
    %7162 = vmatprep.subr.bf16.mxu0 %v5971
    %7163 = vmatpush1.bf16.msra.mxu0 %v5970
    %7164 = vmatprep.subr.bf16.mxu0 %v5979
    %7165 = vmatpush1.bf16.msra.mxu0 %v5978
    %7166 = vmatprep.subr.bf16.mxu0 %v5987
    %7167 = vmatpush1.bf16.msra.mxu0 %v5986
    %7168 = vmatprep.subr.bf16.mxu0 %v5995
    %7169 = vmatpush1.bf16.msra.mxu0 %v5994
    %7170 = vmatprep.subr.bf16.mxu0 %v6003
    %7171 = vmatpush1.bf16.msra.mxu0 %v6002
    %7172 = vmatprep.subr.bf16.mxu0 %v6011
    %7173 = vmatpush1.bf16.msra.mxu0 %v6010
    %7174 = vmatprep.subr.bf16.mxu0 %v6019
    %7175 = vmatpush1.bf16.msra.mxu0 %v6018
    %7176 = vmatprep.subr.bf16.mxu0 %v6027
    %7177 = vmatpush1.bf16.msra.mxu0 %v6026
    %7178 = vmatprep.subr.bf16.mxu0 %v6035
    %7179 = vmatpush1.bf16.msra.mxu0 %v6034
    %7180 = vmatprep.subr.bf16.mxu0 %v6043
    %7181 = vmatpush1.bf16.msra.mxu0 %v6042
    %7182 = vmatprep.subr.bf16.mxu0 %v6051
    %7183 = vmatpush1.bf16.msra.mxu0 %v6050
    %7184 = vmatprep.subr.bf16.mxu0 %v6059
    %7185 = vmatpush1.bf16.msra.mxu0 %v6058
    %7186 = vmatprep.subr.bf16.mxu0 %v6067
    %7187 = vmatpush1.bf16.msra.mxu0 %v6066
    %7188 = vmatprep.subr.bf16.mxu0 %v6075
    %7189 = vmatpush1.bf16.msra.mxu0 %v6074
    %7190 = vmatprep.subr.bf16.mxu0 %v6083
    %7191 = vmatpush1.bf16.msra.mxu0 %v6082
    %7192 = vmatprep.mubr.bf16.mxu0 %v4671
    %7193 = vmatmul.mubr.bf16.gmra.mrb[0].mxu0 %v4670
    %v7194 = vpop.f32.mrb[0].mxu0
    %v7195 = vadd.f32 %v7152, %v7194
    %v7196 = vpop.f32.mrb[0].mxu0
    %v7197 = vadd.f32 %v7154, %v7196
    %v7198 = vpop.f32.mrb[0].mxu0
    %v7199 = vadd.f32 %v7156, %v7198
    %v7200 = vpop.f32.mrb[0].mxu0
    %v7201 = vadd.f32 %v7158, %v7200
    %7202 = vdwg.mxu0
    %7203 = vmatprep.subr.bf16.mxu0 %v6091
    %7204 = vmatpush1.bf16.msra.mxu0 %v6090
    %7205 = vmatprep.subr.bf16.mxu0 %v6099
    %7206 = vmatpush1.bf16.msra.mxu0 %v6098
    %7207 = vmatprep.subr.bf16.mxu0 %v6107
    %7208 = vmatpush1.bf16.msra.mxu0 %v6106
    %7209 = vmatprep.subr.bf16.mxu0 %v6115
    %7210 = vmatpush1.bf16.msra.mxu0 %v6114
    %7211 = vmatprep.subr.bf16.mxu0 %v6123
    %7212 = vmatpush1.bf16.msra.mxu0 %v6122
    %7213 = vmatprep.subr.bf16.mxu0 %v6131
    %7214 = vmatpush1.bf16.msra.mxu0 %v6130
    %7215 = vmatprep.subr.bf16.mxu0 %v6139
    %7216 = vmatpush1.bf16.msra.mxu0 %v6138
    %7217 = vmatprep.subr.bf16.mxu0 %v6147
    %7218 = vmatpush1.bf16.msra.mxu0 %v6146
    %7219 = vmatprep.subr.bf16.mxu0 %v6155
    %7220 = vmatpush1.bf16.msra.mxu0 %v6154
    %7221 = vmatprep.subr.bf16.mxu0 %v6163
    %7222 = vmatpush1.bf16.msra.mxu0 %v6162
    %7223 = vmatprep.subr.bf16.mxu0 %v6171
    %7224 = vmatpush1.bf16.msra.mxu0 %v6170
    %7225 = vmatprep.subr.bf16.mxu0 %v6179
    %7226 = vmatpush1.bf16.msra.mxu0 %v6178
    %7227 = vmatprep.subr.bf16.mxu0 %v6187
    %7228 = vmatpush1.bf16.msra.mxu0 %v6186
    %7229 = vmatprep.subr.bf16.mxu0 %v6195
    %7230 = vmatpush1.bf16.msra.mxu0 %v6194
    %7231 = vmatprep.subr.bf16.mxu0 %v6203
    %7232 = vmatpush1.bf16.msra.mxu0 %v6202
    %7233 = vmatprep.subr.bf16.mxu0 %v6211
    %7234 = vmatpush1.bf16.msra.mxu0 %v6210
    %7235 = vmatprep.mubr.bf16.mxu0 %v4673
    %7236 = vmatmul.mubr.bf16.gmra.mrb[0].mxu0 %v4672
    %v7237 = vpop.f32.mrb[0].mxu0
    %v7238 = vadd.f32 %v7195, %v7237
    %v7239 = vpop.f32.mrb[0].mxu0
    %v7240 = vadd.f32 %v7197, %v7239
    %v7241 = vpop.f32.mrb[0].mxu0
    %v7242 = vadd.f32 %v7199, %v7241
    %v7243 = vpop.f32.mrb[0].mxu0
    %v7244 = vadd.f32 %v7201, %v7243
    %7245 = vdwg.mxu0
    %7246 = vmatprep.subr.bf16.mxu0 %v5197
    %7247 = vmatpush1.bf16.msra.mxu0 %v5196
    %7248 = vmatprep.subr.bf16.mxu0 %v5205
    %7249 = vmatpush1.bf16.msra.mxu0 %v5204
    %7250 = vmatprep.subr.bf16.mxu0 %v5213
    %7251 = vmatpush1.bf16.msra.mxu0 %v5212
    %7252 = vmatprep.subr.bf16.mxu0 %v5221
    %7253 = vmatpush1.bf16.msra.mxu0 %v5220
    %7254 = vmatprep.subr.bf16.mxu0 %v5229
    %7255 = vmatpush1.bf16.msra.mxu0 %v5228
    %7256 = vmatprep.subr.bf16.mxu0 %v5237
    %7257 = vmatpush1.bf16.msra.mxu0 %v5236
    %7258 = vmatprep.subr.bf16.mxu0 %v5245
    %7259 = vmatpush1.bf16.msra.mxu0 %v5244
    %7260 = vmatprep.subr.bf16.mxu0 %v5253
    %7261 = vmatpush1.bf16.msra.mxu0 %v5252
    %7262 = vmatprep.subr.bf16.mxu0 %v5261
    %7263 = vmatpush1.bf16.msra.mxu0 %v5260
    %7264 = vmatprep.subr.bf16.mxu0 %v5269
    %7265 = vmatpush1.bf16.msra.mxu0 %v5268
    %7266 = vmatprep.subr.bf16.mxu0 %v5277
    %7267 = vmatpush1.bf16.msra.mxu0 %v5276
    %7268 = vmatprep.subr.bf16.mxu0 %v5285
    %7269 = vmatpush1.bf16.msra.mxu0 %v5284
    %7270 = vmatprep.subr.bf16.mxu0 %v5293
    %7271 = vmatpush1.bf16.msra.mxu0 %v5292
    %7272 = vmatprep.subr.bf16.mxu0 %v5301
    %7273 = vmatpush1.bf16.msra.mxu0 %v5300
    %7274 = vmatprep.subr.bf16.mxu0 %v5309
    %7275 = vmatpush1.bf16.msra.mxu0 %v5308
    %7276 = vmatprep.subr.bf16.mxu0 %v5317
    %7277 = vmatpush1.bf16.msra.mxu0 %v5316
    %7278 = vmatprep.mubr.bf16.mxu0 %v4659
    %7279 = vmatmul.mubr.bf16.gmra.mrb[0].mxu0 %v4658
    %v7280 = vpop.f32.mrb[0].mxu0
    %v7281 = vadd.f32 0.0, %v7280
    %v7282 = vpop.f32.mrb[0].mxu0
    %v7283 = vadd.f32 0.0, %v7282
    %v7284 = vpop.f32.mrb[0].mxu0
    %v7285 = vadd.f32 0.0, %v7284
    %v7286 = vpop.f32.mrb[0].mxu0
    %v7287 = vadd.f32 0.0, %v7286
    %7288 = vdwg.mxu0
    %7289 = vmatprep.subr.bf16.mxu0 %v5325
    %7290 = vmatpush1.bf16.msra.mxu0 %v5324
    %7291 = vmatprep.subr.bf16.mxu0 %v5333
    %7292 = vmatpush1.bf16.msra.mxu0 %v5332
    %7293 = vmatprep.subr.bf16.mxu0 %v5341
    %7294 = vmatpush1.bf16.msra.mxu0 %v5340
    %7295 = vmatprep.subr.bf16.mxu0 %v5349
    %7296 = vmatpush1.bf16.msra.mxu0 %v5348
    %7297 = vmatprep.subr.bf16.mxu0 %v5357
    %7298 = vmatpush1.bf16.msra.mxu0 %v5356
    %7299 = vmatprep.subr.bf16.mxu0 %v5365
    %7300 = vmatpush1.bf16.msra.mxu0 %v5364
    %7301 = vmatprep.subr.bf16.mxu0 %v5373
    %7302 = vmatpush1.bf16.msra.mxu0 %v5372
    %7303 = vmatprep.subr.bf16.mxu0 %v5381
    %7304 = vmatpush1.bf16.msra.mxu0 %v5380
    %7305 = vmatprep.subr.bf16.mxu0 %v5389
    %7306 = vmatpush1.bf16.msra.mxu0 %v5388
    %7307 = vmatprep.subr.bf16.mxu0 %v5397
    %7308 = vmatpush1.bf16.msra.mxu0 %v5396
    %7309 = vmatprep.subr.bf16.mxu0 %v5405
    %7310 = vmatpush1.bf16.msra.mxu0 %v5404
    %7311 = vmatprep.subr.bf16.mxu0 %v5413
    %7312 = vmatpush1.bf16.msra.mxu0 %v5412
    %7313 = vmatprep.subr.bf16.mxu0 %v5421
    %7314 = vmatpush1.bf16.msra.mxu0 %v5420
    %7315 = vmatprep.subr.bf16.mxu0 %v5429
    %7316 = vmatpush1.bf16.msra.mxu0 %v5428
    %7317 = vmatprep.subr.bf16.mxu0 %v5437
    %7318 = vmatpush1.bf16.msra.mxu0 %v5436
    %7319 = vmatprep.subr.bf16.mxu0 %v5445
    %7320 = vmatpush1.bf16.msra.mxu0 %v5444
    %7321 = vmatprep.mubr.bf16.mxu0 %v4661
    %7322 = vmatmul.mubr.bf16.gmra.mrb[0].mxu0 %v4660
    %v7323 = vpop.f32.mrb[0].mxu0
    %v7324 = vadd.f32 %v7281, %v7323
    %v7325 = vpop.f32.mrb[0].mxu0
    %v7326 = vadd.f32 %v7283, %v7325
    %v7327 = vpop.f32.mrb[0].mxu0
    %v7328 = vadd.f32 %v7285, %v7327
    %v7329 = vpop.f32.mrb[0].mxu0
    %v7330 = vadd.f32 %v7287, %v7329
    %7331 = vdwg.mxu0
    %7332 = vmatprep.subr.bf16.mxu0 %v5453
    %7333 = vmatpush1.bf16.msra.mxu0 %v5452
    %7334 = vmatprep.subr.bf16.mxu0 %v5461
    %7335 = vmatpush1.bf16.msra.mxu0 %v5460
    %7336 = vmatprep.subr.bf16.mxu0 %v5469
    %7337 = vmatpush1.bf16.msra.mxu0 %v5468
    %7338 = vmatprep.subr.bf16.mxu0 %v5477
    %7339 = vmatpush1.bf16.msra.mxu0 %v5476
    %7340 = vmatprep.subr.bf16.mxu0 %v5485
    %7341 = vmatpush1.bf16.msra.mxu0 %v5484
    %7342 = vmatprep.subr.bf16.mxu0 %v5493
    %7343 = vmatpush1.bf16.msra.mxu0 %v5492
    %7344 = vmatprep.subr.bf16.mxu0 %v5501
    %7345 = vmatpush1.bf16.msra.mxu0 %v5500
    %7346 = vmatprep.subr.bf16.mxu0 %v5509
    %7347 = vmatpush1.bf16.msra.mxu0 %v5508
    %7348 = vmatprep.subr.bf16.mxu0 %v5517
    %7349 = vmatpush1.bf16.msra.mxu0 %v5516
    %7350 = vmatprep.subr.bf16.mxu0 %v5525
    %7351 = vmatpush1.bf16.msra.mxu0 %v5524
    %7352 = vmatprep.subr.bf16.mxu0 %v5533
    %7353 = vmatpush1.bf16.msra.mxu0 %v5532
    %7354 = vmatprep.subr.bf16.mxu0 %v5541
    %7355 = vmatpush1.bf16.msra.mxu0 %v5540
    %7356 = vmatprep.subr.bf16.mxu0 %v5549
    %7357 = vmatpush1.bf16.msra.mxu0 %v5548
    %7358 = vmatprep.subr.bf16.mxu0 %v5557
    %7359 = vmatpush1.bf16.msra.mxu0 %v5556
    %7360 = vmatprep.subr.bf16.mxu0 %v5565
    %7361 = vmatpush1.bf16.msra.mxu0 %v5564
    %7362 = vmatprep.subr.bf16.mxu0 %v5573
    %7363 = vmatpush1.bf16.msra.mxu0 %v5572
    %7364 = vmatprep.mubr.bf16.mxu0 %v4663
    %7365 = vmatmul.mubr.bf16.gmra.mrb[0].mxu0 %v4662
    %v7366 = vpop.f32.mrb[0].mxu0
    %v7367 = vadd.f32 %v7324, %v7366
    %v7368 = vpop.f32.mrb[0].mxu0
    %v7369 = vadd.f32 %v7326, %v7368
    %v7370 = vpop.f32.mrb[0].mxu0
    %v7371 = vadd.f32 %v7328, %v7370
    %v7372 = vpop.f32.mrb[0].mxu0
    %v7373 = vadd.f32 %v7330, %v7372
    %7374 = vdwg.mxu0
    %7375 = vmatprep.subr.bf16.mxu0 %v5581
    %7376 = vmatpush1.bf16.msra.mxu0 %v5580
    %7377 = vmatprep.subr.bf16.mxu0 %v5589
    %7378 = vmatpush1.bf16.msra.mxu0 %v5588
    %7379 = vmatprep.subr.bf16.mxu0 %v5597
    %7380 = vmatpush1.bf16.msra.mxu0 %v5596
    %7381 = vmatprep.subr.bf16.mxu0 %v5605
    %7382 = vmatpush1.bf16.msra.mxu0 %v5604
    %7383 = vmatprep.subr.bf16.mxu0 %v5613
    %7384 = vmatpush1.bf16.msra.mxu0 %v5612
    %7385 = vmatprep.subr.bf16.mxu0 %v5621
    %7386 = vmatpush1.bf16.msra.mxu0 %v5620
    %7387 = vmatprep.subr.bf16.mxu0 %v5629
    %7388 = vmatpush1.bf16.msra.mxu0 %v5628
    %7389 = vmatprep.subr.bf16.mxu0 %v5637
    %7390 = vmatpush1.bf16.msra.mxu0 %v5636
    %7391 = vmatprep.subr.bf16.mxu0 %v5645
    %7392 = vmatpush1.bf16.msra.mxu0 %v5644
    %7393 = vmatprep.subr.bf16.mxu0 %v5653
    %7394 = vmatpush1.bf16.msra.mxu0 %v5652
    %7395 = vmatprep.subr.bf16.mxu0 %v5661
    %7396 = vmatpush1.bf16.msra.mxu0 %v5660
    %7397 = vmatprep.subr.bf16.mxu0 %v5669
    %7398 = vmatpush1.bf16.msra.mxu0 %v5668
    %7399 = vmatprep.subr.bf16.mxu0 %v5677
    %7400 = vmatpush1.bf16.msra.mxu0 %v5676
    %7401 = vmatprep.subr.bf16.mxu0 %v5685
    %7402 = vmatpush1.bf16.msra.mxu0 %v5684
    %7403 = vmatprep.subr.bf16.mxu0 %v5693
    %7404 = vmatpush1.bf16.msra.mxu0 %v5692
    %7405 = vmatprep.subr.bf16.mxu0 %v5701
    %7406 = vmatpush1.bf16.msra.mxu0 %v5700
    %7407 = vmatprep.mubr.bf16.mxu0 %v4665
    %7408 = vmatmul.mubr.bf16.gmra.mrb[0].mxu0 %v4664
    %v7409 = vpop.f32.mrb[0].mxu0
    %v7410 = vadd.f32 %v7367, %v7409
    %v7411 = vpop.f32.mrb[0].mxu0
    %v7412 = vadd.f32 %v7369, %v7411
    %v7413 = vpop.f32.mrb[0].mxu0
    %v7414 = vadd.f32 %v7371, %v7413
    %v7415 = vpop.f32.mrb[0].mxu0
    %v7416 = vadd.f32 %v7373, %v7415
    %7417 = vdwg.mxu0
    %7418 = vmatprep.subr.bf16.mxu0 %v5709
    %7419 = vmatpush1.bf16.msra.mxu0 %v5708
    %7420 = vmatprep.subr.bf16.mxu0 %v5717
    %7421 = vmatpush1.bf16.msra.mxu0 %v5716
    %7422 = vmatprep.subr.bf16.mxu0 %v5725
    %7423 = vmatpush1.bf16.msra.mxu0 %v5724
    %7424 = vmatprep.subr.bf16.mxu0 %v5733
    %7425 = vmatpush1.bf16.msra.mxu0 %v5732
    %7426 = vmatprep.subr.bf16.mxu0 %v5741
    %7427 = vmatpush1.bf16.msra.mxu0 %v5740
    %7428 = vmatprep.subr.bf16.mxu0 %v5749
    %7429 = vmatpush1.bf16.msra.mxu0 %v5748
    %7430 = vmatprep.subr.bf16.mxu0 %v5757
    %7431 = vmatpush1.bf16.msra.mxu0 %v5756
    %7432 = vmatprep.subr.bf16.mxu0 %v5765
    %7433 = vmatpush1.bf16.msra.mxu0 %v5764
    %7434 = vmatprep.subr.bf16.mxu0 %v5773
    %7435 = vmatpush1.bf16.msra.mxu0 %v5772
    %7436 = vmatprep.subr.bf16.mxu0 %v5781
    %7437 = vmatpush1.bf16.msra.mxu0 %v5780
    %7438 = vmatprep.subr.bf16.mxu0 %v5789
    %7439 = vmatpush1.bf16.msra.mxu0 %v5788
    %7440 = vmatprep.subr.bf16.mxu0 %v5797
    %7441 = vmatpush1.bf16.msra.mxu0 %v5796
    %7442 = vmatprep.subr.bf16.mxu0 %v5805
    %7443 = vmatpush1.bf16.msra.mxu0 %v5804
    %7444 = vmatprep.subr.bf16.mxu0 %v5813
    %7445 = vmatpush1.bf16.msra.mxu0 %v5812
    %7446 = vmatprep.subr.bf16.mxu0 %v5821
    %7447 = vmatpush1.bf16.msra.mxu0 %v5820
    %7448 = vmatprep.subr.bf16.mxu0 %v5829
    %7449 = vmatpush1.bf16.msra.mxu0 %v5828
    %7450 = vmatprep.mubr.bf16.mxu0 %v4667
    %7451 = vmatmul.mubr.bf16.gmra.mrb[0].mxu0 %v4666
    %v7452 = vpop.f32.mrb[0].mxu0
    %v7453 = vadd.f32 %v7410, %v7452
    %v7454 = vpop.f32.mrb[0].mxu0
    %v7455 = vadd.f32 %v7412, %v7454
    %v7456 = vpop.f32.mrb[0].mxu0
    %v7457 = vadd.f32 %v7414, %v7456
    %v7458 = vpop.f32.mrb[0].mxu0
    %v7459 = vadd.f32 %v7416, %v7458
    %7460 = vdwg.mxu0
    %7461 = vmatprep.subr.bf16.mxu0 %v5837
    %7462 = vmatpush1.bf16.msra.mxu0 %v5836
    %7463 = vmatprep.subr.bf16.mxu0 %v5845
    %7464 = vmatpush1.bf16.msra.mxu0 %v5844
    %7465 = vmatprep.subr.bf16.mxu0 %v5853
    %7466 = vmatpush1.bf16.msra.mxu0 %v5852
    %7467 = vmatprep.subr.bf16.mxu0 %v5861
    %7468 = vmatpush1.bf16.msra.mxu0 %v5860
    %7469 = vmatprep.subr.bf16.mxu0 %v5869
    %7470 = vmatpush1.bf16.msra.mxu0 %v5868
    %7471 = vmatprep.subr.bf16.mxu0 %v5877
    %7472 = vmatpush1.bf16.msra.mxu0 %v5876
    %7473 = vmatprep.subr.bf16.mxu0 %v5885
    %7474 = vmatpush1.bf16.msra.mxu0 %v5884
    %7475 = vmatprep.subr.bf16.mxu0 %v5893
    %7476 = vmatpush1.bf16.msra.mxu0 %v5892
    %7477 = vmatprep.subr.bf16.mxu0 %v5901
    %7478 = vmatpush1.bf16.msra.mxu0 %v5900
    %7479 = vmatprep.subr.bf16.mxu0 %v5909
    %7480 = vmatpush1.bf16.msra.mxu0 %v5908
    %7481 = vmatprep.subr.bf16.mxu0 %v5917
    %7482 = vmatpush1.bf16.msra.mxu0 %v5916
    %7483 = vmatprep.subr.bf16.mxu0 %v5925
    %7484 = vmatpush1.bf16.msra.mxu0 %v5924
    %7485 = vmatprep.subr.bf16.mxu0 %v5933
    %7486 = vmatpush1.bf16.msra.mxu0 %v5932
    %7487 = vmatprep.subr.bf16.mxu0 %v5941
    %7488 = vmatpush1.bf16.msra.mxu0 %v5940
    %7489 = vmatprep.subr.bf16.mxu0 %v5949
    %7490 = vmatpush1.bf16.msra.mxu0 %v5948
    %7491 = vmatprep.subr.bf16.mxu0 %v5957
    %7492 = vmatpush1.bf16.msra.mxu0 %v5956
    %7493 = vmatprep.mubr.bf16.mxu0 %v4669
    %7494 = vmatmul.mubr.bf16.gmra.mrb[0].mxu0 %v4668
    %v7495 = vpop.f32.mrb[0].mxu0
    %v7496 = vadd.f32 %v7453, %v7495
    %v7497 = vpop.f32.mrb[0].mxu0
    %v7498 = vadd.f32 %v7455, %v7497
    %v7499 = vpop.f32.mrb[0].mxu0
    %v7500 = vadd.f32 %v7457, %v7499
    %v7501 = vpop.f32.mrb[0].mxu0
    %v7502 = vadd.f32 %v7459, %v7501
    %7503 = vdwg.mxu0
    %7504 = vmatprep.subr.bf16.mxu0 %v5965
    %7505 = vmatpush1.bf16.msra.mxu0 %v5964
    %7506 = vmatprep.subr.bf16.mxu0 %v5973
    %7507 = vmatpush1.bf16.msra.mxu0 %v5972
    %7508 = vmatprep.subr.bf16.mxu0 %v5981
    %7509 = vmatpush1.bf16.msra.mxu0 %v5980
    %7510 = vmatprep.subr.bf16.mxu0 %v5989
    %7511 = vmatpush1.bf16.msra.mxu0 %v5988
    %7512 = vmatprep.subr.bf16.mxu0 %v5997
    %7513 = vmatpush1.bf16.msra.mxu0 %v5996
    %7514 = vmatprep.subr.bf16.mxu0 %v6005
    %7515 = vmatpush1.bf16.msra.mxu0 %v6004
    %7516 = vmatprep.subr.bf16.mxu0 %v6013
    %7517 = vmatpush1.bf16.msra.mxu0 %v6012
    %7518 = vmatprep.subr.bf16.mxu0 %v6021
    %7519 = vmatpush1.bf16.msra.mxu0 %v6020
    %7520 = vmatprep.subr.bf16.mxu0 %v6029
    %7521 = vmatpush1.bf16.msra.mxu0 %v6028
    %7522 = vmatprep.subr.bf16.mxu0 %v6037
    %7523 = vmatpush1.bf16.msra.mxu0 %v6036
    %7524 = vmatprep.subr.bf16.mxu0 %v6045
    %7525 = vmatpush1.bf16.msra.mxu0 %v6044
    %7526 = vmatprep.subr.bf16.mxu0 %v6053
    %7527 = vmatpush1.bf16.msra.mxu0 %v6052
    %7528 = vmatprep.subr.bf16.mxu0 %v6061
    %7529 = vmatpush1.bf16.msra.mxu0 %v6060
    %7530 = vmatprep.subr.bf16.mxu0 %v6069
    %7531 = vmatpush1.bf16.msra.mxu0 %v6068
    %7532 = vmatprep.subr.bf16.mxu0 %v6077
    %7533 = vmatpush1.bf16.msra.mxu0 %v6076
    %7534 = vmatprep.subr.bf16.mxu0 %v6085
    %7535 = vmatpush1.bf16.msra.mxu0 %v6084
    %7536 = vmatprep.mubr.bf16.mxu0 %v4671
    %7537 = vmatmul.mubr.bf16.gmra.mrb[0].mxu0 %v4670
    %v7538 = vpop.f32.mrb[0].mxu0
    %v7539 = vadd.f32 %v7496, %v7538
    %v7540 = vpop.f32.mrb[0].mxu0
    %v7541 = vadd.f32 %v7498, %v7540
    %v7542 = vpop.f32.mrb[0].mxu0
    %v7543 = vadd.f32 %v7500, %v7542
    %v7544 = vpop.f32.mrb[0].mxu0
    %v7545 = vadd.f32 %v7502, %v7544
    %7546 = vdwg.mxu0
    %7547 = vmatprep.subr.bf16.mxu0 %v6093
    %7548 = vmatpush1.bf16.msra.mxu0 %v6092
    %7549 = vmatprep.subr.bf16.mxu0 %v6101
    %7550 = vmatpush1.bf16.msra.mxu0 %v6100
    %7551 = vmatprep.subr.bf16.mxu0 %v6109
    %7552 = vmatpush1.bf16.msra.mxu0 %v6108
    %7553 = vmatprep.subr.bf16.mxu0 %v6117
    %7554 = vmatpush1.bf16.msra.mxu0 %v6116
    %7555 = vmatprep.subr.bf16.mxu0 %v6125
    %7556 = vmatpush1.bf16.msra.mxu0 %v6124
    %7557 = vmatprep.subr.bf16.mxu0 %v6133
    %7558 = vmatpush1.bf16.msra.mxu0 %v6132
    %7559 = vmatprep.subr.bf16.mxu0 %v6141
    %7560 = vmatpush1.bf16.msra.mxu0 %v6140
    %7561 = vmatprep.subr.bf16.mxu0 %v6149
    %7562 = vmatpush1.bf16.msra.mxu0 %v6148
    %7563 = vmatprep.subr.bf16.mxu0 %v6157
    %7564 = vmatpush1.bf16.msra.mxu0 %v6156
    %7565 = vmatprep.subr.bf16.mxu0 %v6165
    %7566 = vmatpush1.bf16.msra.mxu0 %v6164
    %7567 = vmatprep.subr.bf16.mxu0 %v6173
    %7568 = vmatpush1.bf16.msra.mxu0 %v6172
    %7569 = vmatprep.subr.bf16.mxu0 %v6181
    %7570 = vmatpush1.bf16.msra.mxu0 %v6180
    %7571 = vmatprep.subr.bf16.mxu0 %v6189
    %7572 = vmatpush1.bf16.msra.mxu0 %v6188
    %7573 = vmatprep.subr.bf16.mxu0 %v6197
    %7574 = vmatpush1.bf16.msra.mxu0 %v6196
    %7575 = vmatprep.subr.bf16.mxu0 %v6205
    %7576 = vmatpush1.bf16.msra.mxu0 %v6204
    %7577 = vmatprep.subr.bf16.mxu0 %v6213
    %7578 = vmatpush1.bf16.msra.mxu0 %v6212
    %7579 = vmatprep.mubr.bf16.mxu0 %v4673
    %7580 = vmatmul.mubr.bf16.gmra.mrb[0].mxu0 %v4672
    %v7581 = vpop.f32.mrb[0].mxu0
    %v7582 = vadd.f32 %v7539, %v7581
    %v7583 = vpop.f32.mrb[0].mxu0
    %v7584 = vadd.f32 %v7541, %v7583
    %v7585 = vpop.f32.mrb[0].mxu0
    %v7586 = vadd.f32 %v7543, %v7585
    %v7587 = vpop.f32.mrb[0].mxu0
    %v7588 = vadd.f32 %v7545, %v7587
    %7589 = vdwg.mxu0
    %s7590 = scalar_lea.vmem [#allocation13], 62
    %v7591 = vld [vmem:[%s7590] ss:$2 sm:$0xff]
    %s7592 = scalar_lea.vmem [#allocation13], 63
    %v7593 = vld [vmem:[%s7592] ss:$2 sm:$0xff]
    %v7595 = vlaneseq
    %v7596 = vshrl.u32 %v7595, 7
    %v7597 = vsub.s32 0, %v7596
    %v7598 = vrot.slane %v7591, %v7597
    %v7599 = vlaneseq
    %v7600 = vshrl.u32 %v7599, 7
    %v7601 = vsub.s32 1, %v7600
    %v7602 = vrot.slane %v7591, %v7601
    %v7603 = vlaneseq
    %v7604 = vshrl.u32 %v7603, 7
    %v7605 = vsub.s32 2, %v7604
    %v7606 = vrot.slane %v7591, %v7605
    %v7607 = vlaneseq
    %v7608 = vshrl.u32 %v7607, 7
    %v7609 = vsub.s32 3, %v7608
    %v7610 = vrot.slane %v7591, %v7609
    %v7611 = vlaneseq
    %v7612 = vshrl.u32 %v7611, 7
    %v7613 = vsub.s32 4, %v7612
    %v7614 = vrot.slane %v7591, %v7613
    %v7615 = vlaneseq
    %v7616 = vshrl.u32 %v7615, 7
    %v7617 = vsub.s32 5, %v7616
    %v7618 = vrot.slane %v7591, %v7617
    %v7619 = vlaneseq
    %v7620 = vshrl.u32 %v7619, 7
    %v7621 = vsub.s32 6, %v7620
    %v7622 = vrot.slane %v7591, %v7621
    %v7623 = vlaneseq
    %v7624 = vshrl.u32 %v7623, 7
    %v7625 = vsub.s32 7, %v7624
    %v7626 = vrot.slane %v7591, %v7625
    %v7635 = vmul.f32 %v6550, %v7598
    %v7636 = vmul.f32 %v6552, %v7602
    %v7637 = vmul.f32 %v6894, %v7606
    %v7638 = vmul.f32 %v6896, %v7610
    %v7639 = vmul.f32 %v7238, %v7614
    %v7640 = vmul.f32 %v7240, %v7618
    %v7641 = vmul.f32 %v7582, %v7622
    %v7642 = vmul.f32 %v7584, %v7626
    %v7643 = vmul.f32 %v6554, %v7598
    %v7644 = vmul.f32 %v6556, %v7602
    %v7645 = vmul.f32 %v6898, %v7606
    %v7646 = vmul.f32 %v6900, %v7610
    %v7647 = vmul.f32 %v7242, %v7614
    %v7648 = vmul.f32 %v7244, %v7618
    %v7649 = vmul.f32 %v7586, %v7622
    %v7650 = vmul.f32 %v7588, %v7626
    %v7652 = vlaneseq
    %v7653 = vshrl.u32 %v7652, 7
    %v7654 = vsub.s32 0, %v7653
    %v7655 = vrot.slane %v7593, %v7654
    %v7656 = vlaneseq
    %v7657 = vshrl.u32 %v7656, 7
    %v7658 = vsub.s32 1, %v7657
    %v7659 = vrot.slane %v7593, %v7658
    %v7660 = vlaneseq
    %v7661 = vshrl.u32 %v7660, 7
    %v7662 = vsub.s32 2, %v7661
    %v7663 = vrot.slane %v7593, %v7662
    %v7664 = vlaneseq
    %v7665 = vshrl.u32 %v7664, 7
    %v7666 = vsub.s32 3, %v7665
    %v7667 = vrot.slane %v7593, %v7666
    %v7668 = vlaneseq
    %v7669 = vshrl.u32 %v7668, 7
    %v7670 = vsub.s32 4, %v7669
    %v7671 = vrot.slane %v7593, %v7670
    %v7672 = vlaneseq
    %v7673 = vshrl.u32 %v7672, 7
    %v7674 = vsub.s32 5, %v7673
    %v7675 = vrot.slane %v7593, %v7674
    %v7676 = vlaneseq
    %v7677 = vshrl.u32 %v7676, 7
    %v7678 = vsub.s32 6, %v7677
    %v7679 = vrot.slane %v7593, %v7678
    %v7680 = vlaneseq
    %v7681 = vshrl.u32 %v7680, 7
    %v7682 = vsub.s32 7, %v7681
    %v7683 = vrot.slane %v7593, %v7682
    %v7692 = vadd.f32 %v7635, %v7655
    %v7693 = vadd.f32 %v7636, %v7659
    %v7694 = vadd.f32 %v7637, %v7663
    %v7695 = vadd.f32 %v7638, %v7667
    %v7696 = vadd.f32 %v7639, %v7671
    %v7697 = vadd.f32 %v7640, %v7675
    %v7698 = vadd.f32 %v7641, %v7679
    %v7699 = vadd.f32 %v7642, %v7683
    %v7700 = vadd.f32 %v7643, %v7655
    %v7701 = vadd.f32 %v7644, %v7659
    %v7702 = vadd.f32 %v7645, %v7663
    %v7703 = vadd.f32 %v7646, %v7667
    %v7704 = vadd.f32 %v7647, %v7671
    %v7705 = vadd.f32 %v7648, %v7675
    %v7706 = vadd.f32 %v7649, %v7679
    %v7707 = vadd.f32 %v7650, %v7683
    %v7708 = vmax.f32 %v7692, 0.0
    %v7709 = vmax.f32 %v7693, 0.0
    %v7710 = vmax.f32 %v7694, 0.0
    %v7711 = vmax.f32 %v7695, 0.0
    %v7712 = vmax.f32 %v7696, 0.0
    %v7713 = vmax.f32 %v7697, 0.0
    %v7714 = vmax.f32 %v7698, 0.0
    %v7715 = vmax.f32 %v7699, 0.0
    %v7716 = vmax.f32 %v7700, 0.0
    %v7717 = vmax.f32 %v7701, 0.0
    %v7718 = vmax.f32 %v7702, 0.0
    %v7719 = vmax.f32 %v7703, 0.0
    %v7720 = vmax.f32 %v7704, 0.0
    %v7721 = vmax.f32 %v7705, 0.0
    %v7722 = vmax.f32 %v7706, 0.0
    %v7723 = vmax.f32 %v7707, 0.0
    %v7724 = vpack.c.bf16 %v7716, %v7708
    %v7725 = vpack.c.bf16 %v7717, %v7709
    %v7726 = vpack.c.bf16 %v7718, %v7710
    %v7727 = vpack.c.bf16 %v7719, %v7711
    %v7728 = vpack.c.bf16 %v7720, %v7712
    %v7729 = vpack.c.bf16 %v7721, %v7713
    %v7730 = vpack.c.bf16 %v7722, %v7714
    %v7731 = vpack.c.bf16 %v7723, %v7715
    %s7732 = smul.u32 %s1474, 4
    %s7733 = sshll.u32 %s7732, 4
    %7734 = dma.done %s105, %s7733
    %v7735 = vld [vmem:[#allocation8] sm:$0xff]
    %v7736 = vld [vmem:[#allocation8 + $0x8] sm:$0xff]
    %v7737 = vld [vmem:[#allocation8 + $0x10] sm:$0xff]
    %v7738 = vld [vmem:[#allocation8 + $0x18] sm:$0xff]
    %v7739 = vld [vmem:[#allocation8 + $0x20] sm:$0xff]
    %v7740 = vld [vmem:[#allocation8 + $0x28] sm:$0xff]
    %v7741 = vld [vmem:[#allocation8 + $0x30] sm:$0xff]
    %v7742 = vld [vmem:[#allocation8 + $0x38] sm:$0xff]
    %v7743 = vld [vmem:[#allocation8 + $0x40] sm:$0xff]
    %v7744 = vld [vmem:[#allocation8 + $0x48] sm:$0xff]
    %v7745 = vld [vmem:[#allocation8 + $0x50] sm:$0xff]
    %v7746 = vld [vmem:[#allocation8 + $0x58] sm:$0xff]
    %v7747 = vld [vmem:[#allocation8 + $0x60] sm:$0xff]
    %v7748 = vld [vmem:[#allocation8 + $0x68] sm:$0xff]
    %v7749 = vld [vmem:[#allocation8 + $0x70] sm:$0xff]
    %v7750 = vld [vmem:[#allocation8 + $0x78] sm:$0xff]
    %v7751 = vld [vmem:[#allocation8 + $0x80] sm:$0xff]
    %v7752 = vld [vmem:[#allocation8 + $0x88] sm:$0xff]
    %v7753 = vld [vmem:[#allocation8 + $0x90] sm:$0xff]
    %v7754 = vld [vmem:[#allocation8 + $0x98] sm:$0xff]
    %v7755 = vld [vmem:[#allocation8 + $0xa0] sm:$0xff]
    %v7756 = vld [vmem:[#allocation8 + $0xa8] sm:$0xff]
    %v7757 = vld [vmem:[#allocation8 + $0xb0] sm:$0xff]
    %v7758 = vld [vmem:[#allocation8 + $0xb8] sm:$0xff]
    %v7759 = vld [vmem:[#allocation8 + $0xc0] sm:$0xff]
    %v7760 = vld [vmem:[#allocation8 + $0xc8] sm:$0xff]
    %v7761 = vld [vmem:[#allocation8 + $0xd0] sm:$0xff]
    %v7762 = vld [vmem:[#allocation8 + $0xd8] sm:$0xff]
    %v7763 = vld [vmem:[#allocation8 + $0xe0] sm:$0xff]
    %v7764 = vld [vmem:[#allocation8 + $0xe8] sm:$0xff]
    %v7765 = vld [vmem:[#allocation8 + $0xf0] sm:$0xff]
    %v7766 = vld [vmem:[#allocation8 + $0xf8] sm:$0xff]
    %v7767 = vld [vmem:[#allocation8 + $0x100] sm:$0xff]
    %v7768 = vld [vmem:[#allocation8 + $0x108] sm:$0xff]
    %v7769 = vld [vmem:[#allocation8 + $0x110] sm:$0xff]
    %v7770 = vld [vmem:[#allocation8 + $0x118] sm:$0xff]
    %v7771 = vld [vmem:[#allocation8 + $0x120] sm:$0xff]
    %v7772 = vld [vmem:[#allocation8 + $0x128] sm:$0xff]
    %v7773 = vld [vmem:[#allocation8 + $0x130] sm:$0xff]
    %v7774 = vld [vmem:[#allocation8 + $0x138] sm:$0xff]
    %v7775 = vld [vmem:[#allocation8 + $0x140] sm:$0xff]
    %v7776 = vld [vmem:[#allocation8 + $0x148] sm:$0xff]
    %v7777 = vld [vmem:[#allocation8 + $0x150] sm:$0xff]
    %v7778 = vld [vmem:[#allocation8 + $0x158] sm:$0xff]
    %v7779 = vld [vmem:[#allocation8 + $0x160] sm:$0xff]
    %v7780 = vld [vmem:[#allocation8 + $0x168] sm:$0xff]
    %v7781 = vld [vmem:[#allocation8 + $0x170] sm:$0xff]
    %v7782 = vld [vmem:[#allocation8 + $0x178] sm:$0xff]
    %v7783 = vld [vmem:[#allocation8 + $0x180] sm:$0xff]
    %v7784 = vld [vmem:[#allocation8 + $0x188] sm:$0xff]
    %v7785 = vld [vmem:[#allocation8 + $0x190] sm:$0xff]
    %v7786 = vld [vmem:[#allocation8 + $0x198] sm:$0xff]
    %v7787 = vld [vmem:[#allocation8 + $0x1a0] sm:$0xff]
    %v7788 = vld [vmem:[#allocation8 + $0x1a8] sm:$0xff]
    %v7789 = vld [vmem:[#allocation8 + $0x1b0] sm:$0xff]
    %v7790 = vld [vmem:[#allocation8 + $0x1b8] sm:$0xff]
    %v7791 = vld [vmem:[#allocation8 + $0x1c0] sm:$0xff]
    %v7792 = vld [vmem:[#allocation8 + $0x1c8] sm:$0xff]
    %v7793 = vld [vmem:[#allocation8 + $0x1d0] sm:$0xff]
    %v7794 = vld [vmem:[#allocation8 + $0x1d8] sm:$0xff]
    %v7795 = vld [vmem:[#allocation8 + $0x1e0] sm:$0xff]
    %v7796 = vld [vmem:[#allocation8 + $0x1e8] sm:$0xff]
    %v7797 = vld [vmem:[#allocation8 + $0x1f0] sm:$0xff]
    %v7798 = vld [vmem:[#allocation8 + $0x1f8] sm:$0xff]
    %v7799 = vld [vmem:[#allocation8 + $0x200] sm:$0xff]
    %v7800 = vld [vmem:[#allocation8 + $0x208] sm:$0xff]
    %v7801 = vld [vmem:[#allocation8 + $0x210] sm:$0xff]
    %v7802 = vld [vmem:[#allocation8 + $0x218] sm:$0xff]
    %v7803 = vld [vmem:[#allocation8 + $0x220] sm:$0xff]
    %v7804 = vld [vmem:[#allocation8 + $0x228] sm:$0xff]
    %v7805 = vld [vmem:[#allocation8 + $0x230] sm:$0xff]
    %v7806 = vld [vmem:[#allocation8 + $0x238] sm:$0xff]
    %v7807 = vld [vmem:[#allocation8 + $0x240] sm:$0xff]
    %v7808 = vld [vmem:[#allocation8 + $0x248] sm:$0xff]
    %v7809 = vld [vmem:[#allocation8 + $0x250] sm:$0xff]
    %v7810 = vld [vmem:[#allocation8 + $0x258] sm:$0xff]
    %v7811 = vld [vmem:[#allocation8 + $0x260] sm:$0xff]
    %v7812 = vld [vmem:[#allocation8 + $0x268] sm:$0xff]
    %v7813 = vld [vmem:[#allocation8 + $0x270] sm:$0xff]
    %v7814 = vld [vmem:[#allocation8 + $0x278] sm:$0xff]
    %v7815 = vld [vmem:[#allocation8 + $0x280] sm:$0xff]
    %v7816 = vld [vmem:[#allocation8 + $0x288] sm:$0xff]
    %v7817 = vld [vmem:[#allocation8 + $0x290] sm:$0xff]
    %v7818 = vld [vmem:[#allocation8 + $0x298] sm:$0xff]
    %v7819 = vld [vmem:[#allocation8 + $0x2a0] sm:$0xff]
    %v7820 = vld [vmem:[#allocation8 + $0x2a8] sm:$0xff]
    %v7821 = vld [vmem:[#allocation8 + $0x2b0] sm:$0xff]
    %v7822 = vld [vmem:[#allocation8 + $0x2b8] sm:$0xff]
    %v7823 = vld [vmem:[#allocation8 + $0x2c0] sm:$0xff]
    %v7824 = vld [vmem:[#allocation8 + $0x2c8] sm:$0xff]
    %v7825 = vld [vmem:[#allocation8 + $0x2d0] sm:$0xff]
    %v7826 = vld [vmem:[#allocation8 + $0x2d8] sm:$0xff]
    %v7827 = vld [vmem:[#allocation8 + $0x2e0] sm:$0xff]
    %v7828 = vld [vmem:[#allocation8 + $0x2e8] sm:$0xff]
    %v7829 = vld [vmem:[#allocation8 + $0x2f0] sm:$0xff]
    %v7830 = vld [vmem:[#allocation8 + $0x2f8] sm:$0xff]
    %v7831 = vld [vmem:[#allocation8 + $0x300] sm:$0xff]
    %v7832 = vld [vmem:[#allocation8 + $0x308] sm:$0xff]
    %v7833 = vld [vmem:[#allocation8 + $0x310] sm:$0xff]
    %v7834 = vld [vmem:[#allocation8 + $0x318] sm:$0xff]
    %v7835 = vld [vmem:[#allocation8 + $0x320] sm:$0xff]
    %v7836 = vld [vmem:[#allocation8 + $0x328] sm:$0xff]
    %v7837 = vld [vmem:[#allocation8 + $0x330] sm:$0xff]
    %v7838 = vld [vmem:[#allocation8 + $0x338] sm:$0xff]
    %v7839 = vld [vmem:[#allocation8 + $0x340] sm:$0xff]
    %v7840 = vld [vmem:[#allocation8 + $0x348] sm:$0xff]
    %v7841 = vld [vmem:[#allocation8 + $0x350] sm:$0xff]
    %v7842 = vld [vmem:[#allocation8 + $0x358] sm:$0xff]
    %v7843 = vld [vmem:[#allocation8 + $0x360] sm:$0xff]
    %v7844 = vld [vmem:[#allocation8 + $0x368] sm:$0xff]
    %v7845 = vld [vmem:[#allocation8 + $0x370] sm:$0xff]
    %v7846 = vld [vmem:[#allocation8 + $0x378] sm:$0xff]
    %v7847 = vld [vmem:[#allocation8 + $0x380] sm:$0xff]
    %v7848 = vld [vmem:[#allocation8 + $0x388] sm:$0xff]
    %v7849 = vld [vmem:[#allocation8 + $0x390] sm:$0xff]
    %v7850 = vld [vmem:[#allocation8 + $0x398] sm:$0xff]
    %v7851 = vld [vmem:[#allocation8 + $0x3a0] sm:$0xff]
    %v7852 = vld [vmem:[#allocation8 + $0x3a8] sm:$0xff]
    %v7853 = vld [vmem:[#allocation8 + $0x3b0] sm:$0xff]
    %v7854 = vld [vmem:[#allocation8 + $0x3b8] sm:$0xff]
    %v7855 = vld [vmem:[#allocation8 + $0x3c0] sm:$0xff]
    %v7856 = vld [vmem:[#allocation8 + $0x3c8] sm:$0xff]
    %v7857 = vld [vmem:[#allocation8 + $0x3d0] sm:$0xff]
    %v7858 = vld [vmem:[#allocation8 + $0x3d8] sm:$0xff]
    %v7859 = vld [vmem:[#allocation8 + $0x3e0] sm:$0xff]
    %v7860 = vld [vmem:[#allocation8 + $0x3e8] sm:$0xff]
    %v7861 = vld [vmem:[#allocation8 + $0x3f0] sm:$0xff]
    %v7862 = vld [vmem:[#allocation8 + $0x3f8] sm:$0xff]
    %v7863 = vunpack.c.l.s8.bf16 %v7735
    %v7864 = vunpack.c.l.s8.bf16 %v7736
    %v7865 = vunpack.c.l.s8.bf16 %v7737
    %v7866 = vunpack.c.l.s8.bf16 %v7738
    %v7867 = vunpack.c.h.s8.bf16 %v7735
    %v7868 = vunpack.c.h.s8.bf16 %v7736
    %v7869 = vunpack.c.h.s8.bf16 %v7737
    %v7870 = vunpack.c.h.s8.bf16 %v7738
    %v7871 = vunpack.c.l.s8.bf16 %v7739
    %v7872 = vunpack.c.l.s8.bf16 %v7740
    %v7873 = vunpack.c.l.s8.bf16 %v7741
    %v7874 = vunpack.c.l.s8.bf16 %v7742
    %v7875 = vunpack.c.h.s8.bf16 %v7739
    %v7876 = vunpack.c.h.s8.bf16 %v7740
    %v7877 = vunpack.c.h.s8.bf16 %v7741
    %v7878 = vunpack.c.h.s8.bf16 %v7742
    %v7879 = vunpack.c.l.s8.bf16 %v7743
    %v7880 = vunpack.c.l.s8.bf16 %v7744
    %v7881 = vunpack.c.l.s8.bf16 %v7745
    %v7882 = vunpack.c.l.s8.bf16 %v7746
    %v7883 = vunpack.c.h.s8.bf16 %v7743
    %v7884 = vunpack.c.h.s8.bf16 %v7744
    %v7885 = vunpack.c.h.s8.bf16 %v7745
    %v7886 = vunpack.c.h.s8.bf16 %v7746
    %v7887 = vunpack.c.l.s8.bf16 %v7747
    %v7888 = vunpack.c.l.s8.bf16 %v7748
    %v7889 = vunpack.c.l.s8.bf16 %v7749
    %v7890 = vunpack.c.l.s8.bf16 %v7750
    %v7891 = vunpack.c.h.s8.bf16 %v7747
    %v7892 = vunpack.c.h.s8.bf16 %v7748
    %v7893 = vunpack.c.h.s8.bf16 %v7749
    %v7894 = vunpack.c.h.s8.bf16 %v7750
    %v7895 = vunpack.c.l.s8.bf16 %v7751
    %v7896 = vunpack.c.l.s8.bf16 %v7752
    %v7897 = vunpack.c.l.s8.bf16 %v7753
    %v7898 = vunpack.c.l.s8.bf16 %v7754
    %v7899 = vunpack.c.h.s8.bf16 %v7751
    %v7900 = vunpack.c.h.s8.bf16 %v7752
    %v7901 = vunpack.c.h.s8.bf16 %v7753
    %v7902 = vunpack.c.h.s8.bf16 %v7754
    %v7903 = vunpack.c.l.s8.bf16 %v7755
    %v7904 = vunpack.c.l.s8.bf16 %v7756
    %v7905 = vunpack.c.l.s8.bf16 %v7757
    %v7906 = vunpack.c.l.s8.bf16 %v7758
    %v7907 = vunpack.c.h.s8.bf16 %v7755
    %v7908 = vunpack.c.h.s8.bf16 %v7756
    %v7909 = vunpack.c.h.s8.bf16 %v7757
    %v7910 = vunpack.c.h.s8.bf16 %v7758
    %v7911 = vunpack.c.l.s8.bf16 %v7759
    %v7912 = vunpack.c.l.s8.bf16 %v7760
    %v7913 = vunpack.c.l.s8.bf16 %v7761
    %v7914 = vunpack.c.l.s8.bf16 %v7762
    %v7915 = vunpack.c.h.s8.bf16 %v7759
    %v7916 = vunpack.c.h.s8.bf16 %v7760
    %v7917 = vunpack.c.h.s8.bf16 %v7761
    %v7918 = vunpack.c.h.s8.bf16 %v7762
    %v7919 = vunpack.c.l.s8.bf16 %v7763
    %v7920 = vunpack.c.l.s8.bf16 %v7764
    %v7921 = vunpack.c.l.s8.bf16 %v7765
    %v7922 = vunpack.c.l.s8.bf16 %v7766
    %v7923 = vunpack.c.h.s8.bf16 %v7763
    %v7924 = vunpack.c.h.s8.bf16 %v7764
    %v7925 = vunpack.c.h.s8.bf16 %v7765
    %v7926 = vunpack.c.h.s8.bf16 %v7766
    %v7927 = vunpack.c.l.s8.bf16 %v7767
    %v7928 = vunpack.c.l.s8.bf16 %v7768
    %v7929 = vunpack.c.l.s8.bf16 %v7769
    %v7930 = vunpack.c.l.s8.bf16 %v7770
    %v7931 = vunpack.c.h.s8.bf16 %v7767
    %v7932 = vunpack.c.h.s8.bf16 %v7768
    %v7933 = vunpack.c.h.s8.bf16 %v7769
    %v7934 = vunpack.c.h.s8.bf16 %v7770
    %v7935 = vunpack.c.l.s8.bf16 %v7771
    %v7936 = vunpack.c.l.s8.bf16 %v7772
    %v7937 = vunpack.c.l.s8.bf16 %v7773
    %v7938 = vunpack.c.l.s8.bf16 %v7774
    %v7939 = vunpack.c.h.s8.bf16 %v7771
    %v7940 = vunpack.c.h.s8.bf16 %v7772
    %v7941 = vunpack.c.h.s8.bf16 %v7773
    %v7942 = vunpack.c.h.s8.bf16 %v7774
    %v7943 = vunpack.c.l.s8.bf16 %v7775
    %v7944 = vunpack.c.l.s8.bf16 %v7776
    %v7945 = vunpack.c.l.s8.bf16 %v7777
    %v7946 = vunpack.c.l.s8.bf16 %v7778
    %v7947 = vunpack.c.h.s8.bf16 %v7775
    %v7948 = vunpack.c.h.s8.bf16 %v7776
    %v7949 = vunpack.c.h.s8.bf16 %v7777
    %v7950 = vunpack.c.h.s8.bf16 %v7778
    %v7951 = vunpack.c.l.s8.bf16 %v7779
    %v7952 = vunpack.c.l.s8.bf16 %v7780
    %v7953 = vunpack.c.l.s8.bf16 %v7781
    %v7954 = vunpack.c.l.s8.bf16 %v7782
    %v7955 = vunpack.c.h.s8.bf16 %v7779
    %v7956 = vunpack.c.h.s8.bf16 %v7780
    %v7957 = vunpack.c.h.s8.bf16 %v7781
    %v7958 = vunpack.c.h.s8.bf16 %v7782
    %v7959 = vunpack.c.l.s8.bf16 %v7783
    %v7960 = vunpack.c.l.s8.bf16 %v7784
    %v7961 = vunpack.c.l.s8.bf16 %v7785
    %v7962 = vunpack.c.l.s8.bf16 %v7786
    %v7963 = vunpack.c.h.s8.bf16 %v7783
    %v7964 = vunpack.c.h.s8.bf16 %v7784
    %v7965 = vunpack.c.h.s8.bf16 %v7785
    %v7966 = vunpack.c.h.s8.bf16 %v7786
    %v7967 = vunpack.c.l.s8.bf16 %v7787
    %v7968 = vunpack.c.l.s8.bf16 %v7788
    %v7969 = vunpack.c.l.s8.bf16 %v7789
    %v7970 = vunpack.c.l.s8.bf16 %v7790
    %v7971 = vunpack.c.h.s8.bf16 %v7787
    %v7972 = vunpack.c.h.s8.bf16 %v7788
    %v7973 = vunpack.c.h.s8.bf16 %v7789
    %v7974 = vunpack.c.h.s8.bf16 %v7790
    %v7975 = vunpack.c.l.s8.bf16 %v7791
    %v7976 = vunpack.c.l.s8.bf16 %v7792
    %v7977 = vunpack.c.l.s8.bf16 %v7793
    %v7978 = vunpack.c.l.s8.bf16 %v7794
    %v7979 = vunpack.c.h.s8.bf16 %v7791
    %v7980 = vunpack.c.h.s8.bf16 %v7792
    %v7981 = vunpack.c.h.s8.bf16 %v7793
    %v7982 = vunpack.c.h.s8.bf16 %v7794
    %v7983 = vunpack.c.l.s8.bf16 %v7795
    %v7984 = vunpack.c.l.s8.bf16 %v7796
    %v7985 = vunpack.c.l.s8.bf16 %v7797
    %v7986 = vunpack.c.l.s8.bf16 %v7798
    %v7987 = vunpack.c.h.s8.bf16 %v7795
    %v7988 = vunpack.c.h.s8.bf16 %v7796
    %v7989 = vunpack.c.h.s8.bf16 %v7797
    %v7990 = vunpack.c.h.s8.bf16 %v7798
    %v7991 = vunpack.c.l.s8.bf16 %v7799
    %v7992 = vunpack.c.l.s8.bf16 %v7800
    %v7993 = vunpack.c.l.s8.bf16 %v7801
    %v7994 = vunpack.c.l.s8.bf16 %v7802
    %v7995 = vunpack.c.h.s8.bf16 %v7799
    %v7996 = vunpack.c.h.s8.bf16 %v7800
    %v7997 = vunpack.c.h.s8.bf16 %v7801
    %v7998 = vunpack.c.h.s8.bf16 %v7802
    %v7999 = vunpack.c.l.s8.bf16 %v7803
    %v8000 = vunpack.c.l.s8.bf16 %v7804
    %v8001 = vunpack.c.l.s8.bf16 %v7805
    %v8002 = vunpack.c.l.s8.bf16 %v7806
    %v8003 = vunpack.c.h.s8.bf16 %v7803
    %v8004 = vunpack.c.h.s8.bf16 %v7804
    %v8005 = vunpack.c.h.s8.bf16 %v7805
    %v8006 = vunpack.c.h.s8.bf16 %v7806
    %v8007 = vunpack.c.l.s8.bf16 %v7807
    %v8008 = vunpack.c.l.s8.bf16 %v7808
    %v8009 = vunpack.c.l.s8.bf16 %v7809
    %v8010 = vunpack.c.l.s8.bf16 %v7810
    %v8011 = vunpack.c.h.s8.bf16 %v7807
    %v8012 = vunpack.c.h.s8.bf16 %v7808
    %v8013 = vunpack.c.h.s8.bf16 %v7809
    %v8014 = vunpack.c.h.s8.bf16 %v7810
    %v8015 = vunpack.c.l.s8.bf16 %v7811
    %v8016 = vunpack.c.l.s8.bf16 %v7812
    %v8017 = vunpack.c.l.s8.bf16 %v7813
    %v8018 = vunpack.c.l.s8.bf16 %v7814
    %v8019 = vunpack.c.h.s8.bf16 %v7811
    %v8020 = vunpack.c.h.s8.bf16 %v7812
    %v8021 = vunpack.c.h.s8.bf16 %v7813
    %v8022 = vunpack.c.h.s8.bf16 %v7814
    %v8023 = vunpack.c.l.s8.bf16 %v7815
    %v8024 = vunpack.c.l.s8.bf16 %v7816
    %v8025 = vunpack.c.l.s8.bf16 %v7817
    %v8026 = vunpack.c.l.s8.bf16 %v7818
    %v8027 = vunpack.c.h.s8.bf16 %v7815
    %v8028 = vunpack.c.h.s8.bf16 %v7816
    %v8029 = vunpack.c.h.s8.bf16 %v7817
    %v8030 = vunpack.c.h.s8.bf16 %v7818
    %v8031 = vunpack.c.l.s8.bf16 %v7819
    %v8032 = vunpack.c.l.s8.bf16 %v7820
    %v8033 = vunpack.c.l.s8.bf16 %v7821
    %v8034 = vunpack.c.l.s8.bf16 %v7822
    %v8035 = vunpack.c.h.s8.bf16 %v7819
    %v8036 = vunpack.c.h.s8.bf16 %v7820
    %v8037 = vunpack.c.h.s8.bf16 %v7821
    %v8038 = vunpack.c.h.s8.bf16 %v7822
    %v8039 = vunpack.c.l.s8.bf16 %v7823
    %v8040 = vunpack.c.l.s8.bf16 %v7824
    %v8041 = vunpack.c.l.s8.bf16 %v7825
    %v8042 = vunpack.c.l.s8.bf16 %v7826
    %v8043 = vunpack.c.h.s8.bf16 %v7823
    %v8044 = vunpack.c.h.s8.bf16 %v7824
    %v8045 = vunpack.c.h.s8.bf16 %v7825
    %v8046 = vunpack.c.h.s8.bf16 %v7826
    %v8047 = vunpack.c.l.s8.bf16 %v7827
    %v8048 = vunpack.c.l.s8.bf16 %v7828
    %v8049 = vunpack.c.l.s8.bf16 %v7829
    %v8050 = vunpack.c.l.s8.bf16 %v7830
    %v8051 = vunpack.c.h.s8.bf16 %v7827
    %v8052 = vunpack.c.h.s8.bf16 %v7828
    %v8053 = vunpack.c.h.s8.bf16 %v7829
    %v8054 = vunpack.c.h.s8.bf16 %v7830
    %v8055 = vunpack.c.l.s8.bf16 %v7831
    %v8056 = vunpack.c.l.s8.bf16 %v7832
    %v8057 = vunpack.c.l.s8.bf16 %v7833
    %v8058 = vunpack.c.l.s8.bf16 %v7834
    %v8059 = vunpack.c.h.s8.bf16 %v7831
    %v8060 = vunpack.c.h.s8.bf16 %v7832
    %v8061 = vunpack.c.h.s8.bf16 %v7833
    %v8062 = vunpack.c.h.s8.bf16 %v7834
    %v8063 = vunpack.c.l.s8.bf16 %v7835
    %v8064 = vunpack.c.l.s8.bf16 %v7836
    %v8065 = vunpack.c.l.s8.bf16 %v7837
    %v8066 = vunpack.c.l.s8.bf16 %v7838
    %v8067 = vunpack.c.h.s8.bf16 %v7835
    %v8068 = vunpack.c.h.s8.bf16 %v7836
    %v8069 = vunpack.c.h.s8.bf16 %v7837
    %v8070 = vunpack.c.h.s8.bf16 %v7838
    %v8071 = vunpack.c.l.s8.bf16 %v7839
    %v8072 = vunpack.c.l.s8.bf16 %v7840
    %v8073 = vunpack.c.l.s8.bf16 %v7841
    %v8074 = vunpack.c.l.s8.bf16 %v7842
    %v8075 = vunpack.c.h.s8.bf16 %v7839
    %v8076 = vunpack.c.h.s8.bf16 %v7840
    %v8077 = vunpack.c.h.s8.bf16 %v7841
    %v8078 = vunpack.c.h.s8.bf16 %v7842
    %v8079 = vunpack.c.l.s8.bf16 %v7843
    %v8080 = vunpack.c.l.s8.bf16 %v7844
    %v8081 = vunpack.c.l.s8.bf16 %v7845
    %v8082 = vunpack.c.l.s8.bf16 %v7846
    %v8083 = vunpack.c.h.s8.bf16 %v7843
    %v8084 = vunpack.c.h.s8.bf16 %v7844
    %v8085 = vunpack.c.h.s8.bf16 %v7845
    %v8086 = vunpack.c.h.s8.bf16 %v7846
    %v8087 = vunpack.c.l.s8.bf16 %v7847
    %v8088 = vunpack.c.l.s8.bf16 %v7848
    %v8089 = vunpack.c.l.s8.bf16 %v7849
    %v8090 = vunpack.c.l.s8.bf16 %v7850
    %v8091 = vunpack.c.h.s8.bf16 %v7847
    %v8092 = vunpack.c.h.s8.bf16 %v7848
    %v8093 = vunpack.c.h.s8.bf16 %v7849
    %v8094 = vunpack.c.h.s8.bf16 %v7850
    %v8095 = vunpack.c.l.s8.bf16 %v7851
    %v8096 = vunpack.c.l.s8.bf16 %v7852
    %v8097 = vunpack.c.l.s8.bf16 %v7853
    %v8098 = vunpack.c.l.s8.bf16 %v7854
    %v8099 = vunpack.c.h.s8.bf16 %v7851
    %v8100 = vunpack.c.h.s8.bf16 %v7852
    %v8101 = vunpack.c.h.s8.bf16 %v7853
    %v8102 = vunpack.c.h.s8.bf16 %v7854
    %v8103 = vunpack.c.l.s8.bf16 %v7855
    %v8104 = vunpack.c.l.s8.bf16 %v7856
    %v8105 = vunpack.c.l.s8.bf16 %v7857
    %v8106 = vunpack.c.l.s8.bf16 %v7858
    %v8107 = vunpack.c.h.s8.bf16 %v7855
    %v8108 = vunpack.c.h.s8.bf16 %v7856
    %v8109 = vunpack.c.h.s8.bf16 %v7857
    %v8110 = vunpack.c.h.s8.bf16 %v7858
    %v8111 = vunpack.c.l.s8.bf16 %v7859
    %v8112 = vunpack.c.l.s8.bf16 %v7860
    %v8113 = vunpack.c.l.s8.bf16 %v7861
    %v8114 = vunpack.c.l.s8.bf16 %v7862
    %v8115 = vunpack.c.h.s8.bf16 %v7859
    %v8116 = vunpack.c.h.s8.bf16 %v7860
    %v8117 = vunpack.c.h.s8.bf16 %v7861
    %v8118 = vunpack.c.h.s8.bf16 %v7862
    %8119 = vmatprep.subr.bf16.mxu0 %v7864
    %8120 = vmatpush1.bf16.msra.mxu0 %v7863
    %8121 = vmatprep.subr.bf16.mxu0 %v7868
    %8122 = vmatpush1.bf16.msra.mxu0 %v7867
    %8123 = vmatprep.subr.bf16.mxu0 %v7872
    %8124 = vmatpush1.bf16.msra.mxu0 %v7871
    %8125 = vmatprep.subr.bf16.mxu0 %v7876
    %8126 = vmatpush1.bf16.msra.mxu0 %v7875
    %8127 = vmatprep.subr.bf16.mxu0 %v7880
    %8128 = vmatpush1.bf16.msra.mxu0 %v7879
    %8129 = vmatprep.subr.bf16.mxu0 %v7884
    %8130 = vmatpush1.bf16.msra.mxu0 %v7883
    %8131 = vmatprep.subr.bf16.mxu0 %v7888
    %8132 = vmatpush1.bf16.msra.mxu0 %v7887
    %8133 = vmatprep.subr.bf16.mxu0 %v7892
    %8134 = vmatpush1.bf16.msra.mxu0 %v7891
    %8135 = vmatprep.subr.bf16.mxu0 %v7896
    %8136 = vmatpush1.bf16.msra.mxu0 %v7895
    %8137 = vmatprep.subr.bf16.mxu0 %v7900
    %8138 = vmatpush1.bf16.msra.mxu0 %v7899
    %8139 = vmatprep.subr.bf16.mxu0 %v7904
    %8140 = vmatpush1.bf16.msra.mxu0 %v7903
    %8141 = vmatprep.subr.bf16.mxu0 %v7908
    %8142 = vmatpush1.bf16.msra.mxu0 %v7907
    %8143 = vmatprep.subr.bf16.mxu0 %v7912
    %8144 = vmatpush1.bf16.msra.mxu0 %v7911
    %8145 = vmatprep.subr.bf16.mxu0 %v7916
    %8146 = vmatpush1.bf16.msra.mxu0 %v7915
    %8147 = vmatprep.subr.bf16.mxu0 %v7920
    %8148 = vmatpush1.bf16.msra.mxu0 %v7919
    %8149 = vmatprep.subr.bf16.mxu0 %v7924
    %8150 = vmatpush1.bf16.msra.mxu0 %v7923
    %8151 = vmatprep.mubr.bf16.mxu0 %v7725
    %8152 = vmatmul.mubr.bf16.gmra.mrb[0].mxu0 %v7724
    %v8153 = vpop.f32.mrb[0].mxu0
    %v8154 = vadd.f32 0.0, %v8153
    %v8155 = vpop.f32.mrb[0].mxu0
    %v8156 = vadd.f32 0.0, %v8155
    %v8157 = vpop.f32.mrb[0].mxu0
    %v8158 = vadd.f32 0.0, %v8157
    %v8159 = vpop.f32.mrb[0].mxu0
    %v8160 = vadd.f32 0.0, %v8159
    %8161 = vdwg.mxu0
    %8162 = vmatprep.subr.bf16.mxu0 %v7928
    %8163 = vmatpush1.bf16.msra.mxu0 %v7927
    %8164 = vmatprep.subr.bf16.mxu0 %v7932
    %8165 = vmatpush1.bf16.msra.mxu0 %v7931
    %8166 = vmatprep.subr.bf16.mxu0 %v7936
    %8167 = vmatpush1.bf16.msra.mxu0 %v7935
    %8168 = vmatprep.subr.bf16.mxu0 %v7940
    %8169 = vmatpush1.bf16.msra.mxu0 %v7939
    %8170 = vmatprep.subr.bf16.mxu0 %v7944
    %8171 = vmatpush1.bf16.msra.mxu0 %v7943
    %8172 = vmatprep.subr.bf16.mxu0 %v7948
    %8173 = vmatpush1.bf16.msra.mxu0 %v7947
    %8174 = vmatprep.subr.bf16.mxu0 %v7952
    %8175 = vmatpush1.bf16.msra.mxu0 %v7951
    %8176 = vmatprep.subr.bf16.mxu0 %v7956
    %8177 = vmatpush1.bf16.msra.mxu0 %v7955
    %8178 = vmatprep.subr.bf16.mxu0 %v7960
    %8179 = vmatpush1.bf16.msra.mxu0 %v7959
    %8180 = vmatprep.subr.bf16.mxu0 %v7964
    %8181 = vmatpush1.bf16.msra.mxu0 %v7963
    %8182 = vmatprep.subr.bf16.mxu0 %v7968
    %8183 = vmatpush1.bf16.msra.mxu0 %v7967
    %8184 = vmatprep.subr.bf16.mxu0 %v7972
    %8185 = vmatpush1.bf16.msra.mxu0 %v7971
    %8186 = vmatprep.subr.bf16.mxu0 %v7976
    %8187 = vmatpush1.bf16.msra.mxu0 %v7975
    %8188 = vmatprep.subr.bf16.mxu0 %v7980
    %8189 = vmatpush1.bf16.msra.mxu0 %v7979
    %8190 = vmatprep.subr.bf16.mxu0 %v7984
    %8191 = vmatpush1.bf16.msra.mxu0 %v7983
    %8192 = vmatprep.subr.bf16.mxu0 %v7988
    %8193 = vmatpush1.bf16.msra.mxu0 %v7987
    %8194 = vmatprep.mubr.bf16.mxu0 %v7727
    %8195 = vmatmul.mubr.bf16.gmra.mrb[0].mxu0 %v7726
    %v8196 = vpop.f32.mrb[0].mxu0
    %v8197 = vadd.f32 %v8154, %v8196
    %v8198 = vpop.f32.mrb[0].mxu0
    %v8199 = vadd.f32 %v8156, %v8198
    %v8200 = vpop.f32.mrb[0].mxu0
    %v8201 = vadd.f32 %v8158, %v8200
    %v8202 = vpop.f32.mrb[0].mxu0
    %v8203 = vadd.f32 %v8160, %v8202
    %8204 = vdwg.mxu0
    %8205 = vmatprep.subr.bf16.mxu0 %v7992
    %8206 = vmatpush1.bf16.msra.mxu0 %v7991
    %8207 = vmatprep.subr.bf16.mxu0 %v7996
    %8208 = vmatpush1.bf16.msra.mxu0 %v7995
    %8209 = vmatprep.subr.bf16.mxu0 %v8000
    %8210 = vmatpush1.bf16.msra.mxu0 %v7999
    %8211 = vmatprep.subr.bf16.mxu0 %v8004
    %8212 = vmatpush1.bf16.msra.mxu0 %v8003
    %8213 = vmatprep.subr.bf16.mxu0 %v8008
    %8214 = vmatpush1.bf16.msra.mxu0 %v8007
    %8215 = vmatprep.subr.bf16.mxu0 %v8012
    %8216 = vmatpush1.bf16.msra.mxu0 %v8011
    %8217 = vmatprep.subr.bf16.mxu0 %v8016
    %8218 = vmatpush1.bf16.msra.mxu0 %v8015
    %8219 = vmatprep.subr.bf16.mxu0 %v8020
    %8220 = vmatpush1.bf16.msra.mxu0 %v8019
    %8221 = vmatprep.subr.bf16.mxu0 %v8024
    %8222 = vmatpush1.bf16.msra.mxu0 %v8023
    %8223 = vmatprep.subr.bf16.mxu0 %v8028
    %8224 = vmatpush1.bf16.msra.mxu0 %v8027
    %8225 = vmatprep.subr.bf16.mxu0 %v8032
    %8226 = vmatpush1.bf16.msra.mxu0 %v8031
    %8227 = vmatprep.subr.bf16.mxu0 %v8036
    %8228 = vmatpush1.bf16.msra.mxu0 %v8035
    %8229 = vmatprep.subr.bf16.mxu0 %v8040
    %8230 = vmatpush1.bf16.msra.mxu0 %v8039
    %8231 = vmatprep.subr.bf16.mxu0 %v8044
    %8232 = vmatpush1.bf16.msra.mxu0 %v8043
    %8233 = vmatprep.subr.bf16.mxu0 %v8048
    %8234 = vmatpush1.bf16.msra.mxu0 %v8047
    %8235 = vmatprep.subr.bf16.mxu0 %v8052
    %8236 = vmatpush1.bf16.msra.mxu0 %v8051
    %8237 = vmatprep.mubr.bf16.mxu0 %v7729
    %8238 = vmatmul.mubr.bf16.gmra.mrb[0].mxu0 %v7728
    %v8239 = vpop.f32.mrb[0].mxu0
    %v8240 = vadd.f32 %v8197, %v8239
    %v8241 = vpop.f32.mrb[0].mxu0
    %v8242 = vadd.f32 %v8199, %v8241
    %v8243 = vpop.f32.mrb[0].mxu0
    %v8244 = vadd.f32 %v8201, %v8243
    %v8245 = vpop.f32.mrb[0].mxu0
    %v8246 = vadd.f32 %v8203, %v8245
    %8247 = vdwg.mxu0
    %8248 = vmatprep.subr.bf16.mxu0 %v8056
    %8249 = vmatpush1.bf16.msra.mxu0 %v8055
    %8250 = vmatprep.subr.bf16.mxu0 %v8060
    %8251 = vmatpush1.bf16.msra.mxu0 %v8059
    %8252 = vmatprep.subr.bf16.mxu0 %v8064
    %8253 = vmatpush1.bf16.msra.mxu0 %v8063
    %8254 = vmatprep.subr.bf16.mxu0 %v8068
    %8255 = vmatpush1.bf16.msra.mxu0 %v8067
    %8256 = vmatprep.subr.bf16.mxu0 %v8072
    %8257 = vmatpush1.bf16.msra.mxu0 %v8071
    %8258 = vmatprep.subr.bf16.mxu0 %v8076
    %8259 = vmatpush1.bf16.msra.mxu0 %v8075
    %8260 = vmatprep.subr.bf16.mxu0 %v8080
    %8261 = vmatpush1.bf16.msra.mxu0 %v8079
    %8262 = vmatprep.subr.bf16.mxu0 %v8084
    %8263 = vmatpush1.bf16.msra.mxu0 %v8083
    %8264 = vmatprep.subr.bf16.mxu0 %v8088
    %8265 = vmatpush1.bf16.msra.mxu0 %v8087
    %8266 = vmatprep.subr.bf16.mxu0 %v8092
    %8267 = vmatpush1.bf16.msra.mxu0 %v8091
    %8268 = vmatprep.subr.bf16.mxu0 %v8096
    %8269 = vmatpush1.bf16.msra.mxu0 %v8095
    %8270 = vmatprep.subr.bf16.mxu0 %v8100
    %8271 = vmatpush1.bf16.msra.mxu0 %v8099
    %8272 = vmatprep.subr.bf16.mxu0 %v8104
    %8273 = vmatpush1.bf16.msra.mxu0 %v8103
    %8274 = vmatprep.subr.bf16.mxu0 %v8108
    %8275 = vmatpush1.bf16.msra.mxu0 %v8107
    %8276 = vmatprep.subr.bf16.mxu0 %v8112
    %8277 = vmatpush1.bf16.msra.mxu0 %v8111
    %8278 = vmatprep.subr.bf16.mxu0 %v8116
    %8279 = vmatpush1.bf16.msra.mxu0 %v8115
    %8280 = vmatprep.mubr.bf16.mxu0 %v7731
    %8281 = vmatmul.mubr.bf16.gmra.mrb[0].mxu0 %v7730
    %v8282 = vpop.f32.mrb[0].mxu0
    %v8283 = vadd.f32 %v8240, %v8282
    %v8284 = vpop.f32.mrb[0].mxu0
    %v8285 = vadd.f32 %v8242, %v8284
    %v8286 = vpop.f32.mrb[0].mxu0
    %v8287 = vadd.f32 %v8244, %v8286
    %v8288 = vpop.f32.mrb[0].mxu0
    %v8289 = vadd.f32 %v8246, %v8288
    %8290 = vdwg.mxu0
    %8291 = vmatprep.subr.bf16.mxu0 %v7866
    %8292 = vmatpush1.bf16.msra.mxu0 %v7865
    %8293 = vmatprep.subr.bf16.mxu0 %v7870
    %8294 = vmatpush1.bf16.msra.mxu0 %v7869
    %8295 = vmatprep.subr.bf16.mxu0 %v7874
    %8296 = vmatpush1.bf16.msra.mxu0 %v7873
    %8297 = vmatprep.subr.bf16.mxu0 %v7878
    %8298 = vmatpush1.bf16.msra.mxu0 %v7877
    %8299 = vmatprep.subr.bf16.mxu0 %v7882
    %8300 = vmatpush1.bf16.msra.mxu0 %v7881
    %8301 = vmatprep.subr.bf16.mxu0 %v7886
    %8302 = vmatpush1.bf16.msra.mxu0 %v7885
    %8303 = vmatprep.subr.bf16.mxu0 %v7890
    %8304 = vmatpush1.bf16.msra.mxu0 %v7889
    %8305 = vmatprep.subr.bf16.mxu0 %v7894
    %8306 = vmatpush1.bf16.msra.mxu0 %v7893
    %8307 = vmatprep.subr.bf16.mxu0 %v7898
    %8308 = vmatpush1.bf16.msra.mxu0 %v7897
    %8309 = vmatprep.subr.bf16.mxu0 %v7902
    %8310 = vmatpush1.bf16.msra.mxu0 %v7901
    %8311 = vmatprep.subr.bf16.mxu0 %v7906
    %8312 = vmatpush1.bf16.msra.mxu0 %v7905
    %8313 = vmatprep.subr.bf16.mxu0 %v7910
    %8314 = vmatpush1.bf16.msra.mxu0 %v7909
    %8315 = vmatprep.subr.bf16.mxu0 %v7914
    %8316 = vmatpush1.bf16.msra.mxu0 %v7913
    %8317 = vmatprep.subr.bf16.mxu0 %v7918
    %8318 = vmatpush1.bf16.msra.mxu0 %v7917
    %8319 = vmatprep.subr.bf16.mxu0 %v7922
    %8320 = vmatpush1.bf16.msra.mxu0 %v7921
    %8321 = vmatprep.subr.bf16.mxu0 %v7926
    %8322 = vmatpush1.bf16.msra.mxu0 %v7925
    %8323 = vmatprep.mubr.bf16.mxu0 %v7725
    %8324 = vmatmul.mubr.bf16.gmra.mrb[0].mxu0 %v7724
    %v8325 = vpop.f32.mrb[0].mxu0
    %v8326 = vadd.f32 0.0, %v8325
    %v8327 = vpop.f32.mrb[0].mxu0
    %v8328 = vadd.f32 0.0, %v8327
    %v8329 = vpop.f32.mrb[0].mxu0
    %v8330 = vadd.f32 0.0, %v8329
    %v8331 = vpop.f32.mrb[0].mxu0
    %v8332 = vadd.f32 0.0, %v8331
    %8333 = vdwg.mxu0
    %8334 = vmatprep.subr.bf16.mxu0 %v7930
    %8335 = vmatpush1.bf16.msra.mxu0 %v7929
    %8336 = vmatprep.subr.bf16.mxu0 %v7934
    %8337 = vmatpush1.bf16.msra.mxu0 %v7933
    %8338 = vmatprep.subr.bf16.mxu0 %v7938
    %8339 = vmatpush1.bf16.msra.mxu0 %v7937
    %8340 = vmatprep.subr.bf16.mxu0 %v7942
    %8341 = vmatpush1.bf16.msra.mxu0 %v7941
    %8342 = vmatprep.subr.bf16.mxu0 %v7946
    %8343 = vmatpush1.bf16.msra.mxu0 %v7945
    %8344 = vmatprep.subr.bf16.mxu0 %v7950
    %8345 = vmatpush1.bf16.msra.mxu0 %v7949
    %8346 = vmatprep.subr.bf16.mxu0 %v7954
    %8347 = vmatpush1.bf16.msra.mxu0 %v7953
    %8348 = vmatprep.subr.bf16.mxu0 %v7958
    %8349 = vmatpush1.bf16.msra.mxu0 %v7957
    %8350 = vmatprep.subr.bf16.mxu0 %v7962
    %8351 = vmatpush1.bf16.msra.mxu0 %v7961
    %8352 = vmatprep.subr.bf16.mxu0 %v7966
    %8353 = vmatpush1.bf16.msra.mxu0 %v7965
    %8354 = vmatprep.subr.bf16.mxu0 %v7970
    %8355 = vmatpush1.bf16.msra.mxu0 %v7969
    %8356 = vmatprep.subr.bf16.mxu0 %v7974
    %8357 = vmatpush1.bf16.msra.mxu0 %v7973
    %8358 = vmatprep.subr.bf16.mxu0 %v7978
    %8359 = vmatpush1.bf16.msra.mxu0 %v7977
    %8360 = vmatprep.subr.bf16.mxu0 %v7982
    %8361 = vmatpush1.bf16.msra.mxu0 %v7981
    %8362 = vmatprep.subr.bf16.mxu0 %v7986
    %8363 = vmatpush1.bf16.msra.mxu0 %v7985
    %8364 = vmatprep.subr.bf16.mxu0 %v7990
    %8365 = vmatpush1.bf16.msra.mxu0 %v7989
    %8366 = vmatprep.mubr.bf16.mxu0 %v7727
    %8367 = vmatmul.mubr.bf16.gmra.mrb[0].mxu0 %v7726
    %v8368 = vpop.f32.mrb[0].mxu0
    %v8369 = vadd.f32 %v8326, %v8368
    %v8370 = vpop.f32.mrb[0].mxu0
    %v8371 = vadd.f32 %v8328, %v8370
    %v8372 = vpop.f32.mrb[0].mxu0
    %v8373 = vadd.f32 %v8330, %v8372
    %v8374 = vpop.f32.mrb[0].mxu0
    %v8375 = vadd.f32 %v8332, %v8374
    %8376 = vdwg.mxu0
    %8377 = vmatprep.subr.bf16.mxu0 %v7994
    %8378 = vmatpush1.bf16.msra.mxu0 %v7993
    %8379 = vmatprep.subr.bf16.mxu0 %v7998
    %8380 = vmatpush1.bf16.msra.mxu0 %v7997
    %8381 = vmatprep.subr.bf16.mxu0 %v8002
    %8382 = vmatpush1.bf16.msra.mxu0 %v8001
    %8383 = vmatprep.subr.bf16.mxu0 %v8006
    %8384 = vmatpush1.bf16.msra.mxu0 %v8005
    %8385 = vmatprep.subr.bf16.mxu0 %v8010
    %8386 = vmatpush1.bf16.msra.mxu0 %v8009
    %8387 = vmatprep.subr.bf16.mxu0 %v8014
    %8388 = vmatpush1.bf16.msra.mxu0 %v8013
    %8389 = vmatprep.subr.bf16.mxu0 %v8018
    %8390 = vmatpush1.bf16.msra.mxu0 %v8017
    %8391 = vmatprep.subr.bf16.mxu0 %v8022
    %8392 = vmatpush1.bf16.msra.mxu0 %v8021
    %8393 = vmatprep.subr.bf16.mxu0 %v8026
    %8394 = vmatpush1.bf16.msra.mxu0 %v8025
    %8395 = vmatprep.subr.bf16.mxu0 %v8030
    %8396 = vmatpush1.bf16.msra.mxu0 %v8029
    %8397 = vmatprep.subr.bf16.mxu0 %v8034
    %8398 = vmatpush1.bf16.msra.mxu0 %v8033
    %8399 = vmatprep.subr.bf16.mxu0 %v8038
    %8400 = vmatpush1.bf16.msra.mxu0 %v8037
    %8401 = vmatprep.subr.bf16.mxu0 %v8042
    %8402 = vmatpush1.bf16.msra.mxu0 %v8041
    %8403 = vmatprep.subr.bf16.mxu0 %v8046
    %8404 = vmatpush1.bf16.msra.mxu0 %v8045
    %8405 = vmatprep.subr.bf16.mxu0 %v8050
    %8406 = vmatpush1.bf16.msra.mxu0 %v8049
    %8407 = vmatprep.subr.bf16.mxu0 %v8054
    %8408 = vmatpush1.bf16.msra.mxu0 %v8053
    %8409 = vmatprep.mubr.bf16.mxu0 %v7729
    %8410 = vmatmul.mubr.bf16.gmra.mrb[0].mxu0 %v7728
    %v8411 = vpop.f32.mrb[0].mxu0
    %v8412 = vadd.f32 %v8369, %v8411
    %v8413 = vpop.f32.mrb[0].mxu0
    %v8414 = vadd.f32 %v8371, %v8413
    %v8415 = vpop.f32.mrb[0].mxu0
    %v8416 = vadd.f32 %v8373, %v8415
    %v8417 = vpop.f32.mrb[0].mxu0
    %v8418 = vadd.f32 %v8375, %v8417
    %8419 = vdwg.mxu0
    %8420 = vmatprep.subr.bf16.mxu0 %v8058
    %8421 = vmatpush1.bf16.msra.mxu0 %v8057
    %8422 = vmatprep.subr.bf16.mxu0 %v8062
    %8423 = vmatpush1.bf16.msra.mxu0 %v8061
    %8424 = vmatprep.subr.bf16.mxu0 %v8066
    %8425 = vmatpush1.bf16.msra.mxu0 %v8065
    %8426 = vmatprep.subr.bf16.mxu0 %v8070
    %8427 = vmatpush1.bf16.msra.mxu0 %v8069
    %8428 = vmatprep.subr.bf16.mxu0 %v8074
    %8429 = vmatpush1.bf16.msra.mxu0 %v8073
    %8430 = vmatprep.subr.bf16.mxu0 %v8078
    %8431 = vmatpush1.bf16.msra.mxu0 %v8077
    %8432 = vmatprep.subr.bf16.mxu0 %v8082
    %8433 = vmatpush1.bf16.msra.mxu0 %v8081
    %8434 = vmatprep.subr.bf16.mxu0 %v8086
    %8435 = vmatpush1.bf16.msra.mxu0 %v8085
    %8436 = vmatprep.subr.bf16.mxu0 %v8090
    %8437 = vmatpush1.bf16.msra.mxu0 %v8089
    %8438 = vmatprep.subr.bf16.mxu0 %v8094
    %8439 = vmatpush1.bf16.msra.mxu0 %v8093
    %8440 = vmatprep.subr.bf16.mxu0 %v8098
    %8441 = vmatpush1.bf16.msra.mxu0 %v8097
    %8442 = vmatprep.subr.bf16.mxu0 %v8102
    %8443 = vmatpush1.bf16.msra.mxu0 %v8101
    %8444 = vmatprep.subr.bf16.mxu0 %v8106
    %8445 = vmatpush1.bf16.msra.mxu0 %v8105
    %8446 = vmatprep.subr.bf16.mxu0 %v8110
    %8447 = vmatpush1.bf16.msra.mxu0 %v8109
    %8448 = vmatprep.subr.bf16.mxu0 %v8114
    %8449 = vmatpush1.bf16.msra.mxu0 %v8113
    %8450 = vmatprep.subr.bf16.mxu0 %v8118
    %8451 = vmatpush1.bf16.msra.mxu0 %v8117
    %8452 = vmatprep.mubr.bf16.mxu0 %v7731
    %8453 = vmatmul.mubr.bf16.gmra.mrb[0].mxu0 %v7730
    %v8454 = vpop.f32.mrb[0].mxu0
    %v8455 = vadd.f32 %v8412, %v8454
    %v8456 = vpop.f32.mrb[0].mxu0
    %v8457 = vadd.f32 %v8414, %v8456
    %v8458 = vpop.f32.mrb[0].mxu0
    %v8459 = vadd.f32 %v8416, %v8458
    %v8460 = vpop.f32.mrb[0].mxu0
    %v8461 = vadd.f32 %v8418, %v8460
    %8462 = vdwg.mxu0
    %s8463 = scalar_lea.vmem [#allocation13], 78
    %v8464 = vld [vmem:[%s8463] ss:$2 sm:$0xf]
    %s8465 = scalar_lea.vmem [#allocation13], 79
    %v8466 = vld [vmem:[%s8465] ss:$2 sm:$0xf]
    %v8468 = vlaneseq
    %v8469 = vshrl.u32 %v8468, 7
    %v8470 = vsub.s32 0, %v8469
    %v8471 = vrot.slane %v8464, %v8470
    %v8472 = vlaneseq
    %v8473 = vshrl.u32 %v8472, 7
    %v8474 = vsub.s32 1, %v8473
    %v8475 = vrot.slane %v8464, %v8474
    %v8476 = vlaneseq
    %v8477 = vshrl.u32 %v8476, 7
    %v8478 = vsub.s32 2, %v8477
    %v8479 = vrot.slane %v8464, %v8478
    %v8480 = vlaneseq
    %v8481 = vshrl.u32 %v8480, 7
    %v8482 = vsub.s32 3, %v8481
    %v8483 = vrot.slane %v8464, %v8482
    %v8488 = vmul.f32 %v8283, %v8471
    %v8489 = vmul.f32 %v8285, %v8475
    %v8490 = vmul.f32 %v8455, %v8479
    %v8491 = vmul.f32 %v8457, %v8483
    %v8492 = vmul.f32 %v8287, %v8471
    %v8493 = vmul.f32 %v8289, %v8475
    %v8494 = vmul.f32 %v8459, %v8479
    %v8495 = vmul.f32 %v8461, %v8483
    %v8497 = vlaneseq
    %v8498 = vshrl.u32 %v8497, 7
    %v8499 = vsub.s32 0, %v8498
    %v8500 = vrot.slane %v8466, %v8499
    %v8501 = vlaneseq
    %v8502 = vshrl.u32 %v8501, 7
    %v8503 = vsub.s32 1, %v8502
    %v8504 = vrot.slane %v8466, %v8503
    %v8505 = vlaneseq
    %v8506 = vshrl.u32 %v8505, 7
    %v8507 = vsub.s32 2, %v8506
    %v8508 = vrot.slane %v8466, %v8507
    %v8509 = vlaneseq
    %v8510 = vshrl.u32 %v8509, 7
    %v8511 = vsub.s32 3, %v8510
    %v8512 = vrot.slane %v8466, %v8511
    %v8517 = vadd.f32 %v8488, %v8500
    %v8518 = vadd.f32 %v8489, %v8504
    %v8519 = vadd.f32 %v8490, %v8508
    %v8520 = vadd.f32 %v8491, %v8512
    %v8521 = vadd.f32 %v8492, %v8500
    %v8522 = vadd.f32 %v8493, %v8504
    %v8523 = vadd.f32 %v8494, %v8508
    %v8524 = vadd.f32 %v8495, %v8512
    %v8525 = vmax.f32 %v8517, 0.0
    %v8526 = vmax.f32 %v8518, 0.0
    %v8527 = vmax.f32 %v8519, 0.0
    %v8528 = vmax.f32 %v8520, 0.0
    %v8529 = vmax.f32 %v8521, 0.0
    %v8530 = vmax.f32 %v8522, 0.0
    %v8531 = vmax.f32 %v8523, 0.0
    %v8532 = vmax.f32 %v8524, 0.0
    %v8533 = vpack.c.bf16 %v8529, %v8525
    %v8534 = vpack.c.bf16 %v8530, %v8526
    %v8535 = vpack.c.bf16 %v8531, %v8527
    %v8536 = vpack.c.bf16 %v8532, %v8528
    %s8537 = smul.u32 %s600, 2
    %s8538 = sshll.u32 %s8537, 4
    %8539 = dma.done %s117, %s8538
    %v8540 = vld [vmem:[#allocation9] sm:$0xff]
    %v8541 = vld [vmem:[#allocation9 + $0x8] sm:$0xff]
    %v8542 = vld [vmem:[#allocation9 + $0x10] sm:$0xff]
    %v8543 = vld [vmem:[#allocation9 + $0x18] sm:$0xff]
    %v8544 = vld [vmem:[#allocation9 + $0x20] sm:$0xff]
    %v8545 = vld [vmem:[#allocation9 + $0x28] sm:$0xff]
    %v8546 = vld [vmem:[#allocation9 + $0x30] sm:$0xff]
    %v8547 = vld [vmem:[#allocation9 + $0x38] sm:$0xff]
    %v8548 = vld [vmem:[#allocation9 + $0x40] sm:$0xff]
    %v8549 = vld [vmem:[#allocation9 + $0x48] sm:$0xff]
    %v8550 = vld [vmem:[#allocation9 + $0x50] sm:$0xff]
    %v8551 = vld [vmem:[#allocation9 + $0x58] sm:$0xff]
    %v8552 = vld [vmem:[#allocation9 + $0x60] sm:$0xff]
    %v8553 = vld [vmem:[#allocation9 + $0x68] sm:$0xff]
    %v8554 = vld [vmem:[#allocation9 + $0x70] sm:$0xff]
    %v8555 = vld [vmem:[#allocation9 + $0x78] sm:$0xff]
    %v8556 = vld [vmem:[#allocation9 + $0x80] sm:$0xff]
    %v8557 = vld [vmem:[#allocation9 + $0x88] sm:$0xff]
    %v8558 = vld [vmem:[#allocation9 + $0x90] sm:$0xff]
    %v8559 = vld [vmem:[#allocation9 + $0x98] sm:$0xff]
    %v8560 = vld [vmem:[#allocation9 + $0xa0] sm:$0xff]
    %v8561 = vld [vmem:[#allocation9 + $0xa8] sm:$0xff]
    %v8562 = vld [vmem:[#allocation9 + $0xb0] sm:$0xff]
    %v8563 = vld [vmem:[#allocation9 + $0xb8] sm:$0xff]
    %v8564 = vld [vmem:[#allocation9 + $0xc0] sm:$0xff]
    %v8565 = vld [vmem:[#allocation9 + $0xc8] sm:$0xff]
    %v8566 = vld [vmem:[#allocation9 + $0xd0] sm:$0xff]
    %v8567 = vld [vmem:[#allocation9 + $0xd8] sm:$0xff]
    %v8568 = vld [vmem:[#allocation9 + $0xe0] sm:$0xff]
    %v8569 = vld [vmem:[#allocation9 + $0xe8] sm:$0xff]
    %v8570 = vld [vmem:[#allocation9 + $0xf0] sm:$0xff]
    %v8571 = vld [vmem:[#allocation9 + $0xf8] sm:$0xff]
    %v8572 = vunpack.c.l.s8.bf16 %v8540
    %v8573 = vunpack.c.l.s8.bf16 %v8541
    %v8574 = vunpack.c.h.s8.bf16 %v8540
    %v8575 = vunpack.c.h.s8.bf16 %v8541
    %v8576 = vunpack.c.l.s8.bf16 %v8542
    %v8577 = vunpack.c.l.s8.bf16 %v8543
    %v8578 = vunpack.c.h.s8.bf16 %v8542
    %v8579 = vunpack.c.h.s8.bf16 %v8543
    %v8580 = vunpack.c.l.s8.bf16 %v8544
    %v8581 = vunpack.c.l.s8.bf16 %v8545
    %v8582 = vunpack.c.h.s8.bf16 %v8544
    %v8583 = vunpack.c.h.s8.bf16 %v8545
    %v8584 = vunpack.c.l.s8.bf16 %v8546
    %v8585 = vunpack.c.l.s8.bf16 %v8547
    %v8586 = vunpack.c.h.s8.bf16 %v8546
    %v8587 = vunpack.c.h.s8.bf16 %v8547
    %v8588 = vunpack.c.l.s8.bf16 %v8548
    %v8589 = vunpack.c.l.s8.bf16 %v8549
    %v8590 = vunpack.c.h.s8.bf16 %v8548
    %v8591 = vunpack.c.h.s8.bf16 %v8549
    %v8592 = vunpack.c.l.s8.bf16 %v8550
    %v8593 = vunpack.c.l.s8.bf16 %v8551
    %v8594 = vunpack.c.h.s8.bf16 %v8550
    %v8595 = vunpack.c.h.s8.bf16 %v8551
    %v8596 = vunpack.c.l.s8.bf16 %v8552
    %v8597 = vunpack.c.l.s8.bf16 %v8553
    %v8598 = vunpack.c.h.s8.bf16 %v8552
    %v8599 = vunpack.c.h.s8.bf16 %v8553
    %v8600 = vunpack.c.l.s8.bf16 %v8554
    %v8601 = vunpack.c.l.s8.bf16 %v8555
    %v8602 = vunpack.c.h.s8.bf16 %v8554
    %v8603 = vunpack.c.h.s8.bf16 %v8555
    %v8604 = vunpack.c.l.s8.bf16 %v8556
    %v8605 = vunpack.c.l.s8.bf16 %v8557
    %v8606 = vunpack.c.h.s8.bf16 %v8556
    %v8607 = vunpack.c.h.s8.bf16 %v8557
    %v8608 = vunpack.c.l.s8.bf16 %v8558
    %v8609 = vunpack.c.l.s8.bf16 %v8559
    %v8610 = vunpack.c.h.s8.bf16 %v8558
    %v8611 = vunpack.c.h.s8.bf16 %v8559
    %v8612 = vunpack.c.l.s8.bf16 %v8560
    %v8613 = vunpack.c.l.s8.bf16 %v8561
    %v8614 = vunpack.c.h.s8.bf16 %v8560
    %v8615 = vunpack.c.h.s8.bf16 %v8561
    %v8616 = vunpack.c.l.s8.bf16 %v8562
    %v8617 = vunpack.c.l.s8.bf16 %v8563
    %v8618 = vunpack.c.h.s8.bf16 %v8562
    %v8619 = vunpack.c.h.s8.bf16 %v8563
    %v8620 = vunpack.c.l.s8.bf16 %v8564
    %v8621 = vunpack.c.l.s8.bf16 %v8565
    %v8622 = vunpack.c.h.s8.bf16 %v8564
    %v8623 = vunpack.c.h.s8.bf16 %v8565
    %v8624 = vunpack.c.l.s8.bf16 %v8566
    %v8625 = vunpack.c.l.s8.bf16 %v8567
    %v8626 = vunpack.c.h.s8.bf16 %v8566
    %v8627 = vunpack.c.h.s8.bf16 %v8567
    %v8628 = vunpack.c.l.s8.bf16 %v8568
    %v8629 = vunpack.c.l.s8.bf16 %v8569
    %v8630 = vunpack.c.h.s8.bf16 %v8568
    %v8631 = vunpack.c.h.s8.bf16 %v8569
    %v8632 = vunpack.c.l.s8.bf16 %v8570
    %v8633 = vunpack.c.l.s8.bf16 %v8571
    %v8634 = vunpack.c.h.s8.bf16 %v8570
    %v8635 = vunpack.c.h.s8.bf16 %v8571
    %8636 = vmatprep.subr.bf16.mxu0 %v8573
    %8637 = vmatpush1.bf16.msra.mxu0 %v8572
    %8638 = vmatprep.subr.bf16.mxu0 %v8575
    %8639 = vmatpush1.bf16.msra.mxu0 %v8574
    %8640 = vmatprep.subr.bf16.mxu0 %v8577
    %8641 = vmatpush1.bf16.msra.mxu0 %v8576
    %8642 = vmatprep.subr.bf16.mxu0 %v8579
    %8643 = vmatpush1.bf16.msra.mxu0 %v8578
    %8644 = vmatprep.subr.bf16.mxu0 %v8581
    %8645 = vmatpush1.bf16.msra.mxu0 %v8580
    %8646 = vmatprep.subr.bf16.mxu0 %v8583
    %8647 = vmatpush1.bf16.msra.mxu0 %v8582
    %8648 = vmatprep.subr.bf16.mxu0 %v8585
    %8649 = vmatpush1.bf16.msra.mxu0 %v8584
    %8650 = vmatprep.subr.bf16.mxu0 %v8587
    %8651 = vmatpush1.bf16.msra.mxu0 %v8586
    %8652 = vmatprep.subr.bf16.mxu0 %v8589
    %8653 = vmatpush1.bf16.msra.mxu0 %v8588
    %8654 = vmatprep.subr.bf16.mxu0 %v8591
    %8655 = vmatpush1.bf16.msra.mxu0 %v8590
    %8656 = vmatprep.subr.bf16.mxu0 %v8593
    %8657 = vmatpush1.bf16.msra.mxu0 %v8592
    %8658 = vmatprep.subr.bf16.mxu0 %v8595
    %8659 = vmatpush1.bf16.msra.mxu0 %v8594
    %8660 = vmatprep.subr.bf16.mxu0 %v8597
    %8661 = vmatpush1.bf16.msra.mxu0 %v8596
    %8662 = vmatprep.subr.bf16.mxu0 %v8599
    %8663 = vmatpush1.bf16.msra.mxu0 %v8598
    %8664 = vmatprep.subr.bf16.mxu0 %v8601
    %8665 = vmatpush1.bf16.msra.mxu0 %v8600
    %8666 = vmatprep.subr.bf16.mxu0 %v8603
    %8667 = vmatpush1.bf16.msra.mxu0 %v8602
    %8668 = vmatprep.mubr.bf16.mxu0 %v8534
    %8669 = vmatmul.mubr.bf16.gmra.mrb[0].mxu0 %v8533
    %v8670 = vpop.f32.mrb[0].mxu0
    %v8671 = vadd.f32 0.0, %v8670
    %v8672 = vpop.f32.mrb[0].mxu0
    %v8673 = vadd.f32 0.0, %v8672
    %v8674 = vpop.f32.mrb[0].mxu0
    %v8675 = vadd.f32 0.0, %v8674
    %v8676 = vpop.f32.mrb[0].mxu0
    %v8677 = vadd.f32 0.0, %v8676
    %8678 = vdwg.mxu0
    %8679 = vmatprep.subr.bf16.mxu0 %v8605
    %8680 = vmatpush1.bf16.msra.mxu0 %v8604
    %8681 = vmatprep.subr.bf16.mxu0 %v8607
    %8682 = vmatpush1.bf16.msra.mxu0 %v8606
    %8683 = vmatprep.subr.bf16.mxu0 %v8609
    %8684 = vmatpush1.bf16.msra.mxu0 %v8608
    %8685 = vmatprep.subr.bf16.mxu0 %v8611
    %8686 = vmatpush1.bf16.msra.mxu0 %v8610
    %8687 = vmatprep.subr.bf16.mxu0 %v8613
    %8688 = vmatpush1.bf16.msra.mxu0 %v8612
    %8689 = vmatprep.subr.bf16.mxu0 %v8615
    %8690 = vmatpush1.bf16.msra.mxu0 %v8614
    %8691 = vmatprep.subr.bf16.mxu0 %v8617
    %8692 = vmatpush1.bf16.msra.mxu0 %v8616
    %8693 = vmatprep.subr.bf16.mxu0 %v8619
    %8694 = vmatpush1.bf16.msra.mxu0 %v8618
    %8695 = vmatprep.subr.bf16.mxu0 %v8621
    %8696 = vmatpush1.bf16.msra.mxu0 %v8620
    %8697 = vmatprep.subr.bf16.mxu0 %v8623
    %8698 = vmatpush1.bf16.msra.mxu0 %v8622
    %8699 = vmatprep.subr.bf16.mxu0 %v8625
    %8700 = vmatpush1.bf16.msra.mxu0 %v8624
    %8701 = vmatprep.subr.bf16.mxu0 %v8627
    %8702 = vmatpush1.bf16.msra.mxu0 %v8626
    %8703 = vmatprep.subr.bf16.mxu0 %v8629
    %8704 = vmatpush1.bf16.msra.mxu0 %v8628
    %8705 = vmatprep.subr.bf16.mxu0 %v8631
    %8706 = vmatpush1.bf16.msra.mxu0 %v8630
    %8707 = vmatprep.subr.bf16.mxu0 %v8633
    %8708 = vmatpush1.bf16.msra.mxu0 %v8632
    %8709 = vmatprep.subr.bf16.mxu0 %v8635
    %8710 = vmatpush1.bf16.msra.mxu0 %v8634
    %8711 = vmatprep.mubr.bf16.mxu0 %v8536
    %8712 = vmatmul.mubr.bf16.gmra.mrb[0].mxu0 %v8535
    %v8713 = vpop.f32.mrb[0].mxu0
    %v8714 = vadd.f32 %v8671, %v8713
    %v8715 = vpop.f32.mrb[0].mxu0
    %v8716 = vadd.f32 %v8673, %v8715
    %v8717 = vpop.f32.mrb[0].mxu0
    %v8718 = vadd.f32 %v8675, %v8717
    %v8719 = vpop.f32.mrb[0].mxu0
    %v8720 = vadd.f32 %v8677, %v8719
    %8721 = vdwg.mxu0
    %s8722 = scalar_lea.vmem [#allocation13], 86
    %v8723 = vld [vmem:[%s8722] ss:$2 sm:$0x3]
    %s8724 = scalar_lea.vmem [#allocation13], 87
    %v8725 = vld [vmem:[%s8724] ss:$2 sm:$0x3]
    %v8727 = vlaneseq
    %v8728 = vshrl.u32 %v8727, 7
    %v8729 = vsub.s32 0, %v8728
    %v8730 = vrot.slane %v8723, %v8729
    %v8731 = vlaneseq
    %v8732 = vshrl.u32 %v8731, 7
    %v8733 = vsub.s32 1, %v8732
    %v8734 = vrot.slane %v8723, %v8733
    %v8737 = vmul.f32 %v8714, %v8730
    %v8738 = vmul.f32 %v8716, %v8734
    %v8739 = vmul.f32 %v8718, %v8730
    %v8740 = vmul.f32 %v8720, %v8734
    %v8742 = vlaneseq
    %v8743 = vshrl.u32 %v8742, 7
    %v8744 = vsub.s32 0, %v8743
    %v8745 = vrot.slane %v8725, %v8744
    %v8746 = vlaneseq
    %v8747 = vshrl.u32 %v8746, 7
    %v8748 = vsub.s32 1, %v8747
    %v8749 = vrot.slane %v8725, %v8748
    %v8752 = vadd.f32 %v8737, %v8745
    %v8753 = vadd.f32 %v8738, %v8749
    %v8754 = vadd.f32 %v8739, %v8745
    %v8755 = vadd.f32 %v8740, %v8749
    %v8756 = vmax.f32 %v8752, 0.0
    %v8757 = vmax.f32 %v8753, 0.0
    %v8758 = vmax.f32 %v8754, 0.0
    %v8759 = vmax.f32 %v8755, 0.0
    %v8760 = vpack.c.bf16 %v8758, %v8756
    %v8761 = vpack.c.bf16 %v8759, %v8757
    %s8762 = smul.u32 %s340, 1
    %s8763 = sshll.u32 %s8762, 4
    %8764 = dma.done %s129, %s8763
    %v8765 = vld [vmem:[#allocation10] sm:$0xff]
    %v8766 = vld [vmem:[#allocation10 + $0x8] sm:$0xff]
    %v8767 = vld [vmem:[#allocation10 + $0x10] sm:$0xff]
    %v8768 = vld [vmem:[#allocation10 + $0x18] sm:$0xff]
    %v8769 = vld [vmem:[#allocation10 + $0x20] sm:$0xff]
    %v8770 = vld [vmem:[#allocation10 + $0x28] sm:$0xff]
    %v8771 = vld [vmem:[#allocation10 + $0x30] sm:$0xff]
    %v8772 = vld [vmem:[#allocation10 + $0x38] sm:$0xff]
    %v8773 = vunpack.c.l.s8.bf16 %v8765
    %v8774 = vunpack.c.h.s8.bf16 %v8765
    %v8775 = vunpack.c.l.s8.bf16 %v8766
    %v8776 = vunpack.c.h.s8.bf16 %v8766
    %v8777 = vunpack.c.l.s8.bf16 %v8767
    %v8778 = vunpack.c.h.s8.bf16 %v8767
    %v8779 = vunpack.c.l.s8.bf16 %v8768
    %v8780 = vunpack.c.h.s8.bf16 %v8768
    %v8781 = vunpack.c.l.s8.bf16 %v8769
    %v8782 = vunpack.c.h.s8.bf16 %v8769
    %v8783 = vunpack.c.l.s8.bf16 %v8770
    %v8784 = vunpack.c.h.s8.bf16 %v8770
    %v8785 = vunpack.c.l.s8.bf16 %v8771
    %v8786 = vunpack.c.h.s8.bf16 %v8771
    %v8787 = vunpack.c.l.s8.bf16 %v8772
    %v8788 = vunpack.c.h.s8.bf16 %v8772
    %8789 = vmatprep.subr.bf16.mxu0 0
    %8790 = vmatpush1.bf16.msra.mxu0 %v8773
    %8791 = vmatprep.subr.bf16.mxu0 0
    %8792 = vmatpush1.bf16.msra.mxu0 %v8774
    %8793 = vmatprep.subr.bf16.mxu0 0
    %8794 = vmatpush1.bf16.msra.mxu0 %v8775
    %8795 = vmatprep.subr.bf16.mxu0 0
    %8796 = vmatpush1.bf16.msra.mxu0 %v8776
    %8797 = vmatprep.subr.bf16.mxu0 0
    %8798 = vmatpush1.bf16.msra.mxu0 %v8777
    %8799 = vmatprep.subr.bf16.mxu0 0
    %8800 = vmatpush1.bf16.msra.mxu0 %v8778
    %8801 = vmatprep.subr.bf16.mxu0 0
    %8802 = vmatpush1.bf16.msra.mxu0 %v8779
    %8803 = vmatprep.subr.bf16.mxu0 0
    %8804 = vmatpush1.bf16.msra.mxu0 %v8780
    %8805 = vmatprep.subr.bf16.mxu0 0
    %8806 = vmatpush1.bf16.msra.mxu0 %v8781
    %8807 = vmatprep.subr.bf16.mxu0 0
    %8808 = vmatpush1.bf16.msra.mxu0 %v8782
    %8809 = vmatprep.subr.bf16.mxu0 0
    %8810 = vmatpush1.bf16.msra.mxu0 %v8783
    %8811 = vmatprep.subr.bf16.mxu0 0
    %8812 = vmatpush1.bf16.msra.mxu0 %v8784
    %8813 = vmatprep.subr.bf16.mxu0 0
    %8814 = vmatpush1.bf16.msra.mxu0 %v8785
    %8815 = vmatprep.subr.bf16.mxu0 0
    %8816 = vmatpush1.bf16.msra.mxu0 %v8786
    %8817 = vmatprep.subr.bf16.mxu0 0
    %8818 = vmatpush1.bf16.msra.mxu0 %v8787
    %8819 = vmatprep.subr.bf16.mxu0 0
    %8820 = vmatpush1.bf16.msra.mxu0 %v8788
    %8821 = vmatprep.mubr.bf16.mxu0 %v8761
    %8822 = vmatmul.mubr.bf16.gmra.mrb[0].mxu0 %v8760
    %v8823 = vpop.f32.mrb[0].mxu0
    %v8824 = vadd.f32 0.0, %v8823
    %v8825 = vpop.f32.mrb[0].mxu0
    %v8826 = vpop.f32.mrb[0].mxu0
    %v8827 = vadd.f32 0.0, %v8826
    %v8828 = vpop.f32.mrb[0].mxu0
    %8829 = vdwg.mxu0
    %v8830 = vld [vmem:[#allocation13 + $0x5a] sm:$0x1]
    %v8831 = vld [vmem:[#allocation13 + $0x5b] sm:$0x1]
    %v8832 = vlaneseq
    %v8833 = vshrl.u32 %v8832, 7
    %v8834 = vsub.s32 0, %v8833
    %v8835 = vrot.slane %v8830, %v8834
    %v8836 = vmul.f32 %v8824, %v8835
    %v8837 = vmul.f32 %v8827, %v8835
    %v8838 = vlaneseq
    %v8839 = vshrl.u32 %v8838, 7
    %v8840 = vsub.s32 0, %v8839
    %v8841 = vrot.slane %v8831, %v8840
    %v8842 = vadd.f32 %v8836, %v8841
    %v8843 = vadd.f32 %v8837, %v8841
    %v8844 = vmax.f32 %v8842, 0.0
    %v8845 = vmax.f32 %v8843, 0.0
    %v8846 = vpack.c.bf16 %v8845, %v8844
    %s8847 = sshll.u32 %s157, 4
    %8848 = dma.done %s141, %s8847
    %v8849 = vld [vmem:[#allocation11] sm:$0xff]
    %v8850 = vld [vmem:[#allocation11 + $0x8] sm:$0xff]
    %v8851 = vld [vmem:[#allocation11 + $0x10] sm:$0xff]
    %v8852 = vld [vmem:[#allocation11 + $0x18] sm:$0xff]
    %v8853 = vunpack.c.l.s8.bf16 %v8849
    %v8854 = vunpack.c.h.s8.bf16 %v8849
    %v8855 = vunpack.c.l.s8.bf16 %v8850
    %v8856 = vunpack.c.h.s8.bf16 %v8850
    %v8857 = vunpack.c.l.s8.bf16 %v8851
    %v8858 = vunpack.c.h.s8.bf16 %v8851
    %v8859 = vunpack.c.l.s8.bf16 %v8852
    %v8860 = vunpack.c.h.s8.bf16 %v8852
    %8861 = vmatprep.subr.bf16.mxu0 0
    %8862 = vmatpush1.bf16.msra.mxu0 %v8853
    %8863 = vmatprep.subr.bf16.mxu0 0
    %8864 = vmatpush1.bf16.msra.mxu0 %v8854
    %8865 = vmatprep.subr.bf16.mxu0 0
    %8866 = vmatpush1.bf16.msra.mxu0 %v8855
    %8867 = vmatprep.subr.bf16.mxu0 0
    %8868 = vmatpush1.bf16.msra.mxu0 %v8856
    %8869 = vmatprep.subr.bf16.mxu0 0
    %8870 = vmatpush1.bf16.msra.mxu0 %v8857
    %8871 = vmatprep.subr.bf16.mxu0 0
    %8872 = vmatpush1.bf16.msra.mxu0 %v8858
    %8873 = vmatprep.subr.bf16.mxu0 0
    %8874 = vmatpush1.bf16.msra.mxu0 %v8859
    %8875 = vmatprep.subr.bf16.mxu0 0
    %8876 = vmatpush1.bf16.msra.mxu0 %v8860
    %8877 = vmatprep.subr.bf16.mxu0 0
    %8878 = vmatpush1.bf16.msra.mxu0 0
    %8879 = vmatprep.subr.bf16.mxu0 0
    %8880 = vmatpush1.bf16.msra.mxu0 0
    %8881 = vmatprep.subr.bf16.mxu0 0
    %8882 = vmatpush1.bf16.msra.mxu0 0
    %8883 = vmatprep.subr.bf16.mxu0 0
    %8884 = vmatpush1.bf16.msra.mxu0 0
    %8885 = vmatprep.subr.bf16.mxu0 0
    %8886 = vmatpush1.bf16.msra.mxu0 0
    %8887 = vmatprep.subr.bf16.mxu0 0
    %8888 = vmatpush1.bf16.msra.mxu0 0
    %8889 = vmatprep.subr.bf16.mxu0 0
    %8890 = vmatpush1.bf16.msra.mxu0 0
    %8891 = vmatprep.subr.bf16.mxu0 0
    %8892 = vmatpush1.bf16.msra.mxu0 0
    %8893 = vmatprep.mubr.bf16.mxu0 0
    %8894 = vmatmul.mubr.bf16.gmra.mrb[0].mxu0 %v8846
    %v8895 = vpop.f32.mrb[0].mxu0
    %v8896 = vadd.f32 0.0, %v8895
    %v8897 = vpop.f32.mrb[0].mxu0
    %v8898 = vpop.f32.mrb[0].mxu0
    %v8899 = vadd.f32 0.0, %v8898
    %v8900 = vpop.f32.mrb[0].mxu0
    %8901 = vdwg.mxu0
    %v8902 = vld [vmem:[#allocation13 + $0x5c] sm:$0x1]
    %v8903 = vld [vmem:[#allocation13 + $0x5d] sm:$0x1]
    %v8904 = vlaneseq
    %v8905 = vshrl.u32 %v8904, 7
    %v8906 = vsub.s32 0, %v8905
    %v8907 = vrot.slane %v8902, %v8906
    %v8908 = vmul.f32 %v8896, %v8907
    %v8909 = vmul.f32 %v8899, %v8907
    %v8910 = vlaneseq
    %v8911 = vshrl.u32 %v8910, 7
    %v8912 = vsub.s32 0, %v8911
    %v8913 = vrot.slane %v8903, %v8912
    %v8914 = vadd.f32 %v8908, %v8913
    %v8915 = vadd.f32 %v8909, %v8913
    %8916 = vst [vmem:[%s12] sm:$0xff] %v8914
    %8917 = vst [vmem:[%s12 + $0x8] sm:$0xff] %v8915
    // Predicated region
    $region54: #{my_model_linear_forward.1} parent=1 // pred_check
      _
    $region55: #{my_model_linear_forward.1} parent=1 // pred_check_branch
      %8919 = sbr.rel (0) target = $region57
    $region56: #{my_model_linear_forward.1} parent=1 // pred_region
      _
    $region57: #{my_model_linear_forward.1} parent=1 // pred_fallthru
      _
    // Predicated region
    $region58: #{my_model_linear_forward.1} parent=1 // pred_check
      _
    $region59: #{my_model_linear_forward.1} parent=1 // pred_check_branch
      %8921 = sbr.rel (0) target = $region61
    $region60: #{my_model_linear_forward.1} parent=1 // pred_region
      _
    $region61: #{my_model_linear_forward.1} parent=1 // pred_fallthru
      _
    %8922 = vsyncpa [#allocation14], 1
  %8923 = vsyncmov [#allocation12]
  %s8924 = vpop.sfrf %8923
  %p8925 = scmp.eq.s32.totalorder %s8924, 0
  %p8926 = pneg %p8925
  %8928 = shalt.err (%p8926)
  %s8929 = scalar_lea.sflag [#allocation12], 1
  %8930 = vsyncmov %s8929
  %s8931 = vpop.sfrf %8930
  %p8932 = scmp.eq.s32.totalorder %s8931, 0
  %p8933 = pneg %p8932
  %8935 = shalt.err (%p8933)
  %s8936 = scalar_lea.sflag [#allocation12], 2
  %8937 = vsyncmov %s8936
  %s8938 = vpop.sfrf %8937
  %p8939 = scmp.eq.s32.totalorder %s8938, 0
  %p8940 = pneg %p8939
  %8942 = shalt.err (%p8940)
  %s8943 = scalar_lea.sflag [#allocation12], 3
  %8944 = vsyncmov %s8943
  %s8945 = vpop.sfrf %8944
  %p8946 = scmp.eq.s32.totalorder %s8945, 0
  %p8947 = pneg %p8946
  %8949 = shalt.err (%p8947)
  %s8950 = scalar_lea.sflag [#allocation12], 4
  %8951 = vsyncmov %s8950
  %s8952 = vpop.sfrf %8951
  %p8953 = scmp.eq.s32.totalorder %s8952, 0
  %p8954 = pneg %p8953
  %8956 = shalt.err (%p8954)
  %s8957 = scalar_lea.sflag [#allocation12], 5
  %8958 = vsyncmov %s8957
  %s8959 = vpop.sfrf %8958
  %p8960 = scmp.eq.s32.totalorder %s8959, 0
  %p8961 = pneg %p8960
  %8963 = shalt.err (%p8961)
  %s8964 = scalar_lea.sflag [#allocation12], 6
  %8965 = vsyncmov %s8964
  %s8966 = vpop.sfrf %8965
  %p8967 = scmp.eq.s32.totalorder %s8966, 0
  %p8968 = pneg %p8967
  %8970 = shalt.err (%p8968)
  %s8971 = scalar_lea.sflag [#allocation12], 7
  %8972 = vsyncmov %s8971
  %s8973 = vpop.sfrf %8972
  %p8974 = scmp.eq.s32.totalorder %s8973, 0
  %p8975 = pneg %p8974
  %8977 = shalt.err (%p8975)
  %s8978 = scalar_lea.sflag [#allocation12], 8
  %8979 = vsyncmov %s8978
  %s8980 = vpop.sfrf %8979
  %p8981 = scmp.eq.s32.totalorder %s8980, 0
  %p8982 = pneg %p8981
  %8984 = shalt.err (%p8982)
  %s8985 = scalar_lea.sflag [#allocation12], 9
  %8986 = vsyncmov %s8985
  %s8987 = vpop.sfrf %8986
  %p8988 = scmp.eq.s32.totalorder %s8987, 0
  %p8989 = pneg %p8988
  %8991 = shalt.err (%p8989)

</llo_original>
